<compile_context>
chip_gen: v7x
topology: tpu7x:2x2x1
jax: 0.10.0
libtpu: 0.0.40
codegen_flags: <defaults>
</compile_context>

<pallas_src>
import functools
import math

import numpy as np
import jax
import jax.numpy as jnp
from jax import lax
from jax.experimental import pallas as pl
from jax.experimental.pallas import tpu as pltpu


# ----------------------------------------------------------------------------
# Pallas kernel body: whole L-step decode loop per batch block.
# ----------------------------------------------------------------------------
def pdecoder_kernel(emb_ref, dec_ref, h0_ref, c0_ref, ctx_ref,
                    w_gates_ref, b_gates_ref, w_out_ref, b_out_ref,
                    w_in_ref, b_in_ref, w_ctx_ref, b_ctx_ref, v_ref,
                    outputs_ref, pointers_ref, hfin_ref, cfin_ref,
                    *, L, E, H):
    Bb = dec_ref.shape[0]                       # batch rows in this grid block

    emb = emb_ref[...]                          # (Bb, L, E)
    x = dec_ref[...]                            # (Bb, E)
    h = h0_ref[...]                             # (Bb, H)
    c = c0_ref[...]                             # (Bb, H)

    w_gates = w_gates_ref[...]                  # (E+H, 4H)  = [w_ih; w_hh]
    w_out = w_out_ref[...]                      # (2H, H)
    w_in = w_in_ref[...]                        # (H, H)
    v_col = v_ref[...]                          # (H, 1)

    # Loop-invariant broadcasts hoisted out of the unrolled step loop
    # (JAX does not CSE broadcast_in_dim across the unroll).
    b_gates = jnp.broadcast_to(b_gates_ref[...], (Bb, 4 * H))
    b_in = jnp.broadcast_to(b_in_ref[...], (Bb, H))
    b_out = jnp.broadcast_to(b_out_ref[...], (Bb, H))

    # Conv1d(kernel=1) projection of the context — shared across decode steps.
    ctx_proj = (jnp.dot(ctx_ref[...].reshape(Bb * L, H), w_ctx_ref[...],
                        preferred_element_type=jnp.float32)
                .reshape(Bb, L, H) + b_ctx_ref[...])            # (Bb, L, H)

    mask = jnp.ones((Bb, L), jnp.float32)
    iota_l = lax.broadcasted_iota(jnp.int32, (Bb, L), 1)

    # L is small & static -> unrolled.
    # TODO(synk): switch to lax.fori_loop with per-step dynamic stores if L grows past ~32.
    for step in range(L):
        # --- LSTM cell: single fused gate matmul (gate order: input, forget, cell, out) ---
        xh = jnp.concatenate([x, h], axis=1)                    # (Bb, E+H)
        gates = jnp.dot(xh, w_gates,
                        preferred_element_type=jnp.float32) + b_gates
        i_g = jax.nn.sigmoid(gates[:, 0 * H:1 * H])
        f_g = jax.nn.sigmoid(gates[:, 1 * H:2 * H])
        g_g = jnp.tanh(gates[:, 2 * H:3 * H])
        o_g = jax.nn.sigmoid(gates[:, 3 * H:4 * H])
        c = f_g * c + i_g * g_g
        h_lstm = o_g * jnp.tanh(c)

        # --- pointer attention (score reduction over H done on the MXU) ---
        inp_proj = jnp.dot(h_lstm, w_in,
                           preferred_element_type=jnp.float32) + b_in   # (Bb, H)
        t = jnp.tanh(inp_proj[:, None, :] + ctx_proj)                   # (Bb, L, H)
        att = jnp.dot(t.reshape(Bb * L, H), v_col,
                      preferred_element_type=jnp.float32).reshape(Bb, L)
        att = jnp.where(mask == 0.0, -1e30, att)                # finite "-inf"
        att_max = jnp.max(att, axis=1, keepdims=True)
        e = jnp.exp(att - att_max)
        alpha = e / jnp.sum(e, axis=1, keepdims=True)           # (Bb, L)

        # context mixing as a batched matvec on the MXU
        hidden_state = jnp.einsum('bql,blh->bqh', alpha[:, None, :], ctx_proj,
                                  preferred_element_type=jnp.float32)[:, 0, :]  # (Bb, H)

        # --- fused hidden_out: one (Bb, 2H) @ (2H, H) matmul ---
        ho_in = jnp.concatenate([hidden_state, h_lstm], axis=1)          # (Bb, 2H)
        h = jnp.tanh(jnp.dot(ho_in, w_out,
                             preferred_element_type=jnp.float32) + b_out)

        # --- pointer selection (first occurrence of the max masked prob) ---
        masked_outs = alpha * mask
        mx = jnp.max(masked_outs, axis=1, keepdims=True)
        idx = jnp.min(jnp.where(masked_outs == mx, iota_l, L),
                      axis=1, keepdims=True)                     # (Bb, 1) int32
        one_hot = (iota_l == idx).astype(jnp.float32)
        mask = mask * (1.0 - one_hot)

        # re-embedding gather as a batched matvec on the MXU
        x = jnp.einsum('bql,ble->bqe', one_hot[:, None, :], emb,
                       preferred_element_type=jnp.float32)[:, 0, :]      # (Bb, E)

        # per-step stores: no stack/concat epilogue, short live ranges
        outputs_ref[:, step, :] = alpha
        pointers_ref[:, step:step + 1] = idx

    hfin_ref[...] = h
    cfin_ref[...] = c


# ----------------------------------------------------------------------------
# Wrapper: weight fusion (once), parallel batch grid, BlockSpecs.
# ----------------------------------------------------------------------------
def pdecoder_forward(emb, dec, h0, c0, ctx, params, batch_block=None):
    B, L, E = emb.shape
    H = h0.shape[1]

    # Batch block: whole batch for tiny B (keeps vreg occupancy up); blocks of 8
    # sublane-rows for larger batches so the grid shards across TCs (v7x) and
    # bounds VMEM residency.
    if batch_block is None:
        batch_block = B if (B <= 8 or B % 8 != 0) else 8
    assert B % batch_block == 0, "batch must be divisible by batch_block"
    nb = B // batch_block

    # One-time weight fusion (outside the kernel / step loop).
    w_gates = jnp.concatenate([params['w_ih'], params['w_hh']], axis=0)   # (E+H, 4H)
    b_gates = params['b_ih'] + params['b_hh']                             # (1, 4H)
    v_col = params['v'].T                                                 # (H, 1)

    kernel = functools.partial(pdecoder_kernel, L=L, E=E, H=H)

    batch3 = lambda shape: pl.BlockSpec(shape, lambda b: (b, 0, 0))
    batch2 = lambda shape: pl.BlockSpec(shape, lambda b: (b, 0))
    const2 = lambda shape: pl.BlockSpec(shape, lambda b: (0, 0))   # weights stay resident

    in_specs = [
        batch3((batch_block, L, E)),       # embedded_inputs
        batch2((batch_block, E)),          # decoder_input
        batch2((batch_block, H)),          # h0
        batch2((batch_block, H)),          # c0
        batch3((batch_block, L, H)),       # context
        const2((E + H, 4 * H)),            # fused gate weight
        const2((1, 4 * H)),                # fused gate bias
        const2((2 * H, H)),                # hidden_out weight
        const2((1, H)),                    # hidden_out bias
        const2((H, H)),                    # input_linear weight
        const2((1, H)),                    # input_linear bias
        const2((H, H)),                    # context_linear (1x1 conv) weight
        const2((1, H)),                    # context_linear bias
        const2((H, 1)),                    # attention vector V (column)
    ]
    out_specs = (
        batch3((batch_block, L, L)),       # outputs (alphas)
        batch2((batch_block, L)),          # pointers
        batch2((batch_block, H)),          # final h
        batch2((batch_block, H)),          # final c
    )
    out_shape = (jax.ShapeDtypeStruct((B, L, L), jnp.float32),
                 jax.ShapeDtypeStruct((B, L), jnp.int32),
                 jax.ShapeDtypeStruct((B, H), jnp.float32),
                 jax.ShapeDtypeStruct((B, H), jnp.float32))

    return pl.pallas_call(
        kernel,
        out_shape=out_shape,
        grid=(nb,),
        in_specs=in_specs,
        out_specs=out_specs,
        compiler_params=pltpu.CompilerParams(
            dimension_semantics=("parallel",)),     # batch blocks are independent
    )(emb, dec, h0, c0, ctx,
      w_gates, b_gates, params['w_out'], params['b_out'],
      params['w_in'], params['b_in'], params['w_ctx'], params['b_ctx'], v_col)


# ----------------------------------------------------------------------------
# Deterministic parameter init (PyTorch-Linear-style uniform fan-in bounds).
# Weights are stored pre-transposed so the kernel does `x @ W`.
# ----------------------------------------------------------------------------
def make_params(key, E, H):
    ks = jax.random.split(key, 11)
    u = lambda k, shape, b: jax.random.uniform(k, shape, jnp.float32, -b, b)
    return {
        'w_ih':  u(ks[0], (E, 4 * H), 1.0 / math.sqrt(E)),
        'b_ih':  u(ks[1], (1, 4 * H), 1.0 / math.sqrt(E)),
        'w_hh':  u(ks[2], (H, 4 * H), 1.0 / math.sqrt(H)),
        'b_hh':  u(ks[3], (1, 4 * H), 1.0 / math.sqrt(H)),
        'w_out': u(ks[4], (2 * H, H), 1.0 / math.sqrt(2 * H)),
        'b_out': u(ks[5], (1, H),     1.0 / math.sqrt(2 * H)),
        'w_in':  u(ks[6], (H, H),     1.0 / math.sqrt(H)),
        'b_in':  u(ks[7], (1, H),     1.0 / math.sqrt(H)),
        'w_ctx': u(ks[8], (H, H),     1.0 / math.sqrt(H)),   # Conv1d(1x1) weight^T
        'b_ctx': u(ks[9], (1, H),     1.0 / math.sqrt(H)),
        'v':     u(ks[10], (1, H),    1.0),                  # nn.init.uniform_(-1, 1)
    }


# Pure-JAX reference (identical math & op order, no Pallas) for correctness checks.
def pdecoder_ref(emb, dec, h0, c0, ctx, p):
    B, L, E = emb.shape
    H = h0.shape[1]
    w_gates = jnp.concatenate([p['w_ih'], p['w_hh']], axis=0)
    b_gates = p['b_ih'] + p['b_hh']
    v_col = p['v'].T
    ctx_proj = (jnp.dot(ctx.reshape(B * L, H), p['w_ctx'],
                        preferred_element_type=jnp.float32)
                .reshape(B, L, H) + p['b_ctx'])
    mask = jnp.ones((B, L), jnp.float32)
    iota_l = lax.broadcasted_iota(jnp.int32, (B, L), 1)
    x, h, c = dec, h0, c0
    alphas, ptrs = [], []
    for _ in range(L):
        xh = jnp.concatenate([x, h], axis=1)
        gates = jnp.dot(xh, w_gates, preferred_element_type=jnp.float32) + b_gates
        i_g = jax.nn.sigmoid(gates[:, 0 * H:1 * H])
        f_g = jax.nn.sigmoid(gates[:, 1 * H:2 * H])
        g_g = jnp.tanh(gates[:, 2 * H:3 * H])
        o_g = jax.nn.sigmoid(gates[:, 3 * H:4 * H])
        c = f_g * c + i_g * g_g
        h_lstm = o_g * jnp.tanh(c)
        inp_proj = jnp.dot(h_lstm, p['w_in'],
                           preferred_element_type=jnp.float32) + p['b_in']
        t = jnp.tanh(inp_proj[:, None, :] + ctx_proj)
        att = jnp.dot(t.reshape(B * L, H), v_col,
                      preferred_element_type=jnp.float32).reshape(B, L)
        att = jnp.where(mask == 0.0, -1e30, att)
        att_max = jnp.max(att, axis=1, keepdims=True)
        e = jnp.exp(att - att_max)
        alpha = e / jnp.sum(e, axis=1, keepdims=True)
        hidden_state = jnp.einsum('bql,blh->bqh', alpha[:, None, :], ctx_proj,
                                  preferred_element_type=jnp.float32)[:, 0, :]
        ho_in = jnp.concatenate([hidden_state, h_lstm], axis=1)
        h = jnp.tanh(jnp.dot(ho_in, p['w_out'],
                             preferred_element_type=jnp.float32) + p['b_out'])
        masked_outs = alpha * mask
        mx = jnp.max(masked_outs, axis=1, keepdims=True)
        idx = jnp.min(jnp.where(masked_outs == mx, iota_l, L),
                      axis=1, keepdims=True)
        one_hot = (iota_l == idx).astype(jnp.float32)
        mask = mask * (1.0 - one_hot)
        x = jnp.einsum('bql,ble->bqe', one_hot[:, None, :], emb,
                       preferred_element_type=jnp.float32)[:, 0, :]
        alphas.append(alpha)
        ptrs.append(idx)
    return (jnp.stack(alphas, axis=1), jnp.concatenate(ptrs, axis=1), h, c)


if __name__ == "__main__":
    B, L, E, H = 2, 8, 16, 32
    key = jax.random.PRNGKey(0)
    k1, k2, k3, k4, k5, kp, k6 = jax.random.split(key, 7)
    emb = jax.random.normal(k1, (B, L, E), jnp.float32)    # embedded_inputs
    dec = jax.random.normal(k2, (B, E), jnp.float32)       # decoder_input
    h0 = jax.random.normal(k3, (B, H), jnp.float32)
    c0 = jax.random.normal(k4, (B, H), jnp.float32)
    ctx = jax.random.normal(k5, (B, L, H), jnp.float32)    # context
    params = make_params(kp, E, H)

    outs, ptrs, hf, cf = pdecoder_forward(emb, dec, h0, c0, ctx, params)
    jax.block_until_ready((outs, ptrs, hf, cf))

    r_outs, r_ptrs, r_hf, r_cf = pdecoder_ref(emb, dec, h0, c0, ctx, params)
    np.testing.assert_allclose(np.asarray(outs), np.asarray(r_outs), rtol=1e-3, atol=1e-3)
    np.testing.assert_array_equal(np.asarray(ptrs), np.asarray(r_ptrs))
    np.testing.assert_allclose(np.asarray(hf), np.asarray(r_hf), rtol=1e-3, atol=1e-3)
    np.testing.assert_allclose(np.asarray(cf), np.asarray(r_cf), rtol=1e-3, atol=1e-3)

    # Also exercise the multi-block parallel batch grid (batch_block=8 -> grid=(2,));
    # on v7x this path shards batch blocks across both TensorCores.
    B2 = 16
    kk = jax.random.split(k6, 5)
    emb2 = jax.random.normal(kk[0], (B2, L, E), jnp.float32)
    dec2 = jax.random.normal(kk[1], (B2, E), jnp.float32)
    h02 = jax.random.normal(kk[2], (B2, H), jnp.float32)
    c02 = jax.random.normal(kk[3], (B2, H), jnp.float32)
    ctx2 = jax.random.normal(kk[4], (B2, L, H), jnp.float32)
    o2, p2, hf2, cf2 = pdecoder_forward(emb2, dec2, h02, c02, ctx2, params, batch_block=8)
    jax.block_until_ready((o2, p2, hf2, cf2))
    r2 = pdecoder_ref(emb2, dec2, h02, c02, ctx2, params)
    np.testing.assert_allclose(np.asarray(o2), np.asarray(r2[0]), rtol=1e-3, atol=1e-3)
    np.testing.assert_array_equal(np.asarray(p2), np.asarray(r2[1]))
    np.testing.assert_allclose(np.asarray(hf2), np.asarray(r2[2]), rtol=1e-3, atol=1e-3)
    np.testing.assert_allclose(np.asarray(cf2), np.asarray(r2[3]), rtol=1e-3, atol=1e-3)

    print("KERNEL_OK")
</pallas_src>

<mosaic_0001>
module attributes {stable_mosaic.version = 11 : i64} {
  func.func @pdecoder_kernel(%arg0: i32, %arg1: memref<2x8x16xf32, #tpu.memory_space<vmem>>, %arg2: memref<2x16xf32, #tpu.memory_space<vmem>>, %arg3: memref<2x32xf32, #tpu.memory_space<vmem>>, %arg4: memref<2x32xf32, #tpu.memory_space<vmem>>, %arg5: memref<2x8x32xf32, #tpu.memory_space<vmem>>, %arg6: memref<48x128xf32, #tpu.memory_space<vmem>>, %arg7: memref<1x128xf32, #tpu.memory_space<vmem>>, %arg8: memref<64x32xf32, #tpu.memory_space<vmem>>, %arg9: memref<1x32xf32, #tpu.memory_space<vmem>>, %arg10: memref<32x32xf32, #tpu.memory_space<vmem>>, %arg11: memref<1x32xf32, #tpu.memory_space<vmem>>, %arg12: memref<32x32xf32, #tpu.memory_space<vmem>>, %arg13: memref<1x32xf32, #tpu.memory_space<vmem>>, %arg14: memref<32x1xf32, #tpu.memory_space<vmem>>, %arg15: memref<2x8x8xf32, #tpu.memory_space<vmem>>, %arg16: memref<2x8xi32, #tpu.memory_space<vmem>>, %arg17: memref<2x32xf32, #tpu.memory_space<vmem>>, %arg18: memref<2x32xf32, #tpu.memory_space<vmem>>) attributes {dimension_semantics = [#tpu.dimension_semantics<parallel>], iteration_bounds = array<i64: 1>, scalar_prefetch = 0 : i64, scratch_operands = 0 : i64, tpu.core_type = #tpu.core_type<tc>, window_params = [{transform_indices = @transform_0, window_bounds = array<i64: 2, 8, 16>}, {transform_indices = @transform_1, window_bounds = array<i64: 2, 16>}, {transform_indices = @transform_2, window_bounds = array<i64: 2, 32>}, {transform_indices = @transform_3, window_bounds = array<i64: 2, 32>}, {transform_indices = @transform_4, window_bounds = array<i64: 2, 8, 32>}, {pipeline_mode = #tpu.pipeline_mode<synchronous>, transform_indices = @transform_5, window_bounds = array<i64: 48, 128>}, {pipeline_mode = #tpu.pipeline_mode<synchronous>, transform_indices = @transform_6, window_bounds = array<i64: 1, 128>}, {pipeline_mode = #tpu.pipeline_mode<synchronous>, transform_indices = @transform_7, window_bounds = array<i64: 64, 32>}, {pipeline_mode = #tpu.pipeline_mode<synchronous>, transform_indices = @transform_8, window_bounds = array<i64: 1, 32>}, {pipeline_mode = #tpu.pipeline_mode<synchronous>, transform_indices = @transform_9, window_bounds = array<i64: 32, 32>}, {pipeline_mode = #tpu.pipeline_mode<synchronous>, transform_indices = @transform_10, window_bounds = array<i64: 1, 32>}, {pipeline_mode = #tpu.pipeline_mode<synchronous>, transform_indices = @transform_11, window_bounds = array<i64: 32, 32>}, {pipeline_mode = #tpu.pipeline_mode<synchronous>, transform_indices = @transform_12, window_bounds = array<i64: 1, 32>}, {pipeline_mode = #tpu.pipeline_mode<synchronous>, transform_indices = @transform_13, window_bounds = array<i64: 32, 1>}, {transform_indices = @transform_14, window_bounds = array<i64: 2, 8, 8>}, {transform_indices = @transform_15, window_bounds = array<i64: 2, 8>}, {transform_indices = @transform_16, window_bounds = array<i64: 2, 32>}, {transform_indices = @transform_17, window_bounds = array<i64: 2, 32>}]} {
    %c0 = arith.constant 0 : index
    %c0_0 = arith.constant 0 : index
    %c0_1 = arith.constant 0 : index
    %0 = vector.load %arg1[%c0, %c0_0, %c0_1] : memref<2x8x16xf32, #tpu.memory_space<vmem>>, vector<2x8x16xf32>
    %c0_2 = arith.constant 0 : index
    %c0_3 = arith.constant 0 : index
    %1 = vector.load %arg2[%c0_2, %c0_3] : memref<2x16xf32, #tpu.memory_space<vmem>>, vector<2x16xf32>
    %c0_4 = arith.constant 0 : index
    %c0_5 = arith.constant 0 : index
    %2 = vector.load %arg3[%c0_4, %c0_5] : memref<2x32xf32, #tpu.memory_space<vmem>>, vector<2x32xf32>
    %c0_6 = arith.constant 0 : index
    %c0_7 = arith.constant 0 : index
    %3 = vector.load %arg4[%c0_6, %c0_7] : memref<2x32xf32, #tpu.memory_space<vmem>>, vector<2x32xf32>
    %c0_8 = arith.constant 0 : index
    %c0_9 = arith.constant 0 : index
    %4 = vector.load %arg6[%c0_8, %c0_9] : memref<48x128xf32, #tpu.memory_space<vmem>>, vector<48x128xf32>
    %c0_10 = arith.constant 0 : index
    %c0_11 = arith.constant 0 : index
    %5 = vector.load %arg8[%c0_10, %c0_11] : memref<64x32xf32, #tpu.memory_space<vmem>>, vector<64x32xf32>
    %c0_12 = arith.constant 0 : index
    %c0_13 = arith.constant 0 : index
    %6 = vector.load %arg10[%c0_12, %c0_13] : memref<32x32xf32, #tpu.memory_space<vmem>>, vector<32x32xf32>
    %c0_14 = arith.constant 0 : index
    %c0_15 = arith.constant 0 : index
    %7 = vector.load %arg14[%c0_14, %c0_15] : memref<32x1xf32, #tpu.memory_space<vmem>>, vector<32x1xf32>
    %c0_16 = arith.constant 0 : index
    %c0_17 = arith.constant 0 : index
    %8 = vector.load %arg7[%c0_16, %c0_17] : memref<1x128xf32, #tpu.memory_space<vmem>>, vector<1x128xf32>
    %9 = vector.shape_cast %8 : vector<1x128xf32> to vector<1x128xf32>
    %10 = vector.broadcast %9 : vector<1x128xf32> to vector<2x128xf32>
    %c0_18 = arith.constant 0 : index
    %c0_19 = arith.constant 0 : index
    %11 = vector.load %arg11[%c0_18, %c0_19] : memref<1x32xf32, #tpu.memory_space<vmem>>, vector<1x32xf32>
    %12 = vector.shape_cast %11 : vector<1x32xf32> to vector<1x32xf32>
    %13 = vector.broadcast %12 : vector<1x32xf32> to vector<2x32xf32>
    %c0_20 = arith.constant 0 : index
    %c0_21 = arith.constant 0 : index
    %14 = vector.load %arg9[%c0_20, %c0_21] : memref<1x32xf32, #tpu.memory_space<vmem>>, vector<1x32xf32>
    %15 = vector.shape_cast %14 : vector<1x32xf32> to vector<1x32xf32>
    %16 = vector.broadcast %15 : vector<1x32xf32> to vector<2x32xf32>
    %c0_22 = arith.constant 0 : index
    %c0_23 = arith.constant 0 : index
    %c0_24 = arith.constant 0 : index
    %17 = vector.load %arg5[%c0_22, %c0_23, %c0_24] : memref<2x8x32xf32, #tpu.memory_space<vmem>>, vector<2x8x32xf32>
    %18 = vector.shape_cast %17 : vector<2x8x32xf32> to vector<16x32xf32>
    %c0_25 = arith.constant 0 : index
    %c0_26 = arith.constant 0 : index
    %19 = vector.load %arg12[%c0_25, %c0_26] : memref<32x32xf32, #tpu.memory_space<vmem>>, vector<32x32xf32>
    %cst = arith.constant dense<0.000000e+00> : vector<16x32xf32>
    %20 = tpu.matmul %18, %19, %cst {dimension_numbers = #tpu.dot_dimension_numbers<[1], [0], [0], [1], [0, 0, 1, 1], [], []>} : vector<16x32xf32>, vector<32x32xf32>, vector<16x32xf32> -> vector<16x32xf32>
    %21 = vector.shape_cast %20 : vector<16x32xf32> to vector<2x8x32xf32>
    %c0_27 = arith.constant 0 : index
    %c0_28 = arith.constant 0 : index
    %22 = vector.load %arg13[%c0_27, %c0_28] : memref<1x32xf32, #tpu.memory_space<vmem>>, vector<1x32xf32>
    %23 = vector.shape_cast %22 : vector<1x32xf32> to vector<1x1x32xf32>
    %24 = vector.broadcast %23 : vector<1x1x32xf32> to vector<2x8x32xf32>
    %25 = arith.addf %21, %24 : vector<2x8x32xf32>
    %cst_29 = arith.constant 1.000000e+00 : f32
    %26 = vector.broadcast %cst_29 : f32 to vector<2x8xf32>
    %27 = tpu.iota {dimensions = array<i32: 1>} : vector<2x8xi32>
    %28 = tpu.concatenate %1, %2 in 1 : vector<2x16xf32>, vector<2x32xf32> -> vector<2x48xf32>
    %cst_30 = arith.constant dense<0.000000e+00> : vector<2x128xf32>
    %29 = tpu.matmul %28, %4, %cst_30 {dimension_numbers = #tpu.dot_dimension_numbers<[1], [0], [0], [1], [0, 0, 1, 1], [], []>} : vector<2x48xf32>, vector<48x128xf32>, vector<2x128xf32> -> vector<2x128xf32>
    %30 = arith.addf %29, %10 : vector<2x128xf32>
    %31 = vector.extract_strided_slice %30 {offsets = [0, 0], sizes = [2, 32], strides = [1, 1]} : vector<2x128xf32> to vector<2x32xf32>
    %32 = arith.negf %31 : vector<2x32xf32>
    %33 = math.exp %32 : vector<2x32xf32>
    %cst_31 = arith.constant 1.000000e+00 : f32
    %34 = vector.broadcast %cst_31 : f32 to vector<2x32xf32>
    %35 = arith.addf %34, %33 : vector<2x32xf32>
    %36 = arith.divf %34, %35 : vector<2x32xf32>
    %37 = vector.extract_strided_slice %30 {offsets = [0, 32], sizes = [2, 32], strides = [1, 1]} : vector<2x128xf32> to vector<2x32xf32>
    %38 = arith.negf %37 : vector<2x32xf32>
    %39 = math.exp %38 : vector<2x32xf32>
    %cst_32 = arith.constant 1.000000e+00 : f32
    %40 = vector.broadcast %cst_32 : f32 to vector<2x32xf32>
    %41 = arith.addf %40, %39 : vector<2x32xf32>
    %42 = arith.divf %40, %41 : vector<2x32xf32>
    %43 = vector.extract_strided_slice %30 {offsets = [0, 64], sizes = [2, 32], strides = [1, 1]} : vector<2x128xf32> to vector<2x32xf32>
    %44 = math.tanh %43 : vector<2x32xf32>
    %45 = vector.extract_strided_slice %30 {offsets = [0, 96], sizes = [2, 32], strides = [1, 1]} : vector<2x128xf32> to vector<2x32xf32>
    %46 = arith.negf %45 : vector<2x32xf32>
    %47 = math.exp %46 : vector<2x32xf32>
    %cst_33 = arith.constant 1.000000e+00 : f32
    %48 = vector.broadcast %cst_33 : f32 to vector<2x32xf32>
    %49 = arith.addf %48, %47 : vector<2x32xf32>
    %50 = arith.divf %48, %49 : vector<2x32xf32>
    %51 = arith.mulf %42, %3 : vector<2x32xf32>
    %52 = arith.mulf %36, %44 : vector<2x32xf32>
    %53 = arith.addf %51, %52 : vector<2x32xf32>
    %54 = math.tanh %53 : vector<2x32xf32>
    %55 = arith.mulf %50, %54 : vector<2x32xf32>
    %cst_34 = arith.constant dense<0.000000e+00> : vector<2x32xf32>
    %56 = tpu.matmul %55, %6, %cst_34 {dimension_numbers = #tpu.dot_dimension_numbers<[1], [0], [0], [1], [0, 0, 1, 1], [], []>} : vector<2x32xf32>, vector<32x32xf32>, vector<2x32xf32> -> vector<2x32xf32>
    %57 = arith.addf %56, %13 : vector<2x32xf32>
    %58 = vector.shape_cast %57 : vector<2x32xf32> to vector<2x1x32xf32>
    %59 = vector.broadcast %58 : vector<2x1x32xf32> to vector<2x8x32xf32>
    %60 = arith.addf %59, %25 : vector<2x8x32xf32>
    %61 = math.tanh %60 : vector<2x8x32xf32>
    %62 = vector.shape_cast %61 : vector<2x8x32xf32> to vector<16x32xf32>
    %cst_35 = arith.constant dense<0.000000e+00> : vector<16x1xf32>
    %63 = tpu.matmul %62, %7, %cst_35 {dimension_numbers = #tpu.dot_dimension_numbers<[1], [0], [0], [1], [0, 0, 1, 1], [], []>} : vector<16x32xf32>, vector<32x1xf32>, vector<16x1xf32> -> vector<16x1xf32>
    %64 = vector.shape_cast %63 : vector<16x1xf32> to vector<2x8xf32>
    %cst_36 = arith.constant 0.000000e+00 : f32
    %65 = vector.broadcast %cst_36 : f32 to vector<2x8xf32>
    %66 = arith.cmpf oeq, %26, %65 : vector<2x8xf32>
    %cst_37 = arith.constant -1.000000e+30 : f32
    %67 = vector.broadcast %cst_37 : f32 to vector<2x8xf32>
    %68 = arith.select %66, %67, %64 : vector<2x8xi1>, vector<2x8xf32>
    %cst_38 = arith.constant dense<0xFF800000> : vector<2xf32>
    %69 = vector.multi_reduction <maximumf>, %68, %cst_38 [1] : vector<2x8xf32> to vector<2xf32>
    %70 = vector.shape_cast %69 : vector<2xf32> to vector<2x1xf32>
    %71 = vector.broadcast %70 : vector<2x1xf32> to vector<2x8xf32>
    %72 = arith.subf %68, %71 : vector<2x8xf32>
    %73 = math.exp %72 : vector<2x8xf32>
    %cst_39 = arith.constant dense<0.000000e+00> : vector<2xf32>
    %74 = vector.multi_reduction <add>, %73, %cst_39 [1] : vector<2x8xf32> to vector<2xf32>
    %75 = vector.shape_cast %74 : vector<2xf32> to vector<2x1xf32>
    %76 = vector.broadcast %75 : vector<2x1xf32> to vector<2x8xf32>
    %77 = arith.divf %73, %76 : vector<2x8xf32>
    %78 = vector.shape_cast %77 : vector<2x8xf32> to vector<2x1x8xf32>
    "tpu.trace_start"() <{level = 10 : i32, message = "bql,blh->bqh"}> : () -> ()
    %cst_40 = arith.constant dense<0.000000e+00> : vector<2x1x32xf32>
    %79 = tpu.matmul %78, %25, %cst_40 {dimension_numbers = #tpu.dot_dimension_numbers<[2], [1], [1], [2], [0, 0, 0, 1, 1, 2], [0], [0]>} : vector<2x1x8xf32>, vector<2x8x32xf32>, vector<2x1x32xf32> -> vector<2x1x32xf32>
    "tpu.trace_stop"() : () -> ()
    %80 = vector.shape_cast %79 : vector<2x1x32xf32> to vector<2x32xf32>
    %81 = tpu.concatenate %80, %55 in 1 : vector<2x32xf32>, vector<2x32xf32> -> vector<2x64xf32>
    %cst_41 = arith.constant dense<0.000000e+00> : vector<2x32xf32>
    %82 = tpu.matmul %81, %5, %cst_41 {dimension_numbers = #tpu.dot_dimension_numbers<[1], [0], [0], [1], [0, 0, 1, 1], [], []>} : vector<2x64xf32>, vector<64x32xf32>, vector<2x32xf32> -> vector<2x32xf32>
    %83 = arith.addf %82, %16 : vector<2x32xf32>
    %84 = math.tanh %83 : vector<2x32xf32>
    %85 = arith.mulf %77, %26 : vector<2x8xf32>
    %cst_42 = arith.constant dense<0xFF800000> : vector<2xf32>
    %86 = vector.multi_reduction <maximumf>, %85, %cst_42 [1] : vector<2x8xf32> to vector<2xf32>
    %87 = vector.shape_cast %86 : vector<2xf32> to vector<2x1xf32>
    %88 = vector.broadcast %87 : vector<2x1xf32> to vector<2x8xf32>
    %89 = arith.cmpf oeq, %85, %88 : vector<2x8xf32>
    %c8_i32 = arith.constant 8 : i32
    %90 = vector.broadcast %c8_i32 : i32 to vector<2x8xi32>
    %91 = arith.select %89, %27, %90 : vector<2x8xi1>, vector<2x8xi32>
    %cst_43 = arith.constant dense<2147483647> : vector<2xi32>
    %92 = vector.multi_reduction <minsi>, %91, %cst_43 [1] : vector<2x8xi32> to vector<2xi32>
    %93 = vector.shape_cast %92 : vector<2xi32> to vector<2x1xi32>
    %94 = vector.broadcast %93 : vector<2x1xi32> to vector<2x8xi32>
    %95 = arith.cmpi eq, %27, %94 : vector<2x8xi32>
    %96 = arith.extui %95 : vector<2x8xi1> to vector<2x8xi32>
    %97 = arith.sitofp %96 : vector<2x8xi32> to vector<2x8xf32>
    %cst_44 = arith.constant 1.000000e+00 : f32
    %98 = vector.broadcast %cst_44 : f32 to vector<2x8xf32>
    %99 = arith.subf %98, %97 : vector<2x8xf32>
    %100 = arith.mulf %26, %99 : vector<2x8xf32>
    %101 = vector.shape_cast %97 : vector<2x8xf32> to vector<2x1x8xf32>
    "tpu.trace_start"() <{level = 10 : i32, message = "bql,ble->bqe"}> : () -> ()
    %cst_45 = arith.constant dense<0.000000e+00> : vector<2x1x16xf32>
    %102 = tpu.matmul %101, %0, %cst_45 {dimension_numbers = #tpu.dot_dimension_numbers<[2], [1], [1], [2], [0, 0, 0, 1, 1, 2], [0], [0]>} : vector<2x1x8xf32>, vector<2x8x16xf32>, vector<2x1x16xf32> -> vector<2x1x16xf32>
    "tpu.trace_stop"() : () -> ()
    %103 = vector.shape_cast %102 : vector<2x1x16xf32> to vector<2x16xf32>
    %c0_46 = arith.constant 0 : index
    %c0_47 = arith.constant 0 : index
    %c0_48 = arith.constant 0 : index
    %104 = vector.load %arg15[%c0_46, %c0_47, %c0_48] : memref<2x8x8xf32, #tpu.memory_space<vmem>>, vector<2x1x8xf32>
    %105 = vector.shape_cast %104 : vector<2x1x8xf32> to vector<2x8xf32>
    %106 = vector.shape_cast %77 : vector<2x8xf32> to vector<2x1x8xf32>
    tpu.vector_store %arg15[%c0_46, %c0_47, %c0_48], %106 {strides = array<i32>} : memref<2x8x8xf32, #tpu.memory_space<vmem>>, vector<2x1x8xf32>,
    %c0_49 = arith.constant 0 : index
    %c0_50 = arith.constant 0 : index
    %107 = vector.load %arg16[%c0_49, %c0_50] : memref<2x8xi32, #tpu.memory_space<vmem>>, vector<2x1xi32>
    tpu.vector_store %arg16[%c0_49, %c0_50], %93 {strides = array<i32>} : memref<2x8xi32, #tpu.memory_space<vmem>>, vector<2x1xi32>,
    %108 = tpu.concatenate %103, %84 in 1 : vector<2x16xf32>, vector<2x32xf32> -> vector<2x48xf32>
    %cst_51 = arith.constant dense<0.000000e+00> : vector<2x128xf32>
    %109 = tpu.matmul %108, %4, %cst_51 {dimension_numbers = #tpu.dot_dimension_numbers<[1], [0], [0], [1], [0, 0, 1, 1], [], []>} : vector<2x48xf32>, vector<48x128xf32>, vector<2x128xf32> -> vector<2x128xf32>
    %110 = arith.addf %109, %10 : vector<2x128xf32>
    %111 = vector.extract_strided_slice %110 {offsets = [0, 0], sizes = [2, 32], strides = [1, 1]} : vector<2x128xf32> to vector<2x32xf32>
    %112 = arith.negf %111 : vector<2x32xf32>
    %113 = math.exp %112 : vector<2x32xf32>
    %cst_52 = arith.constant 1.000000e+00 : f32
    %114 = vector.broadcast %cst_52 : f32 to vector<2x32xf32>
    %115 = arith.addf %114, %113 : vector<2x32xf32>
    %116 = arith.divf %114, %115 : vector<2x32xf32>
    %117 = vector.extract_strided_slice %110 {offsets = [0, 32], sizes = [2, 32], strides = [1, 1]} : vector<2x128xf32> to vector<2x32xf32>
    %118 = arith.negf %117 : vector<2x32xf32>
    %119 = math.exp %118 : vector<2x32xf32>
    %cst_53 = arith.constant 1.000000e+00 : f32
    %120 = vector.broadcast %cst_53 : f32 to vector<2x32xf32>
    %121 = arith.addf %120, %119 : vector<2x32xf32>
    %122 = arith.divf %120, %121 : vector<2x32xf32>
    %123 = vector.extract_strided_slice %110 {offsets = [0, 64], sizes = [2, 32], strides = [1, 1]} : vector<2x128xf32> to vector<2x32xf32>
    %124 = math.tanh %123 : vector<2x32xf32>
    %125 = vector.extract_strided_slice %110 {offsets = [0, 96], sizes = [2, 32], strides = [1, 1]} : vector<2x128xf32> to vector<2x32xf32>
    %126 = arith.negf %125 : vector<2x32xf32>
    %127 = math.exp %126 : vector<2x32xf32>
    %cst_54 = arith.constant 1.000000e+00 : f32
    %128 = vector.broadcast %cst_54 : f32 to vector<2x32xf32>
    %129 = arith.addf %128, %127 : vector<2x32xf32>
    %130 = arith.divf %128, %129 : vector<2x32xf32>
    %131 = arith.mulf %122, %53 : vector<2x32xf32>
    %132 = arith.mulf %116, %124 : vector<2x32xf32>
    %133 = arith.addf %131, %132 : vector<2x32xf32>
    %134 = math.tanh %133 : vector<2x32xf32>
    %135 = arith.mulf %130, %134 : vector<2x32xf32>
    %cst_55 = arith.constant dense<0.000000e+00> : vector<2x32xf32>
    %136 = tpu.matmul %135, %6, %cst_55 {dimension_numbers = #tpu.dot_dimension_numbers<[1], [0], [0], [1], [0, 0, 1, 1], [], []>} : vector<2x32xf32>, vector<32x32xf32>, vector<2x32xf32> -> vector<2x32xf32>
    %137 = arith.addf %136, %13 : vector<2x32xf32>
    %138 = vector.shape_cast %137 : vector<2x32xf32> to vector<2x1x32xf32>
    %139 = vector.broadcast %138 : vector<2x1x32xf32> to vector<2x8x32xf32>
    %140 = arith.addf %139, %25 : vector<2x8x32xf32>
    %141 = math.tanh %140 : vector<2x8x32xf32>
    %142 = vector.shape_cast %141 : vector<2x8x32xf32> to vector<16x32xf32>
    %cst_56 = arith.constant dense<0.000000e+00> : vector<16x1xf32>
    %143 = tpu.matmul %142, %7, %cst_56 {dimension_numbers = #tpu.dot_dimension_numbers<[1], [0], [0], [1], [0, 0, 1, 1], [], []>} : vector<16x32xf32>, vector<32x1xf32>, vector<16x1xf32> -> vector<16x1xf32>
    %144 = vector.shape_cast %143 : vector<16x1xf32> to vector<2x8xf32>
    %cst_57 = arith.constant 0.000000e+00 : f32
    %145 = vector.broadcast %cst_57 : f32 to vector<2x8xf32>
    %146 = arith.cmpf oeq, %100, %145 : vector<2x8xf32>
    %cst_58 = arith.constant -1.000000e+30 : f32
    %147 = vector.broadcast %cst_58 : f32 to vector<2x8xf32>
    %148 = arith.select %146, %147, %144 : vector<2x8xi1>, vector<2x8xf32>
    %cst_59 = arith.constant dense<0xFF800000> : vector<2xf32>
    %149 = vector.multi_reduction <maximumf>, %148, %cst_59 [1] : vector<2x8xf32> to vector<2xf32>
    %150 = vector.shape_cast %149 : vector<2xf32> to vector<2x1xf32>
    %151 = vector.broadcast %150 : vector<2x1xf32> to vector<2x8xf32>
    %152 = arith.subf %148, %151 : vector<2x8xf32>
    %153 = math.exp %152 : vector<2x8xf32>
    %cst_60 = arith.constant dense<0.000000e+00> : vector<2xf32>
    %154 = vector.multi_reduction <add>, %153, %cst_60 [1] : vector<2x8xf32> to vector<2xf32>
    %155 = vector.shape_cast %154 : vector<2xf32> to vector<2x1xf32>
    %156 = vector.broadcast %155 : vector<2x1xf32> to vector<2x8xf32>
    %157 = arith.divf %153, %156 : vector<2x8xf32>
    %158 = vector.shape_cast %157 : vector<2x8xf32> to vector<2x1x8xf32>
    "tpu.trace_start"() <{level = 10 : i32, message = "bql,blh->bqh"}> : () -> ()
    %cst_61 = arith.constant dense<0.000000e+00> : vector<2x1x32xf32>
    %159 = tpu.matmul %158, %25, %cst_61 {dimension_numbers = #tpu.dot_dimension_numbers<[2], [1], [1], [2], [0, 0, 0, 1, 1, 2], [0], [0]>} : vector<2x1x8xf32>, vector<2x8x32xf32>, vector<2x1x32xf32> -> vector<2x1x32xf32>
    "tpu.trace_stop"() : () -> ()
    %160 = vector.shape_cast %159 : vector<2x1x32xf32> to vector<2x32xf32>
    %161 = tpu.concatenate %160, %135 in 1 : vector<2x32xf32>, vector<2x32xf32> -> vector<2x64xf32>
    %cst_62 = arith.constant dense<0.000000e+00> : vector<2x32xf32>
    %162 = tpu.matmul %161, %5, %cst_62 {dimension_numbers = #tpu.dot_dimension_numbers<[1], [0], [0], [1], [0, 0, 1, 1], [], []>} : vector<2x64xf32>, vector<64x32xf32>, vector<2x32xf32> -> vector<2x32xf32>
    %163 = arith.addf %162, %16 : vector<2x32xf32>
    %164 = math.tanh %163 : vector<2x32xf32>
    %165 = arith.mulf %157, %100 : vector<2x8xf32>
    %cst_63 = arith.constant dense<0xFF800000> : vector<2xf32>
    %166 = vector.multi_reduction <maximumf>, %165, %cst_63 [1] : vector<2x8xf32> to vector<2xf32>
    %167 = vector.shape_cast %166 : vector<2xf32> to vector<2x1xf32>
    %168 = vector.broadcast %167 : vector<2x1xf32> to vector<2x8xf32>
    %169 = arith.cmpf oeq, %165, %168 : vector<2x8xf32>
    %c8_i32_64 = arith.constant 8 : i32
    %170 = vector.broadcast %c8_i32_64 : i32 to vector<2x8xi32>
    %171 = arith.select %169, %27, %170 : vector<2x8xi1>, vector<2x8xi32>
    %cst_65 = arith.constant dense<2147483647> : vector<2xi32>
    %172 = vector.multi_reduction <minsi>, %171, %cst_65 [1] : vector<2x8xi32> to vector<2xi32>
    %173 = vector.shape_cast %172 : vector<2xi32> to vector<2x1xi32>
    %174 = vector.broadcast %173 : vector<2x1xi32> to vector<2x8xi32>
    %175 = arith.cmpi eq, %27, %174 : vector<2x8xi32>
    %176 = arith.extui %175 : vector<2x8xi1> to vector<2x8xi32>
    %177 = arith.sitofp %176 : vector<2x8xi32> to vector<2x8xf32>
    %cst_66 = arith.constant 1.000000e+00 : f32
    %178 = vector.broadcast %cst_66 : f32 to vector<2x8xf32>
    %179 = arith.subf %178, %177 : vector<2x8xf32>
    %180 = arith.mulf %100, %179 : vector<2x8xf32>
    %181 = vector.shape_cast %177 : vector<2x8xf32> to vector<2x1x8xf32>
    "tpu.trace_start"() <{level = 10 : i32, message = "bql,ble->bqe"}> : () -> ()
    %cst_67 = arith.constant dense<0.000000e+00> : vector<2x1x16xf32>
    %182 = tpu.matmul %181, %0, %cst_67 {dimension_numbers = #tpu.dot_dimension_numbers<[2], [1], [1], [2], [0, 0, 0, 1, 1, 2], [0], [0]>} : vector<2x1x8xf32>, vector<2x8x16xf32>, vector<2x1x16xf32> -> vector<2x1x16xf32>
    "tpu.trace_stop"() : () -> ()
    %183 = vector.shape_cast %182 : vector<2x1x16xf32> to vector<2x16xf32>
    %c0_68 = arith.constant 0 : index
    %c1 = arith.constant 1 : index
    %c0_69 = arith.constant 0 : index
    %184 = vector.load %arg15[%c0_68, %c1, %c0_69] : memref<2x8x8xf32, #tpu.memory_space<vmem>>, vector<2x1x8xf32>
    %185 = vector.shape_cast %184 : vector<2x1x8xf32> to vector<2x8xf32>
    %186 = vector.shape_cast %157 : vector<2x8xf32> to vector<2x1x8xf32>
    tpu.vector_store %arg15[%c0_68, %c1, %c0_69], %186 {strides = array<i32>} : memref<2x8x8xf32, #tpu.memory_space<vmem>>, vector<2x1x8xf32>,
    %c0_70 = arith.constant 0 : index
    %c1_71 = arith.constant 1 : index
    %187 = vector.load %arg16[%c0_70, %c1_71] : memref<2x8xi32, #tpu.memory_space<vmem>>, vector<2x1xi32>
    tpu.vector_store %arg16[%c0_70, %c1_71], %173 {strides = array<i32>} : memref<2x8xi32, #tpu.memory_space<vmem>>, vector<2x1xi32>,
    %188 = tpu.concatenate %183, %164 in 1 : vector<2x16xf32>, vector<2x32xf32> -> vector<2x48xf32>
    %cst_72 = arith.constant dense<0.000000e+00> : vector<2x128xf32>
    %189 = tpu.matmul %188, %4, %cst_72 {dimension_numbers = #tpu.dot_dimension_numbers<[1], [0], [0], [1], [0, 0, 1, 1], [], []>} : vector<2x48xf32>, vector<48x128xf32>, vector<2x128xf32> -> vector<2x128xf32>
    %190 = arith.addf %189, %10 : vector<2x128xf32>
    %191 = vector.extract_strided_slice %190 {offsets = [0, 0], sizes = [2, 32], strides = [1, 1]} : vector<2x128xf32> to vector<2x32xf32>
    %192 = arith.negf %191 : vector<2x32xf32>
    %193 = math.exp %192 : vector<2x32xf32>
    %cst_73 = arith.constant 1.000000e+00 : f32
    %194 = vector.broadcast %cst_73 : f32 to vector<2x32xf32>
    %195 = arith.addf %194, %193 : vector<2x32xf32>
    %196 = arith.divf %194, %195 : vector<2x32xf32>
    %197 = vector.extract_strided_slice %190 {offsets = [0, 32], sizes = [2, 32], strides = [1, 1]} : vector<2x128xf32> to vector<2x32xf32>
    %198 = arith.negf %197 : vector<2x32xf32>
    %199 = math.exp %198 : vector<2x32xf32>
    %cst_74 = arith.constant 1.000000e+00 : f32
    %200 = vector.broadcast %cst_74 : f32 to vector<2x32xf32>
    %201 = arith.addf %200, %199 : vector<2x32xf32>
    %202 = arith.divf %200, %201 : vector<2x32xf32>
    %203 = vector.extract_strided_slice %190 {offsets = [0, 64], sizes = [2, 32], strides = [1, 1]} : vector<2x128xf32> to vector<2x32xf32>
    %204 = math.tanh %203 : vector<2x32xf32>
    %205 = vector.extract_strided_slice %190 {offsets = [0, 96], sizes = [2, 32], strides = [1, 1]} : vector<2x128xf32> to vector<2x32xf32>
    %206 = arith.negf %205 : vector<2x32xf32>
    %207 = math.exp %206 : vector<2x32xf32>
    %cst_75 = arith.constant 1.000000e+00 : f32
    %208 = vector.broadcast %cst_75 : f32 to vector<2x32xf32>
    %209 = arith.addf %208, %207 : vector<2x32xf32>
    %210 = arith.divf %208, %209 : vector<2x32xf32>
    %211 = arith.mulf %202, %133 : vector<2x32xf32>
    %212 = arith.mulf %196, %204 : vector<2x32xf32>
    %213 = arith.addf %211, %212 : vector<2x32xf32>
    %214 = math.tanh %213 : vector<2x32xf32>
    %215 = arith.mulf %210, %214 : vector<2x32xf32>
    %cst_76 = arith.constant dense<0.000000e+00> : vector<2x32xf32>
    %216 = tpu.matmul %215, %6, %cst_76 {dimension_numbers = #tpu.dot_dimension_numbers<[1], [0], [0], [1], [0, 0, 1, 1], [], []>} : vector<2x32xf32>, vector<32x32xf32>, vector<2x32xf32> -> vector<2x32xf32>
    %217 = arith.addf %216, %13 : vector<2x32xf32>
    %218 = vector.shape_cast %217 : vector<2x32xf32> to vector<2x1x32xf32>
    %219 = vector.broadcast %218 : vector<2x1x32xf32> to vector<2x8x32xf32>
    %220 = arith.addf %219, %25 : vector<2x8x32xf32>
    %221 = math.tanh %220 : vector<2x8x32xf32>
    %222 = vector.shape_cast %221 : vector<2x8x32xf32> to vector<16x32xf32>
    %cst_77 = arith.constant dense<0.000000e+00> : vector<16x1xf32>
    %223 = tpu.matmul %222, %7, %cst_77 {dimension_numbers = #tpu.dot_dimension_numbers<[1], [0], [0], [1], [0, 0, 1, 1], [], []>} : vector<16x32xf32>, vector<32x1xf32>, vector<16x1xf32> -> vector<16x1xf32>
    %224 = vector.shape_cast %223 : vector<16x1xf32> to vector<2x8xf32>
    %cst_78 = arith.constant 0.000000e+00 : f32
    %225 = vector.broadcast %cst_78 : f32 to vector<2x8xf32>
    %226 = arith.cmpf oeq, %180, %225 : vector<2x8xf32>
    %cst_79 = arith.constant -1.000000e+30 : f32
    %227 = vector.broadcast %cst_79 : f32 to vector<2x8xf32>
    %228 = arith.select %226, %227, %224 : vector<2x8xi1>, vector<2x8xf32>
    %cst_80 = arith.constant dense<0xFF800000> : vector<2xf32>
    %229 = vector.multi_reduction <maximumf>, %228, %cst_80 [1] : vector<2x8xf32> to vector<2xf32>
    %230 = vector.shape_cast %229 : vector<2xf32> to vector<2x1xf32>
    %231 = vector.broadcast %230 : vector<2x1xf32> to vector<2x8xf32>
    %232 = arith.subf %228, %231 : vector<2x8xf32>
    %233 = math.exp %232 : vector<2x8xf32>
    %cst_81 = arith.constant dense<0.000000e+00> : vector<2xf32>
    %234 = vector.multi_reduction <add>, %233, %cst_81 [1] : vector<2x8xf32> to vector<2xf32>
    %235 = vector.shape_cast %234 : vector<2xf32> to vector<2x1xf32>
    %236 = vector.broadcast %235 : vector<2x1xf32> to vector<2x8xf32>
    %237 = arith.divf %233, %236 : vector<2x8xf32>
    %238 = vector.shape_cast %237 : vector<2x8xf32> to vector<2x1x8xf32>
    "tpu.trace_start"() <{level = 10 : i32, message = "bql,blh->bqh"}> : () -> ()
    %cst_82 = arith.constant dense<0.000000e+00> : vector<2x1x32xf32>
    %239 = tpu.matmul %238, %25, %cst_82 {dimension_numbers = #tpu.dot_dimension_numbers<[2], [1], [1], [2], [0, 0, 0, 1, 1, 2], [0], [0]>} : vector<2x1x8xf32>, vector<2x8x32xf32>, vector<2x1x32xf32> -> vector<2x1x32xf32>
    "tpu.trace_stop"() : () -> ()
    %240 = vector.shape_cast %239 : vector<2x1x32xf32> to vector<2x32xf32>
    %241 = tpu.concatenate %240, %215 in 1 : vector<2x32xf32>, vector<2x32xf32> -> vector<2x64xf32>
    %cst_83 = arith.constant dense<0.000000e+00> : vector<2x32xf32>
    %242 = tpu.matmul %241, %5, %cst_83 {dimension_numbers = #tpu.dot_dimension_numbers<[1], [0], [0], [1], [0, 0, 1, 1], [], []>} : vector<2x64xf32>, vector<64x32xf32>, vector<2x32xf32> -> vector<2x32xf32>
    %243 = arith.addf %242, %16 : vector<2x32xf32>
    %244 = math.tanh %243 : vector<2x32xf32>
    %245 = arith.mulf %237, %180 : vector<2x8xf32>
    %cst_84 = arith.constant dense<0xFF800000> : vector<2xf32>
    %246 = vector.multi_reduction <maximumf>, %245, %cst_84 [1] : vector<2x8xf32> to vector<2xf32>
    %247 = vector.shape_cast %246 : vector<2xf32> to vector<2x1xf32>
    %248 = vector.broadcast %247 : vector<2x1xf32> to vector<2x8xf32>
    %249 = arith.cmpf oeq, %245, %248 : vector<2x8xf32>
    %c8_i32_85 = arith.constant 8 : i32
    %250 = vector.broadcast %c8_i32_85 : i32 to vector<2x8xi32>
    %251 = arith.select %249, %27, %250 : vector<2x8xi1>, vector<2x8xi32>
    %cst_86 = arith.constant dense<2147483647> : vector<2xi32>
    %252 = vector.multi_reduction <minsi>, %251, %cst_86 [1] : vector<2x8xi32> to vector<2xi32>
    %253 = vector.shape_cast %252 : vector<2xi32> to vector<2x1xi32>
    %254 = vector.broadcast %253 : vector<2x1xi32> to vector<2x8xi32>
    %255 = arith.cmpi eq, %27, %254 : vector<2x8xi32>
    %256 = arith.extui %255 : vector<2x8xi1> to vector<2x8xi32>
    %257 = arith.sitofp %256 : vector<2x8xi32> to vector<2x8xf32>
    %cst_87 = arith.constant 1.000000e+00 : f32
    %258 = vector.broadcast %cst_87 : f32 to vector<2x8xf32>
    %259 = arith.subf %258, %257 : vector<2x8xf32>
    %260 = arith.mulf %180, %259 : vector<2x8xf32>
    %261 = vector.shape_cast %257 : vector<2x8xf32> to vector<2x1x8xf32>
    "tpu.trace_start"() <{level = 10 : i32, message = "bql,ble->bqe"}> : () -> ()
    %cst_88 = arith.constant dense<0.000000e+00> : vector<2x1x16xf32>
    %262 = tpu.matmul %261, %0, %cst_88 {dimension_numbers = #tpu.dot_dimension_numbers<[2], [1], [1], [2], [0, 0, 0, 1, 1, 2], [0], [0]>} : vector<2x1x8xf32>, vector<2x8x16xf32>, vector<2x1x16xf32> -> vector<2x1x16xf32>
    "tpu.trace_stop"() : () -> ()
    %263 = vector.shape_cast %262 : vector<2x1x16xf32> to vector<2x16xf32>
    %c0_89 = arith.constant 0 : index
    %c2 = arith.constant 2 : index
    %c0_90 = arith.constant 0 : index
    %264 = vector.load %arg15[%c0_89, %c2, %c0_90] : memref<2x8x8xf32, #tpu.memory_space<vmem>>, vector<2x1x8xf32>
    %265 = vector.shape_cast %264 : vector<2x1x8xf32> to vector<2x8xf32>
    %266 = vector.shape_cast %237 : vector<2x8xf32> to vector<2x1x8xf32>
    tpu.vector_store %arg15[%c0_89, %c2, %c0_90], %266 {strides = array<i32>} : memref<2x8x8xf32, #tpu.memory_space<vmem>>, vector<2x1x8xf32>,
    %c0_91 = arith.constant 0 : index
    %c2_92 = arith.constant 2 : index
    %267 = vector.load %arg16[%c0_91, %c2_92] : memref<2x8xi32, #tpu.memory_space<vmem>>, vector<2x1xi32>
    tpu.vector_store %arg16[%c0_91, %c2_92], %253 {strides = array<i32>} : memref<2x8xi32, #tpu.memory_space<vmem>>, vector<2x1xi32>,
    %268 = tpu.concatenate %263, %244 in 1 : vector<2x16xf32>, vector<2x32xf32> -> vector<2x48xf32>
    %cst_93 = arith.constant dense<0.000000e+00> : vector<2x128xf32>
    %269 = tpu.matmul %268, %4, %cst_93 {dimension_numbers = #tpu.dot_dimension_numbers<[1], [0], [0], [1], [0, 0, 1, 1], [], []>} : vector<2x48xf32>, vector<48x128xf32>, vector<2x128xf32> -> vector<2x128xf32>
    %270 = arith.addf %269, %10 : vector<2x128xf32>
    %271 = vector.extract_strided_slice %270 {offsets = [0, 0], sizes = [2, 32], strides = [1, 1]} : vector<2x128xf32> to vector<2x32xf32>
    %272 = arith.negf %271 : vector<2x32xf32>
    %273 = math.exp %272 : vector<2x32xf32>
    %cst_94 = arith.constant 1.000000e+00 : f32
    %274 = vector.broadcast %cst_94 : f32 to vector<2x32xf32>
    %275 = arith.addf %274, %273 : vector<2x32xf32>
    %276 = arith.divf %274, %275 : vector<2x32xf32>
    %277 = vector.extract_strided_slice %270 {offsets = [0, 32], sizes = [2, 32], strides = [1, 1]} : vector<2x128xf32> to vector<2x32xf32>
    %278 = arith.negf %277 : vector<2x32xf32>
    %279 = math.exp %278 : vector<2x32xf32>
    %cst_95 = arith.constant 1.000000e+00 : f32
    %280 = vector.broadcast %cst_95 : f32 to vector<2x32xf32>
    %281 = arith.addf %280, %279 : vector<2x32xf32>
    %282 = arith.divf %280, %281 : vector<2x32xf32>
    %283 = vector.extract_strided_slice %270 {offsets = [0, 64], sizes = [2, 32], strides = [1, 1]} : vector<2x128xf32> to vector<2x32xf32>
    %284 = math.tanh %283 : vector<2x32xf32>
    %285 = vector.extract_strided_slice %270 {offsets = [0, 96], sizes = [2, 32], strides = [1, 1]} : vector<2x128xf32> to vector<2x32xf32>
    %286 = arith.negf %285 : vector<2x32xf32>
    %287 = math.exp %286 : vector<2x32xf32>
    %cst_96 = arith.constant 1.000000e+00 : f32
    %288 = vector.broadcast %cst_96 : f32 to vector<2x32xf32>
    %289 = arith.addf %288, %287 : vector<2x32xf32>
    %290 = arith.divf %288, %289 : vector<2x32xf32>
    %291 = arith.mulf %282, %213 : vector<2x32xf32>
    %292 = arith.mulf %276, %284 : vector<2x32xf32>
    %293 = arith.addf %291, %292 : vector<2x32xf32>
    %294 = math.tanh %293 : vector<2x32xf32>
    %295 = arith.mulf %290, %294 : vector<2x32xf32>
    %cst_97 = arith.constant dense<0.000000e+00> : vector<2x32xf32>
    %296 = tpu.matmul %295, %6, %cst_97 {dimension_numbers = #tpu.dot_dimension_numbers<[1], [0], [0], [1], [0, 0, 1, 1], [], []>} : vector<2x32xf32>, vector<32x32xf32>, vector<2x32xf32> -> vector<2x32xf32>
    %297 = arith.addf %296, %13 : vector<2x32xf32>
    %298 = vector.shape_cast %297 : vector<2x32xf32> to vector<2x1x32xf32>
    %299 = vector.broadcast %298 : vector<2x1x32xf32> to vector<2x8x32xf32>
    %300 = arith.addf %299, %25 : vector<2x8x32xf32>
    %301 = math.tanh %300 : vector<2x8x32xf32>
    %302 = vector.shape_cast %301 : vector<2x8x32xf32> to vector<16x32xf32>
    %cst_98 = arith.constant dense<0.000000e+00> : vector<16x1xf32>
    %303 = tpu.matmul %302, %7, %cst_98 {dimension_numbers = #tpu.dot_dimension_numbers<[1], [0], [0], [1], [0, 0, 1, 1], [], []>} : vector<16x32xf32>, vector<32x1xf32>, vector<16x1xf32> -> vector<16x1xf32>
    %304 = vector.shape_cast %303 : vector<16x1xf32> to vector<2x8xf32>
    %cst_99 = arith.constant 0.000000e+00 : f32
    %305 = vector.broadcast %cst_99 : f32 to vector<2x8xf32>
    %306 = arith.cmpf oeq, %260, %305 : vector<2x8xf32>
    %cst_100 = arith.constant -1.000000e+30 : f32
    %307 = vector.broadcast %cst_100 : f32 to vector<2x8xf32>
    %308 = arith.select %306, %307, %304 : vector<2x8xi1>, vector<2x8xf32>
    %cst_101 = arith.constant dense<0xFF800000> : vector<2xf32>
    %309 = vector.multi_reduction <maximumf>, %308, %cst_101 [1] : vector<2x8xf32> to vector<2xf32>
    %310 = vector.shape_cast %309 : vector<2xf32> to vector<2x1xf32>
    %311 = vector.broadcast %310 : vector<2x1xf32> to vector<2x8xf32>
    %312 = arith.subf %308, %311 : vector<2x8xf32>
    %313 = math.exp %312 : vector<2x8xf32>
    %cst_102 = arith.constant dense<0.000000e+00> : vector<2xf32>
    %314 = vector.multi_reduction <add>, %313, %cst_102 [1] : vector<2x8xf32> to vector<2xf32>
    %315 = vector.shape_cast %314 : vector<2xf32> to vector<2x1xf32>
    %316 = vector.broadcast %315 : vector<2x1xf32> to vector<2x8xf32>
    %317 = arith.divf %313, %316 : vector<2x8xf32>
    %318 = vector.shape_cast %317 : vector<2x8xf32> to vector<2x1x8xf32>
    "tpu.trace_start"() <{level = 10 : i32, message = "bql,blh->bqh"}> : () -> ()
    %cst_103 = arith.constant dense<0.000000e+00> : vector<2x1x32xf32>
    %319 = tpu.matmul %318, %25, %cst_103 {dimension_numbers = #tpu.dot_dimension_numbers<[2], [1], [1], [2], [0, 0, 0, 1, 1, 2], [0], [0]>} : vector<2x1x8xf32>, vector<2x8x32xf32>, vector<2x1x32xf32> -> vector<2x1x32xf32>
    "tpu.trace_stop"() : () -> ()
    %320 = vector.shape_cast %319 : vector<2x1x32xf32> to vector<2x32xf32>
    %321 = tpu.concatenate %320, %295 in 1 : vector<2x32xf32>, vector<2x32xf32> -> vector<2x64xf32>
    %cst_104 = arith.constant dense<0.000000e+00> : vector<2x32xf32>
    %322 = tpu.matmul %321, %5, %cst_104 {dimension_numbers = #tpu.dot_dimension_numbers<[1], [0], [0], [1], [0, 0, 1, 1], [], []>} : vector<2x64xf32>, vector<64x32xf32>, vector<2x32xf32> -> vector<2x32xf32>
    %323 = arith.addf %322, %16 : vector<2x32xf32>
    %324 = math.tanh %323 : vector<2x32xf32>
    %325 = arith.mulf %317, %260 : vector<2x8xf32>
    %cst_105 = arith.constant dense<0xFF800000> : vector<2xf32>
    %326 = vector.multi_reduction <maximumf>, %325, %cst_105 [1] : vector<2x8xf32> to vector<2xf32>
    %327 = vector.shape_cast %326 : vector<2xf32> to vector<2x1xf32>
    %328 = vector.broadcast %327 : vector<2x1xf32> to vector<2x8xf32>
    %329 = arith.cmpf oeq, %325, %328 : vector<2x8xf32>
    %c8_i32_106 = arith.constant 8 : i32
    %330 = vector.broadcast %c8_i32_106 : i32 to vector<2x8xi32>
    %331 = arith.select %329, %27, %330 : vector<2x8xi1>, vector<2x8xi32>
    %cst_107 = arith.constant dense<2147483647> : vector<2xi32>
    %332 = vector.multi_reduction <minsi>, %331, %cst_107 [1] : vector<2x8xi32> to vector<2xi32>
    %333 = vector.shape_cast %332 : vector<2xi32> to vector<2x1xi32>
    %334 = vector.broadcast %333 : vector<2x1xi32> to vector<2x8xi32>
    %335 = arith.cmpi eq, %27, %334 : vector<2x8xi32>
    %336 = arith.extui %335 : vector<2x8xi1> to vector<2x8xi32>
    %337 = arith.sitofp %336 : vector<2x8xi32> to vector<2x8xf32>
    %cst_108 = arith.constant 1.000000e+00 : f32
    %338 = vector.broadcast %cst_108 : f32 to vector<2x8xf32>
    %339 = arith.subf %338, %337 : vector<2x8xf32>
    %340 = arith.mulf %260, %339 : vector<2x8xf32>
    %341 = vector.shape_cast %337 : vector<2x8xf32> to vector<2x1x8xf32>
    "tpu.trace_start"() <{level = 10 : i32, message = "bql,ble->bqe"}> : () -> ()
    %cst_109 = arith.constant dense<0.000000e+00> : vector<2x1x16xf32>
    %342 = tpu.matmul %341, %0, %cst_109 {dimension_numbers = #tpu.dot_dimension_numbers<[2], [1], [1], [2], [0, 0, 0, 1, 1, 2], [0], [0]>} : vector<2x1x8xf32>, vector<2x8x16xf32>, vector<2x1x16xf32> -> vector<2x1x16xf32>
    "tpu.trace_stop"() : () -> ()
    %343 = vector.shape_cast %342 : vector<2x1x16xf32> to vector<2x16xf32>
    %c0_110 = arith.constant 0 : index
    %c3 = arith.constant 3 : index
    %c0_111 = arith.constant 0 : index
    %344 = vector.load %arg15[%c0_110, %c3, %c0_111] : memref<2x8x8xf32, #tpu.memory_space<vmem>>, vector<2x1x8xf32>
    %345 = vector.shape_cast %344 : vector<2x1x8xf32> to vector<2x8xf32>
    %346 = vector.shape_cast %317 : vector<2x8xf32> to vector<2x1x8xf32>
    tpu.vector_store %arg15[%c0_110, %c3, %c0_111], %346 {strides = array<i32>} : memref<2x8x8xf32, #tpu.memory_space<vmem>>, vector<2x1x8xf32>,
    %c0_112 = arith.constant 0 : index
    %c3_113 = arith.constant 3 : index
    %347 = vector.load %arg16[%c0_112, %c3_113] : memref<2x8xi32, #tpu.memory_space<vmem>>, vector<2x1xi32>
    tpu.vector_store %arg16[%c0_112, %c3_113], %333 {strides = array<i32>} : memref<2x8xi32, #tpu.memory_space<vmem>>, vector<2x1xi32>,
    %348 = tpu.concatenate %343, %324 in 1 : vector<2x16xf32>, vector<2x32xf32> -> vector<2x48xf32>
    %cst_114 = arith.constant dense<0.000000e+00> : vector<2x128xf32>
    %349 = tpu.matmul %348, %4, %cst_114 {dimension_numbers = #tpu.dot_dimension_numbers<[1], [0], [0], [1], [0, 0, 1, 1], [], []>} : vector<2x48xf32>, vector<48x128xf32>, vector<2x128xf32> -> vector<2x128xf32>
    %350 = arith.addf %349, %10 : vector<2x128xf32>
    %351 = vector.extract_strided_slice %350 {offsets = [0, 0], sizes = [2, 32], strides = [1, 1]} : vector<2x128xf32> to vector<2x32xf32>
    %352 = arith.negf %351 : vector<2x32xf32>
    %353 = math.exp %352 : vector<2x32xf32>
    %cst_115 = arith.constant 1.000000e+00 : f32
    %354 = vector.broadcast %cst_115 : f32 to vector<2x32xf32>
    %355 = arith.addf %354, %353 : vector<2x32xf32>
    %356 = arith.divf %354, %355 : vector<2x32xf32>
    %357 = vector.extract_strided_slice %350 {offsets = [0, 32], sizes = [2, 32], strides = [1, 1]} : vector<2x128xf32> to vector<2x32xf32>
    %358 = arith.negf %357 : vector<2x32xf32>
    %359 = math.exp %358 : vector<2x32xf32>
    %cst_116 = arith.constant 1.000000e+00 : f32
    %360 = vector.broadcast %cst_116 : f32 to vector<2x32xf32>
    %361 = arith.addf %360, %359 : vector<2x32xf32>
    %362 = arith.divf %360, %361 : vector<2x32xf32>
    %363 = vector.extract_strided_slice %350 {offsets = [0, 64], sizes = [2, 32], strides = [1, 1]} : vector<2x128xf32> to vector<2x32xf32>
    %364 = math.tanh %363 : vector<2x32xf32>
    %365 = vector.extract_strided_slice %350 {offsets = [0, 96], sizes = [2, 32], strides = [1, 1]} : vector<2x128xf32> to vector<2x32xf32>
    %366 = arith.negf %365 : vector<2x32xf32>
    %367 = math.exp %366 : vector<2x32xf32>
    %cst_117 = arith.constant 1.000000e+00 : f32
    %368 = vector.broadcast %cst_117 : f32 to vector<2x32xf32>
    %369 = arith.addf %368, %367 : vector<2x32xf32>
    %370 = arith.divf %368, %369 : vector<2x32xf32>
    %371 = arith.mulf %362, %293 : vector<2x32xf32>
    %372 = arith.mulf %356, %364 : vector<2x32xf32>
    %373 = arith.addf %371, %372 : vector<2x32xf32>
    %374 = math.tanh %373 : vector<2x32xf32>
    %375 = arith.mulf %370, %374 : vector<2x32xf32>
    %cst_118 = arith.constant dense<0.000000e+00> : vector<2x32xf32>
    %376 = tpu.matmul %375, %6, %cst_118 {dimension_numbers = #tpu.dot_dimension_numbers<[1], [0], [0], [1], [0, 0, 1, 1], [], []>} : vector<2x32xf32>, vector<32x32xf32>, vector<2x32xf32> -> vector<2x32xf32>
    %377 = arith.addf %376, %13 : vector<2x32xf32>
    %378 = vector.shape_cast %377 : vector<2x32xf32> to vector<2x1x32xf32>
    %379 = vector.broadcast %378 : vector<2x1x32xf32> to vector<2x8x32xf32>
    %380 = arith.addf %379, %25 : vector<2x8x32xf32>
    %381 = math.tanh %380 : vector<2x8x32xf32>
    %382 = vector.shape_cast %381 : vector<2x8x32xf32> to vector<16x32xf32>
    %cst_119 = arith.constant dense<0.000000e+00> : vector<16x1xf32>
    %383 = tpu.matmul %382, %7, %cst_119 {dimension_numbers = #tpu.dot_dimension_numbers<[1], [0], [0], [1], [0, 0, 1, 1], [], []>} : vector<16x32xf32>, vector<32x1xf32>, vector<16x1xf32> -> vector<16x1xf32>
    %384 = vector.shape_cast %383 : vector<16x1xf32> to vector<2x8xf32>
    %cst_120 = arith.constant 0.000000e+00 : f32
    %385 = vector.broadcast %cst_120 : f32 to vector<2x8xf32>
    %386 = arith.cmpf oeq, %340, %385 : vector<2x8xf32>
    %cst_121 = arith.constant -1.000000e+30 : f32
    %387 = vector.broadcast %cst_121 : f32 to vector<2x8xf32>
    %388 = arith.select %386, %387, %384 : vector<2x8xi1>, vector<2x8xf32>
    %cst_122 = arith.constant dense<0xFF800000> : vector<2xf32>
    %389 = vector.multi_reduction <maximumf>, %388, %cst_122 [1] : vector<2x8xf32> to vector<2xf32>
    %390 = vector.shape_cast %389 : vector<2xf32> to vector<2x1xf32>
    %391 = vector.broadcast %390 : vector<2x1xf32> to vector<2x8xf32>
    %392 = arith.subf %388, %391 : vector<2x8xf32>
    %393 = math.exp %392 : vector<2x8xf32>
    %cst_123 = arith.constant dense<0.000000e+00> : vector<2xf32>
    %394 = vector.multi_reduction <add>, %393, %cst_123 [1] : vector<2x8xf32> to vector<2xf32>
    %395 = vector.shape_cast %394 : vector<2xf32> to vector<2x1xf32>
    %396 = vector.broadcast %395 : vector<2x1xf32> to vector<2x8xf32>
    %397 = arith.divf %393, %396 : vector<2x8xf32>
    %398 = vector.shape_cast %397 : vector<2x8xf32> to vector<2x1x8xf32>
    "tpu.trace_start"() <{level = 10 : i32, message = "bql,blh->bqh"}> : () -> ()
    %cst_124 = arith.constant dense<0.000000e+00> : vector<2x1x32xf32>
    %399 = tpu.matmul %398, %25, %cst_124 {dimension_numbers = #tpu.dot_dimension_numbers<[2], [1], [1], [2], [0, 0, 0, 1, 1, 2], [0], [0]>} : vector<2x1x8xf32>, vector<2x8x32xf32>, vector<2x1x32xf32> -> vector<2x1x32xf32>
    "tpu.trace_stop"() : () -> ()
    %400 = vector.shape_cast %399 : vector<2x1x32xf32> to vector<2x32xf32>
    %401 = tpu.concatenate %400, %375 in 1 : vector<2x32xf32>, vector<2x32xf32> -> vector<2x64xf32>
    %cst_125 = arith.constant dense<0.000000e+00> : vector<2x32xf32>
    %402 = tpu.matmul %401, %5, %cst_125 {dimension_numbers = #tpu.dot_dimension_numbers<[1], [0], [0], [1], [0, 0, 1, 1], [], []>} : vector<2x64xf32>, vector<64x32xf32>, vector<2x32xf32> -> vector<2x32xf32>
    %403 = arith.addf %402, %16 : vector<2x32xf32>
    %404 = math.tanh %403 : vector<2x32xf32>
    %405 = arith.mulf %397, %340 : vector<2x8xf32>
    %cst_126 = arith.constant dense<0xFF800000> : vector<2xf32>
    %406 = vector.multi_reduction <maximumf>, %405, %cst_126 [1] : vector<2x8xf32> to vector<2xf32>
    %407 = vector.shape_cast %406 : vector<2xf32> to vector<2x1xf32>
    %408 = vector.broadcast %407 : vector<2x1xf32> to vector<2x8xf32>
    %409 = arith.cmpf oeq, %405, %408 : vector<2x8xf32>
    %c8_i32_127 = arith.constant 8 : i32
    %410 = vector.broadcast %c8_i32_127 : i32 to vector<2x8xi32>
    %411 = arith.select %409, %27, %410 : vector<2x8xi1>, vector<2x8xi32>
    %cst_128 = arith.constant dense<2147483647> : vector<2xi32>
    %412 = vector.multi_reduction <minsi>, %411, %cst_128 [1] : vector<2x8xi32> to vector<2xi32>
    %413 = vector.shape_cast %412 : vector<2xi32> to vector<2x1xi32>
    %414 = vector.broadcast %413 : vector<2x1xi32> to vector<2x8xi32>
    %415 = arith.cmpi eq, %27, %414 : vector<2x8xi32>
    %416 = arith.extui %415 : vector<2x8xi1> to vector<2x8xi32>
    %417 = arith.sitofp %416 : vector<2x8xi32> to vector<2x8xf32>
    %cst_129 = arith.constant 1.000000e+00 : f32
    %418 = vector.broadcast %cst_129 : f32 to vector<2x8xf32>
    %419 = arith.subf %418, %417 : vector<2x8xf32>
    %420 = arith.mulf %340, %419 : vector<2x8xf32>
    %421 = vector.shape_cast %417 : vector<2x8xf32> to vector<2x1x8xf32>
    "tpu.trace_start"() <{level = 10 : i32, message = "bql,ble->bqe"}> : () -> ()
    %cst_130 = arith.constant dense<0.000000e+00> : vector<2x1x16xf32>
    %422 = tpu.matmul %421, %0, %cst_130 {dimension_numbers = #tpu.dot_dimension_numbers<[2], [1], [1], [2], [0, 0, 0, 1, 1, 2], [0], [0]>} : vector<2x1x8xf32>, vector<2x8x16xf32>, vector<2x1x16xf32> -> vector<2x1x16xf32>
    "tpu.trace_stop"() : () -> ()
    %423 = vector.shape_cast %422 : vector<2x1x16xf32> to vector<2x16xf32>
    %c0_131 = arith.constant 0 : index
    %c4 = arith.constant 4 : index
    %c0_132 = arith.constant 0 : index
    %424 = vector.load %arg15[%c0_131, %c4, %c0_132] : memref<2x8x8xf32, #tpu.memory_space<vmem>>, vector<2x1x8xf32>
    %425 = vector.shape_cast %424 : vector<2x1x8xf32> to vector<2x8xf32>
    %426 = vector.shape_cast %397 : vector<2x8xf32> to vector<2x1x8xf32>
    tpu.vector_store %arg15[%c0_131, %c4, %c0_132], %426 {strides = array<i32>} : memref<2x8x8xf32, #tpu.memory_space<vmem>>, vector<2x1x8xf32>,
    %c0_133 = arith.constant 0 : index
    %c4_134 = arith.constant 4 : index
    %427 = vector.load %arg16[%c0_133, %c4_134] : memref<2x8xi32, #tpu.memory_space<vmem>>, vector<2x1xi32>
    tpu.vector_store %arg16[%c0_133, %c4_134], %413 {strides = array<i32>} : memref<2x8xi32, #tpu.memory_space<vmem>>, vector<2x1xi32>,
    %428 = tpu.concatenate %423, %404 in 1 : vector<2x16xf32>, vector<2x32xf32> -> vector<2x48xf32>
    %cst_135 = arith.constant dense<0.000000e+00> : vector<2x128xf32>
    %429 = tpu.matmul %428, %4, %cst_135 {dimension_numbers = #tpu.dot_dimension_numbers<[1], [0], [0], [1], [0, 0, 1, 1], [], []>} : vector<2x48xf32>, vector<48x128xf32>, vector<2x128xf32> -> vector<2x128xf32>
    %430 = arith.addf %429, %10 : vector<2x128xf32>
    %431 = vector.extract_strided_slice %430 {offsets = [0, 0], sizes = [2, 32], strides = [1, 1]} : vector<2x128xf32> to vector<2x32xf32>
    %432 = arith.negf %431 : vector<2x32xf32>
    %433 = math.exp %432 : vector<2x32xf32>
    %cst_136 = arith.constant 1.000000e+00 : f32
    %434 = vector.broadcast %cst_136 : f32 to vector<2x32xf32>
    %435 = arith.addf %434, %433 : vector<2x32xf32>
    %436 = arith.divf %434, %435 : vector<2x32xf32>
    %437 = vector.extract_strided_slice %430 {offsets = [0, 32], sizes = [2, 32], strides = [1, 1]} : vector<2x128xf32> to vector<2x32xf32>
    %438 = arith.negf %437 : vector<2x32xf32>
    %439 = math.exp %438 : vector<2x32xf32>
    %cst_137 = arith.constant 1.000000e+00 : f32
    %440 = vector.broadcast %cst_137 : f32 to vector<2x32xf32>
    %441 = arith.addf %440, %439 : vector<2x32xf32>
    %442 = arith.divf %440, %441 : vector<2x32xf32>
    %443 = vector.extract_strided_slice %430 {offsets = [0, 64], sizes = [2, 32], strides = [1, 1]} : vector<2x128xf32> to vector<2x32xf32>
    %444 = math.tanh %443 : vector<2x32xf32>
    %445 = vector.extract_strided_slice %430 {offsets = [0, 96], sizes = [2, 32], strides = [1, 1]} : vector<2x128xf32> to vector<2x32xf32>
    %446 = arith.negf %445 : vector<2x32xf32>
    %447 = math.exp %446 : vector<2x32xf32>
    %cst_138 = arith.constant 1.000000e+00 : f32
    %448 = vector.broadcast %cst_138 : f32 to vector<2x32xf32>
    %449 = arith.addf %448, %447 : vector<2x32xf32>
    %450 = arith.divf %448, %449 : vector<2x32xf32>
    %451 = arith.mulf %442, %373 : vector<2x32xf32>
    %452 = arith.mulf %436, %444 : vector<2x32xf32>
    %453 = arith.addf %451, %452 : vector<2x32xf32>
    %454 = math.tanh %453 : vector<2x32xf32>
    %455 = arith.mulf %450, %454 : vector<2x32xf32>
    %cst_139 = arith.constant dense<0.000000e+00> : vector<2x32xf32>
    %456 = tpu.matmul %455, %6, %cst_139 {dimension_numbers = #tpu.dot_dimension_numbers<[1], [0], [0], [1], [0, 0, 1, 1], [], []>} : vector<2x32xf32>, vector<32x32xf32>, vector<2x32xf32> -> vector<2x32xf32>
    %457 = arith.addf %456, %13 : vector<2x32xf32>
    %458 = vector.shape_cast %457 : vector<2x32xf32> to vector<2x1x32xf32>
    %459 = vector.broadcast %458 : vector<2x1x32xf32> to vector<2x8x32xf32>
    %460 = arith.addf %459, %25 : vector<2x8x32xf32>
    %461 = math.tanh %460 : vector<2x8x32xf32>
    %462 = vector.shape_cast %461 : vector<2x8x32xf32> to vector<16x32xf32>
    %cst_140 = arith.constant dense<0.000000e+00> : vector<16x1xf32>
    %463 = tpu.matmul %462, %7, %cst_140 {dimension_numbers = #tpu.dot_dimension_numbers<[1], [0], [0], [1], [0, 0, 1, 1], [], []>} : vector<16x32xf32>, vector<32x1xf32>, vector<16x1xf32> -> vector<16x1xf32>
    %464 = vector.shape_cast %463 : vector<16x1xf32> to vector<2x8xf32>
    %cst_141 = arith.constant 0.000000e+00 : f32
    %465 = vector.broadcast %cst_141 : f32 to vector<2x8xf32>
    %466 = arith.cmpf oeq, %420, %465 : vector<2x8xf32>
    %cst_142 = arith.constant -1.000000e+30 : f32
    %467 = vector.broadcast %cst_142 : f32 to vector<2x8xf32>
    %468 = arith.select %466, %467, %464 : vector<2x8xi1>, vector<2x8xf32>
    %cst_143 = arith.constant dense<0xFF800000> : vector<2xf32>
    %469 = vector.multi_reduction <maximumf>, %468, %cst_143 [1] : vector<2x8xf32> to vector<2xf32>
    %470 = vector.shape_cast %469 : vector<2xf32> to vector<2x1xf32>
    %471 = vector.broadcast %470 : vector<2x1xf32> to vector<2x8xf32>
    %472 = arith.subf %468, %471 : vector<2x8xf32>
    %473 = math.exp %472 : vector<2x8xf32>
    %cst_144 = arith.constant dense<0.000000e+00> : vector<2xf32>
    %474 = vector.multi_reduction <add>, %473, %cst_144 [1] : vector<2x8xf32> to vector<2xf32>
    %475 = vector.shape_cast %474 : vector<2xf32> to vector<2x1xf32>
    %476 = vector.broadcast %475 : vector<2x1xf32> to vector<2x8xf32>
    %477 = arith.divf %473, %476 : vector<2x8xf32>
    %478 = vector.shape_cast %477 : vector<2x8xf32> to vector<2x1x8xf32>
    "tpu.trace_start"() <{level = 10 : i32, message = "bql,blh->bqh"}> : () -> ()
    %cst_145 = arith.constant dense<0.000000e+00> : vector<2x1x32xf32>
    %479 = tpu.matmul %478, %25, %cst_145 {dimension_numbers = #tpu.dot_dimension_numbers<[2], [1], [1], [2], [0, 0, 0, 1, 1, 2], [0], [0]>} : vector<2x1x8xf32>, vector<2x8x32xf32>, vector<2x1x32xf32> -> vector<2x1x32xf32>
    "tpu.trace_stop"() : () -> ()
    %480 = vector.shape_cast %479 : vector<2x1x32xf32> to vector<2x32xf32>
    %481 = tpu.concatenate %480, %455 in 1 : vector<2x32xf32>, vector<2x32xf32> -> vector<2x64xf32>
    %cst_146 = arith.constant dense<0.000000e+00> : vector<2x32xf32>
    %482 = tpu.matmul %481, %5, %cst_146 {dimension_numbers = #tpu.dot_dimension_numbers<[1], [0], [0], [1], [0, 0, 1, 1], [], []>} : vector<2x64xf32>, vector<64x32xf32>, vector<2x32xf32> -> vector<2x32xf32>
    %483 = arith.addf %482, %16 : vector<2x32xf32>
    %484 = math.tanh %483 : vector<2x32xf32>
    %485 = arith.mulf %477, %420 : vector<2x8xf32>
    %cst_147 = arith.constant dense<0xFF800000> : vector<2xf32>
    %486 = vector.multi_reduction <maximumf>, %485, %cst_147 [1] : vector<2x8xf32> to vector<2xf32>
    %487 = vector.shape_cast %486 : vector<2xf32> to vector<2x1xf32>
    %488 = vector.broadcast %487 : vector<2x1xf32> to vector<2x8xf32>
    %489 = arith.cmpf oeq, %485, %488 : vector<2x8xf32>
    %c8_i32_148 = arith.constant 8 : i32
    %490 = vector.broadcast %c8_i32_148 : i32 to vector<2x8xi32>
    %491 = arith.select %489, %27, %490 : vector<2x8xi1>, vector<2x8xi32>
    %cst_149 = arith.constant dense<2147483647> : vector<2xi32>
    %492 = vector.multi_reduction <minsi>, %491, %cst_149 [1] : vector<2x8xi32> to vector<2xi32>
    %493 = vector.shape_cast %492 : vector<2xi32> to vector<2x1xi32>
    %494 = vector.broadcast %493 : vector<2x1xi32> to vector<2x8xi32>
    %495 = arith.cmpi eq, %27, %494 : vector<2x8xi32>
    %496 = arith.extui %495 : vector<2x8xi1> to vector<2x8xi32>
    %497 = arith.sitofp %496 : vector<2x8xi32> to vector<2x8xf32>
    %cst_150 = arith.constant 1.000000e+00 : f32
    %498 = vector.broadcast %cst_150 : f32 to vector<2x8xf32>
    %499 = arith.subf %498, %497 : vector<2x8xf32>
    %500 = arith.mulf %420, %499 : vector<2x8xf32>
    %501 = vector.shape_cast %497 : vector<2x8xf32> to vector<2x1x8xf32>
    "tpu.trace_start"() <{level = 10 : i32, message = "bql,ble->bqe"}> : () -> ()
    %cst_151 = arith.constant dense<0.000000e+00> : vector<2x1x16xf32>
    %502 = tpu.matmul %501, %0, %cst_151 {dimension_numbers = #tpu.dot_dimension_numbers<[2], [1], [1], [2], [0, 0, 0, 1, 1, 2], [0], [0]>} : vector<2x1x8xf32>, vector<2x8x16xf32>, vector<2x1x16xf32> -> vector<2x1x16xf32>
    "tpu.trace_stop"() : () -> ()
    %503 = vector.shape_cast %502 : vector<2x1x16xf32> to vector<2x16xf32>
    %c0_152 = arith.constant 0 : index
    %c5 = arith.constant 5 : index
    %c0_153 = arith.constant 0 : index
    %504 = vector.load %arg15[%c0_152, %c5, %c0_153] : memref<2x8x8xf32, #tpu.memory_space<vmem>>, vector<2x1x8xf32>
    %505 = vector.shape_cast %504 : vector<2x1x8xf32> to vector<2x8xf32>
    %506 = vector.shape_cast %477 : vector<2x8xf32> to vector<2x1x8xf32>
    tpu.vector_store %arg15[%c0_152, %c5, %c0_153], %506 {strides = array<i32>} : memref<2x8x8xf32, #tpu.memory_space<vmem>>, vector<2x1x8xf32>,
    %c0_154 = arith.constant 0 : index
    %c5_155 = arith.constant 5 : index
    %507 = vector.load %arg16[%c0_154, %c5_155] : memref<2x8xi32, #tpu.memory_space<vmem>>, vector<2x1xi32>
    tpu.vector_store %arg16[%c0_154, %c5_155], %493 {strides = array<i32>} : memref<2x8xi32, #tpu.memory_space<vmem>>, vector<2x1xi32>,
    %508 = tpu.concatenate %503, %484 in 1 : vector<2x16xf32>, vector<2x32xf32> -> vector<2x48xf32>
    %cst_156 = arith.constant dense<0.000000e+00> : vector<2x128xf32>
    %509 = tpu.matmul %508, %4, %cst_156 {dimension_numbers = #tpu.dot_dimension_numbers<[1], [0], [0], [1], [0, 0, 1, 1], [], []>} : vector<2x48xf32>, vector<48x128xf32>, vector<2x128xf32> -> vector<2x128xf32>
    %510 = arith.addf %509, %10 : vector<2x128xf32>
    %511 = vector.extract_strided_slice %510 {offsets = [0, 0], sizes = [2, 32], strides = [1, 1]} : vector<2x128xf32> to vector<2x32xf32>
    %512 = arith.negf %511 : vector<2x32xf32>
    %513 = math.exp %512 : vector<2x32xf32>
    %cst_157 = arith.constant 1.000000e+00 : f32
    %514 = vector.broadcast %cst_157 : f32 to vector<2x32xf32>
    %515 = arith.addf %514, %513 : vector<2x32xf32>
    %516 = arith.divf %514, %515 : vector<2x32xf32>
    %517 = vector.extract_strided_slice %510 {offsets = [0, 32], sizes = [2, 32], strides = [1, 1]} : vector<2x128xf32> to vector<2x32xf32>
    %518 = arith.negf %517 : vector<2x32xf32>
    %519 = math.exp %518 : vector<2x32xf32>
    %cst_158 = arith.constant 1.000000e+00 : f32
    %520 = vector.broadcast %cst_158 : f32 to vector<2x32xf32>
    %521 = arith.addf %520, %519 : vector<2x32xf32>
    %522 = arith.divf %520, %521 : vector<2x32xf32>
    %523 = vector.extract_strided_slice %510 {offsets = [0, 64], sizes = [2, 32], strides = [1, 1]} : vector<2x128xf32> to vector<2x32xf32>
    %524 = math.tanh %523 : vector<2x32xf32>
    %525 = vector.extract_strided_slice %510 {offsets = [0, 96], sizes = [2, 32], strides = [1, 1]} : vector<2x128xf32> to vector<2x32xf32>
    %526 = arith.negf %525 : vector<2x32xf32>
    %527 = math.exp %526 : vector<2x32xf32>
    %cst_159 = arith.constant 1.000000e+00 : f32
    %528 = vector.broadcast %cst_159 : f32 to vector<2x32xf32>
    %529 = arith.addf %528, %527 : vector<2x32xf32>
    %530 = arith.divf %528, %529 : vector<2x32xf32>
    %531 = arith.mulf %522, %453 : vector<2x32xf32>
    %532 = arith.mulf %516, %524 : vector<2x32xf32>
    %533 = arith.addf %531, %532 : vector<2x32xf32>
    %534 = math.tanh %533 : vector<2x32xf32>
    %535 = arith.mulf %530, %534 : vector<2x32xf32>
    %cst_160 = arith.constant dense<0.000000e+00> : vector<2x32xf32>
    %536 = tpu.matmul %535, %6, %cst_160 {dimension_numbers = #tpu.dot_dimension_numbers<[1], [0], [0], [1], [0, 0, 1, 1], [], []>} : vector<2x32xf32>, vector<32x32xf32>, vector<2x32xf32> -> vector<2x32xf32>
    %537 = arith.addf %536, %13 : vector<2x32xf32>
    %538 = vector.shape_cast %537 : vector<2x32xf32> to vector<2x1x32xf32>
    %539 = vector.broadcast %538 : vector<2x1x32xf32> to vector<2x8x32xf32>
    %540 = arith.addf %539, %25 : vector<2x8x32xf32>
    %541 = math.tanh %540 : vector<2x8x32xf32>
    %542 = vector.shape_cast %541 : vector<2x8x32xf32> to vector<16x32xf32>
    %cst_161 = arith.constant dense<0.000000e+00> : vector<16x1xf32>
    %543 = tpu.matmul %542, %7, %cst_161 {dimension_numbers = #tpu.dot_dimension_numbers<[1], [0], [0], [1], [0, 0, 1, 1], [], []>} : vector<16x32xf32>, vector<32x1xf32>, vector<16x1xf32> -> vector<16x1xf32>
    %544 = vector.shape_cast %543 : vector<16x1xf32> to vector<2x8xf32>
    %cst_162 = arith.constant 0.000000e+00 : f32
    %545 = vector.broadcast %cst_162 : f32 to vector<2x8xf32>
    %546 = arith.cmpf oeq, %500, %545 : vector<2x8xf32>
    %cst_163 = arith.constant -1.000000e+30 : f32
    %547 = vector.broadcast %cst_163 : f32 to vector<2x8xf32>
    %548 = arith.select %546, %547, %544 : vector<2x8xi1>, vector<2x8xf32>
    %cst_164 = arith.constant dense<0xFF800000> : vector<2xf32>
    %549 = vector.multi_reduction <maximumf>, %548, %cst_164 [1] : vector<2x8xf32> to vector<2xf32>
    %550 = vector.shape_cast %549 : vector<2xf32> to vector<2x1xf32>
    %551 = vector.broadcast %550 : vector<2x1xf32> to vector<2x8xf32>
    %552 = arith.subf %548, %551 : vector<2x8xf32>
    %553 = math.exp %552 : vector<2x8xf32>
    %cst_165 = arith.constant dense<0.000000e+00> : vector<2xf32>
    %554 = vector.multi_reduction <add>, %553, %cst_165 [1] : vector<2x8xf32> to vector<2xf32>
    %555 = vector.shape_cast %554 : vector<2xf32> to vector<2x1xf32>
    %556 = vector.broadcast %555 : vector<2x1xf32> to vector<2x8xf32>
    %557 = arith.divf %553, %556 : vector<2x8xf32>
    %558 = vector.shape_cast %557 : vector<2x8xf32> to vector<2x1x8xf32>
    "tpu.trace_start"() <{level = 10 : i32, message = "bql,blh->bqh"}> : () -> ()
    %cst_166 = arith.constant dense<0.000000e+00> : vector<2x1x32xf32>
    %559 = tpu.matmul %558, %25, %cst_166 {dimension_numbers = #tpu.dot_dimension_numbers<[2], [1], [1], [2], [0, 0, 0, 1, 1, 2], [0], [0]>} : vector<2x1x8xf32>, vector<2x8x32xf32>, vector<2x1x32xf32> -> vector<2x1x32xf32>
    "tpu.trace_stop"() : () -> ()
    %560 = vector.shape_cast %559 : vector<2x1x32xf32> to vector<2x32xf32>
    %561 = tpu.concatenate %560, %535 in 1 : vector<2x32xf32>, vector<2x32xf32> -> vector<2x64xf32>
    %cst_167 = arith.constant dense<0.000000e+00> : vector<2x32xf32>
    %562 = tpu.matmul %561, %5, %cst_167 {dimension_numbers = #tpu.dot_dimension_numbers<[1], [0], [0], [1], [0, 0, 1, 1], [], []>} : vector<2x64xf32>, vector<64x32xf32>, vector<2x32xf32> -> vector<2x32xf32>
    %563 = arith.addf %562, %16 : vector<2x32xf32>
    %564 = math.tanh %563 : vector<2x32xf32>
    %565 = arith.mulf %557, %500 : vector<2x8xf32>
    %cst_168 = arith.constant dense<0xFF800000> : vector<2xf32>
    %566 = vector.multi_reduction <maximumf>, %565, %cst_168 [1] : vector<2x8xf32> to vector<2xf32>
    %567 = vector.shape_cast %566 : vector<2xf32> to vector<2x1xf32>
    %568 = vector.broadcast %567 : vector<2x1xf32> to vector<2x8xf32>
    %569 = arith.cmpf oeq, %565, %568 : vector<2x8xf32>
    %c8_i32_169 = arith.constant 8 : i32
    %570 = vector.broadcast %c8_i32_169 : i32 to vector<2x8xi32>
    %571 = arith.select %569, %27, %570 : vector<2x8xi1>, vector<2x8xi32>
    %cst_170 = arith.constant dense<2147483647> : vector<2xi32>
    %572 = vector.multi_reduction <minsi>, %571, %cst_170 [1] : vector<2x8xi32> to vector<2xi32>
    %573 = vector.shape_cast %572 : vector<2xi32> to vector<2x1xi32>
    %574 = vector.broadcast %573 : vector<2x1xi32> to vector<2x8xi32>
    %575 = arith.cmpi eq, %27, %574 : vector<2x8xi32>
    %576 = arith.extui %575 : vector<2x8xi1> to vector<2x8xi32>
    %577 = arith.sitofp %576 : vector<2x8xi32> to vector<2x8xf32>
    %cst_171 = arith.constant 1.000000e+00 : f32
    %578 = vector.broadcast %cst_171 : f32 to vector<2x8xf32>
    %579 = arith.subf %578, %577 : vector<2x8xf32>
    %580 = arith.mulf %500, %579 : vector<2x8xf32>
    %581 = vector.shape_cast %577 : vector<2x8xf32> to vector<2x1x8xf32>
    "tpu.trace_start"() <{level = 10 : i32, message = "bql,ble->bqe"}> : () -> ()
    %cst_172 = arith.constant dense<0.000000e+00> : vector<2x1x16xf32>
    %582 = tpu.matmul %581, %0, %cst_172 {dimension_numbers = #tpu.dot_dimension_numbers<[2], [1], [1], [2], [0, 0, 0, 1, 1, 2], [0], [0]>} : vector<2x1x8xf32>, vector<2x8x16xf32>, vector<2x1x16xf32> -> vector<2x1x16xf32>
    "tpu.trace_stop"() : () -> ()
    %583 = vector.shape_cast %582 : vector<2x1x16xf32> to vector<2x16xf32>
    %c0_173 = arith.constant 0 : index
    %c6 = arith.constant 6 : index
    %c0_174 = arith.constant 0 : index
    %584 = vector.load %arg15[%c0_173, %c6, %c0_174] : memref<2x8x8xf32, #tpu.memory_space<vmem>>, vector<2x1x8xf32>
    %585 = vector.shape_cast %584 : vector<2x1x8xf32> to vector<2x8xf32>
    %586 = vector.shape_cast %557 : vector<2x8xf32> to vector<2x1x8xf32>
    tpu.vector_store %arg15[%c0_173, %c6, %c0_174], %586 {strides = array<i32>} : memref<2x8x8xf32, #tpu.memory_space<vmem>>, vector<2x1x8xf32>,
    %c0_175 = arith.constant 0 : index
    %c6_176 = arith.constant 6 : index
    %587 = vector.load %arg16[%c0_175, %c6_176] : memref<2x8xi32, #tpu.memory_space<vmem>>, vector<2x1xi32>
    tpu.vector_store %arg16[%c0_175, %c6_176], %573 {strides = array<i32>} : memref<2x8xi32, #tpu.memory_space<vmem>>, vector<2x1xi32>,
    %588 = tpu.concatenate %583, %564 in 1 : vector<2x16xf32>, vector<2x32xf32> -> vector<2x48xf32>
    %cst_177 = arith.constant dense<0.000000e+00> : vector<2x128xf32>
    %589 = tpu.matmul %588, %4, %cst_177 {dimension_numbers = #tpu.dot_dimension_numbers<[1], [0], [0], [1], [0, 0, 1, 1], [], []>} : vector<2x48xf32>, vector<48x128xf32>, vector<2x128xf32> -> vector<2x128xf32>
    %590 = arith.addf %589, %10 : vector<2x128xf32>
    %591 = vector.extract_strided_slice %590 {offsets = [0, 0], sizes = [2, 32], strides = [1, 1]} : vector<2x128xf32> to vector<2x32xf32>
    %592 = arith.negf %591 : vector<2x32xf32>
    %593 = math.exp %592 : vector<2x32xf32>
    %cst_178 = arith.constant 1.000000e+00 : f32
    %594 = vector.broadcast %cst_178 : f32 to vector<2x32xf32>
    %595 = arith.addf %594, %593 : vector<2x32xf32>
    %596 = arith.divf %594, %595 : vector<2x32xf32>
    %597 = vector.extract_strided_slice %590 {offsets = [0, 32], sizes = [2, 32], strides = [1, 1]} : vector<2x128xf32> to vector<2x32xf32>
    %598 = arith.negf %597 : vector<2x32xf32>
    %599 = math.exp %598 : vector<2x32xf32>
    %cst_179 = arith.constant 1.000000e+00 : f32
    %600 = vector.broadcast %cst_179 : f32 to vector<2x32xf32>
    %601 = arith.addf %600, %599 : vector<2x32xf32>
    %602 = arith.divf %600, %601 : vector<2x32xf32>
    %603 = vector.extract_strided_slice %590 {offsets = [0, 64], sizes = [2, 32], strides = [1, 1]} : vector<2x128xf32> to vector<2x32xf32>
    %604 = math.tanh %603 : vector<2x32xf32>
    %605 = vector.extract_strided_slice %590 {offsets = [0, 96], sizes = [2, 32], strides = [1, 1]} : vector<2x128xf32> to vector<2x32xf32>
    %606 = arith.negf %605 : vector<2x32xf32>
    %607 = math.exp %606 : vector<2x32xf32>
    %cst_180 = arith.constant 1.000000e+00 : f32
    %608 = vector.broadcast %cst_180 : f32 to vector<2x32xf32>
    %609 = arith.addf %608, %607 : vector<2x32xf32>
    %610 = arith.divf %608, %609 : vector<2x32xf32>
    %611 = arith.mulf %602, %533 : vector<2x32xf32>
    %612 = arith.mulf %596, %604 : vector<2x32xf32>
    %613 = arith.addf %611, %612 : vector<2x32xf32>
    %614 = math.tanh %613 : vector<2x32xf32>
    %615 = arith.mulf %610, %614 : vector<2x32xf32>
    %cst_181 = arith.constant dense<0.000000e+00> : vector<2x32xf32>
    %616 = tpu.matmul %615, %6, %cst_181 {dimension_numbers = #tpu.dot_dimension_numbers<[1], [0], [0], [1], [0, 0, 1, 1], [], []>} : vector<2x32xf32>, vector<32x32xf32>, vector<2x32xf32> -> vector<2x32xf32>
    %617 = arith.addf %616, %13 : vector<2x32xf32>
    %618 = vector.shape_cast %617 : vector<2x32xf32> to vector<2x1x32xf32>
    %619 = vector.broadcast %618 : vector<2x1x32xf32> to vector<2x8x32xf32>
    %620 = arith.addf %619, %25 : vector<2x8x32xf32>
    %621 = math.tanh %620 : vector<2x8x32xf32>
    %622 = vector.shape_cast %621 : vector<2x8x32xf32> to vector<16x32xf32>
    %cst_182 = arith.constant dense<0.000000e+00> : vector<16x1xf32>
    %623 = tpu.matmul %622, %7, %cst_182 {dimension_numbers = #tpu.dot_dimension_numbers<[1], [0], [0], [1], [0, 0, 1, 1], [], []>} : vector<16x32xf32>, vector<32x1xf32>, vector<16x1xf32> -> vector<16x1xf32>
    %624 = vector.shape_cast %623 : vector<16x1xf32> to vector<2x8xf32>
    %cst_183 = arith.constant 0.000000e+00 : f32
    %625 = vector.broadcast %cst_183 : f32 to vector<2x8xf32>
    %626 = arith.cmpf oeq, %580, %625 : vector<2x8xf32>
    %cst_184 = arith.constant -1.000000e+30 : f32
    %627 = vector.broadcast %cst_184 : f32 to vector<2x8xf32>
    %628 = arith.select %626, %627, %624 : vector<2x8xi1>, vector<2x8xf32>
    %cst_185 = arith.constant dense<0xFF800000> : vector<2xf32>
    %629 = vector.multi_reduction <maximumf>, %628, %cst_185 [1] : vector<2x8xf32> to vector<2xf32>
    %630 = vector.shape_cast %629 : vector<2xf32> to vector<2x1xf32>
    %631 = vector.broadcast %630 : vector<2x1xf32> to vector<2x8xf32>
    %632 = arith.subf %628, %631 : vector<2x8xf32>
    %633 = math.exp %632 : vector<2x8xf32>
    %cst_186 = arith.constant dense<0.000000e+00> : vector<2xf32>
    %634 = vector.multi_reduction <add>, %633, %cst_186 [1] : vector<2x8xf32> to vector<2xf32>
    %635 = vector.shape_cast %634 : vector<2xf32> to vector<2x1xf32>
    %636 = vector.broadcast %635 : vector<2x1xf32> to vector<2x8xf32>
    %637 = arith.divf %633, %636 : vector<2x8xf32>
    %638 = vector.shape_cast %637 : vector<2x8xf32> to vector<2x1x8xf32>
    "tpu.trace_start"() <{level = 10 : i32, message = "bql,blh->bqh"}> : () -> ()
    %cst_187 = arith.constant dense<0.000000e+00> : vector<2x1x32xf32>
    %639 = tpu.matmul %638, %25, %cst_187 {dimension_numbers = #tpu.dot_dimension_numbers<[2], [1], [1], [2], [0, 0, 0, 1, 1, 2], [0], [0]>} : vector<2x1x8xf32>, vector<2x8x32xf32>, vector<2x1x32xf32> -> vector<2x1x32xf32>
    "tpu.trace_stop"() : () -> ()
    %640 = vector.shape_cast %639 : vector<2x1x32xf32> to vector<2x32xf32>
    %641 = tpu.concatenate %640, %615 in 1 : vector<2x32xf32>, vector<2x32xf32> -> vector<2x64xf32>
    %cst_188 = arith.constant dense<0.000000e+00> : vector<2x32xf32>
    %642 = tpu.matmul %641, %5, %cst_188 {dimension_numbers = #tpu.dot_dimension_numbers<[1], [0], [0], [1], [0, 0, 1, 1], [], []>} : vector<2x64xf32>, vector<64x32xf32>, vector<2x32xf32> -> vector<2x32xf32>
    %643 = arith.addf %642, %16 : vector<2x32xf32>
    %644 = math.tanh %643 : vector<2x32xf32>
    %645 = arith.mulf %637, %580 : vector<2x8xf32>
    %cst_189 = arith.constant dense<0xFF800000> : vector<2xf32>
    %646 = vector.multi_reduction <maximumf>, %645, %cst_189 [1] : vector<2x8xf32> to vector<2xf32>
    %647 = vector.shape_cast %646 : vector<2xf32> to vector<2x1xf32>
    %648 = vector.broadcast %647 : vector<2x1xf32> to vector<2x8xf32>
    %649 = arith.cmpf oeq, %645, %648 : vector<2x8xf32>
    %c8_i32_190 = arith.constant 8 : i32
    %650 = vector.broadcast %c8_i32_190 : i32 to vector<2x8xi32>
    %651 = arith.select %649, %27, %650 : vector<2x8xi1>, vector<2x8xi32>
    %cst_191 = arith.constant dense<2147483647> : vector<2xi32>
    %652 = vector.multi_reduction <minsi>, %651, %cst_191 [1] : vector<2x8xi32> to vector<2xi32>
    %653 = vector.shape_cast %652 : vector<2xi32> to vector<2x1xi32>
    %c0_192 = arith.constant 0 : index
    %c7 = arith.constant 7 : index
    %c0_193 = arith.constant 0 : index
    %654 = vector.load %arg15[%c0_192, %c7, %c0_193] : memref<2x8x8xf32, #tpu.memory_space<vmem>>, vector<2x1x8xf32>
    %655 = vector.shape_cast %654 : vector<2x1x8xf32> to vector<2x8xf32>
    %656 = vector.shape_cast %637 : vector<2x8xf32> to vector<2x1x8xf32>
    tpu.vector_store %arg15[%c0_192, %c7, %c0_193], %656 {strides = array<i32>} : memref<2x8x8xf32, #tpu.memory_space<vmem>>, vector<2x1x8xf32>,
    %c0_194 = arith.constant 0 : index
    %c7_195 = arith.constant 7 : index
    %657 = vector.load %arg16[%c0_194, %c7_195] : memref<2x8xi32, #tpu.memory_space<vmem>>, vector<2x1xi32>
    tpu.vector_store %arg16[%c0_194, %c7_195], %653 {strides = array<i32>} : memref<2x8xi32, #tpu.memory_space<vmem>>, vector<2x1xi32>,
    %c0_196 = arith.constant 0 : index
    %c0_197 = arith.constant 0 : index
    %658 = vector.load %arg17[%c0_196, %c0_197] : memref<2x32xf32, #tpu.memory_space<vmem>>, vector<2x32xf32>
    tpu.vector_store %arg17[%c0_196, %c0_197], %644 {strides = array<i32>} : memref<2x32xf32, #tpu.memory_space<vmem>>, vector<2x32xf32>,
    %c0_198 = arith.constant 0 : index
    %c0_199 = arith.constant 0 : index
    %659 = vector.load %arg18[%c0_198, %c0_199] : memref<2x32xf32, #tpu.memory_space<vmem>>, vector<2x32xf32>
    tpu.vector_store %arg18[%c0_198, %c0_199], %613 {strides = array<i32>} : memref<2x32xf32, #tpu.memory_space<vmem>>, vector<2x32xf32>,
    return
  }
  func.func @transform_0(%arg0: i32) -> (i32, i32, i32) {
    %c0_i32 = arith.constant 0 : i32
    %c0_i32_0 = arith.constant 0 : i32
    %c0_i32_1 = arith.constant 0 : i32
    return %arg0, %c0_i32, %c0_i32_0 : i32, i32, i32
  }
  func.func @transform_1(%arg0: i32) -> (i32, i32) {
    %c0_i32 = arith.constant 0 : i32
    %c0_i32_0 = arith.constant 0 : i32
    return %arg0, %c0_i32 : i32, i32
  }
  func.func @transform_2(%arg0: i32) -> (i32, i32) {
    %c0_i32 = arith.constant 0 : i32
    %c0_i32_0 = arith.constant 0 : i32
    return %arg0, %c0_i32 : i32, i32
  }
  func.func @transform_3(%arg0: i32) -> (i32, i32) {
    %c0_i32 = arith.constant 0 : i32
    %c0_i32_0 = arith.constant 0 : i32
    return %arg0, %c0_i32 : i32, i32
  }
  func.func @transform_4(%arg0: i32) -> (i32, i32, i32) {
    %c0_i32 = arith.constant 0 : i32
    %c0_i32_0 = arith.constant 0 : i32
    %c0_i32_1 = arith.constant 0 : i32
    return %arg0, %c0_i32, %c0_i32_0 : i32, i32, i32
  }
  func.func @transform_5(%arg0: i32) -> (i32, i32) {
    %c0_i32 = arith.constant 0 : i32
    %c0_i32_0 = arith.constant 0 : i32
    %c0_i32_1 = arith.constant 0 : i32
    return %c0_i32, %c0_i32_0 : i32, i32
  }
  func.func @transform_6(%arg0: i32) -> (i32, i32) {
    %c0_i32 = arith.constant 0 : i32
    %c0_i32_0 = arith.constant 0 : i32
    %c0_i32_1 = arith.constant 0 : i32
    return %c0_i32, %c0_i32_0 : i32, i32
  }
  func.func @transform_7(%arg0: i32) -> (i32, i32) {
    %c0_i32 = arith.constant 0 : i32
    %c0_i32_0 = arith.constant 0 : i32
    %c0_i32_1 = arith.constant 0 : i32
    return %c0_i32, %c0_i32_0 : i32, i32
  }
  func.func @transform_8(%arg0: i32) -> (i32, i32) {
    %c0_i32 = arith.constant 0 : i32
    %c0_i32_0 = arith.constant 0 : i32
    %c0_i32_1 = arith.constant 0 : i32
    return %c0_i32, %c0_i32_0 : i32, i32
  }
  func.func @transform_9(%arg0: i32) -> (i32, i32) {
    %c0_i32 = arith.constant 0 : i32
    %c0_i32_0 = arith.constant 0 : i32
    %c0_i32_1 = arith.constant 0 : i32
    return %c0_i32, %c0_i32_0 : i32, i32
  }
  func.func @transform_10(%arg0: i32) -> (i32, i32) {
    %c0_i32 = arith.constant 0 : i32
    %c0_i32_0 = arith.constant 0 : i32
    %c0_i32_1 = arith.constant 0 : i32
    return %c0_i32, %c0_i32_0 : i32, i32
  }
  func.func @transform_11(%arg0: i32) -> (i32, i32) {
    %c0_i32 = arith.constant 0 : i32
    %c0_i32_0 = arith.constant 0 : i32
    %c0_i32_1 = arith.constant 0 : i32
    return %c0_i32, %c0_i32_0 : i32, i32
  }
  func.func @transform_12(%arg0: i32) -> (i32, i32) {
    %c0_i32 = arith.constant 0 : i32
    %c0_i32_0 = arith.constant 0 : i32
    %c0_i32_1 = arith.constant 0 : i32
    return %c0_i32, %c0_i32_0 : i32, i32
  }
  func.func @transform_13(%arg0: i32) -> (i32, i32) {
    %c0_i32 = arith.constant 0 : i32
    %c0_i32_0 = arith.constant 0 : i32
    %c0_i32_1 = arith.constant 0 : i32
    return %c0_i32, %c0_i32_0 : i32, i32
  }
  func.func @transform_14(%arg0: i32) -> (i32, i32, i32) {
    %c0_i32 = arith.constant 0 : i32
    %c0_i32_0 = arith.constant 0 : i32
    %c0_i32_1 = arith.constant 0 : i32
    return %arg0, %c0_i32, %c0_i32_0 : i32, i32, i32
  }
  func.func @transform_15(%arg0: i32) -> (i32, i32) {
    %c0_i32 = arith.constant 0 : i32
    %c0_i32_0 = arith.constant 0 : i32
    return %arg0, %c0_i32 : i32, i32
  }
  func.func @transform_16(%arg0: i32) -> (i32, i32) {
    %c0_i32 = arith.constant 0 : i32
    %c0_i32_0 = arith.constant 0 : i32
    return %arg0, %c0_i32 : i32, i32
  }
  func.func @transform_17(%arg0: i32) -> (i32, i32) {
    %c0_i32 = arith.constant 0 : i32
    %c0_i32_0 = arith.constant 0 : i32
    return %arg0, %c0_i32 : i32, i32
  }
}

</mosaic_0001>

<llo_original>
// kernel: tpu_custom_call.1
$region0: #{tpu_custom_call.1}
  #allocation0 [shape = 'u32[]', space=smem, size = 0x4, offset = 0x4, fixed_abs, tag = 'smem constant byte address 0x4 - core index']
  #allocation1 [shape = 'u32[144,128]{1,0:T(1,128)}', space=vmem, size = 0x12000, scoped, tag = 'internal scratch']
  %s0 = inlined_call_operand.hbm [shape: f32[2,8,16], index: 0, kind: input, shape index: {}]
  %s1 = inlined_call_operand.vmem [shape: f32[2,16], index: 1, kind: input, shape index: {}]
  %s2 = inlined_call_operand.vmem [shape: f32[2,32], index: 2, kind: input, shape index: {}]
  %s3 = inlined_call_operand.vmem [shape: f32[2,32], index: 3, kind: input, shape index: {}]
  %s4 = inlined_call_operand.hbm [shape: f32[2,8,32], index: 4, kind: input, shape index: {}]
  %s5 = inlined_call_operand.vmem [shape: f32[48,128], index: 5, kind: input, shape index: {}]
  %s6 = inlined_call_operand.vmem [shape: f32[1,128], index: 6, kind: input, shape index: {}]
  %s7 = inlined_call_operand.vmem [shape: f32[64,32], index: 7, kind: input, shape index: {}]
  %s8 = inlined_call_operand.vmem [shape: f32[1,32], index: 8, kind: input, shape index: {}]
  %s9 = inlined_call_operand.vmem [shape: f32[32,32], index: 9, kind: input, shape index: {}]
  %s10 = inlined_call_operand.vmem [shape: f32[1,32], index: 10, kind: input, shape index: {}]
  %s11 = inlined_call_operand.vmem [shape: f32[32,32], index: 11, kind: input, shape index: {}]
  %s12 = inlined_call_operand.vmem [shape: f32[1,32], index: 12, kind: input, shape index: {}]
  %s13 = inlined_call_operand.vmem [shape: f32[32,1], index: 13, kind: input, shape index: {}]
  %s14 = inlined_call_operand.hbm [shape: f32[2,8,8], index: 14, kind: output, shape index: {0}]
  %s15 = inlined_call_operand.hbm [shape: s32[2,8], index: 15, kind: output, shape index: {1}]
  %s16 = inlined_call_operand.hbm [shape: f32[2,32], index: 16, kind: output, shape index: {2}]
  %s17 = inlined_call_operand.hbm [shape: f32[2,32], index: 17, kind: output, shape index: {3}]
  %18 = xla_tuple %s14, %s15, %s16, %s17
  %s19 = sld [smem:[#allocation0]]
  $region98: #{tpu_custom_call.1} parent=0
    _
  %s21 = ssub.s32 1, %s19
  %s22 = scalar_select 0, %s21, %s19
  $region1: #{tpu_custom_call.1} parent=0
    #allocation2 [shape = 'u8[8192]{0}', space=vmem, size = 0x2000, scoped, tag = 'input window, operand 0, single buffered']
    #allocation3 [shape = 's32[1]{0}', space=sflag, size = 0x4, scoped, tag = 'scoped memory for tpu_custom_call.1']
    #allocation4 [shape = 's32[1]{0}', space=sflag, size = 0x4, scoped, tag = 'scoped memory for tpu_custom_call.1']
    #allocation5 [shape = 'u8[8192]{0}', space=vmem, size = 0x2000, scoped, tag = 'input window, operand 4, single buffered']
    #allocation6 [shape = 's32[1]{0}', space=sflag, size = 0x4, scoped, tag = 'scoped memory for tpu_custom_call.1']
    #allocation7 [shape = 'u8[8192]{0}', space=vmem, size = 0x2000, scoped, tag = 'output window, operand 0, single buffered']
    #allocation8 [shape = 'u8[1024]{0}', space=vmem, size = 0x400, scoped, tag = 'output window, operand 1, single buffered']
    #allocation9 [shape = 's32[1]{0}', space=sflag, size = 0x4, scoped, tag = 'scoped memory for tpu_custom_call.1']
    #allocation10 [shape = 'u8[1024]{0}', space=vmem, size = 0x400, scoped, tag = 'output window, operand 2, single buffered']
    #allocation11 [shape = 'u8[1024]{0}', space=vmem, size = 0x400, scoped, tag = 'output window, operand 3, single buffered']
    #allocation12 [shape = 's32[1]{0}', space=sflag, size = 0x4, scoped, tag = 'scoped memory for tpu_custom_call.1']
    %23 = vsyncpa [#allocation3], 0
    %24 = vsyncpa [#allocation6], 0
    %25 = vsyncpa [#allocation4], 0
    %26 = vsyncpa [#allocation9], 0
    %27 = vsyncpa [#allocation12], 0
    // Predicated region
    $region2: #{tpu_custom_call.1} parent=1 // pred_check
      _
    $region3: #{tpu_custom_call.1} parent=1 // pred_check_branch
      %29 = sbr.rel (0) target = $region5
    $region4: #{tpu_custom_call.1} parent=1 // pred_region
      %s31 = ssub.s32 256, 256
      %32 = vsyncadd [#allocation3], %s31
      %s33 = sshll.u32 [#allocation2], 4
      %s34 = int_to_ptr.vmem [resolvable:$true] %s33
      %39 = dma.hbm_to_vmem [thread:$0]  %s0, 256, %s34, [#allocation3], 128, 128, 8
    $region5: #{tpu_custom_call.1} parent=1 // pred_fallthru
      _
    // Predicated region
    $region6: #{tpu_custom_call.1} parent=1 // pred_check
      _
    $region7: #{tpu_custom_call.1} parent=1 // pred_check_branch
      %41 = sbr.rel (0) target = $region9
    $region8: #{tpu_custom_call.1} parent=1 // pred_region
      _
    $region9: #{tpu_custom_call.1} parent=1 // pred_fallthru
      _
    // Predicated region
    $region10: #{tpu_custom_call.1} parent=1 // pred_check
      _
    $region11: #{tpu_custom_call.1} parent=1 // pred_check_branch
      %43 = sbr.rel (0) target = $region13
    $region12: #{tpu_custom_call.1} parent=1 // pred_region
      _
    $region13: #{tpu_custom_call.1} parent=1 // pred_fallthru
      _
    // Predicated region
    $region14: #{tpu_custom_call.1} parent=1 // pred_check
      _
    $region15: #{tpu_custom_call.1} parent=1 // pred_check_branch
      %45 = sbr.rel (0) target = $region17
    $region16: #{tpu_custom_call.1} parent=1 // pred_region
      _
    $region17: #{tpu_custom_call.1} parent=1 // pred_fallthru
      _
    // Predicated region
    $region18: #{tpu_custom_call.1} parent=1 // pred_check
      _
    $region19: #{tpu_custom_call.1} parent=1 // pred_check_branch
      %47 = sbr.rel (0) target = $region21
    $region20: #{tpu_custom_call.1} parent=1 // pred_region
      %s49 = ssub.s32 256, 256
      %50 = vsyncadd [#allocation6], %s49
      %s51 = sshll.u32 [#allocation5], 4
      %s52 = int_to_ptr.vmem [resolvable:$true] %s51
      %57 = dma.hbm_to_vmem [thread:$0]  %s4, 256, %s52, [#allocation6], 128, 128, 8
    $region21: #{tpu_custom_call.1} parent=1 // pred_fallthru
      _
    // Predicated region
    $region22: #{tpu_custom_call.1} parent=1 // pred_check
      _
    $region23: #{tpu_custom_call.1} parent=1 // pred_check_branch
      %59 = sbr.rel (0) target = $region25
    $region24: #{tpu_custom_call.1} parent=1 // pred_region
      _
    $region25: #{tpu_custom_call.1} parent=1 // pred_fallthru
      _
    // Predicated region
    $region26: #{tpu_custom_call.1} parent=1 // pred_check
      _
    $region27: #{tpu_custom_call.1} parent=1 // pred_check_branch
      %61 = sbr.rel (0) target = $region29
    $region28: #{tpu_custom_call.1} parent=1 // pred_region
      _
    $region29: #{tpu_custom_call.1} parent=1 // pred_fallthru
      _
    // Predicated region
    $region30: #{tpu_custom_call.1} parent=1 // pred_check
      _
    $region31: #{tpu_custom_call.1} parent=1 // pred_check_branch
      %63 = sbr.rel (0) target = $region33
    $region32: #{tpu_custom_call.1} parent=1 // pred_region
      _
    $region33: #{tpu_custom_call.1} parent=1 // pred_fallthru
      _
    // Predicated region
    $region34: #{tpu_custom_call.1} parent=1 // pred_check
      _
    $region35: #{tpu_custom_call.1} parent=1 // pred_check_branch
      %65 = sbr.rel (0) target = $region37
    $region36: #{tpu_custom_call.1} parent=1 // pred_region
      _
    $region37: #{tpu_custom_call.1} parent=1 // pred_fallthru
      _
    // Predicated region
    $region38: #{tpu_custom_call.1} parent=1 // pred_check
      _
    $region39: #{tpu_custom_call.1} parent=1 // pred_check_branch
      %67 = sbr.rel (0) target = $region41
    $region40: #{tpu_custom_call.1} parent=1 // pred_region
      _
    $region41: #{tpu_custom_call.1} parent=1 // pred_fallthru
      _
    // Predicated region
    $region42: #{tpu_custom_call.1} parent=1 // pred_check
      _
    $region43: #{tpu_custom_call.1} parent=1 // pred_check_branch
      %69 = sbr.rel (0) target = $region45
    $region44: #{tpu_custom_call.1} parent=1 // pred_region
      _
    $region45: #{tpu_custom_call.1} parent=1 // pred_fallthru
      _
    // Predicated region
    $region46: #{tpu_custom_call.1} parent=1 // pred_check
      _
    $region47: #{tpu_custom_call.1} parent=1 // pred_check_branch
      %71 = sbr.rel (0) target = $region49
    $region48: #{tpu_custom_call.1} parent=1 // pred_region
      _
    $region49: #{tpu_custom_call.1} parent=1 // pred_fallthru
      _
    // Predicated region
    $region50: #{tpu_custom_call.1} parent=1 // pred_check
      _
    $region51: #{tpu_custom_call.1} parent=1 // pred_check_branch
      %73 = sbr.rel (0) target = $region53
    $region52: #{tpu_custom_call.1} parent=1 // pred_region
      _
    $region53: #{tpu_custom_call.1} parent=1 // pred_fallthru
      _
    // Predicated region
    $region54: #{tpu_custom_call.1} parent=1 // pred_check
      _
    $region55: #{tpu_custom_call.1} parent=1 // pred_check_branch
      %75 = sbr.rel (0) target = $region57
    $region56: #{tpu_custom_call.1} parent=1 // pred_region
      _
    $region57: #{tpu_custom_call.1} parent=1 // pred_fallthru
      _
    // Predicated region
    $region58: #{tpu_custom_call.1} parent=1 // pred_check
      _
    $region59: #{tpu_custom_call.1} parent=1 // pred_check_branch
      %77 = sbr.rel (0) target = $region61
    $region60: #{tpu_custom_call.1} parent=1 // pred_region
      %78 = dma.done [#allocation3], 256
    $region61: #{tpu_custom_call.1} parent=1 // pred_fallthru
      _
    // Predicated region
    $region62: #{tpu_custom_call.1} parent=1 // pred_check
      _
    $region63: #{tpu_custom_call.1} parent=1 // pred_check_branch
      %80 = sbr.rel (0) target = $region65
    $region64: #{tpu_custom_call.1} parent=1 // pred_region
      %81 = dma.done [#allocation6], 256
    $region65: #{tpu_custom_call.1} parent=1 // pred_fallthru
      _
    %v82 = vld [vmem:[#allocation2] sm:$0xff]
    %v83 = vld [vmem:[#allocation2 + $0x8] sm:$0xff]
    %v84 = vld [vmem:[%s1] sm:$0x3]
    %v85 = vld [vmem:[%s2] sm:$0x3]
    %v86 = vld [vmem:[%s3] sm:$0x3]
    %v87 = vld [vmem:[%s5] sm:$0xff]
    %v88 = vld [vmem:[%s5 + $0x8] sm:$0xff]
    %v89 = vld [vmem:[%s5 + $0x10] sm:$0xff]
    %v90 = vld [vmem:[%s5 + $0x18] sm:$0xff]
    %v91 = vld [vmem:[%s5 + $0x20] sm:$0xff]
    %v92 = vld [vmem:[%s5 + $0x28] sm:$0xff]
    %v93 = vld [vmem:[%s7] sm:$0xff]
    %v94 = vld [vmem:[%s7 + $0x8] sm:$0xff]
    %v95 = vld [vmem:[%s7 + $0x10] sm:$0xff]
    %v96 = vld [vmem:[%s7 + $0x18] sm:$0xff]
    %v97 = vld [vmem:[%s7 + $0x20] sm:$0xff]
    %v98 = vld [vmem:[%s7 + $0x28] sm:$0xff]
    %v99 = vld [vmem:[%s7 + $0x30] sm:$0xff]
    %v100 = vld [vmem:[%s7 + $0x38] sm:$0xff]
    %v101 = vld [vmem:[%s9] sm:$0xff]
    %v102 = vld [vmem:[%s9 + $0x8] sm:$0xff]
    %v103 = vld [vmem:[%s9 + $0x10] sm:$0xff]
    %v104 = vld [vmem:[%s9 + $0x18] sm:$0xff]
    %v105 = vld [vmem:[%s13] sm:$0xff]
    %v106 = vld [vmem:[%s13 + $0x8] sm:$0xff]
    %v107 = vld [vmem:[%s13 + $0x10] sm:$0xff]
    %v108 = vld [vmem:[%s13 + $0x18] sm:$0xff]
    %v109 = vld [vmem:[%s6] sm:$0x1]
    %v111 = vlaneseq
    %v112 = vshrl.u32 %v111, 7
    %v113 = vsub.s32 0, %v112
    %v114 = vrot.slane %v109, %v113
    %v116 = vld [vmem:[%s10] sm:$0x1]
    %v118 = vlaneseq
    %v119 = vshrl.u32 %v118, 7
    %v120 = vsub.s32 0, %v119
    %v121 = vrot.slane %v116, %v120
    %v123 = vld [vmem:[%s8] sm:$0x1]
    %v125 = vlaneseq
    %v126 = vshrl.u32 %v125, 7
    %v127 = vsub.s32 0, %v126
    %v128 = vrot.slane %v123, %v127
    %v130 = vld [vmem:[#allocation5] sm:$0xff]
    %v131 = vld [vmem:[#allocation5 + $0x8] sm:$0xff]
    %v132 = vld [vmem:[%s11] sm:$0xff]
    %v133 = vld [vmem:[%s11 + $0x8] sm:$0xff]
    %v134 = vld [vmem:[%s11 + $0x10] sm:$0xff]
    %v135 = vld [vmem:[%s11 + $0x18] sm:$0xff]
    %vm136 = vcmask 261120
    %v138 = vsel %vm136, %v130, 0
    %v141 = vsel %vm136, %v131, 0
    %143 = vmatprep.subr.mxu0 0.0
    %144 = vmatpush1.msra.mxu0 %v132
    %145 = vmatprep.subr.mxu0 0.0
    %146 = vmatpush1.msra.mxu0 %v133
    %147 = vmatprep.subr.mxu0 0.0
    %148 = vmatpush1.msra.mxu0 %v134
    %149 = vmatprep.subr.mxu0 0.0
    %150 = vmatpush1.msra.mxu0 %v135
    %151 = vmatprep.subr.mxu0 0.0
    %152 = vmatpush1.msra.mxu0 0.0
    %153 = vmatprep.subr.mxu0 0.0
    %154 = vmatpush1.msra.mxu0 0.0
    %155 = vmatprep.subr.mxu0 0.0
    %156 = vmatpush1.msra.mxu0 0.0
    %157 = vmatprep.subr.mxu0 0.0
    %158 = vmatpush1.msra.mxu0 0.0
    %159 = vmatprep.subr.mxu0 0.0
    %160 = vmatpush1.msra.mxu0 0.0
    %161 = vmatprep.subr.mxu0 0.0
    %162 = vmatpush1.msra.mxu0 0.0
    %163 = vmatprep.subr.mxu0 0.0
    %164 = vmatpush1.msra.mxu0 0.0
    %165 = vmatprep.subr.mxu0 0.0
    %166 = vmatpush1.msra.mxu0 0.0
    %167 = vmatprep.subr.mxu0 0.0
    %168 = vmatpush1.msra.mxu0 0.0
    %169 = vmatprep.subr.mxu0 0.0
    %170 = vmatpush1.msra.mxu0 0.0
    %171 = vmatprep.subr.mxu0 0.0
    %172 = vmatpush1.msra.mxu0 0.0
    %173 = vmatprep.subr.mxu0 0.0
    %174 = vmatpush1.msra.mxu0 0.0
    %175 = vmatprep.subr.mxu0 0.0
    %176 = vmatpush1.msra.mxu0 0.0
    %177 = vmatprep.subr.mxu0 0.0
    %178 = vmatpush1.msra.mxu0 0.0
    %179 = vmatprep.subr.mxu0 0.0
    %180 = vmatpush1.msra.mxu0 0.0
    %181 = vmatprep.subr.mxu0 0.0
    %182 = vmatpush1.msra.mxu0 0.0
    %183 = vmatprep.subr.mxu0 0.0
    %184 = vmatpush1.msra.mxu0 0.0
    %185 = vmatprep.subr.mxu0 0.0
    %186 = vmatpush1.msra.mxu0 0.0
    %187 = vmatprep.subr.mxu0 0.0
    %188 = vmatpush1.msra.mxu0 0.0
    %189 = vmatprep.subr.mxu0 0.0
    %190 = vmatpush1.msra.mxu0 0.0
    %191 = vmatprep.subr.mxu0 0.0
    %192 = vmatpush1.msra.mxu0 0.0
    %193 = vmatprep.subr.mxu0 0.0
    %194 = vmatpush1.msra.mxu0 0.0
    %195 = vmatprep.subr.mxu0 0.0
    %196 = vmatpush1.msra.mxu0 0.0
    %197 = vmatprep.subr.mxu0 0.0
    %198 = vmatpush1.msra.mxu0 0.0
    %199 = vmatprep.subr.mxu0 0.0
    %200 = vmatpush1.msra.mxu0 0.0
    %201 = vmatprep.subr.mxu0 0.0
    %202 = vmatpush1.msra.mxu0 0.0
    %203 = vmatprep.subr.mxu0 0.0
    %204 = vmatpush1.msra.mxu0 0.0
    %205 = vmatprep.subr.mxu0 0.0
    %206 = vmatpush1.msra.mxu0 0.0
    %207 = vmatprep.mubr.f32.mxu0 0.0
    %208 = vmatmul.mubr.f32.gmra.mrb[0].mxu0 %v138
    %v209 = vpop.f32.mrb[0].mxu0
    %v210 = vadd.f32 0.0, %v209
    %v211 = vpop.f32.mrb[0].mxu0
    %212 = vmatprep.mubr.f32.mxu0 0.0
    %213 = vmatmul.mubr.f32.gmra.mrb[0].mxu0 %v141
    %v214 = vpop.f32.mrb[0].mxu0
    %v215 = vadd.f32 0.0, %v214
    %v216 = vpop.f32.mrb[0].mxu0
    %217 = vdwg.mxu0
    %v218 = vld [vmem:[%s12] sm:$0x1]
    %v220 = vlaneseq
    %v221 = vshrl.u32 %v220, 7
    %v222 = vsub.s32 0, %v221
    %v223 = vrot.slane %v218, %v222
    %v225 = vadd.f32 %v210, %v223
    %v226 = vadd.f32 %v215, %v223
    %v227 = vlaneseq
    %v228 = vand.u32 %v227, 127
    %230 = vrot.lane.b32.xlu0 %v85, 16
    %v231 = vpop.permute.xlu0 %230
    %vm233 = vcmask 130048
    %v234 = vsel %vm233, %v84, %v231
    %vm235 = vcmask 392192
    %v237 = vsel %vm235, %v234, 0
    %239 = vmatprep.subr.mxu0 0.0
    %240 = vmatpush1.msra.mxu0 %v87
    %241 = vmatprep.subr.mxu0 0.0
    %242 = vmatpush1.msra.mxu0 %v88
    %243 = vmatprep.subr.mxu0 0.0
    %244 = vmatpush1.msra.mxu0 %v89
    %245 = vmatprep.subr.mxu0 0.0
    %246 = vmatpush1.msra.mxu0 %v90
    %247 = vmatprep.subr.mxu0 0.0
    %248 = vmatpush1.msra.mxu0 %v91
    %249 = vmatprep.subr.mxu0 0.0
    %250 = vmatpush1.msra.mxu0 %v92
    %251 = vmatprep.subr.mxu0 0.0
    %252 = vmatpush1.msra.mxu0 0.0
    %253 = vmatprep.subr.mxu0 0.0
    %254 = vmatpush1.msra.mxu0 0.0
    %255 = vmatprep.subr.mxu0 0.0
    %256 = vmatpush1.msra.mxu0 0.0
    %257 = vmatprep.subr.mxu0 0.0
    %258 = vmatpush1.msra.mxu0 0.0
    %259 = vmatprep.subr.mxu0 0.0
    %260 = vmatpush1.msra.mxu0 0.0
    %261 = vmatprep.subr.mxu0 0.0
    %262 = vmatpush1.msra.mxu0 0.0
    %263 = vmatprep.subr.mxu0 0.0
    %264 = vmatpush1.msra.mxu0 0.0
    %265 = vmatprep.subr.mxu0 0.0
    %266 = vmatpush1.msra.mxu0 0.0
    %267 = vmatprep.subr.mxu0 0.0
    %268 = vmatpush1.msra.mxu0 0.0
    %269 = vmatprep.subr.mxu0 0.0
    %270 = vmatpush1.msra.mxu0 0.0
    %271 = vmatprep.subr.mxu0 0.0
    %272 = vmatpush1.msra.mxu0 0.0
    %273 = vmatprep.subr.mxu0 0.0
    %274 = vmatpush1.msra.mxu0 0.0
    %275 = vmatprep.subr.mxu0 0.0
    %276 = vmatpush1.msra.mxu0 0.0
    %277 = vmatprep.subr.mxu0 0.0
    %278 = vmatpush1.msra.mxu0 0.0
    %279 = vmatprep.subr.mxu0 0.0
    %280 = vmatpush1.msra.mxu0 0.0
    %281 = vmatprep.subr.mxu0 0.0
    %282 = vmatpush1.msra.mxu0 0.0
    %283 = vmatprep.subr.mxu0 0.0
    %284 = vmatpush1.msra.mxu0 0.0
    %285 = vmatprep.subr.mxu0 0.0
    %286 = vmatpush1.msra.mxu0 0.0
    %287 = vmatprep.subr.mxu0 0.0
    %288 = vmatpush1.msra.mxu0 0.0
    %289 = vmatprep.subr.mxu0 0.0
    %290 = vmatpush1.msra.mxu0 0.0
    %291 = vmatprep.subr.mxu0 0.0
    %292 = vmatpush1.msra.mxu0 0.0
    %293 = vmatprep.subr.mxu0 0.0
    %294 = vmatpush1.msra.mxu0 0.0
    %295 = vmatprep.subr.mxu0 0.0
    %296 = vmatpush1.msra.mxu0 0.0
    %297 = vmatprep.subr.mxu0 0.0
    %298 = vmatpush1.msra.mxu0 0.0
    %299 = vmatprep.subr.mxu0 0.0
    %300 = vmatpush1.msra.mxu0 0.0
    %301 = vmatprep.subr.mxu0 0.0
    %302 = vmatpush1.msra.mxu0 0.0
    %303 = vmatprep.mubr.f32.mxu0 0.0
    %304 = vmatmul.mubr.f32.gmra.mrb[0].mxu0 %v237
    %v305 = vpop.f32.mrb[0].mxu0
    %v306 = vadd.f32 %v114, %v305
    %v307 = vpop.f32.mrb[0].mxu0
    %308 = vdwg.mxu0
    %v309 = vxor.u32 %v306, 2147483648
    %v310 = vmul.f32 %v309, 1.442695
    %v311 = vpow.pop %v310
    %v312 = vadd.f32 %v311, 1.0
    %v313 = vrcp.pop %v312
    %v314 = vmul.f32 1.0, %v313
    %v315 = vtanh.pop %v306
    %317 = vrot.lane.b32.xlu0 %v86, 32
    %v318 = vpop.permute.xlu0 %317
    %v320 = vmul.f32 %v314, %v318
    %322 = vrot.lane.b32.xlu0 %v315, 64
    %v323 = vpop.permute.xlu0 %322
    %v325 = vmul.f32 %v314, %v323
    %327 = vrot.lane.b32.xlu0 %v325, 32
    %v328 = vpop.permute.xlu0 %327
    %v330 = vadd.f32 %v320, %v328
    %v331 = vtanh.pop %v330
    %333 = vrot.lane.b32.xlu0 %v331, 64
    %v334 = vpop.permute.xlu0 %333
    %v336 = vmul.f32 %v314, %v334
    %338 = vrot.lane.b32.xlu0 %v336, 32
    %v339 = vpop.permute.xlu0 %338
    %v340 = vsel %vm136, %v339, 0
    %342 = vmatprep.subr.mxu0 0.0
    %343 = vmatpush1.msra.mxu0 %v101
    %344 = vmatprep.subr.mxu0 0.0
    %345 = vmatpush1.msra.mxu0 %v102
    %346 = vmatprep.subr.mxu0 0.0
    %347 = vmatpush1.msra.mxu0 %v103
    %348 = vmatprep.subr.mxu0 0.0
    %349 = vmatpush1.msra.mxu0 %v104
    %350 = vmatprep.subr.mxu0 0.0
    %351 = vmatpush1.msra.mxu0 0.0
    %352 = vmatprep.subr.mxu0 0.0
    %353 = vmatpush1.msra.mxu0 0.0
    %354 = vmatprep.subr.mxu0 0.0
    %355 = vmatpush1.msra.mxu0 0.0
    %356 = vmatprep.subr.mxu0 0.0
    %357 = vmatpush1.msra.mxu0 0.0
    %358 = vmatprep.subr.mxu0 0.0
    %359 = vmatpush1.msra.mxu0 0.0
    %360 = vmatprep.subr.mxu0 0.0
    %361 = vmatpush1.msra.mxu0 0.0
    %362 = vmatprep.subr.mxu0 0.0
    %363 = vmatpush1.msra.mxu0 0.0
    %364 = vmatprep.subr.mxu0 0.0
    %365 = vmatpush1.msra.mxu0 0.0
    %366 = vmatprep.subr.mxu0 0.0
    %367 = vmatpush1.msra.mxu0 0.0
    %368 = vmatprep.subr.mxu0 0.0
    %369 = vmatpush1.msra.mxu0 0.0
    %370 = vmatprep.subr.mxu0 0.0
    %371 = vmatpush1.msra.mxu0 0.0
    %372 = vmatprep.subr.mxu0 0.0
    %373 = vmatpush1.msra.mxu0 0.0
    %374 = vmatprep.subr.mxu0 0.0
    %375 = vmatpush1.msra.mxu0 0.0
    %376 = vmatprep.subr.mxu0 0.0
    %377 = vmatpush1.msra.mxu0 0.0
    %378 = vmatprep.subr.mxu0 0.0
    %379 = vmatpush1.msra.mxu0 0.0
    %380 = vmatprep.subr.mxu0 0.0
    %381 = vmatpush1.msra.mxu0 0.0
    %382 = vmatprep.subr.mxu0 0.0
    %383 = vmatpush1.msra.mxu0 0.0
    %384 = vmatprep.subr.mxu0 0.0
    %385 = vmatpush1.msra.mxu0 0.0
    %386 = vmatprep.subr.mxu0 0.0
    %387 = vmatpush1.msra.mxu0 0.0
    %388 = vmatprep.subr.mxu0 0.0
    %389 = vmatpush1.msra.mxu0 0.0
    %390 = vmatprep.subr.mxu0 0.0
    %391 = vmatpush1.msra.mxu0 0.0
    %392 = vmatprep.subr.mxu0 0.0
    %393 = vmatpush1.msra.mxu0 0.0
    %394 = vmatprep.subr.mxu0 0.0
    %395 = vmatpush1.msra.mxu0 0.0
    %396 = vmatprep.subr.mxu0 0.0
    %397 = vmatpush1.msra.mxu0 0.0
    %398 = vmatprep.subr.mxu0 0.0
    %399 = vmatpush1.msra.mxu0 0.0
    %400 = vmatprep.subr.mxu0 0.0
    %401 = vmatpush1.msra.mxu0 0.0
    %402 = vmatprep.subr.mxu0 0.0
    %403 = vmatpush1.msra.mxu0 0.0
    %404 = vmatprep.subr.mxu0 0.0
    %405 = vmatpush1.msra.mxu0 0.0
    %406 = vmatprep.mubr.f32.mxu0 0.0
    %407 = vmatmul.mubr.f32.gmra.mrb[0].mxu0 %v340
    %v408 = vpop.f32.mrb[0].mxu0
    %v409 = vadd.f32 %v121, %v408
    %v410 = vpop.f32.mrb[0].mxu0
    %411 = vdwg.mxu0
    %v414 = vunpack.c.l.s4 1966171168
    %v415 = vunpack.c.0.s8 %v414
    %v416 = vlaneseq
    %v417 = vshrl.u32 %v416, 7
    %v418 = vsub.s32 %v415, %v417
    %v419 = vrot.slane %v409, %v418
    %v420 = vcombine.high %v419, %v419
    %v422 = vunpack.c.l.s4 1966171168
    %v423 = vunpack.c.0.s8 %v422
    %v424 = vlaneseq
    %v425 = vshrl.u32 %v424, 7
    %v426 = vsub.s32 %v423, %v425
    %v427 = vrot.slane %v419, %v426
    %v429 = vunpack.c.l.s4 1966171168
    %v430 = vunpack.c.0.s8 %v429
    %v431 = vlaneseq
    %v432 = vshrl.u32 %v431, 7
    %v433 = vsub.s32 %v430, %v432
    %v434 = vrot.slane %v420, %v433
    %v435 = vlaneseq
    %v436 = vshrl.u32 %v435, 7
    %v437 = vsub.s32 0, %v436
    %v438 = vrot.slane %v427, %v437
    %v439 = vlaneseq
    %v440 = vshrl.u32 %v439, 7
    %v441 = vsub.s32 0, %v440
    %v442 = vrot.slane %v434, %v441
    %v445 = vadd.f32 %v438, %v225
    %v446 = vadd.f32 %v442, %v226
    %v447 = vtanh.pop %v445
    %v448 = vtanh.pop %v446
    %v450 = vsel %vm136, %v447, 0
    %v453 = vsel %vm136, %v448, 0
    %455 = vmatprep.subr.mxu0 0.0
    %456 = vmatpush1.msra.mxu0 %v105
    %457 = vmatprep.subr.mxu0 0.0
    %458 = vmatpush1.msra.mxu0 %v106
    %459 = vmatprep.subr.mxu0 0.0
    %460 = vmatpush1.msra.mxu0 %v107
    %461 = vmatprep.subr.mxu0 0.0
    %462 = vmatpush1.msra.mxu0 %v108
    %463 = vmatprep.subr.mxu0 0.0
    %464 = vmatpush1.msra.mxu0 0.0
    %465 = vmatprep.subr.mxu0 0.0
    %466 = vmatpush1.msra.mxu0 0.0
    %467 = vmatprep.subr.mxu0 0.0
    %468 = vmatpush1.msra.mxu0 0.0
    %469 = vmatprep.subr.mxu0 0.0
    %470 = vmatpush1.msra.mxu0 0.0
    %471 = vmatprep.subr.mxu0 0.0
    %472 = vmatpush1.msra.mxu0 0.0
    %473 = vmatprep.subr.mxu0 0.0
    %474 = vmatpush1.msra.mxu0 0.0
    %475 = vmatprep.subr.mxu0 0.0
    %476 = vmatpush1.msra.mxu0 0.0
    %477 = vmatprep.subr.mxu0 0.0
    %478 = vmatpush1.msra.mxu0 0.0
    %479 = vmatprep.subr.mxu0 0.0
    %480 = vmatpush1.msra.mxu0 0.0
    %481 = vmatprep.subr.mxu0 0.0
    %482 = vmatpush1.msra.mxu0 0.0
    %483 = vmatprep.subr.mxu0 0.0
    %484 = vmatpush1.msra.mxu0 0.0
    %485 = vmatprep.subr.mxu0 0.0
    %486 = vmatpush1.msra.mxu0 0.0
    %487 = vmatprep.subr.mxu0 0.0
    %488 = vmatpush1.msra.mxu0 0.0
    %489 = vmatprep.subr.mxu0 0.0
    %490 = vmatpush1.msra.mxu0 0.0
    %491 = vmatprep.subr.mxu0 0.0
    %492 = vmatpush1.msra.mxu0 0.0
    %493 = vmatprep.subr.mxu0 0.0
    %494 = vmatpush1.msra.mxu0 0.0
    %495 = vmatprep.subr.mxu0 0.0
    %496 = vmatpush1.msra.mxu0 0.0
    %497 = vmatprep.subr.mxu0 0.0
    %498 = vmatpush1.msra.mxu0 0.0
    %499 = vmatprep.subr.mxu0 0.0
    %500 = vmatpush1.msra.mxu0 0.0
    %501 = vmatprep.subr.mxu0 0.0
    %502 = vmatpush1.msra.mxu0 0.0
    %503 = vmatprep.subr.mxu0 0.0
    %504 = vmatpush1.msra.mxu0 0.0
    %505 = vmatprep.subr.mxu0 0.0
    %506 = vmatpush1.msra.mxu0 0.0
    %507 = vmatprep.subr.mxu0 0.0
    %508 = vmatpush1.msra.mxu0 0.0
    %509 = vmatprep.subr.mxu0 0.0
    %510 = vmatpush1.msra.mxu0 0.0
    %511 = vmatprep.subr.mxu0 0.0
    %512 = vmatpush1.msra.mxu0 0.0
    %513 = vmatprep.subr.mxu0 0.0
    %514 = vmatpush1.msra.mxu0 0.0
    %515 = vmatprep.subr.mxu0 0.0
    %516 = vmatpush1.msra.mxu0 0.0
    %517 = vmatprep.subr.mxu0 0.0
    %518 = vmatpush1.msra.mxu0 0.0
    %519 = vmatprep.mubr.f32.mxu0 0.0
    %520 = vmatmul.mubr.f32.gmra.mrb[0].mxu0 %v450
    %v521 = vpop.f32.mrb[0].mxu0
    %v522 = vadd.f32 0.0, %v521
    %v523 = vpop.f32.mrb[0].mxu0
    %524 = vmatprep.mubr.f32.mxu0 0.0
    %525 = vmatmul.mubr.f32.gmra.mrb[0].mxu0 %v453
    %v526 = vpop.f32.mrb[0].mxu0
    %v527 = vadd.f32 0.0, %v526
    %v528 = vpop.f32.mrb[0].mxu0
    %529 = vdwg.mxu0
    %vm530 = vcmp.eq.f32.partialorder 1.0, 0.0
    %v531 = vsel %vm530, -1e+30, %v522
    %v532 = vsel %vm530, -1e+30, %v527
    %535 = vset.pattern.permute.xlu0 0
    %536 = vperm.xlu0 %535, %v531
    %v537 = vpop.permute.xlu0 %536
    %538 = vset.pattern.permute.xlu0 0
    %539 = vperm.xlu0 %538, %v532
    %v540 = vpop.permute.xlu0 %539
    %v541 = vlaneseq
    %v542 = vshrl.u32 %v541, 7
    %v543 = vsub.s32 %v228, %v542
    %v544 = vrot.slane %v537, %v543
    %v545 = vlaneseq
    %v546 = vshrl.u32 %v545, 7
    %v547 = vsub.s32 %v228, %v546
    %v548 = vrot.slane %v540, %v547
    %vm549 = vcmask 1041409
    %v550 = vsel %vm549, %v548, %v544
    %vm552 = vcmask 58368
    %v553 = vsel %vm552, %v550, -inf
    %554 = vmax.xlane.f32.xlu0 %v553
    %v555 = vpop.xlane.xlu0 %554
    %v557 = vlaneseq
    %v558 = vshrl.u32 %v557, 7
    %v559 = vsub.s32 0, %v558
    %v560 = vrot.slane %v555, %v559
    %v561 = vlaneseq
    %v562 = vshrl.u32 %v561, 7
    %v563 = vsub.s32 1, %v562
    %v564 = vrot.slane %v555, %v563
    %v567 = vsub.f32 %v531, %v560
    %v568 = vsub.f32 %v532, %v564
    %v569 = vmul.f32 %v567, 1.442695
    %v570 = vpow.pop %v569
    %v571 = vmul.f32 %v568, 1.442695
    %v572 = vpow.pop %v571
    %575 = vset.pattern.permute.xlu0 0
    %576 = vperm.xlu0 %575, %v570
    %v577 = vpop.permute.xlu0 %576
    %578 = vset.pattern.permute.xlu0 0
    %579 = vperm.xlu0 %578, %v572
    %v580 = vpop.permute.xlu0 %579
    %v581 = vlaneseq
    %v582 = vshrl.u32 %v581, 7
    %v583 = vsub.s32 %v228, %v582
    %v584 = vrot.slane %v577, %v583
    %v585 = vlaneseq
    %v586 = vshrl.u32 %v585, 7
    %v587 = vsub.s32 %v228, %v586
    %v588 = vrot.slane %v580, %v587
    %v589 = vsel %vm549, %v588, %v584
    %v591 = vsel %vm552, %v589, 0.0
    %592 = vadd.xlane.f32.xlu0 %v591
    %v593 = vpop.xlane.xlu0 %592
    %v595 = vlaneseq
    %v596 = vshrl.u32 %v595, 7
    %v597 = vsub.s32 0, %v596
    %v598 = vrot.slane %v593, %v597
    %v599 = vlaneseq
    %v600 = vshrl.u32 %v599, 7
    %v601 = vsub.s32 1, %v600
    %v602 = vrot.slane %v593, %v601
    %v605 = vrcp.pop %v598
    %v606 = vmul.f32 %v570, %v605
    %v607 = vrcp.pop %v602
    %v608 = vmul.f32 %v572, %v607
    %610 = vset.pattern.permute.xlu0 0
    %611 = vperm.xlu0 %610, %v606
    %v612 = vpop.permute.xlu0 %611
    %v613 = vlaneseq
    %v614 = vshrl.u32 %v613, 7
    %v615 = vsub.s32 %v228, %v614
    %v616 = vrot.slane %v612, %v615
    %vm617 = vcmask 64512
    %v618 = vsel %vm617, %v616, 0
    %620 = vmatprep.subr.mxu0 0.0
    %621 = vmatpush1.msra.mxu0 %v225
    %622 = vmatprep.subr.mxu0 0.0
    %623 = vmatpush1.msra.mxu0 0.0
    %624 = vmatprep.subr.mxu0 0.0
    %625 = vmatpush1.msra.mxu0 0.0
    %626 = vmatprep.subr.mxu0 0.0
    %627 = vmatpush1.msra.mxu0 0.0
    %628 = vmatprep.subr.mxu0 0.0
    %629 = vmatpush1.msra.mxu0 0.0
    %630 = vmatprep.subr.mxu0 0.0
    %631 = vmatpush1.msra.mxu0 0.0
    %632 = vmatprep.subr.mxu0 0.0
    %633 = vmatpush1.msra.mxu0 0.0
    %634 = vmatprep.subr.mxu0 0.0
    %635 = vmatpush1.msra.mxu0 0.0
    %636 = vmatprep.subr.mxu0 0.0
    %637 = vmatpush1.msra.mxu0 0.0
    %638 = vmatprep.subr.mxu0 0.0
    %639 = vmatpush1.msra.mxu0 0.0
    %640 = vmatprep.subr.mxu0 0.0
    %641 = vmatpush1.msra.mxu0 0.0
    %642 = vmatprep.subr.mxu0 0.0
    %643 = vmatpush1.msra.mxu0 0.0
    %644 = vmatprep.subr.mxu0 0.0
    %645 = vmatpush1.msra.mxu0 0.0
    %646 = vmatprep.subr.mxu0 0.0
    %647 = vmatpush1.msra.mxu0 0.0
    %648 = vmatprep.subr.mxu0 0.0
    %649 = vmatpush1.msra.mxu0 0.0
    %650 = vmatprep.subr.mxu0 0.0
    %651 = vmatpush1.msra.mxu0 0.0
    %652 = vmatprep.subr.mxu0 0.0
    %653 = vmatpush1.msra.mxu0 0.0
    %654 = vmatprep.subr.mxu0 0.0
    %655 = vmatpush1.msra.mxu0 0.0
    %656 = vmatprep.subr.mxu0 0.0
    %657 = vmatpush1.msra.mxu0 0.0
    %658 = vmatprep.subr.mxu0 0.0
    %659 = vmatpush1.msra.mxu0 0.0
    %660 = vmatprep.subr.mxu0 0.0
    %661 = vmatpush1.msra.mxu0 0.0
    %662 = vmatprep.subr.mxu0 0.0
    %663 = vmatpush1.msra.mxu0 0.0
    %664 = vmatprep.subr.mxu0 0.0
    %665 = vmatpush1.msra.mxu0 0.0
    %666 = vmatprep.subr.mxu0 0.0
    %667 = vmatpush1.msra.mxu0 0.0
    %668 = vmatprep.subr.mxu0 0.0
    %669 = vmatpush1.msra.mxu0 0.0
    %670 = vmatprep.subr.mxu0 0.0
    %671 = vmatpush1.msra.mxu0 0.0
    %672 = vmatprep.subr.mxu0 0.0
    %673 = vmatpush1.msra.mxu0 0.0
    %674 = vmatprep.subr.mxu0 0.0
    %675 = vmatpush1.msra.mxu0 0.0
    %676 = vmatprep.subr.mxu0 0.0
    %677 = vmatpush1.msra.mxu0 0.0
    %678 = vmatprep.subr.mxu0 0.0
    %679 = vmatpush1.msra.mxu0 0.0
    %680 = vmatprep.subr.mxu0 0.0
    %681 = vmatpush1.msra.mxu0 0.0
    %682 = vmatprep.subr.mxu0 0.0
    %683 = vmatpush1.msra.mxu0 0.0
    %684 = vmatprep.mubr.f32.mxu0 0.0
    %685 = vmatmul.mubr.f32.gmra.mrb[0].mxu0 %v618
    %v686 = vpop.f32.mrb[0].mxu0
    %v687 = vadd.f32 0.0, %v686
    %v688 = vpop.f32.mrb[0].mxu0
    %689 = vdwg.mxu0
    %691 = vset.pattern.permute.xlu0 0
    %692 = vperm.xlu0 %691, %v608
    %v693 = vpop.permute.xlu0 %692
    %v694 = vlaneseq
    %v695 = vshrl.u32 %v694, 7
    %v696 = vsub.s32 %v228, %v695
    %v697 = vrot.slane %v693, %v696
    %v698 = vsel %vm617, %v697, 0
    %700 = vmatprep.subr.mxu0 0.0
    %701 = vmatpush1.msra.mxu0 %v226
    %702 = vmatprep.subr.mxu0 0.0
    %703 = vmatpush1.msra.mxu0 0.0
    %704 = vmatprep.subr.mxu0 0.0
    %705 = vmatpush1.msra.mxu0 0.0
    %706 = vmatprep.subr.mxu0 0.0
    %707 = vmatpush1.msra.mxu0 0.0
    %708 = vmatprep.subr.mxu0 0.0
    %709 = vmatpush1.msra.mxu0 0.0
    %710 = vmatprep.subr.mxu0 0.0
    %711 = vmatpush1.msra.mxu0 0.0
    %712 = vmatprep.subr.mxu0 0.0
    %713 = vmatpush1.msra.mxu0 0.0
    %714 = vmatprep.subr.mxu0 0.0
    %715 = vmatpush1.msra.mxu0 0.0
    %716 = vmatprep.subr.mxu0 0.0
    %717 = vmatpush1.msra.mxu0 0.0
    %718 = vmatprep.subr.mxu0 0.0
    %719 = vmatpush1.msra.mxu0 0.0
    %720 = vmatprep.subr.mxu0 0.0
    %721 = vmatpush1.msra.mxu0 0.0
    %722 = vmatprep.subr.mxu0 0.0
    %723 = vmatpush1.msra.mxu0 0.0
    %724 = vmatprep.subr.mxu0 0.0
    %725 = vmatpush1.msra.mxu0 0.0
    %726 = vmatprep.subr.mxu0 0.0
    %727 = vmatpush1.msra.mxu0 0.0
    %728 = vmatprep.subr.mxu0 0.0
    %729 = vmatpush1.msra.mxu0 0.0
    %730 = vmatprep.subr.mxu0 0.0
    %731 = vmatpush1.msra.mxu0 0.0
    %732 = vmatprep.subr.mxu0 0.0
    %733 = vmatpush1.msra.mxu0 0.0
    %734 = vmatprep.subr.mxu0 0.0
    %735 = vmatpush1.msra.mxu0 0.0
    %736 = vmatprep.subr.mxu0 0.0
    %737 = vmatpush1.msra.mxu0 0.0
    %738 = vmatprep.subr.mxu0 0.0
    %739 = vmatpush1.msra.mxu0 0.0
    %740 = vmatprep.subr.mxu0 0.0
    %741 = vmatpush1.msra.mxu0 0.0
    %742 = vmatprep.subr.mxu0 0.0
    %743 = vmatpush1.msra.mxu0 0.0
    %744 = vmatprep.subr.mxu0 0.0
    %745 = vmatpush1.msra.mxu0 0.0
    %746 = vmatprep.subr.mxu0 0.0
    %747 = vmatpush1.msra.mxu0 0.0
    %748 = vmatprep.subr.mxu0 0.0
    %749 = vmatpush1.msra.mxu0 0.0
    %750 = vmatprep.subr.mxu0 0.0
    %751 = vmatpush1.msra.mxu0 0.0
    %752 = vmatprep.subr.mxu0 0.0
    %753 = vmatpush1.msra.mxu0 0.0
    %754 = vmatprep.subr.mxu0 0.0
    %755 = vmatpush1.msra.mxu0 0.0
    %756 = vmatprep.subr.mxu0 0.0
    %757 = vmatpush1.msra.mxu0 0.0
    %758 = vmatprep.subr.mxu0 0.0
    %759 = vmatpush1.msra.mxu0 0.0
    %760 = vmatprep.subr.mxu0 0.0
    %761 = vmatpush1.msra.mxu0 0.0
    %762 = vmatprep.subr.mxu0 0.0
    %763 = vmatpush1.msra.mxu0 0.0
    %764 = vmatprep.mubr.f32.mxu0 0.0
    %765 = vmatmul.mubr.f32.gmra.mrb[0].mxu0 %v698
    %v766 = vpop.f32.mrb[0].mxu0
    %v767 = vadd.f32 0.0, %v766
    %v768 = vpop.f32.mrb[0].mxu0
    %769 = vdwg.mxu0
    %v772 = vrot.slane %v767, 7
    %v773 = vsel %vm549, %v772, %v687
    %775 = vrot.lane.b32.xlu0 %v336, 64
    %v776 = vpop.permute.xlu0 %775
    %v778 = vsel %vm136, %v773, %v776
    %vm779 = vcmask 523264
    %v781 = vsel %vm779, %v778, 0
    %783 = vmatprep.subr.mxu0 0.0
    %784 = vmatpush1.msra.mxu0 %v93
    %785 = vmatprep.subr.mxu0 0.0
    %786 = vmatpush1.msra.mxu0 %v94
    %787 = vmatprep.subr.mxu0 0.0
    %788 = vmatpush1.msra.mxu0 %v95
    %789 = vmatprep.subr.mxu0 0.0
    %790 = vmatpush1.msra.mxu0 %v96
    %791 = vmatprep.subr.mxu0 0.0
    %792 = vmatpush1.msra.mxu0 %v97
    %793 = vmatprep.subr.mxu0 0.0
    %794 = vmatpush1.msra.mxu0 %v98
    %795 = vmatprep.subr.mxu0 0.0
    %796 = vmatpush1.msra.mxu0 %v99
    %797 = vmatprep.subr.mxu0 0.0
    %798 = vmatpush1.msra.mxu0 %v100
    %799 = vmatprep.subr.mxu0 0.0
    %800 = vmatpush1.msra.mxu0 0.0
    %801 = vmatprep.subr.mxu0 0.0
    %802 = vmatpush1.msra.mxu0 0.0
    %803 = vmatprep.subr.mxu0 0.0
    %804 = vmatpush1.msra.mxu0 0.0
    %805 = vmatprep.subr.mxu0 0.0
    %806 = vmatpush1.msra.mxu0 0.0
    %807 = vmatprep.subr.mxu0 0.0
    %808 = vmatpush1.msra.mxu0 0.0
    %809 = vmatprep.subr.mxu0 0.0
    %810 = vmatpush1.msra.mxu0 0.0
    %811 = vmatprep.subr.mxu0 0.0
    %812 = vmatpush1.msra.mxu0 0.0
    %813 = vmatprep.subr.mxu0 0.0
    %814 = vmatpush1.msra.mxu0 0.0
    %815 = vmatprep.subr.mxu0 0.0
    %816 = vmatpush1.msra.mxu0 0.0
    %817 = vmatprep.subr.mxu0 0.0
    %818 = vmatpush1.msra.mxu0 0.0
    %819 = vmatprep.subr.mxu0 0.0
    %820 = vmatpush1.msra.mxu0 0.0
    %821 = vmatprep.subr.mxu0 0.0
    %822 = vmatpush1.msra.mxu0 0.0
    %823 = vmatprep.subr.mxu0 0.0
    %824 = vmatpush1.msra.mxu0 0.0
    %825 = vmatprep.subr.mxu0 0.0
    %826 = vmatpush1.msra.mxu0 0.0
    %827 = vmatprep.subr.mxu0 0.0
    %828 = vmatpush1.msra.mxu0 0.0
    %829 = vmatprep.subr.mxu0 0.0
    %830 = vmatpush1.msra.mxu0 0.0
    %831 = vmatprep.subr.mxu0 0.0
    %832 = vmatpush1.msra.mxu0 0.0
    %833 = vmatprep.subr.mxu0 0.0
    %834 = vmatpush1.msra.mxu0 0.0
    %835 = vmatprep.subr.mxu0 0.0
    %836 = vmatpush1.msra.mxu0 0.0
    %837 = vmatprep.subr.mxu0 0.0
    %838 = vmatpush1.msra.mxu0 0.0
    %839 = vmatprep.subr.mxu0 0.0
    %840 = vmatpush1.msra.mxu0 0.0
    %841 = vmatprep.subr.mxu0 0.0
    %842 = vmatpush1.msra.mxu0 0.0
    %843 = vmatprep.subr.mxu0 0.0
    %844 = vmatpush1.msra.mxu0 0.0
    %845 = vmatprep.subr.mxu0 0.0
    %846 = vmatpush1.msra.mxu0 0.0
    %847 = vmatprep.mubr.f32.mxu0 0.0
    %848 = vmatmul.mubr.f32.gmra.mrb[0].mxu0 %v781
    %v849 = vpop.f32.mrb[0].mxu0
    %v850 = vadd.f32 %v128, %v849
    %v851 = vpop.f32.mrb[0].mxu0
    %852 = vdwg.mxu0
    %v853 = vtanh.pop %v850
    %v854 = vsel %vm549, %v697, %v616
    %v856 = vsel %vm552, %v854, -inf
    %857 = vmax.xlane.f32.xlu0 %v856
    %v858 = vpop.xlane.xlu0 %857
    %v860 = vlaneseq
    %v861 = vshrl.u32 %v860, 7
    %v862 = vsub.s32 0, %v861
    %v863 = vrot.slane %v858, %v862
    %v864 = vlaneseq
    %v865 = vshrl.u32 %v864, 7
    %v866 = vsub.s32 1, %v865
    %v867 = vrot.slane %v858, %v866
    %vm870 = vcmp.eq.f32.partialorder %v606, %v863
    %vm871 = vcmp.eq.f32.partialorder %v608, %v867
    %873 = vbcast.lane.b32.xlu0 %v228, 256
    %v874 = vpop.permute.xlu0 %873
    %v875 = vsel %vm870, %v874, 8
    %v876 = vsel %vm871, %v874, 8
    %877 = vset.pattern.permute.xlu0 0
    %878 = vperm.xlu0 %877, %v875
    %v879 = vpop.permute.xlu0 %878
    %880 = vset.pattern.permute.xlu0 0
    %881 = vperm.xlu0 %880, %v876
    %v882 = vpop.permute.xlu0 %881
    %v883 = vlaneseq
    %v884 = vshrl.u32 %v883, 7
    %v885 = vsub.s32 %v228, %v884
    %v886 = vrot.slane %v879, %v885
    %v887 = vlaneseq
    %v888 = vshrl.u32 %v887, 7
    %v889 = vsub.s32 %v228, %v888
    %v890 = vrot.slane %v882, %v889
    %v891 = vsel %vm549, %v890, %v886
    %v892 = vsel %vm552, %v891, 2147483647
    %v893 = vand.u32 %v892, 65535
    %v894 = vshra.s32 %v892, 16
    %v895 = vcvt.s32.f32 %v893
    %v896 = vcvt.s32.f32 %v894
    %897 = vmin.xlane.f32.xlu0 %v896
    %v898 = vpop.xlane.xlu0 %897
    %vm899 = vcmp.eq.f32.partialorder %v896, %v898
    %v900 = vsel %vm899, %v895, inf
    %901 = vmin.xlane.f32.xlu0 %v900
    %v902 = vpop.xlane.xlu0 %901
    %v903 = vcvt.f32.s32 %v902
    %v904 = vcvt.f32.s32 %v898
    %v905 = vshll.u32 %v904, 16
    %v906 = vadd.s32 %v905, %v903
    %vm907 = vcmp.eq.s32.totalorder %v228, %v906
    %v908 = vsel %vm907, 1, 0
    %v909 = vcvt.s32.f32 %v908
    %v910 = vsub.f32 1.0, %v909
    %v913 = vunpack.c.l.s4 1966171168
    %v914 = vunpack.c.0.s8 %v913
    %v915 = vlaneseq
    %v916 = vshrl.u32 %v915, 7
    %v917 = vsub.s32 %v914, %v916
    %v918 = vrot.slane %v909, %v917
    %v919 = vcombine.high %v918, %v918
    %v921 = vunpack.c.l.s4 1966171168
    %v922 = vunpack.c.0.s8 %v921
    %v923 = vlaneseq
    %v924 = vshrl.u32 %v923, 7
    %v925 = vsub.s32 %v922, %v924
    %v926 = vrot.slane %v918, %v925
    %v928 = vunpack.c.l.s4 1966171168
    %v929 = vunpack.c.0.s8 %v928
    %v930 = vlaneseq
    %v931 = vshrl.u32 %v930, 7
    %v932 = vsub.s32 %v929, %v931
    %v933 = vrot.slane %v919, %v932
    %v934 = vsel %vm617, %v926, 0
    %936 = vmatprep.subr.mxu0 0.0
    %937 = vmatpush1.msra.mxu0 %v82
    %938 = vmatprep.subr.mxu0 0.0
    %939 = vmatpush1.msra.mxu0 0.0
    %940 = vmatprep.subr.mxu0 0.0
    %941 = vmatpush1.msra.mxu0 0.0
    %942 = vmatprep.subr.mxu0 0.0
    %943 = vmatpush1.msra.mxu0 0.0
    %944 = vmatprep.subr.mxu0 0.0
    %945 = vmatpush1.msra.mxu0 0.0
    %946 = vmatprep.subr.mxu0 0.0
    %947 = vmatpush1.msra.mxu0 0.0
    %948 = vmatprep.subr.mxu0 0.0
    %949 = vmatpush1.msra.mxu0 0.0
    %950 = vmatprep.subr.mxu0 0.0
    %951 = vmatpush1.msra.mxu0 0.0
    %952 = vmatprep.subr.mxu0 0.0
    %953 = vmatpush1.msra.mxu0 0.0
    %954 = vmatprep.subr.mxu0 0.0
    %955 = vmatpush1.msra.mxu0 0.0
    %956 = vmatprep.subr.mxu0 0.0
    %957 = vmatpush1.msra.mxu0 0.0
    %958 = vmatprep.subr.mxu0 0.0
    %959 = vmatpush1.msra.mxu0 0.0
    %960 = vmatprep.subr.mxu0 0.0
    %961 = vmatpush1.msra.mxu0 0.0
    %962 = vmatprep.subr.mxu0 0.0
    %963 = vmatpush1.msra.mxu0 0.0
    %964 = vmatprep.subr.mxu0 0.0
    %965 = vmatpush1.msra.mxu0 0.0
    %966 = vmatprep.subr.mxu0 0.0
    %967 = vmatpush1.msra.mxu0 0.0
    %968 = vmatprep.subr.mxu0 0.0
    %969 = vmatpush1.msra.mxu0 0.0
    %970 = vmatprep.subr.mxu0 0.0
    %971 = vmatpush1.msra.mxu0 0.0
    %972 = vmatprep.subr.mxu0 0.0
    %973 = vmatpush1.msra.mxu0 0.0
    %974 = vmatprep.subr.mxu0 0.0
    %975 = vmatpush1.msra.mxu0 0.0
    %976 = vmatprep.subr.mxu0 0.0
    %977 = vmatpush1.msra.mxu0 0.0
    %978 = vmatprep.subr.mxu0 0.0
    %979 = vmatpush1.msra.mxu0 0.0
    %980 = vmatprep.subr.mxu0 0.0
    %981 = vmatpush1.msra.mxu0 0.0
    %982 = vmatprep.subr.mxu0 0.0
    %983 = vmatpush1.msra.mxu0 0.0
    %984 = vmatprep.subr.mxu0 0.0
    %985 = vmatpush1.msra.mxu0 0.0
    %986 = vmatprep.subr.mxu0 0.0
    %987 = vmatpush1.msra.mxu0 0.0
    %988 = vmatprep.subr.mxu0 0.0
    %989 = vmatpush1.msra.mxu0 0.0
    %990 = vmatprep.subr.mxu0 0.0
    %991 = vmatpush1.msra.mxu0 0.0
    %992 = vmatprep.subr.mxu0 0.0
    %993 = vmatpush1.msra.mxu0 0.0
    %994 = vmatprep.subr.mxu0 0.0
    %995 = vmatpush1.msra.mxu0 0.0
    %996 = vmatprep.subr.mxu0 0.0
    %997 = vmatpush1.msra.mxu0 0.0
    %998 = vmatprep.subr.mxu0 0.0
    %999 = vmatpush1.msra.mxu0 0.0
    %1000 = vmatprep.mubr.f32.mxu0 0.0
    %1001 = vmatmul.mubr.f32.gmra.mrb[0].mxu0 %v934
    %v1002 = vpop.f32.mrb[0].mxu0
    %v1003 = vadd.f32 0.0, %v1002
    %v1004 = vpop.f32.mrb[0].mxu0
    %1005 = vdwg.mxu0
    %v1006 = vsel %vm617, %v933, 0
    %1008 = vmatprep.subr.mxu0 0.0
    %1009 = vmatpush1.msra.mxu0 %v83
    %1010 = vmatprep.subr.mxu0 0.0
    %1011 = vmatpush1.msra.mxu0 0.0
    %1012 = vmatprep.subr.mxu0 0.0
    %1013 = vmatpush1.msra.mxu0 0.0
    %1014 = vmatprep.subr.mxu0 0.0
    %1015 = vmatpush1.msra.mxu0 0.0
    %1016 = vmatprep.subr.mxu0 0.0
    %1017 = vmatpush1.msra.mxu0 0.0
    %1018 = vmatprep.subr.mxu0 0.0
    %1019 = vmatpush1.msra.mxu0 0.0
    %1020 = vmatprep.subr.mxu0 0.0
    %1021 = vmatpush1.msra.mxu0 0.0
    %1022 = vmatprep.subr.mxu0 0.0
    %1023 = vmatpush1.msra.mxu0 0.0
    %1024 = vmatprep.subr.mxu0 0.0
    %1025 = vmatpush1.msra.mxu0 0.0
    %1026 = vmatprep.subr.mxu0 0.0
    %1027 = vmatpush1.msra.mxu0 0.0
    %1028 = vmatprep.subr.mxu0 0.0
    %1029 = vmatpush1.msra.mxu0 0.0
    %1030 = vmatprep.subr.mxu0 0.0
    %1031 = vmatpush1.msra.mxu0 0.0
    %1032 = vmatprep.subr.mxu0 0.0
    %1033 = vmatpush1.msra.mxu0 0.0
    %1034 = vmatprep.subr.mxu0 0.0
    %1035 = vmatpush1.msra.mxu0 0.0
    %1036 = vmatprep.subr.mxu0 0.0
    %1037 = vmatpush1.msra.mxu0 0.0
    %1038 = vmatprep.subr.mxu0 0.0
    %1039 = vmatpush1.msra.mxu0 0.0
    %1040 = vmatprep.subr.mxu0 0.0
    %1041 = vmatpush1.msra.mxu0 0.0
    %1042 = vmatprep.subr.mxu0 0.0
    %1043 = vmatpush1.msra.mxu0 0.0
    %1044 = vmatprep.subr.mxu0 0.0
    %1045 = vmatpush1.msra.mxu0 0.0
    %1046 = vmatprep.subr.mxu0 0.0
    %1047 = vmatpush1.msra.mxu0 0.0
    %1048 = vmatprep.subr.mxu0 0.0
    %1049 = vmatpush1.msra.mxu0 0.0
    %1050 = vmatprep.subr.mxu0 0.0
    %1051 = vmatpush1.msra.mxu0 0.0
    %1052 = vmatprep.subr.mxu0 0.0
    %1053 = vmatpush1.msra.mxu0 0.0
    %1054 = vmatprep.subr.mxu0 0.0
    %1055 = vmatpush1.msra.mxu0 0.0
    %1056 = vmatprep.subr.mxu0 0.0
    %1057 = vmatpush1.msra.mxu0 0.0
    %1058 = vmatprep.subr.mxu0 0.0
    %1059 = vmatpush1.msra.mxu0 0.0
    %1060 = vmatprep.subr.mxu0 0.0
    %1061 = vmatpush1.msra.mxu0 0.0
    %1062 = vmatprep.subr.mxu0 0.0
    %1063 = vmatpush1.msra.mxu0 0.0
    %1064 = vmatprep.subr.mxu0 0.0
    %1065 = vmatpush1.msra.mxu0 0.0
    %1066 = vmatprep.subr.mxu0 0.0
    %1067 = vmatpush1.msra.mxu0 0.0
    %1068 = vmatprep.subr.mxu0 0.0
    %1069 = vmatpush1.msra.mxu0 0.0
    %1070 = vmatprep.subr.mxu0 0.0
    %1071 = vmatpush1.msra.mxu0 0.0
    %1072 = vmatprep.mubr.f32.mxu0 0.0
    %1073 = vmatmul.mubr.f32.gmra.mrb[0].mxu0 %v1006
    %v1074 = vpop.f32.mrb[0].mxu0
    %v1075 = vadd.f32 0.0, %v1074
    %v1076 = vpop.f32.mrb[0].mxu0
    %1077 = vdwg.mxu0
    %vm1080 = vcmask 57344
    %1081 = vst.msk [vmem:[#allocation7] sm:$0x1] %vm1080, %v616
    %1082 = vst.msk [vmem:[#allocation7 + $0x8] sm:$0x1] %vm1080, %v697
    %vm1083 = vcmask 1024
    %1084 = vst.msk [vmem:[#allocation8] sm:$0x3] %vm1083, %v906
    %v1087 = vrot.slane %v1075, 7
    %v1088 = vsel %vm549, %v1087, %v1003
    %1091 = vrot.lane.b32.xlu0 %v853, 16
    %v1092 = vpop.permute.xlu0 %1091
    %v1094 = vsel %vm233, %v1088, %v1092
    %v1096 = vsel %vm235, %v1094, 0
    %1098 = vmatprep.subr.mxu0 0.0
    %1099 = vmatpush1.msra.mxu0 %v87
    %1100 = vmatprep.subr.mxu0 0.0
    %1101 = vmatpush1.msra.mxu0 %v88
    %1102 = vmatprep.subr.mxu0 0.0
    %1103 = vmatpush1.msra.mxu0 %v89
    %1104 = vmatprep.subr.mxu0 0.0
    %1105 = vmatpush1.msra.mxu0 %v90
    %1106 = vmatprep.subr.mxu0 0.0
    %1107 = vmatpush1.msra.mxu0 %v91
    %1108 = vmatprep.subr.mxu0 0.0
    %1109 = vmatpush1.msra.mxu0 %v92
    %1110 = vmatprep.subr.mxu0 0.0
    %1111 = vmatpush1.msra.mxu0 0.0
    %1112 = vmatprep.subr.mxu0 0.0
    %1113 = vmatpush1.msra.mxu0 0.0
    %1114 = vmatprep.subr.mxu0 0.0
    %1115 = vmatpush1.msra.mxu0 0.0
    %1116 = vmatprep.subr.mxu0 0.0
    %1117 = vmatpush1.msra.mxu0 0.0
    %1118 = vmatprep.subr.mxu0 0.0
    %1119 = vmatpush1.msra.mxu0 0.0
    %1120 = vmatprep.subr.mxu0 0.0
    %1121 = vmatpush1.msra.mxu0 0.0
    %1122 = vmatprep.subr.mxu0 0.0
    %1123 = vmatpush1.msra.mxu0 0.0
    %1124 = vmatprep.subr.mxu0 0.0
    %1125 = vmatpush1.msra.mxu0 0.0
    %1126 = vmatprep.subr.mxu0 0.0
    %1127 = vmatpush1.msra.mxu0 0.0
    %1128 = vmatprep.subr.mxu0 0.0
    %1129 = vmatpush1.msra.mxu0 0.0
    %1130 = vmatprep.subr.mxu0 0.0
    %1131 = vmatpush1.msra.mxu0 0.0
    %1132 = vmatprep.subr.mxu0 0.0
    %1133 = vmatpush1.msra.mxu0 0.0
    %1134 = vmatprep.subr.mxu0 0.0
    %1135 = vmatpush1.msra.mxu0 0.0
    %1136 = vmatprep.subr.mxu0 0.0
    %1137 = vmatpush1.msra.mxu0 0.0
    %1138 = vmatprep.subr.mxu0 0.0
    %1139 = vmatpush1.msra.mxu0 0.0
    %1140 = vmatprep.subr.mxu0 0.0
    %1141 = vmatpush1.msra.mxu0 0.0
    %1142 = vmatprep.subr.mxu0 0.0
    %1143 = vmatpush1.msra.mxu0 0.0
    %1144 = vmatprep.subr.mxu0 0.0
    %1145 = vmatpush1.msra.mxu0 0.0
    %1146 = vmatprep.subr.mxu0 0.0
    %1147 = vmatpush1.msra.mxu0 0.0
    %1148 = vmatprep.subr.mxu0 0.0
    %1149 = vmatpush1.msra.mxu0 0.0
    %1150 = vmatprep.subr.mxu0 0.0
    %1151 = vmatpush1.msra.mxu0 0.0
    %1152 = vmatprep.subr.mxu0 0.0
    %1153 = vmatpush1.msra.mxu0 0.0
    %1154 = vmatprep.subr.mxu0 0.0
    %1155 = vmatpush1.msra.mxu0 0.0
    %1156 = vmatprep.subr.mxu0 0.0
    %1157 = vmatpush1.msra.mxu0 0.0
    %1158 = vmatprep.subr.mxu0 0.0
    %1159 = vmatpush1.msra.mxu0 0.0
    %1160 = vmatprep.subr.mxu0 0.0
    %1161 = vmatpush1.msra.mxu0 0.0
    %1162 = vmatprep.mubr.f32.mxu0 0.0
    %1163 = vmatmul.mubr.f32.gmra.mrb[0].mxu0 %v1096
    %v1164 = vpop.f32.mrb[0].mxu0
    %v1165 = vadd.f32 %v114, %v1164
    %v1166 = vpop.f32.mrb[0].mxu0
    %1167 = vdwg.mxu0
    %v1168 = vxor.u32 %v1165, 2147483648
    %v1169 = vmul.f32 %v1168, 1.442695
    %v1170 = vpow.pop %v1169
    %v1171 = vadd.f32 %v1170, 1.0
    %v1172 = vrcp.pop %v1171
    %v1173 = vmul.f32 1.0, %v1172
    %v1174 = vtanh.pop %v1165
    %v1175 = vmul.f32 %v1173, %v330
    %1177 = vrot.lane.b32.xlu0 %v1174, 64
    %v1178 = vpop.permute.xlu0 %1177
    %v1180 = vmul.f32 %v1173, %v1178
    %1182 = vrot.lane.b32.xlu0 %v1180, 32
    %v1183 = vpop.permute.xlu0 %1182
    %v1185 = vadd.f32 %v1175, %v1183
    %v1186 = vtanh.pop %v1185
    %1188 = vrot.lane.b32.xlu0 %v1186, 64
    %v1189 = vpop.permute.xlu0 %1188
    %v1191 = vmul.f32 %v1173, %v1189
    %1193 = vrot.lane.b32.xlu0 %v1191, 32
    %v1194 = vpop.permute.xlu0 %1193
    %v1195 = vsel %vm136, %v1194, 0
    %1197 = vmatprep.subr.mxu0 0.0
    %1198 = vmatpush1.msra.mxu0 %v101
    %1199 = vmatprep.subr.mxu0 0.0
    %1200 = vmatpush1.msra.mxu0 %v102
    %1201 = vmatprep.subr.mxu0 0.0
    %1202 = vmatpush1.msra.mxu0 %v103
    %1203 = vmatprep.subr.mxu0 0.0
    %1204 = vmatpush1.msra.mxu0 %v104
    %1205 = vmatprep.subr.mxu0 0.0
    %1206 = vmatpush1.msra.mxu0 0.0
    %1207 = vmatprep.subr.mxu0 0.0
    %1208 = vmatpush1.msra.mxu0 0.0
    %1209 = vmatprep.subr.mxu0 0.0
    %1210 = vmatpush1.msra.mxu0 0.0
    %1211 = vmatprep.subr.mxu0 0.0
    %1212 = vmatpush1.msra.mxu0 0.0
    %1213 = vmatprep.subr.mxu0 0.0
    %1214 = vmatpush1.msra.mxu0 0.0
    %1215 = vmatprep.subr.mxu0 0.0
    %1216 = vmatpush1.msra.mxu0 0.0
    %1217 = vmatprep.subr.mxu0 0.0
    %1218 = vmatpush1.msra.mxu0 0.0
    %1219 = vmatprep.subr.mxu0 0.0
    %1220 = vmatpush1.msra.mxu0 0.0
    %1221 = vmatprep.subr.mxu0 0.0
    %1222 = vmatpush1.msra.mxu0 0.0
    %1223 = vmatprep.subr.mxu0 0.0
    %1224 = vmatpush1.msra.mxu0 0.0
    %1225 = vmatprep.subr.mxu0 0.0
    %1226 = vmatpush1.msra.mxu0 0.0
    %1227 = vmatprep.subr.mxu0 0.0
    %1228 = vmatpush1.msra.mxu0 0.0
    %1229 = vmatprep.subr.mxu0 0.0
    %1230 = vmatpush1.msra.mxu0 0.0
    %1231 = vmatprep.subr.mxu0 0.0
    %1232 = vmatpush1.msra.mxu0 0.0
    %1233 = vmatprep.subr.mxu0 0.0
    %1234 = vmatpush1.msra.mxu0 0.0
    %1235 = vmatprep.subr.mxu0 0.0
    %1236 = vmatpush1.msra.mxu0 0.0
    %1237 = vmatprep.subr.mxu0 0.0
    %1238 = vmatpush1.msra.mxu0 0.0
    %1239 = vmatprep.subr.mxu0 0.0
    %1240 = vmatpush1.msra.mxu0 0.0
    %1241 = vmatprep.subr.mxu0 0.0
    %1242 = vmatpush1.msra.mxu0 0.0
    %1243 = vmatprep.subr.mxu0 0.0
    %1244 = vmatpush1.msra.mxu0 0.0
    %1245 = vmatprep.subr.mxu0 0.0
    %1246 = vmatpush1.msra.mxu0 0.0
    %1247 = vmatprep.subr.mxu0 0.0
    %1248 = vmatpush1.msra.mxu0 0.0
    %1249 = vmatprep.subr.mxu0 0.0
    %1250 = vmatpush1.msra.mxu0 0.0
    %1251 = vmatprep.subr.mxu0 0.0
    %1252 = vmatpush1.msra.mxu0 0.0
    %1253 = vmatprep.subr.mxu0 0.0
    %1254 = vmatpush1.msra.mxu0 0.0
    %1255 = vmatprep.subr.mxu0 0.0
    %1256 = vmatpush1.msra.mxu0 0.0
    %1257 = vmatprep.subr.mxu0 0.0
    %1258 = vmatpush1.msra.mxu0 0.0
    %1259 = vmatprep.subr.mxu0 0.0
    %1260 = vmatpush1.msra.mxu0 0.0
    %1261 = vmatprep.mubr.f32.mxu0 0.0
    %1262 = vmatmul.mubr.f32.gmra.mrb[0].mxu0 %v1195
    %v1263 = vpop.f32.mrb[0].mxu0
    %v1264 = vadd.f32 %v121, %v1263
    %v1265 = vpop.f32.mrb[0].mxu0
    %1266 = vdwg.mxu0
    %v1269 = vunpack.c.l.s4 1966171168
    %v1270 = vunpack.c.0.s8 %v1269
    %v1271 = vlaneseq
    %v1272 = vshrl.u32 %v1271, 7
    %v1273 = vsub.s32 %v1270, %v1272
    %v1274 = vrot.slane %v1264, %v1273
    %v1275 = vcombine.high %v1274, %v1274
    %v1277 = vunpack.c.l.s4 1966171168
    %v1278 = vunpack.c.0.s8 %v1277
    %v1279 = vlaneseq
    %v1280 = vshrl.u32 %v1279, 7
    %v1281 = vsub.s32 %v1278, %v1280
    %v1282 = vrot.slane %v1274, %v1281
    %v1284 = vunpack.c.l.s4 1966171168
    %v1285 = vunpack.c.0.s8 %v1284
    %v1286 = vlaneseq
    %v1287 = vshrl.u32 %v1286, 7
    %v1288 = vsub.s32 %v1285, %v1287
    %v1289 = vrot.slane %v1275, %v1288
    %v1290 = vlaneseq
    %v1291 = vshrl.u32 %v1290, 7
    %v1292 = vsub.s32 0, %v1291
    %v1293 = vrot.slane %v1282, %v1292
    %v1294 = vlaneseq
    %v1295 = vshrl.u32 %v1294, 7
    %v1296 = vsub.s32 0, %v1295
    %v1297 = vrot.slane %v1289, %v1296
    %v1300 = vadd.f32 %v1293, %v225
    %v1301 = vadd.f32 %v1297, %v226
    %v1302 = vtanh.pop %v1300
    %v1303 = vtanh.pop %v1301
    %v1305 = vsel %vm136, %v1302, 0
    %v1308 = vsel %vm136, %v1303, 0
    %1310 = vmatprep.subr.mxu0 0.0
    %1311 = vmatpush1.msra.mxu0 %v105
    %1312 = vmatprep.subr.mxu0 0.0
    %1313 = vmatpush1.msra.mxu0 %v106
    %1314 = vmatprep.subr.mxu0 0.0
    %1315 = vmatpush1.msra.mxu0 %v107
    %1316 = vmatprep.subr.mxu0 0.0
    %1317 = vmatpush1.msra.mxu0 %v108
    %1318 = vmatprep.subr.mxu0 0.0
    %1319 = vmatpush1.msra.mxu0 0.0
    %1320 = vmatprep.subr.mxu0 0.0
    %1321 = vmatpush1.msra.mxu0 0.0
    %1322 = vmatprep.subr.mxu0 0.0
    %1323 = vmatpush1.msra.mxu0 0.0
    %1324 = vmatprep.subr.mxu0 0.0
    %1325 = vmatpush1.msra.mxu0 0.0
    %1326 = vmatprep.subr.mxu0 0.0
    %1327 = vmatpush1.msra.mxu0 0.0
    %1328 = vmatprep.subr.mxu0 0.0
    %1329 = vmatpush1.msra.mxu0 0.0
    %1330 = vmatprep.subr.mxu0 0.0
    %1331 = vmatpush1.msra.mxu0 0.0
    %1332 = vmatprep.subr.mxu0 0.0
    %1333 = vmatpush1.msra.mxu0 0.0
    %1334 = vmatprep.subr.mxu0 0.0
    %1335 = vmatpush1.msra.mxu0 0.0
    %1336 = vmatprep.subr.mxu0 0.0
    %1337 = vmatpush1.msra.mxu0 0.0
    %1338 = vmatprep.subr.mxu0 0.0
    %1339 = vmatpush1.msra.mxu0 0.0
    %1340 = vmatprep.subr.mxu0 0.0
    %1341 = vmatpush1.msra.mxu0 0.0
    %1342 = vmatprep.subr.mxu0 0.0
    %1343 = vmatpush1.msra.mxu0 0.0
    %1344 = vmatprep.subr.mxu0 0.0
    %1345 = vmatpush1.msra.mxu0 0.0
    %1346 = vmatprep.subr.mxu0 0.0
    %1347 = vmatpush1.msra.mxu0 0.0
    %1348 = vmatprep.subr.mxu0 0.0
    %1349 = vmatpush1.msra.mxu0 0.0
    %1350 = vmatprep.subr.mxu0 0.0
    %1351 = vmatpush1.msra.mxu0 0.0
    %1352 = vmatprep.subr.mxu0 0.0
    %1353 = vmatpush1.msra.mxu0 0.0
    %1354 = vmatprep.subr.mxu0 0.0
    %1355 = vmatpush1.msra.mxu0 0.0
    %1356 = vmatprep.subr.mxu0 0.0
    %1357 = vmatpush1.msra.mxu0 0.0
    %1358 = vmatprep.subr.mxu0 0.0
    %1359 = vmatpush1.msra.mxu0 0.0
    %1360 = vmatprep.subr.mxu0 0.0
    %1361 = vmatpush1.msra.mxu0 0.0
    %1362 = vmatprep.subr.mxu0 0.0
    %1363 = vmatpush1.msra.mxu0 0.0
    %1364 = vmatprep.subr.mxu0 0.0
    %1365 = vmatpush1.msra.mxu0 0.0
    %1366 = vmatprep.subr.mxu0 0.0
    %1367 = vmatpush1.msra.mxu0 0.0
    %1368 = vmatprep.subr.mxu0 0.0
    %1369 = vmatpush1.msra.mxu0 0.0
    %1370 = vmatprep.subr.mxu0 0.0
    %1371 = vmatpush1.msra.mxu0 0.0
    %1372 = vmatprep.subr.mxu0 0.0
    %1373 = vmatpush1.msra.mxu0 0.0
    %1374 = vmatprep.mubr.f32.mxu0 0.0
    %1375 = vmatmul.mubr.f32.gmra.mrb[0].mxu0 %v1305
    %v1376 = vpop.f32.mrb[0].mxu0
    %v1377 = vadd.f32 0.0, %v1376
    %v1378 = vpop.f32.mrb[0].mxu0
    %1379 = vmatprep.mubr.f32.mxu0 0.0
    %1380 = vmatmul.mubr.f32.gmra.mrb[0].mxu0 %v1308
    %v1381 = vpop.f32.mrb[0].mxu0
    %v1382 = vadd.f32 0.0, %v1381
    %v1383 = vpop.f32.mrb[0].mxu0
    %1384 = vdwg.mxu0
    %vm1385 = vcmp.eq.f32.partialorder %v910, 0.0
    %1388 = vset.pattern.permute.xlu0 0
    %1389 = vperm.xlu0 %1388, %v1377
    %v1390 = vpop.permute.xlu0 %1389
    %1391 = vset.pattern.permute.xlu0 0
    %1392 = vperm.xlu0 %1391, %v1382
    %v1393 = vpop.permute.xlu0 %1392
    %v1394 = vlaneseq
    %v1395 = vshrl.u32 %v1394, 7
    %v1396 = vsub.s32 %v228, %v1395
    %v1397 = vrot.slane %v1390, %v1396
    %v1398 = vlaneseq
    %v1399 = vshrl.u32 %v1398, 7
    %v1400 = vsub.s32 %v228, %v1399
    %v1401 = vrot.slane %v1393, %v1400
    %v1402 = vsel %vm549, %v1401, %v1397
    %v1404 = vsel %vm1385, -1e+30, %v1402
    %v1405 = vsel %vm552, %v1404, -inf
    %1406 = vmax.xlane.f32.xlu0 %v1405
    %v1407 = vpop.xlane.xlu0 %1406
    %v1408 = vsub.f32 %v1404, %v1407
    %v1409 = vmul.f32 %v1408, 1.442695
    %v1410 = vpow.pop %v1409
    %v1411 = vsel %vm552, %v1410, 0.0
    %1412 = vadd.xlane.f32.xlu0 %v1411
    %v1413 = vpop.xlane.xlu0 %1412
    %v1414 = vrcp.pop %v1413
    %v1415 = vmul.f32 %v1410, %v1414
    %v1418 = vunpack.c.l.s4 1966171168
    %v1419 = vunpack.c.0.s8 %v1418
    %v1420 = vlaneseq
    %v1421 = vshrl.u32 %v1420, 7
    %v1422 = vsub.s32 %v1419, %v1421
    %v1423 = vrot.slane %v1415, %v1422
    %v1424 = vcombine.high %v1423, %v1423
    %v1426 = vunpack.c.l.s4 1966171168
    %v1427 = vunpack.c.0.s8 %v1426
    %v1428 = vlaneseq
    %v1429 = vshrl.u32 %v1428, 7
    %v1430 = vsub.s32 %v1427, %v1429
    %v1431 = vrot.slane %v1423, %v1430
    %v1433 = vunpack.c.l.s4 1966171168
    %v1434 = vunpack.c.0.s8 %v1433
    %v1435 = vlaneseq
    %v1436 = vshrl.u32 %v1435, 7
    %v1437 = vsub.s32 %v1434, %v1436
    %v1438 = vrot.slane %v1424, %v1437
    %v1441 = vsel %vm617, %v1431, 0
    %1443 = vmatprep.subr.mxu0 0.0
    %1444 = vmatpush1.msra.mxu0 %v225
    %1445 = vmatprep.subr.mxu0 0.0
    %1446 = vmatpush1.msra.mxu0 0.0
    %1447 = vmatprep.subr.mxu0 0.0
    %1448 = vmatpush1.msra.mxu0 0.0
    %1449 = vmatprep.subr.mxu0 0.0
    %1450 = vmatpush1.msra.mxu0 0.0
    %1451 = vmatprep.subr.mxu0 0.0
    %1452 = vmatpush1.msra.mxu0 0.0
    %1453 = vmatprep.subr.mxu0 0.0
    %1454 = vmatpush1.msra.mxu0 0.0
    %1455 = vmatprep.subr.mxu0 0.0
    %1456 = vmatpush1.msra.mxu0 0.0
    %1457 = vmatprep.subr.mxu0 0.0
    %1458 = vmatpush1.msra.mxu0 0.0
    %1459 = vmatprep.subr.mxu0 0.0
    %1460 = vmatpush1.msra.mxu0 0.0
    %1461 = vmatprep.subr.mxu0 0.0
    %1462 = vmatpush1.msra.mxu0 0.0
    %1463 = vmatprep.subr.mxu0 0.0
    %1464 = vmatpush1.msra.mxu0 0.0
    %1465 = vmatprep.subr.mxu0 0.0
    %1466 = vmatpush1.msra.mxu0 0.0
    %1467 = vmatprep.subr.mxu0 0.0
    %1468 = vmatpush1.msra.mxu0 0.0
    %1469 = vmatprep.subr.mxu0 0.0
    %1470 = vmatpush1.msra.mxu0 0.0
    %1471 = vmatprep.subr.mxu0 0.0
    %1472 = vmatpush1.msra.mxu0 0.0
    %1473 = vmatprep.subr.mxu0 0.0
    %1474 = vmatpush1.msra.mxu0 0.0
    %1475 = vmatprep.subr.mxu0 0.0
    %1476 = vmatpush1.msra.mxu0 0.0
    %1477 = vmatprep.subr.mxu0 0.0
    %1478 = vmatpush1.msra.mxu0 0.0
    %1479 = vmatprep.subr.mxu0 0.0
    %1480 = vmatpush1.msra.mxu0 0.0
    %1481 = vmatprep.subr.mxu0 0.0
    %1482 = vmatpush1.msra.mxu0 0.0
    %1483 = vmatprep.subr.mxu0 0.0
    %1484 = vmatpush1.msra.mxu0 0.0
    %1485 = vmatprep.subr.mxu0 0.0
    %1486 = vmatpush1.msra.mxu0 0.0
    %1487 = vmatprep.subr.mxu0 0.0
    %1488 = vmatpush1.msra.mxu0 0.0
    %1489 = vmatprep.subr.mxu0 0.0
    %1490 = vmatpush1.msra.mxu0 0.0
    %1491 = vmatprep.subr.mxu0 0.0
    %1492 = vmatpush1.msra.mxu0 0.0
    %1493 = vmatprep.subr.mxu0 0.0
    %1494 = vmatpush1.msra.mxu0 0.0
    %1495 = vmatprep.subr.mxu0 0.0
    %1496 = vmatpush1.msra.mxu0 0.0
    %1497 = vmatprep.subr.mxu0 0.0
    %1498 = vmatpush1.msra.mxu0 0.0
    %1499 = vmatprep.subr.mxu0 0.0
    %1500 = vmatpush1.msra.mxu0 0.0
    %1501 = vmatprep.subr.mxu0 0.0
    %1502 = vmatpush1.msra.mxu0 0.0
    %1503 = vmatprep.subr.mxu0 0.0
    %1504 = vmatpush1.msra.mxu0 0.0
    %1505 = vmatprep.subr.mxu0 0.0
    %1506 = vmatpush1.msra.mxu0 0.0
    %1507 = vmatprep.mubr.f32.mxu0 0.0
    %1508 = vmatmul.mubr.f32.gmra.mrb[0].mxu0 %v1441
    %v1509 = vpop.f32.mrb[0].mxu0
    %v1510 = vadd.f32 0.0, %v1509
    %v1511 = vpop.f32.mrb[0].mxu0
    %1512 = vdwg.mxu0
    %v1513 = vsel %vm617, %v1438, 0
    %1515 = vmatprep.subr.mxu0 0.0
    %1516 = vmatpush1.msra.mxu0 %v226
    %1517 = vmatprep.subr.mxu0 0.0
    %1518 = vmatpush1.msra.mxu0 0.0
    %1519 = vmatprep.subr.mxu0 0.0
    %1520 = vmatpush1.msra.mxu0 0.0
    %1521 = vmatprep.subr.mxu0 0.0
    %1522 = vmatpush1.msra.mxu0 0.0
    %1523 = vmatprep.subr.mxu0 0.0
    %1524 = vmatpush1.msra.mxu0 0.0
    %1525 = vmatprep.subr.mxu0 0.0
    %1526 = vmatpush1.msra.mxu0 0.0
    %1527 = vmatprep.subr.mxu0 0.0
    %1528 = vmatpush1.msra.mxu0 0.0
    %1529 = vmatprep.subr.mxu0 0.0
    %1530 = vmatpush1.msra.mxu0 0.0
    %1531 = vmatprep.subr.mxu0 0.0
    %1532 = vmatpush1.msra.mxu0 0.0
    %1533 = vmatprep.subr.mxu0 0.0
    %1534 = vmatpush1.msra.mxu0 0.0
    %1535 = vmatprep.subr.mxu0 0.0
    %1536 = vmatpush1.msra.mxu0 0.0
    %1537 = vmatprep.subr.mxu0 0.0
    %1538 = vmatpush1.msra.mxu0 0.0
    %1539 = vmatprep.subr.mxu0 0.0
    %1540 = vmatpush1.msra.mxu0 0.0
    %1541 = vmatprep.subr.mxu0 0.0
    %1542 = vmatpush1.msra.mxu0 0.0
    %1543 = vmatprep.subr.mxu0 0.0
    %1544 = vmatpush1.msra.mxu0 0.0
    %1545 = vmatprep.subr.mxu0 0.0
    %1546 = vmatpush1.msra.mxu0 0.0
    %1547 = vmatprep.subr.mxu0 0.0
    %1548 = vmatpush1.msra.mxu0 0.0
    %1549 = vmatprep.subr.mxu0 0.0
    %1550 = vmatpush1.msra.mxu0 0.0
    %1551 = vmatprep.subr.mxu0 0.0
    %1552 = vmatpush1.msra.mxu0 0.0
    %1553 = vmatprep.subr.mxu0 0.0
    %1554 = vmatpush1.msra.mxu0 0.0
    %1555 = vmatprep.subr.mxu0 0.0
    %1556 = vmatpush1.msra.mxu0 0.0
    %1557 = vmatprep.subr.mxu0 0.0
    %1558 = vmatpush1.msra.mxu0 0.0
    %1559 = vmatprep.subr.mxu0 0.0
    %1560 = vmatpush1.msra.mxu0 0.0
    %1561 = vmatprep.subr.mxu0 0.0
    %1562 = vmatpush1.msra.mxu0 0.0
    %1563 = vmatprep.subr.mxu0 0.0
    %1564 = vmatpush1.msra.mxu0 0.0
    %1565 = vmatprep.subr.mxu0 0.0
    %1566 = vmatpush1.msra.mxu0 0.0
    %1567 = vmatprep.subr.mxu0 0.0
    %1568 = vmatpush1.msra.mxu0 0.0
    %1569 = vmatprep.subr.mxu0 0.0
    %1570 = vmatpush1.msra.mxu0 0.0
    %1571 = vmatprep.subr.mxu0 0.0
    %1572 = vmatpush1.msra.mxu0 0.0
    %1573 = vmatprep.subr.mxu0 0.0
    %1574 = vmatpush1.msra.mxu0 0.0
    %1575 = vmatprep.subr.mxu0 0.0
    %1576 = vmatpush1.msra.mxu0 0.0
    %1577 = vmatprep.subr.mxu0 0.0
    %1578 = vmatpush1.msra.mxu0 0.0
    %1579 = vmatprep.mubr.f32.mxu0 0.0
    %1580 = vmatmul.mubr.f32.gmra.mrb[0].mxu0 %v1513
    %v1581 = vpop.f32.mrb[0].mxu0
    %v1582 = vadd.f32 0.0, %v1581
    %v1583 = vpop.f32.mrb[0].mxu0
    %1584 = vdwg.mxu0
    %v1587 = vrot.slane %v1582, 7
    %v1588 = vsel %vm549, %v1587, %v1510
    %1590 = vrot.lane.b32.xlu0 %v1191, 64
    %v1591 = vpop.permute.xlu0 %1590
    %v1593 = vsel %vm136, %v1588, %v1591
    %v1595 = vsel %vm779, %v1593, 0
    %1597 = vmatprep.subr.mxu0 0.0
    %1598 = vmatpush1.msra.mxu0 %v93
    %1599 = vmatprep.subr.mxu0 0.0
    %1600 = vmatpush1.msra.mxu0 %v94
    %1601 = vmatprep.subr.mxu0 0.0
    %1602 = vmatpush1.msra.mxu0 %v95
    %1603 = vmatprep.subr.mxu0 0.0
    %1604 = vmatpush1.msra.mxu0 %v96
    %1605 = vmatprep.subr.mxu0 0.0
    %1606 = vmatpush1.msra.mxu0 %v97
    %1607 = vmatprep.subr.mxu0 0.0
    %1608 = vmatpush1.msra.mxu0 %v98
    %1609 = vmatprep.subr.mxu0 0.0
    %1610 = vmatpush1.msra.mxu0 %v99
    %1611 = vmatprep.subr.mxu0 0.0
    %1612 = vmatpush1.msra.mxu0 %v100
    %1613 = vmatprep.subr.mxu0 0.0
    %1614 = vmatpush1.msra.mxu0 0.0
    %1615 = vmatprep.subr.mxu0 0.0
    %1616 = vmatpush1.msra.mxu0 0.0
    %1617 = vmatprep.subr.mxu0 0.0
    %1618 = vmatpush1.msra.mxu0 0.0
    %1619 = vmatprep.subr.mxu0 0.0
    %1620 = vmatpush1.msra.mxu0 0.0
    %1621 = vmatprep.subr.mxu0 0.0
    %1622 = vmatpush1.msra.mxu0 0.0
    %1623 = vmatprep.subr.mxu0 0.0
    %1624 = vmatpush1.msra.mxu0 0.0
    %1625 = vmatprep.subr.mxu0 0.0
    %1626 = vmatpush1.msra.mxu0 0.0
    %1627 = vmatprep.subr.mxu0 0.0
    %1628 = vmatpush1.msra.mxu0 0.0
    %1629 = vmatprep.subr.mxu0 0.0
    %1630 = vmatpush1.msra.mxu0 0.0
    %1631 = vmatprep.subr.mxu0 0.0
    %1632 = vmatpush1.msra.mxu0 0.0
    %1633 = vmatprep.subr.mxu0 0.0
    %1634 = vmatpush1.msra.mxu0 0.0
    %1635 = vmatprep.subr.mxu0 0.0
    %1636 = vmatpush1.msra.mxu0 0.0
    %1637 = vmatprep.subr.mxu0 0.0
    %1638 = vmatpush1.msra.mxu0 0.0
    %1639 = vmatprep.subr.mxu0 0.0
    %1640 = vmatpush1.msra.mxu0 0.0
    %1641 = vmatprep.subr.mxu0 0.0
    %1642 = vmatpush1.msra.mxu0 0.0
    %1643 = vmatprep.subr.mxu0 0.0
    %1644 = vmatpush1.msra.mxu0 0.0
    %1645 = vmatprep.subr.mxu0 0.0
    %1646 = vmatpush1.msra.mxu0 0.0
    %1647 = vmatprep.subr.mxu0 0.0
    %1648 = vmatpush1.msra.mxu0 0.0
    %1649 = vmatprep.subr.mxu0 0.0
    %1650 = vmatpush1.msra.mxu0 0.0
    %1651 = vmatprep.subr.mxu0 0.0
    %1652 = vmatpush1.msra.mxu0 0.0
    %1653 = vmatprep.subr.mxu0 0.0
    %1654 = vmatpush1.msra.mxu0 0.0
    %1655 = vmatprep.subr.mxu0 0.0
    %1656 = vmatpush1.msra.mxu0 0.0
    %1657 = vmatprep.subr.mxu0 0.0
    %1658 = vmatpush1.msra.mxu0 0.0
    %1659 = vmatprep.subr.mxu0 0.0
    %1660 = vmatpush1.msra.mxu0 0.0
    %1661 = vmatprep.mubr.f32.mxu0 0.0
    %1662 = vmatmul.mubr.f32.gmra.mrb[0].mxu0 %v1595
    %v1663 = vpop.f32.mrb[0].mxu0
    %v1664 = vadd.f32 %v128, %v1663
    %v1665 = vpop.f32.mrb[0].mxu0
    %1666 = vdwg.mxu0
    %v1667 = vtanh.pop %v1664
    %v1668 = vmul.f32 %v1415, %v910
    %v1669 = vsel %vm552, %v1668, -inf
    %1670 = vmax.xlane.f32.xlu0 %v1669
    %v1671 = vpop.xlane.xlu0 %1670
    %vm1672 = vcmp.eq.f32.partialorder %v1668, %v1671
    %v1673 = vsel %vm1672, %v228, 8
    %v1674 = vsel %vm552, %v1673, 2147483647
    %v1675 = vand.u32 %v1674, 65535
    %v1676 = vshra.s32 %v1674, 16
    %v1677 = vcvt.s32.f32 %v1675
    %v1678 = vcvt.s32.f32 %v1676
    %1679 = vmin.xlane.f32.xlu0 %v1678
    %v1680 = vpop.xlane.xlu0 %1679
    %vm1681 = vcmp.eq.f32.partialorder %v1678, %v1680
    %v1682 = vsel %vm1681, %v1677, inf
    %1683 = vmin.xlane.f32.xlu0 %v1682
    %v1684 = vpop.xlane.xlu0 %1683
    %v1685 = vcvt.f32.s32 %v1684
    %v1686 = vcvt.f32.s32 %v1680
    %v1687 = vshll.u32 %v1686, 16
    %v1688 = vadd.s32 %v1687, %v1685
    %vm1689 = vcmp.eq.s32.totalorder %v228, %v1688
    %v1690 = vsel %vm1689, 1, 0
    %v1691 = vcvt.s32.f32 %v1690
    %v1692 = vsub.f32 1.0, %v1691
    %v1693 = vmul.f32 %v910, %v1692
    %v1696 = vunpack.c.l.s4 1966171168
    %v1697 = vunpack.c.0.s8 %v1696
    %v1698 = vlaneseq
    %v1699 = vshrl.u32 %v1698, 7
    %v1700 = vsub.s32 %v1697, %v1699
    %v1701 = vrot.slane %v1691, %v1700
    %v1702 = vcombine.high %v1701, %v1701
    %v1704 = vunpack.c.l.s4 1966171168
    %v1705 = vunpack.c.0.s8 %v1704
    %v1706 = vlaneseq
    %v1707 = vshrl.u32 %v1706, 7
    %v1708 = vsub.s32 %v1705, %v1707
    %v1709 = vrot.slane %v1701, %v1708
    %v1711 = vunpack.c.l.s4 1966171168
    %v1712 = vunpack.c.0.s8 %v1711
    %v1713 = vlaneseq
    %v1714 = vshrl.u32 %v1713, 7
    %v1715 = vsub.s32 %v1712, %v1714
    %v1716 = vrot.slane %v1702, %v1715
    %v1717 = vsel %vm617, %v1709, 0
    %1719 = vmatprep.subr.mxu0 0.0
    %1720 = vmatpush1.msra.mxu0 %v82
    %1721 = vmatprep.subr.mxu0 0.0
    %1722 = vmatpush1.msra.mxu0 0.0
    %1723 = vmatprep.subr.mxu0 0.0
    %1724 = vmatpush1.msra.mxu0 0.0
    %1725 = vmatprep.subr.mxu0 0.0
    %1726 = vmatpush1.msra.mxu0 0.0
    %1727 = vmatprep.subr.mxu0 0.0
    %1728 = vmatpush1.msra.mxu0 0.0
    %1729 = vmatprep.subr.mxu0 0.0
    %1730 = vmatpush1.msra.mxu0 0.0
    %1731 = vmatprep.subr.mxu0 0.0
    %1732 = vmatpush1.msra.mxu0 0.0
    %1733 = vmatprep.subr.mxu0 0.0
    %1734 = vmatpush1.msra.mxu0 0.0
    %1735 = vmatprep.subr.mxu0 0.0
    %1736 = vmatpush1.msra.mxu0 0.0
    %1737 = vmatprep.subr.mxu0 0.0
    %1738 = vmatpush1.msra.mxu0 0.0
    %1739 = vmatprep.subr.mxu0 0.0
    %1740 = vmatpush1.msra.mxu0 0.0
    %1741 = vmatprep.subr.mxu0 0.0
    %1742 = vmatpush1.msra.mxu0 0.0
    %1743 = vmatprep.subr.mxu0 0.0
    %1744 = vmatpush1.msra.mxu0 0.0
    %1745 = vmatprep.subr.mxu0 0.0
    %1746 = vmatpush1.msra.mxu0 0.0
    %1747 = vmatprep.subr.mxu0 0.0
    %1748 = vmatpush1.msra.mxu0 0.0
    %1749 = vmatprep.subr.mxu0 0.0
    %1750 = vmatpush1.msra.mxu0 0.0
    %1751 = vmatprep.subr.mxu0 0.0
    %1752 = vmatpush1.msra.mxu0 0.0
    %1753 = vmatprep.subr.mxu0 0.0
    %1754 = vmatpush1.msra.mxu0 0.0
    %1755 = vmatprep.subr.mxu0 0.0
    %1756 = vmatpush1.msra.mxu0 0.0
    %1757 = vmatprep.subr.mxu0 0.0
    %1758 = vmatpush1.msra.mxu0 0.0
    %1759 = vmatprep.subr.mxu0 0.0
    %1760 = vmatpush1.msra.mxu0 0.0
    %1761 = vmatprep.subr.mxu0 0.0
    %1762 = vmatpush1.msra.mxu0 0.0
    %1763 = vmatprep.subr.mxu0 0.0
    %1764 = vmatpush1.msra.mxu0 0.0
    %1765 = vmatprep.subr.mxu0 0.0
    %1766 = vmatpush1.msra.mxu0 0.0
    %1767 = vmatprep.subr.mxu0 0.0
    %1768 = vmatpush1.msra.mxu0 0.0
    %1769 = vmatprep.subr.mxu0 0.0
    %1770 = vmatpush1.msra.mxu0 0.0
    %1771 = vmatprep.subr.mxu0 0.0
    %1772 = vmatpush1.msra.mxu0 0.0
    %1773 = vmatprep.subr.mxu0 0.0
    %1774 = vmatpush1.msra.mxu0 0.0
    %1775 = vmatprep.subr.mxu0 0.0
    %1776 = vmatpush1.msra.mxu0 0.0
    %1777 = vmatprep.subr.mxu0 0.0
    %1778 = vmatpush1.msra.mxu0 0.0
    %1779 = vmatprep.subr.mxu0 0.0
    %1780 = vmatpush1.msra.mxu0 0.0
    %1781 = vmatprep.subr.mxu0 0.0
    %1782 = vmatpush1.msra.mxu0 0.0
    %1783 = vmatprep.mubr.f32.mxu0 0.0
    %1784 = vmatmul.mubr.f32.gmra.mrb[0].mxu0 %v1717
    %v1785 = vpop.f32.mrb[0].mxu0
    %v1786 = vadd.f32 0.0, %v1785
    %v1787 = vpop.f32.mrb[0].mxu0
    %1788 = vdwg.mxu0
    %v1789 = vsel %vm617, %v1716, 0
    %1791 = vmatprep.subr.mxu0 0.0
    %1792 = vmatpush1.msra.mxu0 %v83
    %1793 = vmatprep.subr.mxu0 0.0
    %1794 = vmatpush1.msra.mxu0 0.0
    %1795 = vmatprep.subr.mxu0 0.0
    %1796 = vmatpush1.msra.mxu0 0.0
    %1797 = vmatprep.subr.mxu0 0.0
    %1798 = vmatpush1.msra.mxu0 0.0
    %1799 = vmatprep.subr.mxu0 0.0
    %1800 = vmatpush1.msra.mxu0 0.0
    %1801 = vmatprep.subr.mxu0 0.0
    %1802 = vmatpush1.msra.mxu0 0.0
    %1803 = vmatprep.subr.mxu0 0.0
    %1804 = vmatpush1.msra.mxu0 0.0
    %1805 = vmatprep.subr.mxu0 0.0
    %1806 = vmatpush1.msra.mxu0 0.0
    %1807 = vmatprep.subr.mxu0 0.0
    %1808 = vmatpush1.msra.mxu0 0.0
    %1809 = vmatprep.subr.mxu0 0.0
    %1810 = vmatpush1.msra.mxu0 0.0
    %1811 = vmatprep.subr.mxu0 0.0
    %1812 = vmatpush1.msra.mxu0 0.0
    %1813 = vmatprep.subr.mxu0 0.0
    %1814 = vmatpush1.msra.mxu0 0.0
    %1815 = vmatprep.subr.mxu0 0.0
    %1816 = vmatpush1.msra.mxu0 0.0
    %1817 = vmatprep.subr.mxu0 0.0
    %1818 = vmatpush1.msra.mxu0 0.0
    %1819 = vmatprep.subr.mxu0 0.0
    %1820 = vmatpush1.msra.mxu0 0.0
    %1821 = vmatprep.subr.mxu0 0.0
    %1822 = vmatpush1.msra.mxu0 0.0
    %1823 = vmatprep.subr.mxu0 0.0
    %1824 = vmatpush1.msra.mxu0 0.0
    %1825 = vmatprep.subr.mxu0 0.0
    %1826 = vmatpush1.msra.mxu0 0.0
    %1827 = vmatprep.subr.mxu0 0.0
    %1828 = vmatpush1.msra.mxu0 0.0
    %1829 = vmatprep.subr.mxu0 0.0
    %1830 = vmatpush1.msra.mxu0 0.0
    %1831 = vmatprep.subr.mxu0 0.0
    %1832 = vmatpush1.msra.mxu0 0.0
    %1833 = vmatprep.subr.mxu0 0.0
    %1834 = vmatpush1.msra.mxu0 0.0
    %1835 = vmatprep.subr.mxu0 0.0
    %1836 = vmatpush1.msra.mxu0 0.0
    %1837 = vmatprep.subr.mxu0 0.0
    %1838 = vmatpush1.msra.mxu0 0.0
    %1839 = vmatprep.subr.mxu0 0.0
    %1840 = vmatpush1.msra.mxu0 0.0
    %1841 = vmatprep.subr.mxu0 0.0
    %1842 = vmatpush1.msra.mxu0 0.0
    %1843 = vmatprep.subr.mxu0 0.0
    %1844 = vmatpush1.msra.mxu0 0.0
    %1845 = vmatprep.subr.mxu0 0.0
    %1846 = vmatpush1.msra.mxu0 0.0
    %1847 = vmatprep.subr.mxu0 0.0
    %1848 = vmatpush1.msra.mxu0 0.0
    %1849 = vmatprep.subr.mxu0 0.0
    %1850 = vmatpush1.msra.mxu0 0.0
    %1851 = vmatprep.subr.mxu0 0.0
    %1852 = vmatpush1.msra.mxu0 0.0
    %1853 = vmatprep.subr.mxu0 0.0
    %1854 = vmatpush1.msra.mxu0 0.0
    %1855 = vmatprep.mubr.f32.mxu0 0.0
    %1856 = vmatmul.mubr.f32.gmra.mrb[0].mxu0 %v1789
    %v1857 = vpop.f32.mrb[0].mxu0
    %v1858 = vadd.f32 0.0, %v1857
    %v1859 = vpop.f32.mrb[0].mxu0
    %1860 = vdwg.mxu0
    %1861 = vst.msk [vmem:[#allocation7 + $0x1] sm:$0x1] %vm1080, %v1431
    %1862 = vst.msk [vmem:[#allocation7 + $0x9] sm:$0x1] %vm1080, %v1438
    %vm1863 = vcmask 9224
    %1864 = vst.msk [vmem:[#allocation8] sm:$0x3] %vm1863, %v1688
    %v1867 = vrot.slane %v1858, 7
    %v1868 = vsel %vm549, %v1867, %v1786
    %1871 = vrot.lane.b32.xlu0 %v1667, 16
    %v1872 = vpop.permute.xlu0 %1871
    %v1874 = vsel %vm233, %v1868, %v1872
    %v1876 = vsel %vm235, %v1874, 0
    %1878 = vmatprep.subr.mxu0 0.0
    %1879 = vmatpush1.msra.mxu0 %v87
    %1880 = vmatprep.subr.mxu0 0.0
    %1881 = vmatpush1.msra.mxu0 %v88
    %1882 = vmatprep.subr.mxu0 0.0
    %1883 = vmatpush1.msra.mxu0 %v89
    %1884 = vmatprep.subr.mxu0 0.0
    %1885 = vmatpush1.msra.mxu0 %v90
    %1886 = vmatprep.subr.mxu0 0.0
    %1887 = vmatpush1.msra.mxu0 %v91
    %1888 = vmatprep.subr.mxu0 0.0
    %1889 = vmatpush1.msra.mxu0 %v92
    %1890 = vmatprep.subr.mxu0 0.0
    %1891 = vmatpush1.msra.mxu0 0.0
    %1892 = vmatprep.subr.mxu0 0.0
    %1893 = vmatpush1.msra.mxu0 0.0
    %1894 = vmatprep.subr.mxu0 0.0
    %1895 = vmatpush1.msra.mxu0 0.0
    %1896 = vmatprep.subr.mxu0 0.0
    %1897 = vmatpush1.msra.mxu0 0.0
    %1898 = vmatprep.subr.mxu0 0.0
    %1899 = vmatpush1.msra.mxu0 0.0
    %1900 = vmatprep.subr.mxu0 0.0
    %1901 = vmatpush1.msra.mxu0 0.0
    %1902 = vmatprep.subr.mxu0 0.0
    %1903 = vmatpush1.msra.mxu0 0.0
    %1904 = vmatprep.subr.mxu0 0.0
    %1905 = vmatpush1.msra.mxu0 0.0
    %1906 = vmatprep.subr.mxu0 0.0
    %1907 = vmatpush1.msra.mxu0 0.0
    %1908 = vmatprep.subr.mxu0 0.0
    %1909 = vmatpush1.msra.mxu0 0.0
    %1910 = vmatprep.subr.mxu0 0.0
    %1911 = vmatpush1.msra.mxu0 0.0
    %1912 = vmatprep.subr.mxu0 0.0
    %1913 = vmatpush1.msra.mxu0 0.0
    %1914 = vmatprep.subr.mxu0 0.0
    %1915 = vmatpush1.msra.mxu0 0.0
    %1916 = vmatprep.subr.mxu0 0.0
    %1917 = vmatpush1.msra.mxu0 0.0
    %1918 = vmatprep.subr.mxu0 0.0
    %1919 = vmatpush1.msra.mxu0 0.0
    %1920 = vmatprep.subr.mxu0 0.0
    %1921 = vmatpush1.msra.mxu0 0.0
    %1922 = vmatprep.subr.mxu0 0.0
    %1923 = vmatpush1.msra.mxu0 0.0
    %1924 = vmatprep.subr.mxu0 0.0
    %1925 = vmatpush1.msra.mxu0 0.0
    %1926 = vmatprep.subr.mxu0 0.0
    %1927 = vmatpush1.msra.mxu0 0.0
    %1928 = vmatprep.subr.mxu0 0.0
    %1929 = vmatpush1.msra.mxu0 0.0
    %1930 = vmatprep.subr.mxu0 0.0
    %1931 = vmatpush1.msra.mxu0 0.0
    %1932 = vmatprep.subr.mxu0 0.0
    %1933 = vmatpush1.msra.mxu0 0.0
    %1934 = vmatprep.subr.mxu0 0.0
    %1935 = vmatpush1.msra.mxu0 0.0
    %1936 = vmatprep.subr.mxu0 0.0
    %1937 = vmatpush1.msra.mxu0 0.0
    %1938 = vmatprep.subr.mxu0 0.0
    %1939 = vmatpush1.msra.mxu0 0.0
    %1940 = vmatprep.subr.mxu0 0.0
    %1941 = vmatpush1.msra.mxu0 0.0
    %1942 = vmatprep.mubr.f32.mxu0 0.0
    %1943 = vmatmul.mubr.f32.gmra.mrb[0].mxu0 %v1876
    %v1944 = vpop.f32.mrb[0].mxu0
    %v1945 = vadd.f32 %v114, %v1944
    %v1946 = vpop.f32.mrb[0].mxu0
    %1947 = vdwg.mxu0
    %v1948 = vxor.u32 %v1945, 2147483648
    %v1949 = vmul.f32 %v1948, 1.442695
    %v1950 = vpow.pop %v1949
    %v1951 = vadd.f32 %v1950, 1.0
    %v1952 = vrcp.pop %v1951
    %v1953 = vmul.f32 1.0, %v1952
    %v1954 = vtanh.pop %v1945
    %v1955 = vmul.f32 %v1953, %v1185
    %1957 = vrot.lane.b32.xlu0 %v1954, 64
    %v1958 = vpop.permute.xlu0 %1957
    %v1960 = vmul.f32 %v1953, %v1958
    %1962 = vrot.lane.b32.xlu0 %v1960, 32
    %v1963 = vpop.permute.xlu0 %1962
    %v1965 = vadd.f32 %v1955, %v1963
    %v1966 = vtanh.pop %v1965
    %1968 = vrot.lane.b32.xlu0 %v1966, 64
    %v1969 = vpop.permute.xlu0 %1968
    %v1971 = vmul.f32 %v1953, %v1969
    %1973 = vrot.lane.b32.xlu0 %v1971, 32
    %v1974 = vpop.permute.xlu0 %1973
    %v1975 = vsel %vm136, %v1974, 0
    %1977 = vmatprep.subr.mxu0 0.0
    %1978 = vmatpush1.msra.mxu0 %v101
    %1979 = vmatprep.subr.mxu0 0.0
    %1980 = vmatpush1.msra.mxu0 %v102
    %1981 = vmatprep.subr.mxu0 0.0
    %1982 = vmatpush1.msra.mxu0 %v103
    %1983 = vmatprep.subr.mxu0 0.0
    %1984 = vmatpush1.msra.mxu0 %v104
    %1985 = vmatprep.subr.mxu0 0.0
    %1986 = vmatpush1.msra.mxu0 0.0
    %1987 = vmatprep.subr.mxu0 0.0
    %1988 = vmatpush1.msra.mxu0 0.0
    %1989 = vmatprep.subr.mxu0 0.0
    %1990 = vmatpush1.msra.mxu0 0.0
    %1991 = vmatprep.subr.mxu0 0.0
    %1992 = vmatpush1.msra.mxu0 0.0
    %1993 = vmatprep.subr.mxu0 0.0
    %1994 = vmatpush1.msra.mxu0 0.0
    %1995 = vmatprep.subr.mxu0 0.0
    %1996 = vmatpush1.msra.mxu0 0.0
    %1997 = vmatprep.subr.mxu0 0.0
    %1998 = vmatpush1.msra.mxu0 0.0
    %1999 = vmatprep.subr.mxu0 0.0
    %2000 = vmatpush1.msra.mxu0 0.0
    %2001 = vmatprep.subr.mxu0 0.0
    %2002 = vmatpush1.msra.mxu0 0.0
    %2003 = vmatprep.subr.mxu0 0.0
    %2004 = vmatpush1.msra.mxu0 0.0
    %2005 = vmatprep.subr.mxu0 0.0
    %2006 = vmatpush1.msra.mxu0 0.0
    %2007 = vmatprep.subr.mxu0 0.0
    %2008 = vmatpush1.msra.mxu0 0.0
    %2009 = vmatprep.subr.mxu0 0.0
    %2010 = vmatpush1.msra.mxu0 0.0
    %2011 = vmatprep.subr.mxu0 0.0
    %2012 = vmatpush1.msra.mxu0 0.0
    %2013 = vmatprep.subr.mxu0 0.0
    %2014 = vmatpush1.msra.mxu0 0.0
    %2015 = vmatprep.subr.mxu0 0.0
    %2016 = vmatpush1.msra.mxu0 0.0
    %2017 = vmatprep.subr.mxu0 0.0
    %2018 = vmatpush1.msra.mxu0 0.0
    %2019 = vmatprep.subr.mxu0 0.0
    %2020 = vmatpush1.msra.mxu0 0.0
    %2021 = vmatprep.subr.mxu0 0.0
    %2022 = vmatpush1.msra.mxu0 0.0
    %2023 = vmatprep.subr.mxu0 0.0
    %2024 = vmatpush1.msra.mxu0 0.0
    %2025 = vmatprep.subr.mxu0 0.0
    %2026 = vmatpush1.msra.mxu0 0.0
    %2027 = vmatprep.subr.mxu0 0.0
    %2028 = vmatpush1.msra.mxu0 0.0
    %2029 = vmatprep.subr.mxu0 0.0
    %2030 = vmatpush1.msra.mxu0 0.0
    %2031 = vmatprep.subr.mxu0 0.0
    %2032 = vmatpush1.msra.mxu0 0.0
    %2033 = vmatprep.subr.mxu0 0.0
    %2034 = vmatpush1.msra.mxu0 0.0
    %2035 = vmatprep.subr.mxu0 0.0
    %2036 = vmatpush1.msra.mxu0 0.0
    %2037 = vmatprep.subr.mxu0 0.0
    %2038 = vmatpush1.msra.mxu0 0.0
    %2039 = vmatprep.subr.mxu0 0.0
    %2040 = vmatpush1.msra.mxu0 0.0
    %2041 = vmatprep.mubr.f32.mxu0 0.0
    %2042 = vmatmul.mubr.f32.gmra.mrb[0].mxu0 %v1975
    %v2043 = vpop.f32.mrb[0].mxu0
    %v2044 = vadd.f32 %v121, %v2043
    %v2045 = vpop.f32.mrb[0].mxu0
    %2046 = vdwg.mxu0
    %v2049 = vunpack.c.l.s4 1966171168
    %v2050 = vunpack.c.0.s8 %v2049
    %v2051 = vlaneseq
    %v2052 = vshrl.u32 %v2051, 7
    %v2053 = vsub.s32 %v2050, %v2052
    %v2054 = vrot.slane %v2044, %v2053
    %v2055 = vcombine.high %v2054, %v2054
    %v2057 = vunpack.c.l.s4 1966171168
    %v2058 = vunpack.c.0.s8 %v2057
    %v2059 = vlaneseq
    %v2060 = vshrl.u32 %v2059, 7
    %v2061 = vsub.s32 %v2058, %v2060
    %v2062 = vrot.slane %v2054, %v2061
    %v2064 = vunpack.c.l.s4 1966171168
    %v2065 = vunpack.c.0.s8 %v2064
    %v2066 = vlaneseq
    %v2067 = vshrl.u32 %v2066, 7
    %v2068 = vsub.s32 %v2065, %v2067
    %v2069 = vrot.slane %v2055, %v2068
    %v2070 = vlaneseq
    %v2071 = vshrl.u32 %v2070, 7
    %v2072 = vsub.s32 0, %v2071
    %v2073 = vrot.slane %v2062, %v2072
    %v2074 = vlaneseq
    %v2075 = vshrl.u32 %v2074, 7
    %v2076 = vsub.s32 0, %v2075
    %v2077 = vrot.slane %v2069, %v2076
    %v2080 = vadd.f32 %v2073, %v225
    %v2081 = vadd.f32 %v2077, %v226
    %v2082 = vtanh.pop %v2080
    %v2083 = vtanh.pop %v2081
    %v2085 = vsel %vm136, %v2082, 0
    %v2088 = vsel %vm136, %v2083, 0
    %2090 = vmatprep.subr.mxu0 0.0
    %2091 = vmatpush1.msra.mxu0 %v105
    %2092 = vmatprep.subr.mxu0 0.0
    %2093 = vmatpush1.msra.mxu0 %v106
    %2094 = vmatprep.subr.mxu0 0.0
    %2095 = vmatpush1.msra.mxu0 %v107
    %2096 = vmatprep.subr.mxu0 0.0
    %2097 = vmatpush1.msra.mxu0 %v108
    %2098 = vmatprep.subr.mxu0 0.0
    %2099 = vmatpush1.msra.mxu0 0.0
    %2100 = vmatprep.subr.mxu0 0.0
    %2101 = vmatpush1.msra.mxu0 0.0
    %2102 = vmatprep.subr.mxu0 0.0
    %2103 = vmatpush1.msra.mxu0 0.0
    %2104 = vmatprep.subr.mxu0 0.0
    %2105 = vmatpush1.msra.mxu0 0.0
    %2106 = vmatprep.subr.mxu0 0.0
    %2107 = vmatpush1.msra.mxu0 0.0
    %2108 = vmatprep.subr.mxu0 0.0
    %2109 = vmatpush1.msra.mxu0 0.0
    %2110 = vmatprep.subr.mxu0 0.0
    %2111 = vmatpush1.msra.mxu0 0.0
    %2112 = vmatprep.subr.mxu0 0.0
    %2113 = vmatpush1.msra.mxu0 0.0
    %2114 = vmatprep.subr.mxu0 0.0
    %2115 = vmatpush1.msra.mxu0 0.0
    %2116 = vmatprep.subr.mxu0 0.0
    %2117 = vmatpush1.msra.mxu0 0.0
    %2118 = vmatprep.subr.mxu0 0.0
    %2119 = vmatpush1.msra.mxu0 0.0
    %2120 = vmatprep.subr.mxu0 0.0
    %2121 = vmatpush1.msra.mxu0 0.0
    %2122 = vmatprep.subr.mxu0 0.0
    %2123 = vmatpush1.msra.mxu0 0.0
    %2124 = vmatprep.subr.mxu0 0.0
    %2125 = vmatpush1.msra.mxu0 0.0
    %2126 = vmatprep.subr.mxu0 0.0
    %2127 = vmatpush1.msra.mxu0 0.0
    %2128 = vmatprep.subr.mxu0 0.0
    %2129 = vmatpush1.msra.mxu0 0.0
    %2130 = vmatprep.subr.mxu0 0.0
    %2131 = vmatpush1.msra.mxu0 0.0
    %2132 = vmatprep.subr.mxu0 0.0
    %2133 = vmatpush1.msra.mxu0 0.0
    %2134 = vmatprep.subr.mxu0 0.0
    %2135 = vmatpush1.msra.mxu0 0.0
    %2136 = vmatprep.subr.mxu0 0.0
    %2137 = vmatpush1.msra.mxu0 0.0
    %2138 = vmatprep.subr.mxu0 0.0
    %2139 = vmatpush1.msra.mxu0 0.0
    %2140 = vmatprep.subr.mxu0 0.0
    %2141 = vmatpush1.msra.mxu0 0.0
    %2142 = vmatprep.subr.mxu0 0.0
    %2143 = vmatpush1.msra.mxu0 0.0
    %2144 = vmatprep.subr.mxu0 0.0
    %2145 = vmatpush1.msra.mxu0 0.0
    %2146 = vmatprep.subr.mxu0 0.0
    %2147 = vmatpush1.msra.mxu0 0.0
    %2148 = vmatprep.subr.mxu0 0.0
    %2149 = vmatpush1.msra.mxu0 0.0
    %2150 = vmatprep.subr.mxu0 0.0
    %2151 = vmatpush1.msra.mxu0 0.0
    %2152 = vmatprep.subr.mxu0 0.0
    %2153 = vmatpush1.msra.mxu0 0.0
    %2154 = vmatprep.mubr.f32.mxu0 0.0
    %2155 = vmatmul.mubr.f32.gmra.mrb[0].mxu0 %v2085
    %v2156 = vpop.f32.mrb[0].mxu0
    %v2157 = vadd.f32 0.0, %v2156
    %v2158 = vpop.f32.mrb[0].mxu0
    %2159 = vmatprep.mubr.f32.mxu0 0.0
    %2160 = vmatmul.mubr.f32.gmra.mrb[0].mxu0 %v2088
    %v2161 = vpop.f32.mrb[0].mxu0
    %v2162 = vadd.f32 0.0, %v2161
    %v2163 = vpop.f32.mrb[0].mxu0
    %2164 = vdwg.mxu0
    %vm2165 = vcmp.eq.f32.partialorder %v1693, 0.0
    %2168 = vset.pattern.permute.xlu0 0
    %2169 = vperm.xlu0 %2168, %v2157
    %v2170 = vpop.permute.xlu0 %2169
    %2171 = vset.pattern.permute.xlu0 0
    %2172 = vperm.xlu0 %2171, %v2162
    %v2173 = vpop.permute.xlu0 %2172
    %v2174 = vlaneseq
    %v2175 = vshrl.u32 %v2174, 7
    %v2176 = vsub.s32 %v228, %v2175
    %v2177 = vrot.slane %v2170, %v2176
    %v2178 = vlaneseq
    %v2179 = vshrl.u32 %v2178, 7
    %v2180 = vsub.s32 %v228, %v2179
    %v2181 = vrot.slane %v2173, %v2180
    %v2182 = vsel %vm549, %v2181, %v2177
    %v2184 = vsel %vm2165, -1e+30, %v2182
    %v2185 = vsel %vm552, %v2184, -inf
    %2186 = vmax.xlane.f32.xlu0 %v2185
    %v2187 = vpop.xlane.xlu0 %2186
    %v2188 = vsub.f32 %v2184, %v2187
    %v2189 = vmul.f32 %v2188, 1.442695
    %v2190 = vpow.pop %v2189
    %v2191 = vsel %vm552, %v2190, 0.0
    %2192 = vadd.xlane.f32.xlu0 %v2191
    %v2193 = vpop.xlane.xlu0 %2192
    %v2194 = vrcp.pop %v2193
    %v2195 = vmul.f32 %v2190, %v2194
    %v2198 = vunpack.c.l.s4 1966171168
    %v2199 = vunpack.c.0.s8 %v2198
    %v2200 = vlaneseq
    %v2201 = vshrl.u32 %v2200, 7
    %v2202 = vsub.s32 %v2199, %v2201
    %v2203 = vrot.slane %v2195, %v2202
    %v2204 = vcombine.high %v2203, %v2203
    %v2206 = vunpack.c.l.s4 1966171168
    %v2207 = vunpack.c.0.s8 %v2206
    %v2208 = vlaneseq
    %v2209 = vshrl.u32 %v2208, 7
    %v2210 = vsub.s32 %v2207, %v2209
    %v2211 = vrot.slane %v2203, %v2210
    %v2213 = vunpack.c.l.s4 1966171168
    %v2214 = vunpack.c.0.s8 %v2213
    %v2215 = vlaneseq
    %v2216 = vshrl.u32 %v2215, 7
    %v2217 = vsub.s32 %v2214, %v2216
    %v2218 = vrot.slane %v2204, %v2217
    %v2221 = vsel %vm617, %v2211, 0
    %2223 = vmatprep.subr.mxu0 0.0
    %2224 = vmatpush1.msra.mxu0 %v225
    %2225 = vmatprep.subr.mxu0 0.0
    %2226 = vmatpush1.msra.mxu0 0.0
    %2227 = vmatprep.subr.mxu0 0.0
    %2228 = vmatpush1.msra.mxu0 0.0
    %2229 = vmatprep.subr.mxu0 0.0
    %2230 = vmatpush1.msra.mxu0 0.0
    %2231 = vmatprep.subr.mxu0 0.0
    %2232 = vmatpush1.msra.mxu0 0.0
    %2233 = vmatprep.subr.mxu0 0.0
    %2234 = vmatpush1.msra.mxu0 0.0
    %2235 = vmatprep.subr.mxu0 0.0
    %2236 = vmatpush1.msra.mxu0 0.0
    %2237 = vmatprep.subr.mxu0 0.0
    %2238 = vmatpush1.msra.mxu0 0.0
    %2239 = vmatprep.subr.mxu0 0.0
    %2240 = vmatpush1.msra.mxu0 0.0
    %2241 = vmatprep.subr.mxu0 0.0
    %2242 = vmatpush1.msra.mxu0 0.0
    %2243 = vmatprep.subr.mxu0 0.0
    %2244 = vmatpush1.msra.mxu0 0.0
    %2245 = vmatprep.subr.mxu0 0.0
    %2246 = vmatpush1.msra.mxu0 0.0
    %2247 = vmatprep.subr.mxu0 0.0
    %2248 = vmatpush1.msra.mxu0 0.0
    %2249 = vmatprep.subr.mxu0 0.0
    %2250 = vmatpush1.msra.mxu0 0.0
    %2251 = vmatprep.subr.mxu0 0.0
    %2252 = vmatpush1.msra.mxu0 0.0
    %2253 = vmatprep.subr.mxu0 0.0
    %2254 = vmatpush1.msra.mxu0 0.0
    %2255 = vmatprep.subr.mxu0 0.0
    %2256 = vmatpush1.msra.mxu0 0.0
    %2257 = vmatprep.subr.mxu0 0.0
    %2258 = vmatpush1.msra.mxu0 0.0
    %2259 = vmatprep.subr.mxu0 0.0
    %2260 = vmatpush1.msra.mxu0 0.0
    %2261 = vmatprep.subr.mxu0 0.0
    %2262 = vmatpush1.msra.mxu0 0.0
    %2263 = vmatprep.subr.mxu0 0.0
    %2264 = vmatpush1.msra.mxu0 0.0
    %2265 = vmatprep.subr.mxu0 0.0
    %2266 = vmatpush1.msra.mxu0 0.0
    %2267 = vmatprep.subr.mxu0 0.0
    %2268 = vmatpush1.msra.mxu0 0.0
    %2269 = vmatprep.subr.mxu0 0.0
    %2270 = vmatpush1.msra.mxu0 0.0
    %2271 = vmatprep.subr.mxu0 0.0
    %2272 = vmatpush1.msra.mxu0 0.0
    %2273 = vmatprep.subr.mxu0 0.0
    %2274 = vmatpush1.msra.mxu0 0.0
    %2275 = vmatprep.subr.mxu0 0.0
    %2276 = vmatpush1.msra.mxu0 0.0
    %2277 = vmatprep.subr.mxu0 0.0
    %2278 = vmatpush1.msra.mxu0 0.0
    %2279 = vmatprep.subr.mxu0 0.0
    %2280 = vmatpush1.msra.mxu0 0.0
    %2281 = vmatprep.subr.mxu0 0.0
    %2282 = vmatpush1.msra.mxu0 0.0
    %2283 = vmatprep.subr.mxu0 0.0
    %2284 = vmatpush1.msra.mxu0 0.0
    %2285 = vmatprep.subr.mxu0 0.0
    %2286 = vmatpush1.msra.mxu0 0.0
    %2287 = vmatprep.mubr.f32.mxu0 0.0
    %2288 = vmatmul.mubr.f32.gmra.mrb[0].mxu0 %v2221
    %v2289 = vpop.f32.mrb[0].mxu0
    %v2290 = vadd.f32 0.0, %v2289
    %v2291 = vpop.f32.mrb[0].mxu0
    %2292 = vdwg.mxu0
    %v2293 = vsel %vm617, %v2218, 0
    %2295 = vmatprep.subr.mxu0 0.0
    %2296 = vmatpush1.msra.mxu0 %v226
    %2297 = vmatprep.subr.mxu0 0.0
    %2298 = vmatpush1.msra.mxu0 0.0
    %2299 = vmatprep.subr.mxu0 0.0
    %2300 = vmatpush1.msra.mxu0 0.0
    %2301 = vmatprep.subr.mxu0 0.0
    %2302 = vmatpush1.msra.mxu0 0.0
    %2303 = vmatprep.subr.mxu0 0.0
    %2304 = vmatpush1.msra.mxu0 0.0
    %2305 = vmatprep.subr.mxu0 0.0
    %2306 = vmatpush1.msra.mxu0 0.0
    %2307 = vmatprep.subr.mxu0 0.0
    %2308 = vmatpush1.msra.mxu0 0.0
    %2309 = vmatprep.subr.mxu0 0.0
    %2310 = vmatpush1.msra.mxu0 0.0
    %2311 = vmatprep.subr.mxu0 0.0
    %2312 = vmatpush1.msra.mxu0 0.0
    %2313 = vmatprep.subr.mxu0 0.0
    %2314 = vmatpush1.msra.mxu0 0.0
    %2315 = vmatprep.subr.mxu0 0.0
    %2316 = vmatpush1.msra.mxu0 0.0
    %2317 = vmatprep.subr.mxu0 0.0
    %2318 = vmatpush1.msra.mxu0 0.0
    %2319 = vmatprep.subr.mxu0 0.0
    %2320 = vmatpush1.msra.mxu0 0.0
    %2321 = vmatprep.subr.mxu0 0.0
    %2322 = vmatpush1.msra.mxu0 0.0
    %2323 = vmatprep.subr.mxu0 0.0
    %2324 = vmatpush1.msra.mxu0 0.0
    %2325 = vmatprep.subr.mxu0 0.0
    %2326 = vmatpush1.msra.mxu0 0.0
    %2327 = vmatprep.subr.mxu0 0.0
    %2328 = vmatpush1.msra.mxu0 0.0
    %2329 = vmatprep.subr.mxu0 0.0
    %2330 = vmatpush1.msra.mxu0 0.0
    %2331 = vmatprep.subr.mxu0 0.0
    %2332 = vmatpush1.msra.mxu0 0.0
    %2333 = vmatprep.subr.mxu0 0.0
    %2334 = vmatpush1.msra.mxu0 0.0
    %2335 = vmatprep.subr.mxu0 0.0
    %2336 = vmatpush1.msra.mxu0 0.0
    %2337 = vmatprep.subr.mxu0 0.0
    %2338 = vmatpush1.msra.mxu0 0.0
    %2339 = vmatprep.subr.mxu0 0.0
    %2340 = vmatpush1.msra.mxu0 0.0
    %2341 = vmatprep.subr.mxu0 0.0
    %2342 = vmatpush1.msra.mxu0 0.0
    %2343 = vmatprep.subr.mxu0 0.0
    %2344 = vmatpush1.msra.mxu0 0.0
    %2345 = vmatprep.subr.mxu0 0.0
    %2346 = vmatpush1.msra.mxu0 0.0
    %2347 = vmatprep.subr.mxu0 0.0
    %2348 = vmatpush1.msra.mxu0 0.0
    %2349 = vmatprep.subr.mxu0 0.0
    %2350 = vmatpush1.msra.mxu0 0.0
    %2351 = vmatprep.subr.mxu0 0.0
    %2352 = vmatpush1.msra.mxu0 0.0
    %2353 = vmatprep.subr.mxu0 0.0
    %2354 = vmatpush1.msra.mxu0 0.0
    %2355 = vmatprep.subr.mxu0 0.0
    %2356 = vmatpush1.msra.mxu0 0.0
    %2357 = vmatprep.subr.mxu0 0.0
    %2358 = vmatpush1.msra.mxu0 0.0
    %2359 = vmatprep.mubr.f32.mxu0 0.0
    %2360 = vmatmul.mubr.f32.gmra.mrb[0].mxu0 %v2293
    %v2361 = vpop.f32.mrb[0].mxu0
    %v2362 = vadd.f32 0.0, %v2361
    %v2363 = vpop.f32.mrb[0].mxu0
    %2364 = vdwg.mxu0
    %v2367 = vrot.slane %v2362, 7
    %v2368 = vsel %vm549, %v2367, %v2290
    %2370 = vrot.lane.b32.xlu0 %v1971, 64
    %v2371 = vpop.permute.xlu0 %2370
    %v2373 = vsel %vm136, %v2368, %v2371
    %v2375 = vsel %vm779, %v2373, 0
    %2377 = vmatprep.subr.mxu0 0.0
    %2378 = vmatpush1.msra.mxu0 %v93
    %2379 = vmatprep.subr.mxu0 0.0
    %2380 = vmatpush1.msra.mxu0 %v94
    %2381 = vmatprep.subr.mxu0 0.0
    %2382 = vmatpush1.msra.mxu0 %v95
    %2383 = vmatprep.subr.mxu0 0.0
    %2384 = vmatpush1.msra.mxu0 %v96
    %2385 = vmatprep.subr.mxu0 0.0
    %2386 = vmatpush1.msra.mxu0 %v97
    %2387 = vmatprep.subr.mxu0 0.0
    %2388 = vmatpush1.msra.mxu0 %v98
    %2389 = vmatprep.subr.mxu0 0.0
    %2390 = vmatpush1.msra.mxu0 %v99
    %2391 = vmatprep.subr.mxu0 0.0
    %2392 = vmatpush1.msra.mxu0 %v100
    %2393 = vmatprep.subr.mxu0 0.0
    %2394 = vmatpush1.msra.mxu0 0.0
    %2395 = vmatprep.subr.mxu0 0.0
    %2396 = vmatpush1.msra.mxu0 0.0
    %2397 = vmatprep.subr.mxu0 0.0
    %2398 = vmatpush1.msra.mxu0 0.0
    %2399 = vmatprep.subr.mxu0 0.0
    %2400 = vmatpush1.msra.mxu0 0.0
    %2401 = vmatprep.subr.mxu0 0.0
    %2402 = vmatpush1.msra.mxu0 0.0
    %2403 = vmatprep.subr.mxu0 0.0
    %2404 = vmatpush1.msra.mxu0 0.0
    %2405 = vmatprep.subr.mxu0 0.0
    %2406 = vmatpush1.msra.mxu0 0.0
    %2407 = vmatprep.subr.mxu0 0.0
    %2408 = vmatpush1.msra.mxu0 0.0
    %2409 = vmatprep.subr.mxu0 0.0
    %2410 = vmatpush1.msra.mxu0 0.0
    %2411 = vmatprep.subr.mxu0 0.0
    %2412 = vmatpush1.msra.mxu0 0.0
    %2413 = vmatprep.subr.mxu0 0.0
    %2414 = vmatpush1.msra.mxu0 0.0
    %2415 = vmatprep.subr.mxu0 0.0
    %2416 = vmatpush1.msra.mxu0 0.0
    %2417 = vmatprep.subr.mxu0 0.0
    %2418 = vmatpush1.msra.mxu0 0.0
    %2419 = vmatprep.subr.mxu0 0.0
    %2420 = vmatpush1.msra.mxu0 0.0
    %2421 = vmatprep.subr.mxu0 0.0
    %2422 = vmatpush1.msra.mxu0 0.0
    %2423 = vmatprep.subr.mxu0 0.0
    %2424 = vmatpush1.msra.mxu0 0.0
    %2425 = vmatprep.subr.mxu0 0.0
    %2426 = vmatpush1.msra.mxu0 0.0
    %2427 = vmatprep.subr.mxu0 0.0
    %2428 = vmatpush1.msra.mxu0 0.0
    %2429 = vmatprep.subr.mxu0 0.0
    %2430 = vmatpush1.msra.mxu0 0.0
    %2431 = vmatprep.subr.mxu0 0.0
    %2432 = vmatpush1.msra.mxu0 0.0
    %2433 = vmatprep.subr.mxu0 0.0
    %2434 = vmatpush1.msra.mxu0 0.0
    %2435 = vmatprep.subr.mxu0 0.0
    %2436 = vmatpush1.msra.mxu0 0.0
    %2437 = vmatprep.subr.mxu0 0.0
    %2438 = vmatpush1.msra.mxu0 0.0
    %2439 = vmatprep.subr.mxu0 0.0
    %2440 = vmatpush1.msra.mxu0 0.0
    %2441 = vmatprep.mubr.f32.mxu0 0.0
    %2442 = vmatmul.mubr.f32.gmra.mrb[0].mxu0 %v2375
    %v2443 = vpop.f32.mrb[0].mxu0
    %v2444 = vadd.f32 %v128, %v2443
    %v2445 = vpop.f32.mrb[0].mxu0
    %2446 = vdwg.mxu0
    %v2447 = vtanh.pop %v2444
    %v2448 = vmul.f32 %v2195, %v1693
    %v2449 = vsel %vm552, %v2448, -inf
    %2450 = vmax.xlane.f32.xlu0 %v2449
    %v2451 = vpop.xlane.xlu0 %2450
    %vm2452 = vcmp.eq.f32.partialorder %v2448, %v2451
    %v2453 = vsel %vm2452, %v228, 8
    %v2454 = vsel %vm552, %v2453, 2147483647
    %v2455 = vand.u32 %v2454, 65535
    %v2456 = vshra.s32 %v2454, 16
    %v2457 = vcvt.s32.f32 %v2455
    %v2458 = vcvt.s32.f32 %v2456
    %2459 = vmin.xlane.f32.xlu0 %v2458
    %v2460 = vpop.xlane.xlu0 %2459
    %vm2461 = vcmp.eq.f32.partialorder %v2458, %v2460
    %v2462 = vsel %vm2461, %v2457, inf
    %2463 = vmin.xlane.f32.xlu0 %v2462
    %v2464 = vpop.xlane.xlu0 %2463
    %v2465 = vcvt.f32.s32 %v2464
    %v2466 = vcvt.f32.s32 %v2460
    %v2467 = vshll.u32 %v2466, 16
    %v2468 = vadd.s32 %v2467, %v2465
    %vm2469 = vcmp.eq.s32.totalorder %v228, %v2468
    %v2470 = vsel %vm2469, 1, 0
    %v2471 = vcvt.s32.f32 %v2470
    %v2472 = vsub.f32 1.0, %v2471
    %v2473 = vmul.f32 %v1693, %v2472
    %v2476 = vunpack.c.l.s4 1966171168
    %v2477 = vunpack.c.0.s8 %v2476
    %v2478 = vlaneseq
    %v2479 = vshrl.u32 %v2478, 7
    %v2480 = vsub.s32 %v2477, %v2479
    %v2481 = vrot.slane %v2471, %v2480
    %v2482 = vcombine.high %v2481, %v2481
    %v2484 = vunpack.c.l.s4 1966171168
    %v2485 = vunpack.c.0.s8 %v2484
    %v2486 = vlaneseq
    %v2487 = vshrl.u32 %v2486, 7
    %v2488 = vsub.s32 %v2485, %v2487
    %v2489 = vrot.slane %v2481, %v2488
    %v2491 = vunpack.c.l.s4 1966171168
    %v2492 = vunpack.c.0.s8 %v2491
    %v2493 = vlaneseq
    %v2494 = vshrl.u32 %v2493, 7
    %v2495 = vsub.s32 %v2492, %v2494
    %v2496 = vrot.slane %v2482, %v2495
    %v2497 = vsel %vm617, %v2489, 0
    %2499 = vmatprep.subr.mxu0 0.0
    %2500 = vmatpush1.msra.mxu0 %v82
    %2501 = vmatprep.subr.mxu0 0.0
    %2502 = vmatpush1.msra.mxu0 0.0
    %2503 = vmatprep.subr.mxu0 0.0
    %2504 = vmatpush1.msra.mxu0 0.0
    %2505 = vmatprep.subr.mxu0 0.0
    %2506 = vmatpush1.msra.mxu0 0.0
    %2507 = vmatprep.subr.mxu0 0.0
    %2508 = vmatpush1.msra.mxu0 0.0
    %2509 = vmatprep.subr.mxu0 0.0
    %2510 = vmatpush1.msra.mxu0 0.0
    %2511 = vmatprep.subr.mxu0 0.0
    %2512 = vmatpush1.msra.mxu0 0.0
    %2513 = vmatprep.subr.mxu0 0.0
    %2514 = vmatpush1.msra.mxu0 0.0
    %2515 = vmatprep.subr.mxu0 0.0
    %2516 = vmatpush1.msra.mxu0 0.0
    %2517 = vmatprep.subr.mxu0 0.0
    %2518 = vmatpush1.msra.mxu0 0.0
    %2519 = vmatprep.subr.mxu0 0.0
    %2520 = vmatpush1.msra.mxu0 0.0
    %2521 = vmatprep.subr.mxu0 0.0
    %2522 = vmatpush1.msra.mxu0 0.0
    %2523 = vmatprep.subr.mxu0 0.0
    %2524 = vmatpush1.msra.mxu0 0.0
    %2525 = vmatprep.subr.mxu0 0.0
    %2526 = vmatpush1.msra.mxu0 0.0
    %2527 = vmatprep.subr.mxu0 0.0
    %2528 = vmatpush1.msra.mxu0 0.0
    %2529 = vmatprep.subr.mxu0 0.0
    %2530 = vmatpush1.msra.mxu0 0.0
    %2531 = vmatprep.subr.mxu0 0.0
    %2532 = vmatpush1.msra.mxu0 0.0
    %2533 = vmatprep.subr.mxu0 0.0
    %2534 = vmatpush1.msra.mxu0 0.0
    %2535 = vmatprep.subr.mxu0 0.0
    %2536 = vmatpush1.msra.mxu0 0.0
    %2537 = vmatprep.subr.mxu0 0.0
    %2538 = vmatpush1.msra.mxu0 0.0
    %2539 = vmatprep.subr.mxu0 0.0
    %2540 = vmatpush1.msra.mxu0 0.0
    %2541 = vmatprep.subr.mxu0 0.0
    %2542 = vmatpush1.msra.mxu0 0.0
    %2543 = vmatprep.subr.mxu0 0.0
    %2544 = vmatpush1.msra.mxu0 0.0
    %2545 = vmatprep.subr.mxu0 0.0
    %2546 = vmatpush1.msra.mxu0 0.0
    %2547 = vmatprep.subr.mxu0 0.0
    %2548 = vmatpush1.msra.mxu0 0.0
    %2549 = vmatprep.subr.mxu0 0.0
    %2550 = vmatpush1.msra.mxu0 0.0
    %2551 = vmatprep.subr.mxu0 0.0
    %2552 = vmatpush1.msra.mxu0 0.0
    %2553 = vmatprep.subr.mxu0 0.0
    %2554 = vmatpush1.msra.mxu0 0.0
    %2555 = vmatprep.subr.mxu0 0.0
    %2556 = vmatpush1.msra.mxu0 0.0
    %2557 = vmatprep.subr.mxu0 0.0
    %2558 = vmatpush1.msra.mxu0 0.0
    %2559 = vmatprep.subr.mxu0 0.0
    %2560 = vmatpush1.msra.mxu0 0.0
    %2561 = vmatprep.subr.mxu0 0.0
    %2562 = vmatpush1.msra.mxu0 0.0
    %2563 = vmatprep.mubr.f32.mxu0 0.0
    %2564 = vmatmul.mubr.f32.gmra.mrb[0].mxu0 %v2497
    %v2565 = vpop.f32.mrb[0].mxu0
    %v2566 = vadd.f32 0.0, %v2565
    %v2567 = vpop.f32.mrb[0].mxu0
    %2568 = vdwg.mxu0
    %v2569 = vsel %vm617, %v2496, 0
    %2571 = vmatprep.subr.mxu0 0.0
    %2572 = vmatpush1.msra.mxu0 %v83
    %2573 = vmatprep.subr.mxu0 0.0
    %2574 = vmatpush1.msra.mxu0 0.0
    %2575 = vmatprep.subr.mxu0 0.0
    %2576 = vmatpush1.msra.mxu0 0.0
    %2577 = vmatprep.subr.mxu0 0.0
    %2578 = vmatpush1.msra.mxu0 0.0
    %2579 = vmatprep.subr.mxu0 0.0
    %2580 = vmatpush1.msra.mxu0 0.0
    %2581 = vmatprep.subr.mxu0 0.0
    %2582 = vmatpush1.msra.mxu0 0.0
    %2583 = vmatprep.subr.mxu0 0.0
    %2584 = vmatpush1.msra.mxu0 0.0
    %2585 = vmatprep.subr.mxu0 0.0
    %2586 = vmatpush1.msra.mxu0 0.0
    %2587 = vmatprep.subr.mxu0 0.0
    %2588 = vmatpush1.msra.mxu0 0.0
    %2589 = vmatprep.subr.mxu0 0.0
    %2590 = vmatpush1.msra.mxu0 0.0
    %2591 = vmatprep.subr.mxu0 0.0
    %2592 = vmatpush1.msra.mxu0 0.0
    %2593 = vmatprep.subr.mxu0 0.0
    %2594 = vmatpush1.msra.mxu0 0.0
    %2595 = vmatprep.subr.mxu0 0.0
    %2596 = vmatpush1.msra.mxu0 0.0
    %2597 = vmatprep.subr.mxu0 0.0
    %2598 = vmatpush1.msra.mxu0 0.0
    %2599 = vmatprep.subr.mxu0 0.0
    %2600 = vmatpush1.msra.mxu0 0.0
    %2601 = vmatprep.subr.mxu0 0.0
    %2602 = vmatpush1.msra.mxu0 0.0
    %2603 = vmatprep.subr.mxu0 0.0
    %2604 = vmatpush1.msra.mxu0 0.0
    %2605 = vmatprep.subr.mxu0 0.0
    %2606 = vmatpush1.msra.mxu0 0.0
    %2607 = vmatprep.subr.mxu0 0.0
    %2608 = vmatpush1.msra.mxu0 0.0
    %2609 = vmatprep.subr.mxu0 0.0
    %2610 = vmatpush1.msra.mxu0 0.0
    %2611 = vmatprep.subr.mxu0 0.0
    %2612 = vmatpush1.msra.mxu0 0.0
    %2613 = vmatprep.subr.mxu0 0.0
    %2614 = vmatpush1.msra.mxu0 0.0
    %2615 = vmatprep.subr.mxu0 0.0
    %2616 = vmatpush1.msra.mxu0 0.0
    %2617 = vmatprep.subr.mxu0 0.0
    %2618 = vmatpush1.msra.mxu0 0.0
    %2619 = vmatprep.subr.mxu0 0.0
    %2620 = vmatpush1.msra.mxu0 0.0
    %2621 = vmatprep.subr.mxu0 0.0
    %2622 = vmatpush1.msra.mxu0 0.0
    %2623 = vmatprep.subr.mxu0 0.0
    %2624 = vmatpush1.msra.mxu0 0.0
    %2625 = vmatprep.subr.mxu0 0.0
    %2626 = vmatpush1.msra.mxu0 0.0
    %2627 = vmatprep.subr.mxu0 0.0
    %2628 = vmatpush1.msra.mxu0 0.0
    %2629 = vmatprep.subr.mxu0 0.0
    %2630 = vmatpush1.msra.mxu0 0.0
    %2631 = vmatprep.subr.mxu0 0.0
    %2632 = vmatpush1.msra.mxu0 0.0
    %2633 = vmatprep.subr.mxu0 0.0
    %2634 = vmatpush1.msra.mxu0 0.0
    %2635 = vmatprep.mubr.f32.mxu0 0.0
    %2636 = vmatmul.mubr.f32.gmra.mrb[0].mxu0 %v2569
    %v2637 = vpop.f32.mrb[0].mxu0
    %v2638 = vadd.f32 0.0, %v2637
    %v2639 = vpop.f32.mrb[0].mxu0
    %2640 = vdwg.mxu0
    %2641 = vst.msk [vmem:[#allocation7 + $0x2] sm:$0x1] %vm1080, %v2211
    %2642 = vst.msk [vmem:[#allocation7 + $0xa] sm:$0x1] %vm1080, %v2218
    %vm2643 = vcmask 17424
    %2644 = vst.msk [vmem:[#allocation8] sm:$0x3] %vm2643, %v2468
    %v2647 = vrot.slane %v2638, 7
    %v2648 = vsel %vm549, %v2647, %v2566
    %2651 = vrot.lane.b32.xlu0 %v2447, 16
    %v2652 = vpop.permute.xlu0 %2651
    %v2654 = vsel %vm233, %v2648, %v2652
    %v2656 = vsel %vm235, %v2654, 0
    %2658 = vmatprep.subr.mxu0 0.0
    %2659 = vmatpush1.msra.mxu0 %v87
    %2660 = vmatprep.subr.mxu0 0.0
    %2661 = vmatpush1.msra.mxu0 %v88
    %2662 = vmatprep.subr.mxu0 0.0
    %2663 = vmatpush1.msra.mxu0 %v89
    %2664 = vmatprep.subr.mxu0 0.0
    %2665 = vmatpush1.msra.mxu0 %v90
    %2666 = vmatprep.subr.mxu0 0.0
    %2667 = vmatpush1.msra.mxu0 %v91
    %2668 = vmatprep.subr.mxu0 0.0
    %2669 = vmatpush1.msra.mxu0 %v92
    %2670 = vmatprep.subr.mxu0 0.0
    %2671 = vmatpush1.msra.mxu0 0.0
    %2672 = vmatprep.subr.mxu0 0.0
    %2673 = vmatpush1.msra.mxu0 0.0
    %2674 = vmatprep.subr.mxu0 0.0
    %2675 = vmatpush1.msra.mxu0 0.0
    %2676 = vmatprep.subr.mxu0 0.0
    %2677 = vmatpush1.msra.mxu0 0.0
    %2678 = vmatprep.subr.mxu0 0.0
    %2679 = vmatpush1.msra.mxu0 0.0
    %2680 = vmatprep.subr.mxu0 0.0
    %2681 = vmatpush1.msra.mxu0 0.0
    %2682 = vmatprep.subr.mxu0 0.0
    %2683 = vmatpush1.msra.mxu0 0.0
    %2684 = vmatprep.subr.mxu0 0.0
    %2685 = vmatpush1.msra.mxu0 0.0
    %2686 = vmatprep.subr.mxu0 0.0
    %2687 = vmatpush1.msra.mxu0 0.0
    %2688 = vmatprep.subr.mxu0 0.0
    %2689 = vmatpush1.msra.mxu0 0.0
    %2690 = vmatprep.subr.mxu0 0.0
    %2691 = vmatpush1.msra.mxu0 0.0
    %2692 = vmatprep.subr.mxu0 0.0
    %2693 = vmatpush1.msra.mxu0 0.0
    %2694 = vmatprep.subr.mxu0 0.0
    %2695 = vmatpush1.msra.mxu0 0.0
    %2696 = vmatprep.subr.mxu0 0.0
    %2697 = vmatpush1.msra.mxu0 0.0
    %2698 = vmatprep.subr.mxu0 0.0
    %2699 = vmatpush1.msra.mxu0 0.0
    %2700 = vmatprep.subr.mxu0 0.0
    %2701 = vmatpush1.msra.mxu0 0.0
    %2702 = vmatprep.subr.mxu0 0.0
    %2703 = vmatpush1.msra.mxu0 0.0
    %2704 = vmatprep.subr.mxu0 0.0
    %2705 = vmatpush1.msra.mxu0 0.0
    %2706 = vmatprep.subr.mxu0 0.0
    %2707 = vmatpush1.msra.mxu0 0.0
    %2708 = vmatprep.subr.mxu0 0.0
    %2709 = vmatpush1.msra.mxu0 0.0
    %2710 = vmatprep.subr.mxu0 0.0
    %2711 = vmatpush1.msra.mxu0 0.0
    %2712 = vmatprep.subr.mxu0 0.0
    %2713 = vmatpush1.msra.mxu0 0.0
    %2714 = vmatprep.subr.mxu0 0.0
    %2715 = vmatpush1.msra.mxu0 0.0
    %2716 = vmatprep.subr.mxu0 0.0
    %2717 = vmatpush1.msra.mxu0 0.0
    %2718 = vmatprep.subr.mxu0 0.0
    %2719 = vmatpush1.msra.mxu0 0.0
    %2720 = vmatprep.subr.mxu0 0.0
    %2721 = vmatpush1.msra.mxu0 0.0
    %2722 = vmatprep.mubr.f32.mxu0 0.0
    %2723 = vmatmul.mubr.f32.gmra.mrb[0].mxu0 %v2656
    %v2724 = vpop.f32.mrb[0].mxu0
    %v2725 = vadd.f32 %v114, %v2724
    %v2726 = vpop.f32.mrb[0].mxu0
    %2727 = vdwg.mxu0
    %v2728 = vxor.u32 %v2725, 2147483648
    %v2729 = vmul.f32 %v2728, 1.442695
    %v2730 = vpow.pop %v2729
    %v2731 = vadd.f32 %v2730, 1.0
    %v2732 = vrcp.pop %v2731
    %v2733 = vmul.f32 1.0, %v2732
    %v2734 = vtanh.pop %v2725
    %v2735 = vmul.f32 %v2733, %v1965
    %2737 = vrot.lane.b32.xlu0 %v2734, 64
    %v2738 = vpop.permute.xlu0 %2737
    %v2740 = vmul.f32 %v2733, %v2738
    %2742 = vrot.lane.b32.xlu0 %v2740, 32
    %v2743 = vpop.permute.xlu0 %2742
    %v2745 = vadd.f32 %v2735, %v2743
    %v2746 = vtanh.pop %v2745
    %2748 = vrot.lane.b32.xlu0 %v2746, 64
    %v2749 = vpop.permute.xlu0 %2748
    %v2751 = vmul.f32 %v2733, %v2749
    %2753 = vrot.lane.b32.xlu0 %v2751, 32
    %v2754 = vpop.permute.xlu0 %2753
    %v2755 = vsel %vm136, %v2754, 0
    %2757 = vmatprep.subr.mxu0 0.0
    %2758 = vmatpush1.msra.mxu0 %v101
    %2759 = vmatprep.subr.mxu0 0.0
    %2760 = vmatpush1.msra.mxu0 %v102
    %2761 = vmatprep.subr.mxu0 0.0
    %2762 = vmatpush1.msra.mxu0 %v103
    %2763 = vmatprep.subr.mxu0 0.0
    %2764 = vmatpush1.msra.mxu0 %v104
    %2765 = vmatprep.subr.mxu0 0.0
    %2766 = vmatpush1.msra.mxu0 0.0
    %2767 = vmatprep.subr.mxu0 0.0
    %2768 = vmatpush1.msra.mxu0 0.0
    %2769 = vmatprep.subr.mxu0 0.0
    %2770 = vmatpush1.msra.mxu0 0.0
    %2771 = vmatprep.subr.mxu0 0.0
    %2772 = vmatpush1.msra.mxu0 0.0
    %2773 = vmatprep.subr.mxu0 0.0
    %2774 = vmatpush1.msra.mxu0 0.0
    %2775 = vmatprep.subr.mxu0 0.0
    %2776 = vmatpush1.msra.mxu0 0.0
    %2777 = vmatprep.subr.mxu0 0.0
    %2778 = vmatpush1.msra.mxu0 0.0
    %2779 = vmatprep.subr.mxu0 0.0
    %2780 = vmatpush1.msra.mxu0 0.0
    %2781 = vmatprep.subr.mxu0 0.0
    %2782 = vmatpush1.msra.mxu0 0.0
    %2783 = vmatprep.subr.mxu0 0.0
    %2784 = vmatpush1.msra.mxu0 0.0
    %2785 = vmatprep.subr.mxu0 0.0
    %2786 = vmatpush1.msra.mxu0 0.0
    %2787 = vmatprep.subr.mxu0 0.0
    %2788 = vmatpush1.msra.mxu0 0.0
    %2789 = vmatprep.subr.mxu0 0.0
    %2790 = vmatpush1.msra.mxu0 0.0
    %2791 = vmatprep.subr.mxu0 0.0
    %2792 = vmatpush1.msra.mxu0 0.0
    %2793 = vmatprep.subr.mxu0 0.0
    %2794 = vmatpush1.msra.mxu0 0.0
    %2795 = vmatprep.subr.mxu0 0.0
    %2796 = vmatpush1.msra.mxu0 0.0
    %2797 = vmatprep.subr.mxu0 0.0
    %2798 = vmatpush1.msra.mxu0 0.0
    %2799 = vmatprep.subr.mxu0 0.0
    %2800 = vmatpush1.msra.mxu0 0.0
    %2801 = vmatprep.subr.mxu0 0.0
    %2802 = vmatpush1.msra.mxu0 0.0
    %2803 = vmatprep.subr.mxu0 0.0
    %2804 = vmatpush1.msra.mxu0 0.0
    %2805 = vmatprep.subr.mxu0 0.0
    %2806 = vmatpush1.msra.mxu0 0.0
    %2807 = vmatprep.subr.mxu0 0.0
    %2808 = vmatpush1.msra.mxu0 0.0
    %2809 = vmatprep.subr.mxu0 0.0
    %2810 = vmatpush1.msra.mxu0 0.0
    %2811 = vmatprep.subr.mxu0 0.0
    %2812 = vmatpush1.msra.mxu0 0.0
    %2813 = vmatprep.subr.mxu0 0.0
    %2814 = vmatpush1.msra.mxu0 0.0
    %2815 = vmatprep.subr.mxu0 0.0
    %2816 = vmatpush1.msra.mxu0 0.0
    %2817 = vmatprep.subr.mxu0 0.0
    %2818 = vmatpush1.msra.mxu0 0.0
    %2819 = vmatprep.subr.mxu0 0.0
    %2820 = vmatpush1.msra.mxu0 0.0
    %2821 = vmatprep.mubr.f32.mxu0 0.0
    %2822 = vmatmul.mubr.f32.gmra.mrb[0].mxu0 %v2755
    %v2823 = vpop.f32.mrb[0].mxu0
    %v2824 = vadd.f32 %v121, %v2823
    %v2825 = vpop.f32.mrb[0].mxu0
    %2826 = vdwg.mxu0
    %v2829 = vunpack.c.l.s4 1966171168
    %v2830 = vunpack.c.0.s8 %v2829
    %v2831 = vlaneseq
    %v2832 = vshrl.u32 %v2831, 7
    %v2833 = vsub.s32 %v2830, %v2832
    %v2834 = vrot.slane %v2824, %v2833
    %v2835 = vcombine.high %v2834, %v2834
    %v2837 = vunpack.c.l.s4 1966171168
    %v2838 = vunpack.c.0.s8 %v2837
    %v2839 = vlaneseq
    %v2840 = vshrl.u32 %v2839, 7
    %v2841 = vsub.s32 %v2838, %v2840
    %v2842 = vrot.slane %v2834, %v2841
    %v2844 = vunpack.c.l.s4 1966171168
    %v2845 = vunpack.c.0.s8 %v2844
    %v2846 = vlaneseq
    %v2847 = vshrl.u32 %v2846, 7
    %v2848 = vsub.s32 %v2845, %v2847
    %v2849 = vrot.slane %v2835, %v2848
    %v2850 = vlaneseq
    %v2851 = vshrl.u32 %v2850, 7
    %v2852 = vsub.s32 0, %v2851
    %v2853 = vrot.slane %v2842, %v2852
    %v2854 = vlaneseq
    %v2855 = vshrl.u32 %v2854, 7
    %v2856 = vsub.s32 0, %v2855
    %v2857 = vrot.slane %v2849, %v2856
    %v2860 = vadd.f32 %v2853, %v225
    %v2861 = vadd.f32 %v2857, %v226
    %v2862 = vtanh.pop %v2860
    %v2863 = vtanh.pop %v2861
    %v2865 = vsel %vm136, %v2862, 0
    %v2868 = vsel %vm136, %v2863, 0
    %2870 = vmatprep.subr.mxu0 0.0
    %2871 = vmatpush1.msra.mxu0 %v105
    %2872 = vmatprep.subr.mxu0 0.0
    %2873 = vmatpush1.msra.mxu0 %v106
    %2874 = vmatprep.subr.mxu0 0.0
    %2875 = vmatpush1.msra.mxu0 %v107
    %2876 = vmatprep.subr.mxu0 0.0
    %2877 = vmatpush1.msra.mxu0 %v108
    %2878 = vmatprep.subr.mxu0 0.0
    %2879 = vmatpush1.msra.mxu0 0.0
    %2880 = vmatprep.subr.mxu0 0.0
    %2881 = vmatpush1.msra.mxu0 0.0
    %2882 = vmatprep.subr.mxu0 0.0
    %2883 = vmatpush1.msra.mxu0 0.0
    %2884 = vmatprep.subr.mxu0 0.0
    %2885 = vmatpush1.msra.mxu0 0.0
    %2886 = vmatprep.subr.mxu0 0.0
    %2887 = vmatpush1.msra.mxu0 0.0
    %2888 = vmatprep.subr.mxu0 0.0
    %2889 = vmatpush1.msra.mxu0 0.0
    %2890 = vmatprep.subr.mxu0 0.0
    %2891 = vmatpush1.msra.mxu0 0.0
    %2892 = vmatprep.subr.mxu0 0.0
    %2893 = vmatpush1.msra.mxu0 0.0
    %2894 = vmatprep.subr.mxu0 0.0
    %2895 = vmatpush1.msra.mxu0 0.0
    %2896 = vmatprep.subr.mxu0 0.0
    %2897 = vmatpush1.msra.mxu0 0.0
    %2898 = vmatprep.subr.mxu0 0.0
    %2899 = vmatpush1.msra.mxu0 0.0
    %2900 = vmatprep.subr.mxu0 0.0
    %2901 = vmatpush1.msra.mxu0 0.0
    %2902 = vmatprep.subr.mxu0 0.0
    %2903 = vmatpush1.msra.mxu0 0.0
    %2904 = vmatprep.subr.mxu0 0.0
    %2905 = vmatpush1.msra.mxu0 0.0
    %2906 = vmatprep.subr.mxu0 0.0
    %2907 = vmatpush1.msra.mxu0 0.0
    %2908 = vmatprep.subr.mxu0 0.0
    %2909 = vmatpush1.msra.mxu0 0.0
    %2910 = vmatprep.subr.mxu0 0.0
    %2911 = vmatpush1.msra.mxu0 0.0
    %2912 = vmatprep.subr.mxu0 0.0
    %2913 = vmatpush1.msra.mxu0 0.0
    %2914 = vmatprep.subr.mxu0 0.0
    %2915 = vmatpush1.msra.mxu0 0.0
    %2916 = vmatprep.subr.mxu0 0.0
    %2917 = vmatpush1.msra.mxu0 0.0
    %2918 = vmatprep.subr.mxu0 0.0
    %2919 = vmatpush1.msra.mxu0 0.0
    %2920 = vmatprep.subr.mxu0 0.0
    %2921 = vmatpush1.msra.mxu0 0.0
    %2922 = vmatprep.subr.mxu0 0.0
    %2923 = vmatpush1.msra.mxu0 0.0
    %2924 = vmatprep.subr.mxu0 0.0
    %2925 = vmatpush1.msra.mxu0 0.0
    %2926 = vmatprep.subr.mxu0 0.0
    %2927 = vmatpush1.msra.mxu0 0.0
    %2928 = vmatprep.subr.mxu0 0.0
    %2929 = vmatpush1.msra.mxu0 0.0
    %2930 = vmatprep.subr.mxu0 0.0
    %2931 = vmatpush1.msra.mxu0 0.0
    %2932 = vmatprep.subr.mxu0 0.0
    %2933 = vmatpush1.msra.mxu0 0.0
    %2934 = vmatprep.mubr.f32.mxu0 0.0
    %2935 = vmatmul.mubr.f32.gmra.mrb[0].mxu0 %v2865
    %v2936 = vpop.f32.mrb[0].mxu0
    %v2937 = vadd.f32 0.0, %v2936
    %v2938 = vpop.f32.mrb[0].mxu0
    %2939 = vmatprep.mubr.f32.mxu0 0.0
    %2940 = vmatmul.mubr.f32.gmra.mrb[0].mxu0 %v2868
    %v2941 = vpop.f32.mrb[0].mxu0
    %v2942 = vadd.f32 0.0, %v2941
    %v2943 = vpop.f32.mrb[0].mxu0
    %2944 = vdwg.mxu0
    %vm2945 = vcmp.eq.f32.partialorder %v2473, 0.0
    %2948 = vset.pattern.permute.xlu0 0
    %2949 = vperm.xlu0 %2948, %v2937
    %v2950 = vpop.permute.xlu0 %2949
    %2951 = vset.pattern.permute.xlu0 0
    %2952 = vperm.xlu0 %2951, %v2942
    %v2953 = vpop.permute.xlu0 %2952
    %v2954 = vlaneseq
    %v2955 = vshrl.u32 %v2954, 7
    %v2956 = vsub.s32 %v228, %v2955
    %v2957 = vrot.slane %v2950, %v2956
    %v2958 = vlaneseq
    %v2959 = vshrl.u32 %v2958, 7
    %v2960 = vsub.s32 %v228, %v2959
    %v2961 = vrot.slane %v2953, %v2960
    %v2962 = vsel %vm549, %v2961, %v2957
    %v2964 = vsel %vm2945, -1e+30, %v2962
    %v2965 = vsel %vm552, %v2964, -inf
    %2966 = vmax.xlane.f32.xlu0 %v2965
    %v2967 = vpop.xlane.xlu0 %2966
    %v2968 = vsub.f32 %v2964, %v2967
    %v2969 = vmul.f32 %v2968, 1.442695
    %v2970 = vpow.pop %v2969
    %v2971 = vsel %vm552, %v2970, 0.0
    %2972 = vadd.xlane.f32.xlu0 %v2971
    %v2973 = vpop.xlane.xlu0 %2972
    %v2974 = vrcp.pop %v2973
    %v2975 = vmul.f32 %v2970, %v2974
    %v2978 = vunpack.c.l.s4 1966171168
    %v2979 = vunpack.c.0.s8 %v2978
    %v2980 = vlaneseq
    %v2981 = vshrl.u32 %v2980, 7
    %v2982 = vsub.s32 %v2979, %v2981
    %v2983 = vrot.slane %v2975, %v2982
    %v2984 = vcombine.high %v2983, %v2983
    %v2986 = vunpack.c.l.s4 1966171168
    %v2987 = vunpack.c.0.s8 %v2986
    %v2988 = vlaneseq
    %v2989 = vshrl.u32 %v2988, 7
    %v2990 = vsub.s32 %v2987, %v2989
    %v2991 = vrot.slane %v2983, %v2990
    %v2993 = vunpack.c.l.s4 1966171168
    %v2994 = vunpack.c.0.s8 %v2993
    %v2995 = vlaneseq
    %v2996 = vshrl.u32 %v2995, 7
    %v2997 = vsub.s32 %v2994, %v2996
    %v2998 = vrot.slane %v2984, %v2997
    %v3001 = vsel %vm617, %v2991, 0
    %3003 = vmatprep.subr.mxu0 0.0
    %3004 = vmatpush1.msra.mxu0 %v225
    %3005 = vmatprep.subr.mxu0 0.0
    %3006 = vmatpush1.msra.mxu0 0.0
    %3007 = vmatprep.subr.mxu0 0.0
    %3008 = vmatpush1.msra.mxu0 0.0
    %3009 = vmatprep.subr.mxu0 0.0
    %3010 = vmatpush1.msra.mxu0 0.0
    %3011 = vmatprep.subr.mxu0 0.0
    %3012 = vmatpush1.msra.mxu0 0.0
    %3013 = vmatprep.subr.mxu0 0.0
    %3014 = vmatpush1.msra.mxu0 0.0
    %3015 = vmatprep.subr.mxu0 0.0
    %3016 = vmatpush1.msra.mxu0 0.0
    %3017 = vmatprep.subr.mxu0 0.0
    %3018 = vmatpush1.msra.mxu0 0.0
    %3019 = vmatprep.subr.mxu0 0.0
    %3020 = vmatpush1.msra.mxu0 0.0
    %3021 = vmatprep.subr.mxu0 0.0
    %3022 = vmatpush1.msra.mxu0 0.0
    %3023 = vmatprep.subr.mxu0 0.0
    %3024 = vmatpush1.msra.mxu0 0.0
    %3025 = vmatprep.subr.mxu0 0.0
    %3026 = vmatpush1.msra.mxu0 0.0
    %3027 = vmatprep.subr.mxu0 0.0
    %3028 = vmatpush1.msra.mxu0 0.0
    %3029 = vmatprep.subr.mxu0 0.0
    %3030 = vmatpush1.msra.mxu0 0.0
    %3031 = vmatprep.subr.mxu0 0.0
    %3032 = vmatpush1.msra.mxu0 0.0
    %3033 = vmatprep.subr.mxu0 0.0
    %3034 = vmatpush1.msra.mxu0 0.0
    %3035 = vmatprep.subr.mxu0 0.0
    %3036 = vmatpush1.msra.mxu0 0.0
    %3037 = vmatprep.subr.mxu0 0.0
    %3038 = vmatpush1.msra.mxu0 0.0
    %3039 = vmatprep.subr.mxu0 0.0
    %3040 = vmatpush1.msra.mxu0 0.0
    %3041 = vmatprep.subr.mxu0 0.0
    %3042 = vmatpush1.msra.mxu0 0.0
    %3043 = vmatprep.subr.mxu0 0.0
    %3044 = vmatpush1.msra.mxu0 0.0
    %3045 = vmatprep.subr.mxu0 0.0
    %3046 = vmatpush1.msra.mxu0 0.0
    %3047 = vmatprep.subr.mxu0 0.0
    %3048 = vmatpush1.msra.mxu0 0.0
    %3049 = vmatprep.subr.mxu0 0.0
    %3050 = vmatpush1.msra.mxu0 0.0
    %3051 = vmatprep.subr.mxu0 0.0
    %3052 = vmatpush1.msra.mxu0 0.0
    %3053 = vmatprep.subr.mxu0 0.0
    %3054 = vmatpush1.msra.mxu0 0.0
    %3055 = vmatprep.subr.mxu0 0.0
    %3056 = vmatpush1.msra.mxu0 0.0
    %3057 = vmatprep.subr.mxu0 0.0
    %3058 = vmatpush1.msra.mxu0 0.0
    %3059 = vmatprep.subr.mxu0 0.0
    %3060 = vmatpush1.msra.mxu0 0.0
    %3061 = vmatprep.subr.mxu0 0.0
    %3062 = vmatpush1.msra.mxu0 0.0
    %3063 = vmatprep.subr.mxu0 0.0
    %3064 = vmatpush1.msra.mxu0 0.0
    %3065 = vmatprep.subr.mxu0 0.0
    %3066 = vmatpush1.msra.mxu0 0.0
    %3067 = vmatprep.mubr.f32.mxu0 0.0
    %3068 = vmatmul.mubr.f32.gmra.mrb[0].mxu0 %v3001
    %v3069 = vpop.f32.mrb[0].mxu0
    %v3070 = vadd.f32 0.0, %v3069
    %v3071 = vpop.f32.mrb[0].mxu0
    %3072 = vdwg.mxu0
    %v3073 = vsel %vm617, %v2998, 0
    %3075 = vmatprep.subr.mxu0 0.0
    %3076 = vmatpush1.msra.mxu0 %v226
    %3077 = vmatprep.subr.mxu0 0.0
    %3078 = vmatpush1.msra.mxu0 0.0
    %3079 = vmatprep.subr.mxu0 0.0
    %3080 = vmatpush1.msra.mxu0 0.0
    %3081 = vmatprep.subr.mxu0 0.0
    %3082 = vmatpush1.msra.mxu0 0.0
    %3083 = vmatprep.subr.mxu0 0.0
    %3084 = vmatpush1.msra.mxu0 0.0
    %3085 = vmatprep.subr.mxu0 0.0
    %3086 = vmatpush1.msra.mxu0 0.0
    %3087 = vmatprep.subr.mxu0 0.0
    %3088 = vmatpush1.msra.mxu0 0.0
    %3089 = vmatprep.subr.mxu0 0.0
    %3090 = vmatpush1.msra.mxu0 0.0
    %3091 = vmatprep.subr.mxu0 0.0
    %3092 = vmatpush1.msra.mxu0 0.0
    %3093 = vmatprep.subr.mxu0 0.0
    %3094 = vmatpush1.msra.mxu0 0.0
    %3095 = vmatprep.subr.mxu0 0.0
    %3096 = vmatpush1.msra.mxu0 0.0
    %3097 = vmatprep.subr.mxu0 0.0
    %3098 = vmatpush1.msra.mxu0 0.0
    %3099 = vmatprep.subr.mxu0 0.0
    %3100 = vmatpush1.msra.mxu0 0.0
    %3101 = vmatprep.subr.mxu0 0.0
    %3102 = vmatpush1.msra.mxu0 0.0
    %3103 = vmatprep.subr.mxu0 0.0
    %3104 = vmatpush1.msra.mxu0 0.0
    %3105 = vmatprep.subr.mxu0 0.0
    %3106 = vmatpush1.msra.mxu0 0.0
    %3107 = vmatprep.subr.mxu0 0.0
    %3108 = vmatpush1.msra.mxu0 0.0
    %3109 = vmatprep.subr.mxu0 0.0
    %3110 = vmatpush1.msra.mxu0 0.0
    %3111 = vmatprep.subr.mxu0 0.0
    %3112 = vmatpush1.msra.mxu0 0.0
    %3113 = vmatprep.subr.mxu0 0.0
    %3114 = vmatpush1.msra.mxu0 0.0
    %3115 = vmatprep.subr.mxu0 0.0
    %3116 = vmatpush1.msra.mxu0 0.0
    %3117 = vmatprep.subr.mxu0 0.0
    %3118 = vmatpush1.msra.mxu0 0.0
    %3119 = vmatprep.subr.mxu0 0.0
    %3120 = vmatpush1.msra.mxu0 0.0
    %3121 = vmatprep.subr.mxu0 0.0
    %3122 = vmatpush1.msra.mxu0 0.0
    %3123 = vmatprep.subr.mxu0 0.0
    %3124 = vmatpush1.msra.mxu0 0.0
    %3125 = vmatprep.subr.mxu0 0.0
    %3126 = vmatpush1.msra.mxu0 0.0
    %3127 = vmatprep.subr.mxu0 0.0
    %3128 = vmatpush1.msra.mxu0 0.0
    %3129 = vmatprep.subr.mxu0 0.0
    %3130 = vmatpush1.msra.mxu0 0.0
    %3131 = vmatprep.subr.mxu0 0.0
    %3132 = vmatpush1.msra.mxu0 0.0
    %3133 = vmatprep.subr.mxu0 0.0
    %3134 = vmatpush1.msra.mxu0 0.0
    %3135 = vmatprep.subr.mxu0 0.0
    %3136 = vmatpush1.msra.mxu0 0.0
    %3137 = vmatprep.subr.mxu0 0.0
    %3138 = vmatpush1.msra.mxu0 0.0
    %3139 = vmatprep.mubr.f32.mxu0 0.0
    %3140 = vmatmul.mubr.f32.gmra.mrb[0].mxu0 %v3073
    %v3141 = vpop.f32.mrb[0].mxu0
    %v3142 = vadd.f32 0.0, %v3141
    %v3143 = vpop.f32.mrb[0].mxu0
    %3144 = vdwg.mxu0
    %v3147 = vrot.slane %v3142, 7
    %v3148 = vsel %vm549, %v3147, %v3070
    %3150 = vrot.lane.b32.xlu0 %v2751, 64
    %v3151 = vpop.permute.xlu0 %3150
    %v3153 = vsel %vm136, %v3148, %v3151
    %v3155 = vsel %vm779, %v3153, 0
    %3157 = vmatprep.subr.mxu0 0.0
    %3158 = vmatpush1.msra.mxu0 %v93
    %3159 = vmatprep.subr.mxu0 0.0
    %3160 = vmatpush1.msra.mxu0 %v94
    %3161 = vmatprep.subr.mxu0 0.0
    %3162 = vmatpush1.msra.mxu0 %v95
    %3163 = vmatprep.subr.mxu0 0.0
    %3164 = vmatpush1.msra.mxu0 %v96
    %3165 = vmatprep.subr.mxu0 0.0
    %3166 = vmatpush1.msra.mxu0 %v97
    %3167 = vmatprep.subr.mxu0 0.0
    %3168 = vmatpush1.msra.mxu0 %v98
    %3169 = vmatprep.subr.mxu0 0.0
    %3170 = vmatpush1.msra.mxu0 %v99
    %3171 = vmatprep.subr.mxu0 0.0
    %3172 = vmatpush1.msra.mxu0 %v100
    %3173 = vmatprep.subr.mxu0 0.0
    %3174 = vmatpush1.msra.mxu0 0.0
    %3175 = vmatprep.subr.mxu0 0.0
    %3176 = vmatpush1.msra.mxu0 0.0
    %3177 = vmatprep.subr.mxu0 0.0
    %3178 = vmatpush1.msra.mxu0 0.0
    %3179 = vmatprep.subr.mxu0 0.0
    %3180 = vmatpush1.msra.mxu0 0.0
    %3181 = vmatprep.subr.mxu0 0.0
    %3182 = vmatpush1.msra.mxu0 0.0
    %3183 = vmatprep.subr.mxu0 0.0
    %3184 = vmatpush1.msra.mxu0 0.0
    %3185 = vmatprep.subr.mxu0 0.0
    %3186 = vmatpush1.msra.mxu0 0.0
    %3187 = vmatprep.subr.mxu0 0.0
    %3188 = vmatpush1.msra.mxu0 0.0
    %3189 = vmatprep.subr.mxu0 0.0
    %3190 = vmatpush1.msra.mxu0 0.0
    %3191 = vmatprep.subr.mxu0 0.0
    %3192 = vmatpush1.msra.mxu0 0.0
    %3193 = vmatprep.subr.mxu0 0.0
    %3194 = vmatpush1.msra.mxu0 0.0
    %3195 = vmatprep.subr.mxu0 0.0
    %3196 = vmatpush1.msra.mxu0 0.0
    %3197 = vmatprep.subr.mxu0 0.0
    %3198 = vmatpush1.msra.mxu0 0.0
    %3199 = vmatprep.subr.mxu0 0.0
    %3200 = vmatpush1.msra.mxu0 0.0
    %3201 = vmatprep.subr.mxu0 0.0
    %3202 = vmatpush1.msra.mxu0 0.0
    %3203 = vmatprep.subr.mxu0 0.0
    %3204 = vmatpush1.msra.mxu0 0.0
    %3205 = vmatprep.subr.mxu0 0.0
    %3206 = vmatpush1.msra.mxu0 0.0
    %3207 = vmatprep.subr.mxu0 0.0
    %3208 = vmatpush1.msra.mxu0 0.0
    %3209 = vmatprep.subr.mxu0 0.0
    %3210 = vmatpush1.msra.mxu0 0.0
    %3211 = vmatprep.subr.mxu0 0.0
    %3212 = vmatpush1.msra.mxu0 0.0
    %3213 = vmatprep.subr.mxu0 0.0
    %3214 = vmatpush1.msra.mxu0 0.0
    %3215 = vmatprep.subr.mxu0 0.0
    %3216 = vmatpush1.msra.mxu0 0.0
    %3217 = vmatprep.subr.mxu0 0.0
    %3218 = vmatpush1.msra.mxu0 0.0
    %3219 = vmatprep.subr.mxu0 0.0
    %3220 = vmatpush1.msra.mxu0 0.0
    %3221 = vmatprep.mubr.f32.mxu0 0.0
    %3222 = vmatmul.mubr.f32.gmra.mrb[0].mxu0 %v3155
    %v3223 = vpop.f32.mrb[0].mxu0
    %v3224 = vadd.f32 %v128, %v3223
    %v3225 = vpop.f32.mrb[0].mxu0
    %3226 = vdwg.mxu0
    %v3227 = vtanh.pop %v3224
    %v3228 = vmul.f32 %v2975, %v2473
    %v3229 = vsel %vm552, %v3228, -inf
    %3230 = vmax.xlane.f32.xlu0 %v3229
    %v3231 = vpop.xlane.xlu0 %3230
    %vm3232 = vcmp.eq.f32.partialorder %v3228, %v3231
    %v3233 = vsel %vm3232, %v228, 8
    %v3234 = vsel %vm552, %v3233, 2147483647
    %v3235 = vand.u32 %v3234, 65535
    %v3236 = vshra.s32 %v3234, 16
    %v3237 = vcvt.s32.f32 %v3235
    %v3238 = vcvt.s32.f32 %v3236
    %3239 = vmin.xlane.f32.xlu0 %v3238
    %v3240 = vpop.xlane.xlu0 %3239
    %vm3241 = vcmp.eq.f32.partialorder %v3238, %v3240
    %v3242 = vsel %vm3241, %v3237, inf
    %3243 = vmin.xlane.f32.xlu0 %v3242
    %v3244 = vpop.xlane.xlu0 %3243
    %v3245 = vcvt.f32.s32 %v3244
    %v3246 = vcvt.f32.s32 %v3240
    %v3247 = vshll.u32 %v3246, 16
    %v3248 = vadd.s32 %v3247, %v3245
    %vm3249 = vcmp.eq.s32.totalorder %v228, %v3248
    %v3250 = vsel %vm3249, 1, 0
    %v3251 = vcvt.s32.f32 %v3250
    %v3252 = vsub.f32 1.0, %v3251
    %v3253 = vmul.f32 %v2473, %v3252
    %v3256 = vunpack.c.l.s4 1966171168
    %v3257 = vunpack.c.0.s8 %v3256
    %v3258 = vlaneseq
    %v3259 = vshrl.u32 %v3258, 7
    %v3260 = vsub.s32 %v3257, %v3259
    %v3261 = vrot.slane %v3251, %v3260
    %v3262 = vcombine.high %v3261, %v3261
    %v3264 = vunpack.c.l.s4 1966171168
    %v3265 = vunpack.c.0.s8 %v3264
    %v3266 = vlaneseq
    %v3267 = vshrl.u32 %v3266, 7
    %v3268 = vsub.s32 %v3265, %v3267
    %v3269 = vrot.slane %v3261, %v3268
    %v3271 = vunpack.c.l.s4 1966171168
    %v3272 = vunpack.c.0.s8 %v3271
    %v3273 = vlaneseq
    %v3274 = vshrl.u32 %v3273, 7
    %v3275 = vsub.s32 %v3272, %v3274
    %v3276 = vrot.slane %v3262, %v3275
    %v3277 = vsel %vm617, %v3269, 0
    %3279 = vmatprep.subr.mxu0 0.0
    %3280 = vmatpush1.msra.mxu0 %v82
    %3281 = vmatprep.subr.mxu0 0.0
    %3282 = vmatpush1.msra.mxu0 0.0
    %3283 = vmatprep.subr.mxu0 0.0
    %3284 = vmatpush1.msra.mxu0 0.0
    %3285 = vmatprep.subr.mxu0 0.0
    %3286 = vmatpush1.msra.mxu0 0.0
    %3287 = vmatprep.subr.mxu0 0.0
    %3288 = vmatpush1.msra.mxu0 0.0
    %3289 = vmatprep.subr.mxu0 0.0
    %3290 = vmatpush1.msra.mxu0 0.0
    %3291 = vmatprep.subr.mxu0 0.0
    %3292 = vmatpush1.msra.mxu0 0.0
    %3293 = vmatprep.subr.mxu0 0.0
    %3294 = vmatpush1.msra.mxu0 0.0
    %3295 = vmatprep.subr.mxu0 0.0
    %3296 = vmatpush1.msra.mxu0 0.0
    %3297 = vmatprep.subr.mxu0 0.0
    %3298 = vmatpush1.msra.mxu0 0.0
    %3299 = vmatprep.subr.mxu0 0.0
    %3300 = vmatpush1.msra.mxu0 0.0
    %3301 = vmatprep.subr.mxu0 0.0
    %3302 = vmatpush1.msra.mxu0 0.0
    %3303 = vmatprep.subr.mxu0 0.0
    %3304 = vmatpush1.msra.mxu0 0.0
    %3305 = vmatprep.subr.mxu0 0.0
    %3306 = vmatpush1.msra.mxu0 0.0
    %3307 = vmatprep.subr.mxu0 0.0
    %3308 = vmatpush1.msra.mxu0 0.0
    %3309 = vmatprep.subr.mxu0 0.0
    %3310 = vmatpush1.msra.mxu0 0.0
    %3311 = vmatprep.subr.mxu0 0.0
    %3312 = vmatpush1.msra.mxu0 0.0
    %3313 = vmatprep.subr.mxu0 0.0
    %3314 = vmatpush1.msra.mxu0 0.0
    %3315 = vmatprep.subr.mxu0 0.0
    %3316 = vmatpush1.msra.mxu0 0.0
    %3317 = vmatprep.subr.mxu0 0.0
    %3318 = vmatpush1.msra.mxu0 0.0
    %3319 = vmatprep.subr.mxu0 0.0
    %3320 = vmatpush1.msra.mxu0 0.0
    %3321 = vmatprep.subr.mxu0 0.0
    %3322 = vmatpush1.msra.mxu0 0.0
    %3323 = vmatprep.subr.mxu0 0.0
    %3324 = vmatpush1.msra.mxu0 0.0
    %3325 = vmatprep.subr.mxu0 0.0
    %3326 = vmatpush1.msra.mxu0 0.0
    %3327 = vmatprep.subr.mxu0 0.0
    %3328 = vmatpush1.msra.mxu0 0.0
    %3329 = vmatprep.subr.mxu0 0.0
    %3330 = vmatpush1.msra.mxu0 0.0
    %3331 = vmatprep.subr.mxu0 0.0
    %3332 = vmatpush1.msra.mxu0 0.0
    %3333 = vmatprep.subr.mxu0 0.0
    %3334 = vmatpush1.msra.mxu0 0.0
    %3335 = vmatprep.subr.mxu0 0.0
    %3336 = vmatpush1.msra.mxu0 0.0
    %3337 = vmatprep.subr.mxu0 0.0
    %3338 = vmatpush1.msra.mxu0 0.0
    %3339 = vmatprep.subr.mxu0 0.0
    %3340 = vmatpush1.msra.mxu0 0.0
    %3341 = vmatprep.subr.mxu0 0.0
    %3342 = vmatpush1.msra.mxu0 0.0
    %3343 = vmatprep.mubr.f32.mxu0 0.0
    %3344 = vmatmul.mubr.f32.gmra.mrb[0].mxu0 %v3277
    %v3345 = vpop.f32.mrb[0].mxu0
    %v3346 = vadd.f32 0.0, %v3345
    %v3347 = vpop.f32.mrb[0].mxu0
    %3348 = vdwg.mxu0
    %v3349 = vsel %vm617, %v3276, 0
    %3351 = vmatprep.subr.mxu0 0.0
    %3352 = vmatpush1.msra.mxu0 %v83
    %3353 = vmatprep.subr.mxu0 0.0
    %3354 = vmatpush1.msra.mxu0 0.0
    %3355 = vmatprep.subr.mxu0 0.0
    %3356 = vmatpush1.msra.mxu0 0.0
    %3357 = vmatprep.subr.mxu0 0.0
    %3358 = vmatpush1.msra.mxu0 0.0
    %3359 = vmatprep.subr.mxu0 0.0
    %3360 = vmatpush1.msra.mxu0 0.0
    %3361 = vmatprep.subr.mxu0 0.0
    %3362 = vmatpush1.msra.mxu0 0.0
    %3363 = vmatprep.subr.mxu0 0.0
    %3364 = vmatpush1.msra.mxu0 0.0
    %3365 = vmatprep.subr.mxu0 0.0
    %3366 = vmatpush1.msra.mxu0 0.0
    %3367 = vmatprep.subr.mxu0 0.0
    %3368 = vmatpush1.msra.mxu0 0.0
    %3369 = vmatprep.subr.mxu0 0.0
    %3370 = vmatpush1.msra.mxu0 0.0
    %3371 = vmatprep.subr.mxu0 0.0
    %3372 = vmatpush1.msra.mxu0 0.0
    %3373 = vmatprep.subr.mxu0 0.0
    %3374 = vmatpush1.msra.mxu0 0.0
    %3375 = vmatprep.subr.mxu0 0.0
    %3376 = vmatpush1.msra.mxu0 0.0
    %3377 = vmatprep.subr.mxu0 0.0
    %3378 = vmatpush1.msra.mxu0 0.0
    %3379 = vmatprep.subr.mxu0 0.0
    %3380 = vmatpush1.msra.mxu0 0.0
    %3381 = vmatprep.subr.mxu0 0.0
    %3382 = vmatpush1.msra.mxu0 0.0
    %3383 = vmatprep.subr.mxu0 0.0
    %3384 = vmatpush1.msra.mxu0 0.0
    %3385 = vmatprep.subr.mxu0 0.0
    %3386 = vmatpush1.msra.mxu0 0.0
    %3387 = vmatprep.subr.mxu0 0.0
    %3388 = vmatpush1.msra.mxu0 0.0
    %3389 = vmatprep.subr.mxu0 0.0
    %3390 = vmatpush1.msra.mxu0 0.0
    %3391 = vmatprep.subr.mxu0 0.0
    %3392 = vmatpush1.msra.mxu0 0.0
    %3393 = vmatprep.subr.mxu0 0.0
    %3394 = vmatpush1.msra.mxu0 0.0
    %3395 = vmatprep.subr.mxu0 0.0
    %3396 = vmatpush1.msra.mxu0 0.0
    %3397 = vmatprep.subr.mxu0 0.0
    %3398 = vmatpush1.msra.mxu0 0.0
    %3399 = vmatprep.subr.mxu0 0.0
    %3400 = vmatpush1.msra.mxu0 0.0
    %3401 = vmatprep.subr.mxu0 0.0
    %3402 = vmatpush1.msra.mxu0 0.0
    %3403 = vmatprep.subr.mxu0 0.0
    %3404 = vmatpush1.msra.mxu0 0.0
    %3405 = vmatprep.subr.mxu0 0.0
    %3406 = vmatpush1.msra.mxu0 0.0
    %3407 = vmatprep.subr.mxu0 0.0
    %3408 = vmatpush1.msra.mxu0 0.0
    %3409 = vmatprep.subr.mxu0 0.0
    %3410 = vmatpush1.msra.mxu0 0.0
    %3411 = vmatprep.subr.mxu0 0.0
    %3412 = vmatpush1.msra.mxu0 0.0
    %3413 = vmatprep.subr.mxu0 0.0
    %3414 = vmatpush1.msra.mxu0 0.0
    %3415 = vmatprep.mubr.f32.mxu0 0.0
    %3416 = vmatmul.mubr.f32.gmra.mrb[0].mxu0 %v3349
    %v3417 = vpop.f32.mrb[0].mxu0
    %v3418 = vadd.f32 0.0, %v3417
    %v3419 = vpop.f32.mrb[0].mxu0
    %3420 = vdwg.mxu0
    %3421 = vst.msk [vmem:[#allocation7 + $0x3] sm:$0x1] %vm1080, %v2991
    %3422 = vst.msk [vmem:[#allocation7 + $0xb] sm:$0x1] %vm1080, %v2998
    %vm3423 = vcmask 25624
    %3424 = vst.msk [vmem:[#allocation8] sm:$0x3] %vm3423, %v3248
    %v3427 = vrot.slane %v3418, 7
    %v3428 = vsel %vm549, %v3427, %v3346
    %3431 = vrot.lane.b32.xlu0 %v3227, 16
    %v3432 = vpop.permute.xlu0 %3431
    %v3434 = vsel %vm233, %v3428, %v3432
    %v3436 = vsel %vm235, %v3434, 0
    %3438 = vmatprep.subr.mxu0 0.0
    %3439 = vmatpush1.msra.mxu0 %v87
    %3440 = vmatprep.subr.mxu0 0.0
    %3441 = vmatpush1.msra.mxu0 %v88
    %3442 = vmatprep.subr.mxu0 0.0
    %3443 = vmatpush1.msra.mxu0 %v89
    %3444 = vmatprep.subr.mxu0 0.0
    %3445 = vmatpush1.msra.mxu0 %v90
    %3446 = vmatprep.subr.mxu0 0.0
    %3447 = vmatpush1.msra.mxu0 %v91
    %3448 = vmatprep.subr.mxu0 0.0
    %3449 = vmatpush1.msra.mxu0 %v92
    %3450 = vmatprep.subr.mxu0 0.0
    %3451 = vmatpush1.msra.mxu0 0.0
    %3452 = vmatprep.subr.mxu0 0.0
    %3453 = vmatpush1.msra.mxu0 0.0
    %3454 = vmatprep.subr.mxu0 0.0
    %3455 = vmatpush1.msra.mxu0 0.0
    %3456 = vmatprep.subr.mxu0 0.0
    %3457 = vmatpush1.msra.mxu0 0.0
    %3458 = vmatprep.subr.mxu0 0.0
    %3459 = vmatpush1.msra.mxu0 0.0
    %3460 = vmatprep.subr.mxu0 0.0
    %3461 = vmatpush1.msra.mxu0 0.0
    %3462 = vmatprep.subr.mxu0 0.0
    %3463 = vmatpush1.msra.mxu0 0.0
    %3464 = vmatprep.subr.mxu0 0.0
    %3465 = vmatpush1.msra.mxu0 0.0
    %3466 = vmatprep.subr.mxu0 0.0
    %3467 = vmatpush1.msra.mxu0 0.0
    %3468 = vmatprep.subr.mxu0 0.0
    %3469 = vmatpush1.msra.mxu0 0.0
    %3470 = vmatprep.subr.mxu0 0.0
    %3471 = vmatpush1.msra.mxu0 0.0
    %3472 = vmatprep.subr.mxu0 0.0
    %3473 = vmatpush1.msra.mxu0 0.0
    %3474 = vmatprep.subr.mxu0 0.0
    %3475 = vmatpush1.msra.mxu0 0.0
    %3476 = vmatprep.subr.mxu0 0.0
    %3477 = vmatpush1.msra.mxu0 0.0
    %3478 = vmatprep.subr.mxu0 0.0
    %3479 = vmatpush1.msra.mxu0 0.0
    %3480 = vmatprep.subr.mxu0 0.0
    %3481 = vmatpush1.msra.mxu0 0.0
    %3482 = vmatprep.subr.mxu0 0.0
    %3483 = vmatpush1.msra.mxu0 0.0
    %3484 = vmatprep.subr.mxu0 0.0
    %3485 = vmatpush1.msra.mxu0 0.0
    %3486 = vmatprep.subr.mxu0 0.0
    %3487 = vmatpush1.msra.mxu0 0.0
    %3488 = vmatprep.subr.mxu0 0.0
    %3489 = vmatpush1.msra.mxu0 0.0
    %3490 = vmatprep.subr.mxu0 0.0
    %3491 = vmatpush1.msra.mxu0 0.0
    %3492 = vmatprep.subr.mxu0 0.0
    %3493 = vmatpush1.msra.mxu0 0.0
    %3494 = vmatprep.subr.mxu0 0.0
    %3495 = vmatpush1.msra.mxu0 0.0
    %3496 = vmatprep.subr.mxu0 0.0
    %3497 = vmatpush1.msra.mxu0 0.0
    %3498 = vmatprep.subr.mxu0 0.0
    %3499 = vmatpush1.msra.mxu0 0.0
    %3500 = vmatprep.subr.mxu0 0.0
    %3501 = vmatpush1.msra.mxu0 0.0
    %3502 = vmatprep.mubr.f32.mxu0 0.0
    %3503 = vmatmul.mubr.f32.gmra.mrb[0].mxu0 %v3436
    %v3504 = vpop.f32.mrb[0].mxu0
    %v3505 = vadd.f32 %v114, %v3504
    %v3506 = vpop.f32.mrb[0].mxu0
    %3507 = vdwg.mxu0
    %v3508 = vxor.u32 %v3505, 2147483648
    %v3509 = vmul.f32 %v3508, 1.442695
    %v3510 = vpow.pop %v3509
    %v3511 = vadd.f32 %v3510, 1.0
    %v3512 = vrcp.pop %v3511
    %v3513 = vmul.f32 1.0, %v3512
    %v3514 = vtanh.pop %v3505
    %v3515 = vmul.f32 %v3513, %v2745
    %3517 = vrot.lane.b32.xlu0 %v3514, 64
    %v3518 = vpop.permute.xlu0 %3517
    %v3520 = vmul.f32 %v3513, %v3518
    %3522 = vrot.lane.b32.xlu0 %v3520, 32
    %v3523 = vpop.permute.xlu0 %3522
    %v3525 = vadd.f32 %v3515, %v3523
    %v3526 = vtanh.pop %v3525
    %3528 = vrot.lane.b32.xlu0 %v3526, 64
    %v3529 = vpop.permute.xlu0 %3528
    %v3531 = vmul.f32 %v3513, %v3529
    %3533 = vrot.lane.b32.xlu0 %v3531, 32
    %v3534 = vpop.permute.xlu0 %3533
    %v3535 = vsel %vm136, %v3534, 0
    %3537 = vmatprep.subr.mxu0 0.0
    %3538 = vmatpush1.msra.mxu0 %v101
    %3539 = vmatprep.subr.mxu0 0.0
    %3540 = vmatpush1.msra.mxu0 %v102
    %3541 = vmatprep.subr.mxu0 0.0
    %3542 = vmatpush1.msra.mxu0 %v103
    %3543 = vmatprep.subr.mxu0 0.0
    %3544 = vmatpush1.msra.mxu0 %v104
    %3545 = vmatprep.subr.mxu0 0.0
    %3546 = vmatpush1.msra.mxu0 0.0
    %3547 = vmatprep.subr.mxu0 0.0
    %3548 = vmatpush1.msra.mxu0 0.0
    %3549 = vmatprep.subr.mxu0 0.0
    %3550 = vmatpush1.msra.mxu0 0.0
    %3551 = vmatprep.subr.mxu0 0.0
    %3552 = vmatpush1.msra.mxu0 0.0
    %3553 = vmatprep.subr.mxu0 0.0
    %3554 = vmatpush1.msra.mxu0 0.0
    %3555 = vmatprep.subr.mxu0 0.0
    %3556 = vmatpush1.msra.mxu0 0.0
    %3557 = vmatprep.subr.mxu0 0.0
    %3558 = vmatpush1.msra.mxu0 0.0
    %3559 = vmatprep.subr.mxu0 0.0
    %3560 = vmatpush1.msra.mxu0 0.0
    %3561 = vmatprep.subr.mxu0 0.0
    %3562 = vmatpush1.msra.mxu0 0.0
    %3563 = vmatprep.subr.mxu0 0.0
    %3564 = vmatpush1.msra.mxu0 0.0
    %3565 = vmatprep.subr.mxu0 0.0
    %3566 = vmatpush1.msra.mxu0 0.0
    %3567 = vmatprep.subr.mxu0 0.0
    %3568 = vmatpush1.msra.mxu0 0.0
    %3569 = vmatprep.subr.mxu0 0.0
    %3570 = vmatpush1.msra.mxu0 0.0
    %3571 = vmatprep.subr.mxu0 0.0
    %3572 = vmatpush1.msra.mxu0 0.0
    %3573 = vmatprep.subr.mxu0 0.0
    %3574 = vmatpush1.msra.mxu0 0.0
    %3575 = vmatprep.subr.mxu0 0.0
    %3576 = vmatpush1.msra.mxu0 0.0
    %3577 = vmatprep.subr.mxu0 0.0
    %3578 = vmatpush1.msra.mxu0 0.0
    %3579 = vmatprep.subr.mxu0 0.0
    %3580 = vmatpush1.msra.mxu0 0.0
    %3581 = vmatprep.subr.mxu0 0.0
    %3582 = vmatpush1.msra.mxu0 0.0
    %3583 = vmatprep.subr.mxu0 0.0
    %3584 = vmatpush1.msra.mxu0 0.0
    %3585 = vmatprep.subr.mxu0 0.0
    %3586 = vmatpush1.msra.mxu0 0.0
    %3587 = vmatprep.subr.mxu0 0.0
    %3588 = vmatpush1.msra.mxu0 0.0
    %3589 = vmatprep.subr.mxu0 0.0
    %3590 = vmatpush1.msra.mxu0 0.0
    %3591 = vmatprep.subr.mxu0 0.0
    %3592 = vmatpush1.msra.mxu0 0.0
    %3593 = vmatprep.subr.mxu0 0.0
    %3594 = vmatpush1.msra.mxu0 0.0
    %3595 = vmatprep.subr.mxu0 0.0
    %3596 = vmatpush1.msra.mxu0 0.0
    %3597 = vmatprep.subr.mxu0 0.0
    %3598 = vmatpush1.msra.mxu0 0.0
    %3599 = vmatprep.subr.mxu0 0.0
    %3600 = vmatpush1.msra.mxu0 0.0
    %3601 = vmatprep.mubr.f32.mxu0 0.0
    %3602 = vmatmul.mubr.f32.gmra.mrb[0].mxu0 %v3535
    %v3603 = vpop.f32.mrb[0].mxu0
    %v3604 = vadd.f32 %v121, %v3603
    %v3605 = vpop.f32.mrb[0].mxu0
    %3606 = vdwg.mxu0
    %v3609 = vunpack.c.l.s4 1966171168
    %v3610 = vunpack.c.0.s8 %v3609
    %v3611 = vlaneseq
    %v3612 = vshrl.u32 %v3611, 7
    %v3613 = vsub.s32 %v3610, %v3612
    %v3614 = vrot.slane %v3604, %v3613
    %v3615 = vcombine.high %v3614, %v3614
    %v3617 = vunpack.c.l.s4 1966171168
    %v3618 = vunpack.c.0.s8 %v3617
    %v3619 = vlaneseq
    %v3620 = vshrl.u32 %v3619, 7
    %v3621 = vsub.s32 %v3618, %v3620
    %v3622 = vrot.slane %v3614, %v3621
    %v3624 = vunpack.c.l.s4 1966171168
    %v3625 = vunpack.c.0.s8 %v3624
    %v3626 = vlaneseq
    %v3627 = vshrl.u32 %v3626, 7
    %v3628 = vsub.s32 %v3625, %v3627
    %v3629 = vrot.slane %v3615, %v3628
    %v3630 = vlaneseq
    %v3631 = vshrl.u32 %v3630, 7
    %v3632 = vsub.s32 0, %v3631
    %v3633 = vrot.slane %v3622, %v3632
    %v3634 = vlaneseq
    %v3635 = vshrl.u32 %v3634, 7
    %v3636 = vsub.s32 0, %v3635
    %v3637 = vrot.slane %v3629, %v3636
    %v3640 = vadd.f32 %v3633, %v225
    %v3641 = vadd.f32 %v3637, %v226
    %v3642 = vtanh.pop %v3640
    %v3643 = vtanh.pop %v3641
    %v3645 = vsel %vm136, %v3642, 0
    %v3648 = vsel %vm136, %v3643, 0
    %3650 = vmatprep.subr.mxu0 0.0
    %3651 = vmatpush1.msra.mxu0 %v105
    %3652 = vmatprep.subr.mxu0 0.0
    %3653 = vmatpush1.msra.mxu0 %v106
    %3654 = vmatprep.subr.mxu0 0.0
    %3655 = vmatpush1.msra.mxu0 %v107
    %3656 = vmatprep.subr.mxu0 0.0
    %3657 = vmatpush1.msra.mxu0 %v108
    %3658 = vmatprep.subr.mxu0 0.0
    %3659 = vmatpush1.msra.mxu0 0.0
    %3660 = vmatprep.subr.mxu0 0.0
    %3661 = vmatpush1.msra.mxu0 0.0
    %3662 = vmatprep.subr.mxu0 0.0
    %3663 = vmatpush1.msra.mxu0 0.0
    %3664 = vmatprep.subr.mxu0 0.0
    %3665 = vmatpush1.msra.mxu0 0.0
    %3666 = vmatprep.subr.mxu0 0.0
    %3667 = vmatpush1.msra.mxu0 0.0
    %3668 = vmatprep.subr.mxu0 0.0
    %3669 = vmatpush1.msra.mxu0 0.0
    %3670 = vmatprep.subr.mxu0 0.0
    %3671 = vmatpush1.msra.mxu0 0.0
    %3672 = vmatprep.subr.mxu0 0.0
    %3673 = vmatpush1.msra.mxu0 0.0
    %3674 = vmatprep.subr.mxu0 0.0
    %3675 = vmatpush1.msra.mxu0 0.0
    %3676 = vmatprep.subr.mxu0 0.0
    %3677 = vmatpush1.msra.mxu0 0.0
    %3678 = vmatprep.subr.mxu0 0.0
    %3679 = vmatpush1.msra.mxu0 0.0
    %3680 = vmatprep.subr.mxu0 0.0
    %3681 = vmatpush1.msra.mxu0 0.0
    %3682 = vmatprep.subr.mxu0 0.0
    %3683 = vmatpush1.msra.mxu0 0.0
    %3684 = vmatprep.subr.mxu0 0.0
    %3685 = vmatpush1.msra.mxu0 0.0
    %3686 = vmatprep.subr.mxu0 0.0
    %3687 = vmatpush1.msra.mxu0 0.0
    %3688 = vmatprep.subr.mxu0 0.0
    %3689 = vmatpush1.msra.mxu0 0.0
    %3690 = vmatprep.subr.mxu0 0.0
    %3691 = vmatpush1.msra.mxu0 0.0
    %3692 = vmatprep.subr.mxu0 0.0
    %3693 = vmatpush1.msra.mxu0 0.0
    %3694 = vmatprep.subr.mxu0 0.0
    %3695 = vmatpush1.msra.mxu0 0.0
    %3696 = vmatprep.subr.mxu0 0.0
    %3697 = vmatpush1.msra.mxu0 0.0
    %3698 = vmatprep.subr.mxu0 0.0
    %3699 = vmatpush1.msra.mxu0 0.0
    %3700 = vmatprep.subr.mxu0 0.0
    %3701 = vmatpush1.msra.mxu0 0.0
    %3702 = vmatprep.subr.mxu0 0.0
    %3703 = vmatpush1.msra.mxu0 0.0
    %3704 = vmatprep.subr.mxu0 0.0
    %3705 = vmatpush1.msra.mxu0 0.0
    %3706 = vmatprep.subr.mxu0 0.0
    %3707 = vmatpush1.msra.mxu0 0.0
    %3708 = vmatprep.subr.mxu0 0.0
    %3709 = vmatpush1.msra.mxu0 0.0
    %3710 = vmatprep.subr.mxu0 0.0
    %3711 = vmatpush1.msra.mxu0 0.0
    %3712 = vmatprep.subr.mxu0 0.0
    %3713 = vmatpush1.msra.mxu0 0.0
    %3714 = vmatprep.mubr.f32.mxu0 0.0
    %3715 = vmatmul.mubr.f32.gmra.mrb[0].mxu0 %v3645
    %v3716 = vpop.f32.mrb[0].mxu0
    %v3717 = vadd.f32 0.0, %v3716
    %v3718 = vpop.f32.mrb[0].mxu0
    %3719 = vmatprep.mubr.f32.mxu0 0.0
    %3720 = vmatmul.mubr.f32.gmra.mrb[0].mxu0 %v3648
    %v3721 = vpop.f32.mrb[0].mxu0
    %v3722 = vadd.f32 0.0, %v3721
    %v3723 = vpop.f32.mrb[0].mxu0
    %3724 = vdwg.mxu0
    %vm3725 = vcmp.eq.f32.partialorder %v3253, 0.0
    %3728 = vset.pattern.permute.xlu0 0
    %3729 = vperm.xlu0 %3728, %v3717
    %v3730 = vpop.permute.xlu0 %3729
    %3731 = vset.pattern.permute.xlu0 0
    %3732 = vperm.xlu0 %3731, %v3722
    %v3733 = vpop.permute.xlu0 %3732
    %v3734 = vlaneseq
    %v3735 = vshrl.u32 %v3734, 7
    %v3736 = vsub.s32 %v228, %v3735
    %v3737 = vrot.slane %v3730, %v3736
    %v3738 = vlaneseq
    %v3739 = vshrl.u32 %v3738, 7
    %v3740 = vsub.s32 %v228, %v3739
    %v3741 = vrot.slane %v3733, %v3740
    %v3742 = vsel %vm549, %v3741, %v3737
    %v3744 = vsel %vm3725, -1e+30, %v3742
    %v3745 = vsel %vm552, %v3744, -inf
    %3746 = vmax.xlane.f32.xlu0 %v3745
    %v3747 = vpop.xlane.xlu0 %3746
    %v3748 = vsub.f32 %v3744, %v3747
    %v3749 = vmul.f32 %v3748, 1.442695
    %v3750 = vpow.pop %v3749
    %v3751 = vsel %vm552, %v3750, 0.0
    %3752 = vadd.xlane.f32.xlu0 %v3751
    %v3753 = vpop.xlane.xlu0 %3752
    %v3754 = vrcp.pop %v3753
    %v3755 = vmul.f32 %v3750, %v3754
    %v3758 = vunpack.c.l.s4 1966171168
    %v3759 = vunpack.c.0.s8 %v3758
    %v3760 = vlaneseq
    %v3761 = vshrl.u32 %v3760, 7
    %v3762 = vsub.s32 %v3759, %v3761
    %v3763 = vrot.slane %v3755, %v3762
    %v3764 = vcombine.high %v3763, %v3763
    %v3766 = vunpack.c.l.s4 1966171168
    %v3767 = vunpack.c.0.s8 %v3766
    %v3768 = vlaneseq
    %v3769 = vshrl.u32 %v3768, 7
    %v3770 = vsub.s32 %v3767, %v3769
    %v3771 = vrot.slane %v3763, %v3770
    %v3773 = vunpack.c.l.s4 1966171168
    %v3774 = vunpack.c.0.s8 %v3773
    %v3775 = vlaneseq
    %v3776 = vshrl.u32 %v3775, 7
    %v3777 = vsub.s32 %v3774, %v3776
    %v3778 = vrot.slane %v3764, %v3777
    %v3781 = vsel %vm617, %v3771, 0
    %3783 = vmatprep.subr.mxu0 0.0
    %3784 = vmatpush1.msra.mxu0 %v225
    %3785 = vmatprep.subr.mxu0 0.0
    %3786 = vmatpush1.msra.mxu0 0.0
    %3787 = vmatprep.subr.mxu0 0.0
    %3788 = vmatpush1.msra.mxu0 0.0
    %3789 = vmatprep.subr.mxu0 0.0
    %3790 = vmatpush1.msra.mxu0 0.0
    %3791 = vmatprep.subr.mxu0 0.0
    %3792 = vmatpush1.msra.mxu0 0.0
    %3793 = vmatprep.subr.mxu0 0.0
    %3794 = vmatpush1.msra.mxu0 0.0
    %3795 = vmatprep.subr.mxu0 0.0
    %3796 = vmatpush1.msra.mxu0 0.0
    %3797 = vmatprep.subr.mxu0 0.0
    %3798 = vmatpush1.msra.mxu0 0.0
    %3799 = vmatprep.subr.mxu0 0.0
    %3800 = vmatpush1.msra.mxu0 0.0
    %3801 = vmatprep.subr.mxu0 0.0
    %3802 = vmatpush1.msra.mxu0 0.0
    %3803 = vmatprep.subr.mxu0 0.0
    %3804 = vmatpush1.msra.mxu0 0.0
    %3805 = vmatprep.subr.mxu0 0.0
    %3806 = vmatpush1.msra.mxu0 0.0
    %3807 = vmatprep.subr.mxu0 0.0
    %3808 = vmatpush1.msra.mxu0 0.0
    %3809 = vmatprep.subr.mxu0 0.0
    %3810 = vmatpush1.msra.mxu0 0.0
    %3811 = vmatprep.subr.mxu0 0.0
    %3812 = vmatpush1.msra.mxu0 0.0
    %3813 = vmatprep.subr.mxu0 0.0
    %3814 = vmatpush1.msra.mxu0 0.0
    %3815 = vmatprep.subr.mxu0 0.0
    %3816 = vmatpush1.msra.mxu0 0.0
    %3817 = vmatprep.subr.mxu0 0.0
    %3818 = vmatpush1.msra.mxu0 0.0
    %3819 = vmatprep.subr.mxu0 0.0
    %3820 = vmatpush1.msra.mxu0 0.0
    %3821 = vmatprep.subr.mxu0 0.0
    %3822 = vmatpush1.msra.mxu0 0.0
    %3823 = vmatprep.subr.mxu0 0.0
    %3824 = vmatpush1.msra.mxu0 0.0
    %3825 = vmatprep.subr.mxu0 0.0
    %3826 = vmatpush1.msra.mxu0 0.0
    %3827 = vmatprep.subr.mxu0 0.0
    %3828 = vmatpush1.msra.mxu0 0.0
    %3829 = vmatprep.subr.mxu0 0.0
    %3830 = vmatpush1.msra.mxu0 0.0
    %3831 = vmatprep.subr.mxu0 0.0
    %3832 = vmatpush1.msra.mxu0 0.0
    %3833 = vmatprep.subr.mxu0 0.0
    %3834 = vmatpush1.msra.mxu0 0.0
    %3835 = vmatprep.subr.mxu0 0.0
    %3836 = vmatpush1.msra.mxu0 0.0
    %3837 = vmatprep.subr.mxu0 0.0
    %3838 = vmatpush1.msra.mxu0 0.0
    %3839 = vmatprep.subr.mxu0 0.0
    %3840 = vmatpush1.msra.mxu0 0.0
    %3841 = vmatprep.subr.mxu0 0.0
    %3842 = vmatpush1.msra.mxu0 0.0
    %3843 = vmatprep.subr.mxu0 0.0
    %3844 = vmatpush1.msra.mxu0 0.0
    %3845 = vmatprep.subr.mxu0 0.0
    %3846 = vmatpush1.msra.mxu0 0.0
    %3847 = vmatprep.mubr.f32.mxu0 0.0
    %3848 = vmatmul.mubr.f32.gmra.mrb[0].mxu0 %v3781
    %v3849 = vpop.f32.mrb[0].mxu0
    %v3850 = vadd.f32 0.0, %v3849
    %v3851 = vpop.f32.mrb[0].mxu0
    %3852 = vdwg.mxu0
    %v3853 = vsel %vm617, %v3778, 0
    %3855 = vmatprep.subr.mxu0 0.0
    %3856 = vmatpush1.msra.mxu0 %v226
    %3857 = vmatprep.subr.mxu0 0.0
    %3858 = vmatpush1.msra.mxu0 0.0
    %3859 = vmatprep.subr.mxu0 0.0
    %3860 = vmatpush1.msra.mxu0 0.0
    %3861 = vmatprep.subr.mxu0 0.0
    %3862 = vmatpush1.msra.mxu0 0.0
    %3863 = vmatprep.subr.mxu0 0.0
    %3864 = vmatpush1.msra.mxu0 0.0
    %3865 = vmatprep.subr.mxu0 0.0
    %3866 = vmatpush1.msra.mxu0 0.0
    %3867 = vmatprep.subr.mxu0 0.0
    %3868 = vmatpush1.msra.mxu0 0.0
    %3869 = vmatprep.subr.mxu0 0.0
    %3870 = vmatpush1.msra.mxu0 0.0
    %3871 = vmatprep.subr.mxu0 0.0
    %3872 = vmatpush1.msra.mxu0 0.0
    %3873 = vmatprep.subr.mxu0 0.0
    %3874 = vmatpush1.msra.mxu0 0.0
    %3875 = vmatprep.subr.mxu0 0.0
    %3876 = vmatpush1.msra.mxu0 0.0
    %3877 = vmatprep.subr.mxu0 0.0
    %3878 = vmatpush1.msra.mxu0 0.0
    %3879 = vmatprep.subr.mxu0 0.0
    %3880 = vmatpush1.msra.mxu0 0.0
    %3881 = vmatprep.subr.mxu0 0.0
    %3882 = vmatpush1.msra.mxu0 0.0
    %3883 = vmatprep.subr.mxu0 0.0
    %3884 = vmatpush1.msra.mxu0 0.0
    %3885 = vmatprep.subr.mxu0 0.0
    %3886 = vmatpush1.msra.mxu0 0.0
    %3887 = vmatprep.subr.mxu0 0.0
    %3888 = vmatpush1.msra.mxu0 0.0
    %3889 = vmatprep.subr.mxu0 0.0
    %3890 = vmatpush1.msra.mxu0 0.0
    %3891 = vmatprep.subr.mxu0 0.0
    %3892 = vmatpush1.msra.mxu0 0.0
    %3893 = vmatprep.subr.mxu0 0.0
    %3894 = vmatpush1.msra.mxu0 0.0
    %3895 = vmatprep.subr.mxu0 0.0
    %3896 = vmatpush1.msra.mxu0 0.0
    %3897 = vmatprep.subr.mxu0 0.0
    %3898 = vmatpush1.msra.mxu0 0.0
    %3899 = vmatprep.subr.mxu0 0.0
    %3900 = vmatpush1.msra.mxu0 0.0
    %3901 = vmatprep.subr.mxu0 0.0
    %3902 = vmatpush1.msra.mxu0 0.0
    %3903 = vmatprep.subr.mxu0 0.0
    %3904 = vmatpush1.msra.mxu0 0.0
    %3905 = vmatprep.subr.mxu0 0.0
    %3906 = vmatpush1.msra.mxu0 0.0
    %3907 = vmatprep.subr.mxu0 0.0
    %3908 = vmatpush1.msra.mxu0 0.0
    %3909 = vmatprep.subr.mxu0 0.0
    %3910 = vmatpush1.msra.mxu0 0.0
    %3911 = vmatprep.subr.mxu0 0.0
    %3912 = vmatpush1.msra.mxu0 0.0
    %3913 = vmatprep.subr.mxu0 0.0
    %3914 = vmatpush1.msra.mxu0 0.0
    %3915 = vmatprep.subr.mxu0 0.0
    %3916 = vmatpush1.msra.mxu0 0.0
    %3917 = vmatprep.subr.mxu0 0.0
    %3918 = vmatpush1.msra.mxu0 0.0
    %3919 = vmatprep.mubr.f32.mxu0 0.0
    %3920 = vmatmul.mubr.f32.gmra.mrb[0].mxu0 %v3853
    %v3921 = vpop.f32.mrb[0].mxu0
    %v3922 = vadd.f32 0.0, %v3921
    %v3923 = vpop.f32.mrb[0].mxu0
    %3924 = vdwg.mxu0
    %v3927 = vrot.slane %v3922, 7
    %v3928 = vsel %vm549, %v3927, %v3850
    %3930 = vrot.lane.b32.xlu0 %v3531, 64
    %v3931 = vpop.permute.xlu0 %3930
    %v3933 = vsel %vm136, %v3928, %v3931
    %v3935 = vsel %vm779, %v3933, 0
    %3937 = vmatprep.subr.mxu0 0.0
    %3938 = vmatpush1.msra.mxu0 %v93
    %3939 = vmatprep.subr.mxu0 0.0
    %3940 = vmatpush1.msra.mxu0 %v94
    %3941 = vmatprep.subr.mxu0 0.0
    %3942 = vmatpush1.msra.mxu0 %v95
    %3943 = vmatprep.subr.mxu0 0.0
    %3944 = vmatpush1.msra.mxu0 %v96
    %3945 = vmatprep.subr.mxu0 0.0
    %3946 = vmatpush1.msra.mxu0 %v97
    %3947 = vmatprep.subr.mxu0 0.0
    %3948 = vmatpush1.msra.mxu0 %v98
    %3949 = vmatprep.subr.mxu0 0.0
    %3950 = vmatpush1.msra.mxu0 %v99
    %3951 = vmatprep.subr.mxu0 0.0
    %3952 = vmatpush1.msra.mxu0 %v100
    %3953 = vmatprep.subr.mxu0 0.0
    %3954 = vmatpush1.msra.mxu0 0.0
    %3955 = vmatprep.subr.mxu0 0.0
    %3956 = vmatpush1.msra.mxu0 0.0
    %3957 = vmatprep.subr.mxu0 0.0
    %3958 = vmatpush1.msra.mxu0 0.0
    %3959 = vmatprep.subr.mxu0 0.0
    %3960 = vmatpush1.msra.mxu0 0.0
    %3961 = vmatprep.subr.mxu0 0.0
    %3962 = vmatpush1.msra.mxu0 0.0
    %3963 = vmatprep.subr.mxu0 0.0
    %3964 = vmatpush1.msra.mxu0 0.0
    %3965 = vmatprep.subr.mxu0 0.0
    %3966 = vmatpush1.msra.mxu0 0.0
    %3967 = vmatprep.subr.mxu0 0.0
    %3968 = vmatpush1.msra.mxu0 0.0
    %3969 = vmatprep.subr.mxu0 0.0
    %3970 = vmatpush1.msra.mxu0 0.0
    %3971 = vmatprep.subr.mxu0 0.0
    %3972 = vmatpush1.msra.mxu0 0.0
    %3973 = vmatprep.subr.mxu0 0.0
    %3974 = vmatpush1.msra.mxu0 0.0
    %3975 = vmatprep.subr.mxu0 0.0
    %3976 = vmatpush1.msra.mxu0 0.0
    %3977 = vmatprep.subr.mxu0 0.0
    %3978 = vmatpush1.msra.mxu0 0.0
    %3979 = vmatprep.subr.mxu0 0.0
    %3980 = vmatpush1.msra.mxu0 0.0
    %3981 = vmatprep.subr.mxu0 0.0
    %3982 = vmatpush1.msra.mxu0 0.0
    %3983 = vmatprep.subr.mxu0 0.0
    %3984 = vmatpush1.msra.mxu0 0.0
    %3985 = vmatprep.subr.mxu0 0.0
    %3986 = vmatpush1.msra.mxu0 0.0
    %3987 = vmatprep.subr.mxu0 0.0
    %3988 = vmatpush1.msra.mxu0 0.0
    %3989 = vmatprep.subr.mxu0 0.0
    %3990 = vmatpush1.msra.mxu0 0.0
    %3991 = vmatprep.subr.mxu0 0.0
    %3992 = vmatpush1.msra.mxu0 0.0
    %3993 = vmatprep.subr.mxu0 0.0
    %3994 = vmatpush1.msra.mxu0 0.0
    %3995 = vmatprep.subr.mxu0 0.0
    %3996 = vmatpush1.msra.mxu0 0.0
    %3997 = vmatprep.subr.mxu0 0.0
    %3998 = vmatpush1.msra.mxu0 0.0
    %3999 = vmatprep.subr.mxu0 0.0
    %4000 = vmatpush1.msra.mxu0 0.0
    %4001 = vmatprep.mubr.f32.mxu0 0.0
    %4002 = vmatmul.mubr.f32.gmra.mrb[0].mxu0 %v3935
    %v4003 = vpop.f32.mrb[0].mxu0
    %v4004 = vadd.f32 %v128, %v4003
    %v4005 = vpop.f32.mrb[0].mxu0
    %4006 = vdwg.mxu0
    %v4007 = vtanh.pop %v4004
    %v4008 = vmul.f32 %v3755, %v3253
    %v4009 = vsel %vm552, %v4008, -inf
    %4010 = vmax.xlane.f32.xlu0 %v4009
    %v4011 = vpop.xlane.xlu0 %4010
    %vm4012 = vcmp.eq.f32.partialorder %v4008, %v4011
    %v4013 = vsel %vm4012, %v228, 8
    %v4014 = vsel %vm552, %v4013, 2147483647
    %v4015 = vand.u32 %v4014, 65535
    %v4016 = vshra.s32 %v4014, 16
    %v4017 = vcvt.s32.f32 %v4015
    %v4018 = vcvt.s32.f32 %v4016
    %4019 = vmin.xlane.f32.xlu0 %v4018
    %v4020 = vpop.xlane.xlu0 %4019
    %vm4021 = vcmp.eq.f32.partialorder %v4018, %v4020
    %v4022 = vsel %vm4021, %v4017, inf
    %4023 = vmin.xlane.f32.xlu0 %v4022
    %v4024 = vpop.xlane.xlu0 %4023
    %v4025 = vcvt.f32.s32 %v4024
    %v4026 = vcvt.f32.s32 %v4020
    %v4027 = vshll.u32 %v4026, 16
    %v4028 = vadd.s32 %v4027, %v4025
    %vm4029 = vcmp.eq.s32.totalorder %v228, %v4028
    %v4030 = vsel %vm4029, 1, 0
    %v4031 = vcvt.s32.f32 %v4030
    %v4032 = vsub.f32 1.0, %v4031
    %v4033 = vmul.f32 %v3253, %v4032
    %v4036 = vunpack.c.l.s4 1966171168
    %v4037 = vunpack.c.0.s8 %v4036
    %v4038 = vlaneseq
    %v4039 = vshrl.u32 %v4038, 7
    %v4040 = vsub.s32 %v4037, %v4039
    %v4041 = vrot.slane %v4031, %v4040
    %v4042 = vcombine.high %v4041, %v4041
    %v4044 = vunpack.c.l.s4 1966171168
    %v4045 = vunpack.c.0.s8 %v4044
    %v4046 = vlaneseq
    %v4047 = vshrl.u32 %v4046, 7
    %v4048 = vsub.s32 %v4045, %v4047
    %v4049 = vrot.slane %v4041, %v4048
    %v4051 = vunpack.c.l.s4 1966171168
    %v4052 = vunpack.c.0.s8 %v4051
    %v4053 = vlaneseq
    %v4054 = vshrl.u32 %v4053, 7
    %v4055 = vsub.s32 %v4052, %v4054
    %v4056 = vrot.slane %v4042, %v4055
    %v4057 = vsel %vm617, %v4049, 0
    %4059 = vmatprep.subr.mxu0 0.0
    %4060 = vmatpush1.msra.mxu0 %v82
    %4061 = vmatprep.subr.mxu0 0.0
    %4062 = vmatpush1.msra.mxu0 0.0
    %4063 = vmatprep.subr.mxu0 0.0
    %4064 = vmatpush1.msra.mxu0 0.0
    %4065 = vmatprep.subr.mxu0 0.0
    %4066 = vmatpush1.msra.mxu0 0.0
    %4067 = vmatprep.subr.mxu0 0.0
    %4068 = vmatpush1.msra.mxu0 0.0
    %4069 = vmatprep.subr.mxu0 0.0
    %4070 = vmatpush1.msra.mxu0 0.0
    %4071 = vmatprep.subr.mxu0 0.0
    %4072 = vmatpush1.msra.mxu0 0.0
    %4073 = vmatprep.subr.mxu0 0.0
    %4074 = vmatpush1.msra.mxu0 0.0
    %4075 = vmatprep.subr.mxu0 0.0
    %4076 = vmatpush1.msra.mxu0 0.0
    %4077 = vmatprep.subr.mxu0 0.0
    %4078 = vmatpush1.msra.mxu0 0.0
    %4079 = vmatprep.subr.mxu0 0.0
    %4080 = vmatpush1.msra.mxu0 0.0
    %4081 = vmatprep.subr.mxu0 0.0
    %4082 = vmatpush1.msra.mxu0 0.0
    %4083 = vmatprep.subr.mxu0 0.0
    %4084 = vmatpush1.msra.mxu0 0.0
    %4085 = vmatprep.subr.mxu0 0.0
    %4086 = vmatpush1.msra.mxu0 0.0
    %4087 = vmatprep.subr.mxu0 0.0
    %4088 = vmatpush1.msra.mxu0 0.0
    %4089 = vmatprep.subr.mxu0 0.0
    %4090 = vmatpush1.msra.mxu0 0.0
    %4091 = vmatprep.subr.mxu0 0.0
    %4092 = vmatpush1.msra.mxu0 0.0
    %4093 = vmatprep.subr.mxu0 0.0
    %4094 = vmatpush1.msra.mxu0 0.0
    %4095 = vmatprep.subr.mxu0 0.0
    %4096 = vmatpush1.msra.mxu0 0.0
    %4097 = vmatprep.subr.mxu0 0.0
    %4098 = vmatpush1.msra.mxu0 0.0
    %4099 = vmatprep.subr.mxu0 0.0
    %4100 = vmatpush1.msra.mxu0 0.0
    %4101 = vmatprep.subr.mxu0 0.0
    %4102 = vmatpush1.msra.mxu0 0.0
    %4103 = vmatprep.subr.mxu0 0.0
    %4104 = vmatpush1.msra.mxu0 0.0
    %4105 = vmatprep.subr.mxu0 0.0
    %4106 = vmatpush1.msra.mxu0 0.0
    %4107 = vmatprep.subr.mxu0 0.0
    %4108 = vmatpush1.msra.mxu0 0.0
    %4109 = vmatprep.subr.mxu0 0.0
    %4110 = vmatpush1.msra.mxu0 0.0
    %4111 = vmatprep.subr.mxu0 0.0
    %4112 = vmatpush1.msra.mxu0 0.0
    %4113 = vmatprep.subr.mxu0 0.0
    %4114 = vmatpush1.msra.mxu0 0.0
    %4115 = vmatprep.subr.mxu0 0.0
    %4116 = vmatpush1.msra.mxu0 0.0
    %4117 = vmatprep.subr.mxu0 0.0
    %4118 = vmatpush1.msra.mxu0 0.0
    %4119 = vmatprep.subr.mxu0 0.0
    %4120 = vmatpush1.msra.mxu0 0.0
    %4121 = vmatprep.subr.mxu0 0.0
    %4122 = vmatpush1.msra.mxu0 0.0
    %4123 = vmatprep.mubr.f32.mxu0 0.0
    %4124 = vmatmul.mubr.f32.gmra.mrb[0].mxu0 %v4057
    %v4125 = vpop.f32.mrb[0].mxu0
    %v4126 = vadd.f32 0.0, %v4125
    %v4127 = vpop.f32.mrb[0].mxu0
    %4128 = vdwg.mxu0
    %v4129 = vsel %vm617, %v4056, 0
    %4131 = vmatprep.subr.mxu0 0.0
    %4132 = vmatpush1.msra.mxu0 %v83
    %4133 = vmatprep.subr.mxu0 0.0
    %4134 = vmatpush1.msra.mxu0 0.0
    %4135 = vmatprep.subr.mxu0 0.0
    %4136 = vmatpush1.msra.mxu0 0.0
    %4137 = vmatprep.subr.mxu0 0.0
    %4138 = vmatpush1.msra.mxu0 0.0
    %4139 = vmatprep.subr.mxu0 0.0
    %4140 = vmatpush1.msra.mxu0 0.0
    %4141 = vmatprep.subr.mxu0 0.0
    %4142 = vmatpush1.msra.mxu0 0.0
    %4143 = vmatprep.subr.mxu0 0.0
    %4144 = vmatpush1.msra.mxu0 0.0
    %4145 = vmatprep.subr.mxu0 0.0
    %4146 = vmatpush1.msra.mxu0 0.0
    %4147 = vmatprep.subr.mxu0 0.0
    %4148 = vmatpush1.msra.mxu0 0.0
    %4149 = vmatprep.subr.mxu0 0.0
    %4150 = vmatpush1.msra.mxu0 0.0
    %4151 = vmatprep.subr.mxu0 0.0
    %4152 = vmatpush1.msra.mxu0 0.0
    %4153 = vmatprep.subr.mxu0 0.0
    %4154 = vmatpush1.msra.mxu0 0.0
    %4155 = vmatprep.subr.mxu0 0.0
    %4156 = vmatpush1.msra.mxu0 0.0
    %4157 = vmatprep.subr.mxu0 0.0
    %4158 = vmatpush1.msra.mxu0 0.0
    %4159 = vmatprep.subr.mxu0 0.0
    %4160 = vmatpush1.msra.mxu0 0.0
    %4161 = vmatprep.subr.mxu0 0.0
    %4162 = vmatpush1.msra.mxu0 0.0
    %4163 = vmatprep.subr.mxu0 0.0
    %4164 = vmatpush1.msra.mxu0 0.0
    %4165 = vmatprep.subr.mxu0 0.0
    %4166 = vmatpush1.msra.mxu0 0.0
    %4167 = vmatprep.subr.mxu0 0.0
    %4168 = vmatpush1.msra.mxu0 0.0
    %4169 = vmatprep.subr.mxu0 0.0
    %4170 = vmatpush1.msra.mxu0 0.0
    %4171 = vmatprep.subr.mxu0 0.0
    %4172 = vmatpush1.msra.mxu0 0.0
    %4173 = vmatprep.subr.mxu0 0.0
    %4174 = vmatpush1.msra.mxu0 0.0
    %4175 = vmatprep.subr.mxu0 0.0
    %4176 = vmatpush1.msra.mxu0 0.0
    %4177 = vmatprep.subr.mxu0 0.0
    %4178 = vmatpush1.msra.mxu0 0.0
    %4179 = vmatprep.subr.mxu0 0.0
    %4180 = vmatpush1.msra.mxu0 0.0
    %4181 = vmatprep.subr.mxu0 0.0
    %4182 = vmatpush1.msra.mxu0 0.0
    %4183 = vmatprep.subr.mxu0 0.0
    %4184 = vmatpush1.msra.mxu0 0.0
    %4185 = vmatprep.subr.mxu0 0.0
    %4186 = vmatpush1.msra.mxu0 0.0
    %4187 = vmatprep.subr.mxu0 0.0
    %4188 = vmatpush1.msra.mxu0 0.0
    %4189 = vmatprep.subr.mxu0 0.0
    %4190 = vmatpush1.msra.mxu0 0.0
    %4191 = vmatprep.subr.mxu0 0.0
    %4192 = vmatpush1.msra.mxu0 0.0
    %4193 = vmatprep.subr.mxu0 0.0
    %4194 = vmatpush1.msra.mxu0 0.0
    %4195 = vmatprep.mubr.f32.mxu0 0.0
    %4196 = vmatmul.mubr.f32.gmra.mrb[0].mxu0 %v4129
    %v4197 = vpop.f32.mrb[0].mxu0
    %v4198 = vadd.f32 0.0, %v4197
    %v4199 = vpop.f32.mrb[0].mxu0
    %4200 = vdwg.mxu0
    %4201 = vst.msk [vmem:[#allocation7 + $0x4] sm:$0x1] %vm1080, %v3771
    %4202 = vst.msk [vmem:[#allocation7 + $0xc] sm:$0x1] %vm1080, %v3778
    %vm4203 = vcmask 33824
    %4204 = vst.msk [vmem:[#allocation8] sm:$0x3] %vm4203, %v4028
    %v4207 = vrot.slane %v4198, 7
    %v4208 = vsel %vm549, %v4207, %v4126
    %4211 = vrot.lane.b32.xlu0 %v4007, 16
    %v4212 = vpop.permute.xlu0 %4211
    %v4214 = vsel %vm233, %v4208, %v4212
    %v4216 = vsel %vm235, %v4214, 0
    %4218 = vmatprep.subr.mxu0 0.0
    %4219 = vmatpush1.msra.mxu0 %v87
    %4220 = vmatprep.subr.mxu0 0.0
    %4221 = vmatpush1.msra.mxu0 %v88
    %4222 = vmatprep.subr.mxu0 0.0
    %4223 = vmatpush1.msra.mxu0 %v89
    %4224 = vmatprep.subr.mxu0 0.0
    %4225 = vmatpush1.msra.mxu0 %v90
    %4226 = vmatprep.subr.mxu0 0.0
    %4227 = vmatpush1.msra.mxu0 %v91
    %4228 = vmatprep.subr.mxu0 0.0
    %4229 = vmatpush1.msra.mxu0 %v92
    %4230 = vmatprep.subr.mxu0 0.0
    %4231 = vmatpush1.msra.mxu0 0.0
    %4232 = vmatprep.subr.mxu0 0.0
    %4233 = vmatpush1.msra.mxu0 0.0
    %4234 = vmatprep.subr.mxu0 0.0
    %4235 = vmatpush1.msra.mxu0 0.0
    %4236 = vmatprep.subr.mxu0 0.0
    %4237 = vmatpush1.msra.mxu0 0.0
    %4238 = vmatprep.subr.mxu0 0.0
    %4239 = vmatpush1.msra.mxu0 0.0
    %4240 = vmatprep.subr.mxu0 0.0
    %4241 = vmatpush1.msra.mxu0 0.0
    %4242 = vmatprep.subr.mxu0 0.0
    %4243 = vmatpush1.msra.mxu0 0.0
    %4244 = vmatprep.subr.mxu0 0.0
    %4245 = vmatpush1.msra.mxu0 0.0
    %4246 = vmatprep.subr.mxu0 0.0
    %4247 = vmatpush1.msra.mxu0 0.0
    %4248 = vmatprep.subr.mxu0 0.0
    %4249 = vmatpush1.msra.mxu0 0.0
    %4250 = vmatprep.subr.mxu0 0.0
    %4251 = vmatpush1.msra.mxu0 0.0
    %4252 = vmatprep.subr.mxu0 0.0
    %4253 = vmatpush1.msra.mxu0 0.0
    %4254 = vmatprep.subr.mxu0 0.0
    %4255 = vmatpush1.msra.mxu0 0.0
    %4256 = vmatprep.subr.mxu0 0.0
    %4257 = vmatpush1.msra.mxu0 0.0
    %4258 = vmatprep.subr.mxu0 0.0
    %4259 = vmatpush1.msra.mxu0 0.0
    %4260 = vmatprep.subr.mxu0 0.0
    %4261 = vmatpush1.msra.mxu0 0.0
    %4262 = vmatprep.subr.mxu0 0.0
    %4263 = vmatpush1.msra.mxu0 0.0
    %4264 = vmatprep.subr.mxu0 0.0
    %4265 = vmatpush1.msra.mxu0 0.0
    %4266 = vmatprep.subr.mxu0 0.0
    %4267 = vmatpush1.msra.mxu0 0.0
    %4268 = vmatprep.subr.mxu0 0.0
    %4269 = vmatpush1.msra.mxu0 0.0
    %4270 = vmatprep.subr.mxu0 0.0
    %4271 = vmatpush1.msra.mxu0 0.0
    %4272 = vmatprep.subr.mxu0 0.0
    %4273 = vmatpush1.msra.mxu0 0.0
    %4274 = vmatprep.subr.mxu0 0.0
    %4275 = vmatpush1.msra.mxu0 0.0
    %4276 = vmatprep.subr.mxu0 0.0
    %4277 = vmatpush1.msra.mxu0 0.0
    %4278 = vmatprep.subr.mxu0 0.0
    %4279 = vmatpush1.msra.mxu0 0.0
    %4280 = vmatprep.subr.mxu0 0.0
    %4281 = vmatpush1.msra.mxu0 0.0
    %4282 = vmatprep.mubr.f32.mxu0 0.0
    %4283 = vmatmul.mubr.f32.gmra.mrb[0].mxu0 %v4216
    %v4284 = vpop.f32.mrb[0].mxu0
    %v4285 = vadd.f32 %v114, %v4284
    %v4286 = vpop.f32.mrb[0].mxu0
    %4287 = vdwg.mxu0
    %v4288 = vxor.u32 %v4285, 2147483648
    %v4289 = vmul.f32 %v4288, 1.442695
    %v4290 = vpow.pop %v4289
    %v4291 = vadd.f32 %v4290, 1.0
    %v4292 = vrcp.pop %v4291
    %v4293 = vmul.f32 1.0, %v4292
    %v4294 = vtanh.pop %v4285
    %v4295 = vmul.f32 %v4293, %v3525
    %4297 = vrot.lane.b32.xlu0 %v4294, 64
    %v4298 = vpop.permute.xlu0 %4297
    %v4300 = vmul.f32 %v4293, %v4298
    %4302 = vrot.lane.b32.xlu0 %v4300, 32
    %v4303 = vpop.permute.xlu0 %4302
    %v4305 = vadd.f32 %v4295, %v4303
    %v4306 = vtanh.pop %v4305
    %4308 = vrot.lane.b32.xlu0 %v4306, 64
    %v4309 = vpop.permute.xlu0 %4308
    %v4311 = vmul.f32 %v4293, %v4309
    %4313 = vrot.lane.b32.xlu0 %v4311, 32
    %v4314 = vpop.permute.xlu0 %4313
    %v4315 = vsel %vm136, %v4314, 0
    %4317 = vmatprep.subr.mxu0 0.0
    %4318 = vmatpush1.msra.mxu0 %v101
    %4319 = vmatprep.subr.mxu0 0.0
    %4320 = vmatpush1.msra.mxu0 %v102
    %4321 = vmatprep.subr.mxu0 0.0
    %4322 = vmatpush1.msra.mxu0 %v103
    %4323 = vmatprep.subr.mxu0 0.0
    %4324 = vmatpush1.msra.mxu0 %v104
    %4325 = vmatprep.subr.mxu0 0.0
    %4326 = vmatpush1.msra.mxu0 0.0
    %4327 = vmatprep.subr.mxu0 0.0
    %4328 = vmatpush1.msra.mxu0 0.0
    %4329 = vmatprep.subr.mxu0 0.0
    %4330 = vmatpush1.msra.mxu0 0.0
    %4331 = vmatprep.subr.mxu0 0.0
    %4332 = vmatpush1.msra.mxu0 0.0
    %4333 = vmatprep.subr.mxu0 0.0
    %4334 = vmatpush1.msra.mxu0 0.0
    %4335 = vmatprep.subr.mxu0 0.0
    %4336 = vmatpush1.msra.mxu0 0.0
    %4337 = vmatprep.subr.mxu0 0.0
    %4338 = vmatpush1.msra.mxu0 0.0
    %4339 = vmatprep.subr.mxu0 0.0
    %4340 = vmatpush1.msra.mxu0 0.0
    %4341 = vmatprep.subr.mxu0 0.0
    %4342 = vmatpush1.msra.mxu0 0.0
    %4343 = vmatprep.subr.mxu0 0.0
    %4344 = vmatpush1.msra.mxu0 0.0
    %4345 = vmatprep.subr.mxu0 0.0
    %4346 = vmatpush1.msra.mxu0 0.0
    %4347 = vmatprep.subr.mxu0 0.0
    %4348 = vmatpush1.msra.mxu0 0.0
    %4349 = vmatprep.subr.mxu0 0.0
    %4350 = vmatpush1.msra.mxu0 0.0
    %4351 = vmatprep.subr.mxu0 0.0
    %4352 = vmatpush1.msra.mxu0 0.0
    %4353 = vmatprep.subr.mxu0 0.0
    %4354 = vmatpush1.msra.mxu0 0.0
    %4355 = vmatprep.subr.mxu0 0.0
    %4356 = vmatpush1.msra.mxu0 0.0
    %4357 = vmatprep.subr.mxu0 0.0
    %4358 = vmatpush1.msra.mxu0 0.0
    %4359 = vmatprep.subr.mxu0 0.0
    %4360 = vmatpush1.msra.mxu0 0.0
    %4361 = vmatprep.subr.mxu0 0.0
    %4362 = vmatpush1.msra.mxu0 0.0
    %4363 = vmatprep.subr.mxu0 0.0
    %4364 = vmatpush1.msra.mxu0 0.0
    %4365 = vmatprep.subr.mxu0 0.0
    %4366 = vmatpush1.msra.mxu0 0.0
    %4367 = vmatprep.subr.mxu0 0.0
    %4368 = vmatpush1.msra.mxu0 0.0
    %4369 = vmatprep.subr.mxu0 0.0
    %4370 = vmatpush1.msra.mxu0 0.0
    %4371 = vmatprep.subr.mxu0 0.0
    %4372 = vmatpush1.msra.mxu0 0.0
    %4373 = vmatprep.subr.mxu0 0.0
    %4374 = vmatpush1.msra.mxu0 0.0
    %4375 = vmatprep.subr.mxu0 0.0
    %4376 = vmatpush1.msra.mxu0 0.0
    %4377 = vmatprep.subr.mxu0 0.0
    %4378 = vmatpush1.msra.mxu0 0.0
    %4379 = vmatprep.subr.mxu0 0.0
    %4380 = vmatpush1.msra.mxu0 0.0
    %4381 = vmatprep.mubr.f32.mxu0 0.0
    %4382 = vmatmul.mubr.f32.gmra.mrb[0].mxu0 %v4315
    %v4383 = vpop.f32.mrb[0].mxu0
    %v4384 = vadd.f32 %v121, %v4383
    %v4385 = vpop.f32.mrb[0].mxu0
    %4386 = vdwg.mxu0
    %v4389 = vunpack.c.l.s4 1966171168
    %v4390 = vunpack.c.0.s8 %v4389
    %v4391 = vlaneseq
    %v4392 = vshrl.u32 %v4391, 7
    %v4393 = vsub.s32 %v4390, %v4392
    %v4394 = vrot.slane %v4384, %v4393
    %v4395 = vcombine.high %v4394, %v4394
    %v4397 = vunpack.c.l.s4 1966171168
    %v4398 = vunpack.c.0.s8 %v4397
    %v4399 = vlaneseq
    %v4400 = vshrl.u32 %v4399, 7
    %v4401 = vsub.s32 %v4398, %v4400
    %v4402 = vrot.slane %v4394, %v4401
    %v4404 = vunpack.c.l.s4 1966171168
    %v4405 = vunpack.c.0.s8 %v4404
    %v4406 = vlaneseq
    %v4407 = vshrl.u32 %v4406, 7
    %v4408 = vsub.s32 %v4405, %v4407
    %v4409 = vrot.slane %v4395, %v4408
    %v4410 = vlaneseq
    %v4411 = vshrl.u32 %v4410, 7
    %v4412 = vsub.s32 0, %v4411
    %v4413 = vrot.slane %v4402, %v4412
    %v4414 = vlaneseq
    %v4415 = vshrl.u32 %v4414, 7
    %v4416 = vsub.s32 0, %v4415
    %v4417 = vrot.slane %v4409, %v4416
    %v4420 = vadd.f32 %v4413, %v225
    %v4421 = vadd.f32 %v4417, %v226
    %v4422 = vtanh.pop %v4420
    %v4423 = vtanh.pop %v4421
    %v4425 = vsel %vm136, %v4422, 0
    %v4428 = vsel %vm136, %v4423, 0
    %4430 = vmatprep.subr.mxu0 0.0
    %4431 = vmatpush1.msra.mxu0 %v105
    %4432 = vmatprep.subr.mxu0 0.0
    %4433 = vmatpush1.msra.mxu0 %v106
    %4434 = vmatprep.subr.mxu0 0.0
    %4435 = vmatpush1.msra.mxu0 %v107
    %4436 = vmatprep.subr.mxu0 0.0
    %4437 = vmatpush1.msra.mxu0 %v108
    %4438 = vmatprep.subr.mxu0 0.0
    %4439 = vmatpush1.msra.mxu0 0.0
    %4440 = vmatprep.subr.mxu0 0.0
    %4441 = vmatpush1.msra.mxu0 0.0
    %4442 = vmatprep.subr.mxu0 0.0
    %4443 = vmatpush1.msra.mxu0 0.0
    %4444 = vmatprep.subr.mxu0 0.0
    %4445 = vmatpush1.msra.mxu0 0.0
    %4446 = vmatprep.subr.mxu0 0.0
    %4447 = vmatpush1.msra.mxu0 0.0
    %4448 = vmatprep.subr.mxu0 0.0
    %4449 = vmatpush1.msra.mxu0 0.0
    %4450 = vmatprep.subr.mxu0 0.0
    %4451 = vmatpush1.msra.mxu0 0.0
    %4452 = vmatprep.subr.mxu0 0.0
    %4453 = vmatpush1.msra.mxu0 0.0
    %4454 = vmatprep.subr.mxu0 0.0
    %4455 = vmatpush1.msra.mxu0 0.0
    %4456 = vmatprep.subr.mxu0 0.0
    %4457 = vmatpush1.msra.mxu0 0.0
    %4458 = vmatprep.subr.mxu0 0.0
    %4459 = vmatpush1.msra.mxu0 0.0
    %4460 = vmatprep.subr.mxu0 0.0
    %4461 = vmatpush1.msra.mxu0 0.0
    %4462 = vmatprep.subr.mxu0 0.0
    %4463 = vmatpush1.msra.mxu0 0.0
    %4464 = vmatprep.subr.mxu0 0.0
    %4465 = vmatpush1.msra.mxu0 0.0
    %4466 = vmatprep.subr.mxu0 0.0
    %4467 = vmatpush1.msra.mxu0 0.0
    %4468 = vmatprep.subr.mxu0 0.0
    %4469 = vmatpush1.msra.mxu0 0.0
    %4470 = vmatprep.subr.mxu0 0.0
    %4471 = vmatpush1.msra.mxu0 0.0
    %4472 = vmatprep.subr.mxu0 0.0
    %4473 = vmatpush1.msra.mxu0 0.0
    %4474 = vmatprep.subr.mxu0 0.0
    %4475 = vmatpush1.msra.mxu0 0.0
    %4476 = vmatprep.subr.mxu0 0.0
    %4477 = vmatpush1.msra.mxu0 0.0
    %4478 = vmatprep.subr.mxu0 0.0
    %4479 = vmatpush1.msra.mxu0 0.0
    %4480 = vmatprep.subr.mxu0 0.0
    %4481 = vmatpush1.msra.mxu0 0.0
    %4482 = vmatprep.subr.mxu0 0.0
    %4483 = vmatpush1.msra.mxu0 0.0
    %4484 = vmatprep.subr.mxu0 0.0
    %4485 = vmatpush1.msra.mxu0 0.0
    %4486 = vmatprep.subr.mxu0 0.0
    %4487 = vmatpush1.msra.mxu0 0.0
    %4488 = vmatprep.subr.mxu0 0.0
    %4489 = vmatpush1.msra.mxu0 0.0
    %4490 = vmatprep.subr.mxu0 0.0
    %4491 = vmatpush1.msra.mxu0 0.0
    %4492 = vmatprep.subr.mxu0 0.0
    %4493 = vmatpush1.msra.mxu0 0.0
    %4494 = vmatprep.mubr.f32.mxu0 0.0
    %4495 = vmatmul.mubr.f32.gmra.mrb[0].mxu0 %v4425
    %v4496 = vpop.f32.mrb[0].mxu0
    %v4497 = vadd.f32 0.0, %v4496
    %v4498 = vpop.f32.mrb[0].mxu0
    %4499 = vmatprep.mubr.f32.mxu0 0.0
    %4500 = vmatmul.mubr.f32.gmra.mrb[0].mxu0 %v4428
    %v4501 = vpop.f32.mrb[0].mxu0
    %v4502 = vadd.f32 0.0, %v4501
    %v4503 = vpop.f32.mrb[0].mxu0
    %4504 = vdwg.mxu0
    %vm4505 = vcmp.eq.f32.partialorder %v4033, 0.0
    %4508 = vset.pattern.permute.xlu0 0
    %4509 = vperm.xlu0 %4508, %v4497
    %v4510 = vpop.permute.xlu0 %4509
    %4511 = vset.pattern.permute.xlu0 0
    %4512 = vperm.xlu0 %4511, %v4502
    %v4513 = vpop.permute.xlu0 %4512
    %v4514 = vlaneseq
    %v4515 = vshrl.u32 %v4514, 7
    %v4516 = vsub.s32 %v228, %v4515
    %v4517 = vrot.slane %v4510, %v4516
    %v4518 = vlaneseq
    %v4519 = vshrl.u32 %v4518, 7
    %v4520 = vsub.s32 %v228, %v4519
    %v4521 = vrot.slane %v4513, %v4520
    %v4522 = vsel %vm549, %v4521, %v4517
    %v4524 = vsel %vm4505, -1e+30, %v4522
    %v4525 = vsel %vm552, %v4524, -inf
    %4526 = vmax.xlane.f32.xlu0 %v4525
    %v4527 = vpop.xlane.xlu0 %4526
    %v4528 = vsub.f32 %v4524, %v4527
    %v4529 = vmul.f32 %v4528, 1.442695
    %v4530 = vpow.pop %v4529
    %v4531 = vsel %vm552, %v4530, 0.0
    %4532 = vadd.xlane.f32.xlu0 %v4531
    %v4533 = vpop.xlane.xlu0 %4532
    %v4534 = vrcp.pop %v4533
    %v4535 = vmul.f32 %v4530, %v4534
    %v4538 = vunpack.c.l.s4 1966171168
    %v4539 = vunpack.c.0.s8 %v4538
    %v4540 = vlaneseq
    %v4541 = vshrl.u32 %v4540, 7
    %v4542 = vsub.s32 %v4539, %v4541
    %v4543 = vrot.slane %v4535, %v4542
    %v4544 = vcombine.high %v4543, %v4543
    %v4546 = vunpack.c.l.s4 1966171168
    %v4547 = vunpack.c.0.s8 %v4546
    %v4548 = vlaneseq
    %v4549 = vshrl.u32 %v4548, 7
    %v4550 = vsub.s32 %v4547, %v4549
    %v4551 = vrot.slane %v4543, %v4550
    %v4553 = vunpack.c.l.s4 1966171168
    %v4554 = vunpack.c.0.s8 %v4553
    %v4555 = vlaneseq
    %v4556 = vshrl.u32 %v4555, 7
    %v4557 = vsub.s32 %v4554, %v4556
    %v4558 = vrot.slane %v4544, %v4557
    %v4561 = vsel %vm617, %v4551, 0
    %4563 = vmatprep.subr.mxu0 0.0
    %4564 = vmatpush1.msra.mxu0 %v225
    %4565 = vmatprep.subr.mxu0 0.0
    %4566 = vmatpush1.msra.mxu0 0.0
    %4567 = vmatprep.subr.mxu0 0.0
    %4568 = vmatpush1.msra.mxu0 0.0
    %4569 = vmatprep.subr.mxu0 0.0
    %4570 = vmatpush1.msra.mxu0 0.0
    %4571 = vmatprep.subr.mxu0 0.0
    %4572 = vmatpush1.msra.mxu0 0.0
    %4573 = vmatprep.subr.mxu0 0.0
    %4574 = vmatpush1.msra.mxu0 0.0
    %4575 = vmatprep.subr.mxu0 0.0
    %4576 = vmatpush1.msra.mxu0 0.0
    %4577 = vmatprep.subr.mxu0 0.0
    %4578 = vmatpush1.msra.mxu0 0.0
    %4579 = vmatprep.subr.mxu0 0.0
    %4580 = vmatpush1.msra.mxu0 0.0
    %4581 = vmatprep.subr.mxu0 0.0
    %4582 = vmatpush1.msra.mxu0 0.0
    %4583 = vmatprep.subr.mxu0 0.0
    %4584 = vmatpush1.msra.mxu0 0.0
    %4585 = vmatprep.subr.mxu0 0.0
    %4586 = vmatpush1.msra.mxu0 0.0
    %4587 = vmatprep.subr.mxu0 0.0
    %4588 = vmatpush1.msra.mxu0 0.0
    %4589 = vmatprep.subr.mxu0 0.0
    %4590 = vmatpush1.msra.mxu0 0.0
    %4591 = vmatprep.subr.mxu0 0.0
    %4592 = vmatpush1.msra.mxu0 0.0
    %4593 = vmatprep.subr.mxu0 0.0
    %4594 = vmatpush1.msra.mxu0 0.0
    %4595 = vmatprep.subr.mxu0 0.0
    %4596 = vmatpush1.msra.mxu0 0.0
    %4597 = vmatprep.subr.mxu0 0.0
    %4598 = vmatpush1.msra.mxu0 0.0
    %4599 = vmatprep.subr.mxu0 0.0
    %4600 = vmatpush1.msra.mxu0 0.0
    %4601 = vmatprep.subr.mxu0 0.0
    %4602 = vmatpush1.msra.mxu0 0.0
    %4603 = vmatprep.subr.mxu0 0.0
    %4604 = vmatpush1.msra.mxu0 0.0
    %4605 = vmatprep.subr.mxu0 0.0
    %4606 = vmatpush1.msra.mxu0 0.0
    %4607 = vmatprep.subr.mxu0 0.0
    %4608 = vmatpush1.msra.mxu0 0.0
    %4609 = vmatprep.subr.mxu0 0.0
    %4610 = vmatpush1.msra.mxu0 0.0
    %4611 = vmatprep.subr.mxu0 0.0
    %4612 = vmatpush1.msra.mxu0 0.0
    %4613 = vmatprep.subr.mxu0 0.0
    %4614 = vmatpush1.msra.mxu0 0.0
    %4615 = vmatprep.subr.mxu0 0.0
    %4616 = vmatpush1.msra.mxu0 0.0
    %4617 = vmatprep.subr.mxu0 0.0
    %4618 = vmatpush1.msra.mxu0 0.0
    %4619 = vmatprep.subr.mxu0 0.0
    %4620 = vmatpush1.msra.mxu0 0.0
    %4621 = vmatprep.subr.mxu0 0.0
    %4622 = vmatpush1.msra.mxu0 0.0
    %4623 = vmatprep.subr.mxu0 0.0
    %4624 = vmatpush1.msra.mxu0 0.0
    %4625 = vmatprep.subr.mxu0 0.0
    %4626 = vmatpush1.msra.mxu0 0.0
    %4627 = vmatprep.mubr.f32.mxu0 0.0
    %4628 = vmatmul.mubr.f32.gmra.mrb[0].mxu0 %v4561
    %v4629 = vpop.f32.mrb[0].mxu0
    %v4630 = vadd.f32 0.0, %v4629
    %v4631 = vpop.f32.mrb[0].mxu0
    %4632 = vdwg.mxu0
    %v4633 = vsel %vm617, %v4558, 0
    %4635 = vmatprep.subr.mxu0 0.0
    %4636 = vmatpush1.msra.mxu0 %v226
    %4637 = vmatprep.subr.mxu0 0.0
    %4638 = vmatpush1.msra.mxu0 0.0
    %4639 = vmatprep.subr.mxu0 0.0
    %4640 = vmatpush1.msra.mxu0 0.0
    %4641 = vmatprep.subr.mxu0 0.0
    %4642 = vmatpush1.msra.mxu0 0.0
    %4643 = vmatprep.subr.mxu0 0.0
    %4644 = vmatpush1.msra.mxu0 0.0
    %4645 = vmatprep.subr.mxu0 0.0
    %4646 = vmatpush1.msra.mxu0 0.0
    %4647 = vmatprep.subr.mxu0 0.0
    %4648 = vmatpush1.msra.mxu0 0.0
    %4649 = vmatprep.subr.mxu0 0.0
    %4650 = vmatpush1.msra.mxu0 0.0
    %4651 = vmatprep.subr.mxu0 0.0
    %4652 = vmatpush1.msra.mxu0 0.0
    %4653 = vmatprep.subr.mxu0 0.0
    %4654 = vmatpush1.msra.mxu0 0.0
    %4655 = vmatprep.subr.mxu0 0.0
    %4656 = vmatpush1.msra.mxu0 0.0
    %4657 = vmatprep.subr.mxu0 0.0
    %4658 = vmatpush1.msra.mxu0 0.0
    %4659 = vmatprep.subr.mxu0 0.0
    %4660 = vmatpush1.msra.mxu0 0.0
    %4661 = vmatprep.subr.mxu0 0.0
    %4662 = vmatpush1.msra.mxu0 0.0
    %4663 = vmatprep.subr.mxu0 0.0
    %4664 = vmatpush1.msra.mxu0 0.0
    %4665 = vmatprep.subr.mxu0 0.0
    %4666 = vmatpush1.msra.mxu0 0.0
    %4667 = vmatprep.subr.mxu0 0.0
    %4668 = vmatpush1.msra.mxu0 0.0
    %4669 = vmatprep.subr.mxu0 0.0
    %4670 = vmatpush1.msra.mxu0 0.0
    %4671 = vmatprep.subr.mxu0 0.0
    %4672 = vmatpush1.msra.mxu0 0.0
    %4673 = vmatprep.subr.mxu0 0.0
    %4674 = vmatpush1.msra.mxu0 0.0
    %4675 = vmatprep.subr.mxu0 0.0
    %4676 = vmatpush1.msra.mxu0 0.0
    %4677 = vmatprep.subr.mxu0 0.0
    %4678 = vmatpush1.msra.mxu0 0.0
    %4679 = vmatprep.subr.mxu0 0.0
    %4680 = vmatpush1.msra.mxu0 0.0
    %4681 = vmatprep.subr.mxu0 0.0
    %4682 = vmatpush1.msra.mxu0 0.0
    %4683 = vmatprep.subr.mxu0 0.0
    %4684 = vmatpush1.msra.mxu0 0.0
    %4685 = vmatprep.subr.mxu0 0.0
    %4686 = vmatpush1.msra.mxu0 0.0
    %4687 = vmatprep.subr.mxu0 0.0
    %4688 = vmatpush1.msra.mxu0 0.0
    %4689 = vmatprep.subr.mxu0 0.0
    %4690 = vmatpush1.msra.mxu0 0.0
    %4691 = vmatprep.subr.mxu0 0.0
    %4692 = vmatpush1.msra.mxu0 0.0
    %4693 = vmatprep.subr.mxu0 0.0
    %4694 = vmatpush1.msra.mxu0 0.0
    %4695 = vmatprep.subr.mxu0 0.0
    %4696 = vmatpush1.msra.mxu0 0.0
    %4697 = vmatprep.subr.mxu0 0.0
    %4698 = vmatpush1.msra.mxu0 0.0
    %4699 = vmatprep.mubr.f32.mxu0 0.0
    %4700 = vmatmul.mubr.f32.gmra.mrb[0].mxu0 %v4633
    %v4701 = vpop.f32.mrb[0].mxu0
    %v4702 = vadd.f32 0.0, %v4701
    %v4703 = vpop.f32.mrb[0].mxu0
    %4704 = vdwg.mxu0
    %v4707 = vrot.slane %v4702, 7
    %v4708 = vsel %vm549, %v4707, %v4630
    %4710 = vrot.lane.b32.xlu0 %v4311, 64
    %v4711 = vpop.permute.xlu0 %4710
    %v4713 = vsel %vm136, %v4708, %v4711
    %v4715 = vsel %vm779, %v4713, 0
    %4717 = vmatprep.subr.mxu0 0.0
    %4718 = vmatpush1.msra.mxu0 %v93
    %4719 = vmatprep.subr.mxu0 0.0
    %4720 = vmatpush1.msra.mxu0 %v94
    %4721 = vmatprep.subr.mxu0 0.0
    %4722 = vmatpush1.msra.mxu0 %v95
    %4723 = vmatprep.subr.mxu0 0.0
    %4724 = vmatpush1.msra.mxu0 %v96
    %4725 = vmatprep.subr.mxu0 0.0
    %4726 = vmatpush1.msra.mxu0 %v97
    %4727 = vmatprep.subr.mxu0 0.0
    %4728 = vmatpush1.msra.mxu0 %v98
    %4729 = vmatprep.subr.mxu0 0.0
    %4730 = vmatpush1.msra.mxu0 %v99
    %4731 = vmatprep.subr.mxu0 0.0
    %4732 = vmatpush1.msra.mxu0 %v100
    %4733 = vmatprep.subr.mxu0 0.0
    %4734 = vmatpush1.msra.mxu0 0.0
    %4735 = vmatprep.subr.mxu0 0.0
    %4736 = vmatpush1.msra.mxu0 0.0
    %4737 = vmatprep.subr.mxu0 0.0
    %4738 = vmatpush1.msra.mxu0 0.0
    %4739 = vmatprep.subr.mxu0 0.0
    %4740 = vmatpush1.msra.mxu0 0.0
    %4741 = vmatprep.subr.mxu0 0.0
    %4742 = vmatpush1.msra.mxu0 0.0
    %4743 = vmatprep.subr.mxu0 0.0
    %4744 = vmatpush1.msra.mxu0 0.0
    %4745 = vmatprep.subr.mxu0 0.0
    %4746 = vmatpush1.msra.mxu0 0.0
    %4747 = vmatprep.subr.mxu0 0.0
    %4748 = vmatpush1.msra.mxu0 0.0
    %4749 = vmatprep.subr.mxu0 0.0
    %4750 = vmatpush1.msra.mxu0 0.0
    %4751 = vmatprep.subr.mxu0 0.0
    %4752 = vmatpush1.msra.mxu0 0.0
    %4753 = vmatprep.subr.mxu0 0.0
    %4754 = vmatpush1.msra.mxu0 0.0
    %4755 = vmatprep.subr.mxu0 0.0
    %4756 = vmatpush1.msra.mxu0 0.0
    %4757 = vmatprep.subr.mxu0 0.0
    %4758 = vmatpush1.msra.mxu0 0.0
    %4759 = vmatprep.subr.mxu0 0.0
    %4760 = vmatpush1.msra.mxu0 0.0
    %4761 = vmatprep.subr.mxu0 0.0
    %4762 = vmatpush1.msra.mxu0 0.0
    %4763 = vmatprep.subr.mxu0 0.0
    %4764 = vmatpush1.msra.mxu0 0.0
    %4765 = vmatprep.subr.mxu0 0.0
    %4766 = vmatpush1.msra.mxu0 0.0
    %4767 = vmatprep.subr.mxu0 0.0
    %4768 = vmatpush1.msra.mxu0 0.0
    %4769 = vmatprep.subr.mxu0 0.0
    %4770 = vmatpush1.msra.mxu0 0.0
    %4771 = vmatprep.subr.mxu0 0.0
    %4772 = vmatpush1.msra.mxu0 0.0
    %4773 = vmatprep.subr.mxu0 0.0
    %4774 = vmatpush1.msra.mxu0 0.0
    %4775 = vmatprep.subr.mxu0 0.0
    %4776 = vmatpush1.msra.mxu0 0.0
    %4777 = vmatprep.subr.mxu0 0.0
    %4778 = vmatpush1.msra.mxu0 0.0
    %4779 = vmatprep.subr.mxu0 0.0
    %4780 = vmatpush1.msra.mxu0 0.0
    %4781 = vmatprep.mubr.f32.mxu0 0.0
    %4782 = vmatmul.mubr.f32.gmra.mrb[0].mxu0 %v4715
    %v4783 = vpop.f32.mrb[0].mxu0
    %v4784 = vadd.f32 %v128, %v4783
    %v4785 = vpop.f32.mrb[0].mxu0
    %4786 = vdwg.mxu0
    %v4787 = vtanh.pop %v4784
    %v4788 = vmul.f32 %v4535, %v4033
    %v4789 = vsel %vm552, %v4788, -inf
    %4790 = vmax.xlane.f32.xlu0 %v4789
    %v4791 = vpop.xlane.xlu0 %4790
    %vm4792 = vcmp.eq.f32.partialorder %v4788, %v4791
    %v4793 = vsel %vm4792, %v228, 8
    %v4794 = vsel %vm552, %v4793, 2147483647
    %v4795 = vand.u32 %v4794, 65535
    %v4796 = vshra.s32 %v4794, 16
    %v4797 = vcvt.s32.f32 %v4795
    %v4798 = vcvt.s32.f32 %v4796
    %4799 = vmin.xlane.f32.xlu0 %v4798
    %v4800 = vpop.xlane.xlu0 %4799
    %vm4801 = vcmp.eq.f32.partialorder %v4798, %v4800
    %v4802 = vsel %vm4801, %v4797, inf
    %4803 = vmin.xlane.f32.xlu0 %v4802
    %v4804 = vpop.xlane.xlu0 %4803
    %v4805 = vcvt.f32.s32 %v4804
    %v4806 = vcvt.f32.s32 %v4800
    %v4807 = vshll.u32 %v4806, 16
    %v4808 = vadd.s32 %v4807, %v4805
    %vm4809 = vcmp.eq.s32.totalorder %v228, %v4808
    %v4810 = vsel %vm4809, 1, 0
    %v4811 = vcvt.s32.f32 %v4810
    %v4812 = vsub.f32 1.0, %v4811
    %v4813 = vmul.f32 %v4033, %v4812
    %v4816 = vunpack.c.l.s4 1966171168
    %v4817 = vunpack.c.0.s8 %v4816
    %v4818 = vlaneseq
    %v4819 = vshrl.u32 %v4818, 7
    %v4820 = vsub.s32 %v4817, %v4819
    %v4821 = vrot.slane %v4811, %v4820
    %v4822 = vcombine.high %v4821, %v4821
    %v4824 = vunpack.c.l.s4 1966171168
    %v4825 = vunpack.c.0.s8 %v4824
    %v4826 = vlaneseq
    %v4827 = vshrl.u32 %v4826, 7
    %v4828 = vsub.s32 %v4825, %v4827
    %v4829 = vrot.slane %v4821, %v4828
    %v4831 = vunpack.c.l.s4 1966171168
    %v4832 = vunpack.c.0.s8 %v4831
    %v4833 = vlaneseq
    %v4834 = vshrl.u32 %v4833, 7
    %v4835 = vsub.s32 %v4832, %v4834
    %v4836 = vrot.slane %v4822, %v4835
    %v4837 = vsel %vm617, %v4829, 0
    %4839 = vmatprep.subr.mxu0 0.0
    %4840 = vmatpush1.msra.mxu0 %v82
    %4841 = vmatprep.subr.mxu0 0.0
    %4842 = vmatpush1.msra.mxu0 0.0
    %4843 = vmatprep.subr.mxu0 0.0
    %4844 = vmatpush1.msra.mxu0 0.0
    %4845 = vmatprep.subr.mxu0 0.0
    %4846 = vmatpush1.msra.mxu0 0.0
    %4847 = vmatprep.subr.mxu0 0.0
    %4848 = vmatpush1.msra.mxu0 0.0
    %4849 = vmatprep.subr.mxu0 0.0
    %4850 = vmatpush1.msra.mxu0 0.0
    %4851 = vmatprep.subr.mxu0 0.0
    %4852 = vmatpush1.msra.mxu0 0.0
    %4853 = vmatprep.subr.mxu0 0.0
    %4854 = vmatpush1.msra.mxu0 0.0
    %4855 = vmatprep.subr.mxu0 0.0
    %4856 = vmatpush1.msra.mxu0 0.0
    %4857 = vmatprep.subr.mxu0 0.0
    %4858 = vmatpush1.msra.mxu0 0.0
    %4859 = vmatprep.subr.mxu0 0.0
    %4860 = vmatpush1.msra.mxu0 0.0
    %4861 = vmatprep.subr.mxu0 0.0
    %4862 = vmatpush1.msra.mxu0 0.0
    %4863 = vmatprep.subr.mxu0 0.0
    %4864 = vmatpush1.msra.mxu0 0.0
    %4865 = vmatprep.subr.mxu0 0.0
    %4866 = vmatpush1.msra.mxu0 0.0
    %4867 = vmatprep.subr.mxu0 0.0
    %4868 = vmatpush1.msra.mxu0 0.0
    %4869 = vmatprep.subr.mxu0 0.0
    %4870 = vmatpush1.msra.mxu0 0.0
    %4871 = vmatprep.subr.mxu0 0.0
    %4872 = vmatpush1.msra.mxu0 0.0
    %4873 = vmatprep.subr.mxu0 0.0
    %4874 = vmatpush1.msra.mxu0 0.0
    %4875 = vmatprep.subr.mxu0 0.0
    %4876 = vmatpush1.msra.mxu0 0.0
    %4877 = vmatprep.subr.mxu0 0.0
    %4878 = vmatpush1.msra.mxu0 0.0
    %4879 = vmatprep.subr.mxu0 0.0
    %4880 = vmatpush1.msra.mxu0 0.0
    %4881 = vmatprep.subr.mxu0 0.0
    %4882 = vmatpush1.msra.mxu0 0.0
    %4883 = vmatprep.subr.mxu0 0.0
    %4884 = vmatpush1.msra.mxu0 0.0
    %4885 = vmatprep.subr.mxu0 0.0
    %4886 = vmatpush1.msra.mxu0 0.0
    %4887 = vmatprep.subr.mxu0 0.0
    %4888 = vmatpush1.msra.mxu0 0.0
    %4889 = vmatprep.subr.mxu0 0.0
    %4890 = vmatpush1.msra.mxu0 0.0
    %4891 = vmatprep.subr.mxu0 0.0
    %4892 = vmatpush1.msra.mxu0 0.0
    %4893 = vmatprep.subr.mxu0 0.0
    %4894 = vmatpush1.msra.mxu0 0.0
    %4895 = vmatprep.subr.mxu0 0.0
    %4896 = vmatpush1.msra.mxu0 0.0
    %4897 = vmatprep.subr.mxu0 0.0
    %4898 = vmatpush1.msra.mxu0 0.0
    %4899 = vmatprep.subr.mxu0 0.0
    %4900 = vmatpush1.msra.mxu0 0.0
    %4901 = vmatprep.subr.mxu0 0.0
    %4902 = vmatpush1.msra.mxu0 0.0
    %4903 = vmatprep.mubr.f32.mxu0 0.0
    %4904 = vmatmul.mubr.f32.gmra.mrb[0].mxu0 %v4837
    %v4905 = vpop.f32.mrb[0].mxu0
    %v4906 = vadd.f32 0.0, %v4905
    %v4907 = vpop.f32.mrb[0].mxu0
    %4908 = vdwg.mxu0
    %v4909 = vsel %vm617, %v4836, 0
    %4911 = vmatprep.subr.mxu0 0.0
    %4912 = vmatpush1.msra.mxu0 %v83
    %4913 = vmatprep.subr.mxu0 0.0
    %4914 = vmatpush1.msra.mxu0 0.0
    %4915 = vmatprep.subr.mxu0 0.0
    %4916 = vmatpush1.msra.mxu0 0.0
    %4917 = vmatprep.subr.mxu0 0.0
    %4918 = vmatpush1.msra.mxu0 0.0
    %4919 = vmatprep.subr.mxu0 0.0
    %4920 = vmatpush1.msra.mxu0 0.0
    %4921 = vmatprep.subr.mxu0 0.0
    %4922 = vmatpush1.msra.mxu0 0.0
    %4923 = vmatprep.subr.mxu0 0.0
    %4924 = vmatpush1.msra.mxu0 0.0
    %4925 = vmatprep.subr.mxu0 0.0
    %4926 = vmatpush1.msra.mxu0 0.0
    %4927 = vmatprep.subr.mxu0 0.0
    %4928 = vmatpush1.msra.mxu0 0.0
    %4929 = vmatprep.subr.mxu0 0.0
    %4930 = vmatpush1.msra.mxu0 0.0
    %4931 = vmatprep.subr.mxu0 0.0
    %4932 = vmatpush1.msra.mxu0 0.0
    %4933 = vmatprep.subr.mxu0 0.0
    %4934 = vmatpush1.msra.mxu0 0.0
    %4935 = vmatprep.subr.mxu0 0.0
    %4936 = vmatpush1.msra.mxu0 0.0
    %4937 = vmatprep.subr.mxu0 0.0
    %4938 = vmatpush1.msra.mxu0 0.0
    %4939 = vmatprep.subr.mxu0 0.0
    %4940 = vmatpush1.msra.mxu0 0.0
    %4941 = vmatprep.subr.mxu0 0.0
    %4942 = vmatpush1.msra.mxu0 0.0
    %4943 = vmatprep.subr.mxu0 0.0
    %4944 = vmatpush1.msra.mxu0 0.0
    %4945 = vmatprep.subr.mxu0 0.0
    %4946 = vmatpush1.msra.mxu0 0.0
    %4947 = vmatprep.subr.mxu0 0.0
    %4948 = vmatpush1.msra.mxu0 0.0
    %4949 = vmatprep.subr.mxu0 0.0
    %4950 = vmatpush1.msra.mxu0 0.0
    %4951 = vmatprep.subr.mxu0 0.0
    %4952 = vmatpush1.msra.mxu0 0.0
    %4953 = vmatprep.subr.mxu0 0.0
    %4954 = vmatpush1.msra.mxu0 0.0
    %4955 = vmatprep.subr.mxu0 0.0
    %4956 = vmatpush1.msra.mxu0 0.0
    %4957 = vmatprep.subr.mxu0 0.0
    %4958 = vmatpush1.msra.mxu0 0.0
    %4959 = vmatprep.subr.mxu0 0.0
    %4960 = vmatpush1.msra.mxu0 0.0
    %4961 = vmatprep.subr.mxu0 0.0
    %4962 = vmatpush1.msra.mxu0 0.0
    %4963 = vmatprep.subr.mxu0 0.0
    %4964 = vmatpush1.msra.mxu0 0.0
    %4965 = vmatprep.subr.mxu0 0.0
    %4966 = vmatpush1.msra.mxu0 0.0
    %4967 = vmatprep.subr.mxu0 0.0
    %4968 = vmatpush1.msra.mxu0 0.0
    %4969 = vmatprep.subr.mxu0 0.0
    %4970 = vmatpush1.msra.mxu0 0.0
    %4971 = vmatprep.subr.mxu0 0.0
    %4972 = vmatpush1.msra.mxu0 0.0
    %4973 = vmatprep.subr.mxu0 0.0
    %4974 = vmatpush1.msra.mxu0 0.0
    %4975 = vmatprep.mubr.f32.mxu0 0.0
    %4976 = vmatmul.mubr.f32.gmra.mrb[0].mxu0 %v4909
    %v4977 = vpop.f32.mrb[0].mxu0
    %v4978 = vadd.f32 0.0, %v4977
    %v4979 = vpop.f32.mrb[0].mxu0
    %4980 = vdwg.mxu0
    %4981 = vst.msk [vmem:[#allocation7 + $0x5] sm:$0x1] %vm1080, %v4551
    %4982 = vst.msk [vmem:[#allocation7 + $0xd] sm:$0x1] %vm1080, %v4558
    %vm4983 = vcmask 42024
    %4984 = vst.msk [vmem:[#allocation8] sm:$0x3] %vm4983, %v4808
    %v4987 = vrot.slane %v4978, 7
    %v4988 = vsel %vm549, %v4987, %v4906
    %4991 = vrot.lane.b32.xlu0 %v4787, 16
    %v4992 = vpop.permute.xlu0 %4991
    %v4994 = vsel %vm233, %v4988, %v4992
    %v4996 = vsel %vm235, %v4994, 0
    %4998 = vmatprep.subr.mxu0 0.0
    %4999 = vmatpush1.msra.mxu0 %v87
    %5000 = vmatprep.subr.mxu0 0.0
    %5001 = vmatpush1.msra.mxu0 %v88
    %5002 = vmatprep.subr.mxu0 0.0
    %5003 = vmatpush1.msra.mxu0 %v89
    %5004 = vmatprep.subr.mxu0 0.0
    %5005 = vmatpush1.msra.mxu0 %v90
    %5006 = vmatprep.subr.mxu0 0.0
    %5007 = vmatpush1.msra.mxu0 %v91
    %5008 = vmatprep.subr.mxu0 0.0
    %5009 = vmatpush1.msra.mxu0 %v92
    %5010 = vmatprep.subr.mxu0 0.0
    %5011 = vmatpush1.msra.mxu0 0.0
    %5012 = vmatprep.subr.mxu0 0.0
    %5013 = vmatpush1.msra.mxu0 0.0
    %5014 = vmatprep.subr.mxu0 0.0
    %5015 = vmatpush1.msra.mxu0 0.0
    %5016 = vmatprep.subr.mxu0 0.0
    %5017 = vmatpush1.msra.mxu0 0.0
    %5018 = vmatprep.subr.mxu0 0.0
    %5019 = vmatpush1.msra.mxu0 0.0
    %5020 = vmatprep.subr.mxu0 0.0
    %5021 = vmatpush1.msra.mxu0 0.0
    %5022 = vmatprep.subr.mxu0 0.0
    %5023 = vmatpush1.msra.mxu0 0.0
    %5024 = vmatprep.subr.mxu0 0.0
    %5025 = vmatpush1.msra.mxu0 0.0
    %5026 = vmatprep.subr.mxu0 0.0
    %5027 = vmatpush1.msra.mxu0 0.0
    %5028 = vmatprep.subr.mxu0 0.0
    %5029 = vmatpush1.msra.mxu0 0.0
    %5030 = vmatprep.subr.mxu0 0.0
    %5031 = vmatpush1.msra.mxu0 0.0
    %5032 = vmatprep.subr.mxu0 0.0
    %5033 = vmatpush1.msra.mxu0 0.0
    %5034 = vmatprep.subr.mxu0 0.0
    %5035 = vmatpush1.msra.mxu0 0.0
    %5036 = vmatprep.subr.mxu0 0.0
    %5037 = vmatpush1.msra.mxu0 0.0
    %5038 = vmatprep.subr.mxu0 0.0
    %5039 = vmatpush1.msra.mxu0 0.0
    %5040 = vmatprep.subr.mxu0 0.0
    %5041 = vmatpush1.msra.mxu0 0.0
    %5042 = vmatprep.subr.mxu0 0.0
    %5043 = vmatpush1.msra.mxu0 0.0
    %5044 = vmatprep.subr.mxu0 0.0
    %5045 = vmatpush1.msra.mxu0 0.0
    %5046 = vmatprep.subr.mxu0 0.0
    %5047 = vmatpush1.msra.mxu0 0.0
    %5048 = vmatprep.subr.mxu0 0.0
    %5049 = vmatpush1.msra.mxu0 0.0
    %5050 = vmatprep.subr.mxu0 0.0
    %5051 = vmatpush1.msra.mxu0 0.0
    %5052 = vmatprep.subr.mxu0 0.0
    %5053 = vmatpush1.msra.mxu0 0.0
    %5054 = vmatprep.subr.mxu0 0.0
    %5055 = vmatpush1.msra.mxu0 0.0
    %5056 = vmatprep.subr.mxu0 0.0
    %5057 = vmatpush1.msra.mxu0 0.0
    %5058 = vmatprep.subr.mxu0 0.0
    %5059 = vmatpush1.msra.mxu0 0.0
    %5060 = vmatprep.subr.mxu0 0.0
    %5061 = vmatpush1.msra.mxu0 0.0
    %5062 = vmatprep.mubr.f32.mxu0 0.0
    %5063 = vmatmul.mubr.f32.gmra.mrb[0].mxu0 %v4996
    %v5064 = vpop.f32.mrb[0].mxu0
    %v5065 = vadd.f32 %v114, %v5064
    %v5066 = vpop.f32.mrb[0].mxu0
    %5067 = vdwg.mxu0
    %v5068 = vxor.u32 %v5065, 2147483648
    %v5069 = vmul.f32 %v5068, 1.442695
    %v5070 = vpow.pop %v5069
    %v5071 = vadd.f32 %v5070, 1.0
    %v5072 = vrcp.pop %v5071
    %v5073 = vmul.f32 1.0, %v5072
    %v5074 = vtanh.pop %v5065
    %v5075 = vmul.f32 %v5073, %v4305
    %5077 = vrot.lane.b32.xlu0 %v5074, 64
    %v5078 = vpop.permute.xlu0 %5077
    %v5080 = vmul.f32 %v5073, %v5078
    %5082 = vrot.lane.b32.xlu0 %v5080, 32
    %v5083 = vpop.permute.xlu0 %5082
    %v5085 = vadd.f32 %v5075, %v5083
    %v5086 = vtanh.pop %v5085
    %5088 = vrot.lane.b32.xlu0 %v5086, 64
    %v5089 = vpop.permute.xlu0 %5088
    %v5091 = vmul.f32 %v5073, %v5089
    %5093 = vrot.lane.b32.xlu0 %v5091, 32
    %v5094 = vpop.permute.xlu0 %5093
    %v5095 = vsel %vm136, %v5094, 0
    %5097 = vmatprep.subr.mxu0 0.0
    %5098 = vmatpush1.msra.mxu0 %v101
    %5099 = vmatprep.subr.mxu0 0.0
    %5100 = vmatpush1.msra.mxu0 %v102
    %5101 = vmatprep.subr.mxu0 0.0
    %5102 = vmatpush1.msra.mxu0 %v103
    %5103 = vmatprep.subr.mxu0 0.0
    %5104 = vmatpush1.msra.mxu0 %v104
    %5105 = vmatprep.subr.mxu0 0.0
    %5106 = vmatpush1.msra.mxu0 0.0
    %5107 = vmatprep.subr.mxu0 0.0
    %5108 = vmatpush1.msra.mxu0 0.0
    %5109 = vmatprep.subr.mxu0 0.0
    %5110 = vmatpush1.msra.mxu0 0.0
    %5111 = vmatprep.subr.mxu0 0.0
    %5112 = vmatpush1.msra.mxu0 0.0
    %5113 = vmatprep.subr.mxu0 0.0
    %5114 = vmatpush1.msra.mxu0 0.0
    %5115 = vmatprep.subr.mxu0 0.0
    %5116 = vmatpush1.msra.mxu0 0.0
    %5117 = vmatprep.subr.mxu0 0.0
    %5118 = vmatpush1.msra.mxu0 0.0
    %5119 = vmatprep.subr.mxu0 0.0
    %5120 = vmatpush1.msra.mxu0 0.0
    %5121 = vmatprep.subr.mxu0 0.0
    %5122 = vmatpush1.msra.mxu0 0.0
    %5123 = vmatprep.subr.mxu0 0.0
    %5124 = vmatpush1.msra.mxu0 0.0
    %5125 = vmatprep.subr.mxu0 0.0
    %5126 = vmatpush1.msra.mxu0 0.0
    %5127 = vmatprep.subr.mxu0 0.0
    %5128 = vmatpush1.msra.mxu0 0.0
    %5129 = vmatprep.subr.mxu0 0.0
    %5130 = vmatpush1.msra.mxu0 0.0
    %5131 = vmatprep.subr.mxu0 0.0
    %5132 = vmatpush1.msra.mxu0 0.0
    %5133 = vmatprep.subr.mxu0 0.0
    %5134 = vmatpush1.msra.mxu0 0.0
    %5135 = vmatprep.subr.mxu0 0.0
    %5136 = vmatpush1.msra.mxu0 0.0
    %5137 = vmatprep.subr.mxu0 0.0
    %5138 = vmatpush1.msra.mxu0 0.0
    %5139 = vmatprep.subr.mxu0 0.0
    %5140 = vmatpush1.msra.mxu0 0.0
    %5141 = vmatprep.subr.mxu0 0.0
    %5142 = vmatpush1.msra.mxu0 0.0
    %5143 = vmatprep.subr.mxu0 0.0
    %5144 = vmatpush1.msra.mxu0 0.0
    %5145 = vmatprep.subr.mxu0 0.0
    %5146 = vmatpush1.msra.mxu0 0.0
    %5147 = vmatprep.subr.mxu0 0.0
    %5148 = vmatpush1.msra.mxu0 0.0
    %5149 = vmatprep.subr.mxu0 0.0
    %5150 = vmatpush1.msra.mxu0 0.0
    %5151 = vmatprep.subr.mxu0 0.0
    %5152 = vmatpush1.msra.mxu0 0.0
    %5153 = vmatprep.subr.mxu0 0.0
    %5154 = vmatpush1.msra.mxu0 0.0
    %5155 = vmatprep.subr.mxu0 0.0
    %5156 = vmatpush1.msra.mxu0 0.0
    %5157 = vmatprep.subr.mxu0 0.0
    %5158 = vmatpush1.msra.mxu0 0.0
    %5159 = vmatprep.subr.mxu0 0.0
    %5160 = vmatpush1.msra.mxu0 0.0
    %5161 = vmatprep.mubr.f32.mxu0 0.0
    %5162 = vmatmul.mubr.f32.gmra.mrb[0].mxu0 %v5095
    %v5163 = vpop.f32.mrb[0].mxu0
    %v5164 = vadd.f32 %v121, %v5163
    %v5165 = vpop.f32.mrb[0].mxu0
    %5166 = vdwg.mxu0
    %v5169 = vunpack.c.l.s4 1966171168
    %v5170 = vunpack.c.0.s8 %v5169
    %v5171 = vlaneseq
    %v5172 = vshrl.u32 %v5171, 7
    %v5173 = vsub.s32 %v5170, %v5172
    %v5174 = vrot.slane %v5164, %v5173
    %v5175 = vcombine.high %v5174, %v5174
    %v5177 = vunpack.c.l.s4 1966171168
    %v5178 = vunpack.c.0.s8 %v5177
    %v5179 = vlaneseq
    %v5180 = vshrl.u32 %v5179, 7
    %v5181 = vsub.s32 %v5178, %v5180
    %v5182 = vrot.slane %v5174, %v5181
    %v5184 = vunpack.c.l.s4 1966171168
    %v5185 = vunpack.c.0.s8 %v5184
    %v5186 = vlaneseq
    %v5187 = vshrl.u32 %v5186, 7
    %v5188 = vsub.s32 %v5185, %v5187
    %v5189 = vrot.slane %v5175, %v5188
    %v5190 = vlaneseq
    %v5191 = vshrl.u32 %v5190, 7
    %v5192 = vsub.s32 0, %v5191
    %v5193 = vrot.slane %v5182, %v5192
    %v5194 = vlaneseq
    %v5195 = vshrl.u32 %v5194, 7
    %v5196 = vsub.s32 0, %v5195
    %v5197 = vrot.slane %v5189, %v5196
    %v5200 = vadd.f32 %v5193, %v225
    %v5201 = vadd.f32 %v5197, %v226
    %v5202 = vtanh.pop %v5200
    %v5203 = vtanh.pop %v5201
    %v5205 = vsel %vm136, %v5202, 0
    %v5208 = vsel %vm136, %v5203, 0
    %5210 = vmatprep.subr.mxu0 0.0
    %5211 = vmatpush1.msra.mxu0 %v105
    %5212 = vmatprep.subr.mxu0 0.0
    %5213 = vmatpush1.msra.mxu0 %v106
    %5214 = vmatprep.subr.mxu0 0.0
    %5215 = vmatpush1.msra.mxu0 %v107
    %5216 = vmatprep.subr.mxu0 0.0
    %5217 = vmatpush1.msra.mxu0 %v108
    %5218 = vmatprep.subr.mxu0 0.0
    %5219 = vmatpush1.msra.mxu0 0.0
    %5220 = vmatprep.subr.mxu0 0.0
    %5221 = vmatpush1.msra.mxu0 0.0
    %5222 = vmatprep.subr.mxu0 0.0
    %5223 = vmatpush1.msra.mxu0 0.0
    %5224 = vmatprep.subr.mxu0 0.0
    %5225 = vmatpush1.msra.mxu0 0.0
    %5226 = vmatprep.subr.mxu0 0.0
    %5227 = vmatpush1.msra.mxu0 0.0
    %5228 = vmatprep.subr.mxu0 0.0
    %5229 = vmatpush1.msra.mxu0 0.0
    %5230 = vmatprep.subr.mxu0 0.0
    %5231 = vmatpush1.msra.mxu0 0.0
    %5232 = vmatprep.subr.mxu0 0.0
    %5233 = vmatpush1.msra.mxu0 0.0
    %5234 = vmatprep.subr.mxu0 0.0
    %5235 = vmatpush1.msra.mxu0 0.0
    %5236 = vmatprep.subr.mxu0 0.0
    %5237 = vmatpush1.msra.mxu0 0.0
    %5238 = vmatprep.subr.mxu0 0.0
    %5239 = vmatpush1.msra.mxu0 0.0
    %5240 = vmatprep.subr.mxu0 0.0
    %5241 = vmatpush1.msra.mxu0 0.0
    %5242 = vmatprep.subr.mxu0 0.0
    %5243 = vmatpush1.msra.mxu0 0.0
    %5244 = vmatprep.subr.mxu0 0.0
    %5245 = vmatpush1.msra.mxu0 0.0
    %5246 = vmatprep.subr.mxu0 0.0
    %5247 = vmatpush1.msra.mxu0 0.0
    %5248 = vmatprep.subr.mxu0 0.0
    %5249 = vmatpush1.msra.mxu0 0.0
    %5250 = vmatprep.subr.mxu0 0.0
    %5251 = vmatpush1.msra.mxu0 0.0
    %5252 = vmatprep.subr.mxu0 0.0
    %5253 = vmatpush1.msra.mxu0 0.0
    %5254 = vmatprep.subr.mxu0 0.0
    %5255 = vmatpush1.msra.mxu0 0.0
    %5256 = vmatprep.subr.mxu0 0.0
    %5257 = vmatpush1.msra.mxu0 0.0
    %5258 = vmatprep.subr.mxu0 0.0
    %5259 = vmatpush1.msra.mxu0 0.0
    %5260 = vmatprep.subr.mxu0 0.0
    %5261 = vmatpush1.msra.mxu0 0.0
    %5262 = vmatprep.subr.mxu0 0.0
    %5263 = vmatpush1.msra.mxu0 0.0
    %5264 = vmatprep.subr.mxu0 0.0
    %5265 = vmatpush1.msra.mxu0 0.0
    %5266 = vmatprep.subr.mxu0 0.0
    %5267 = vmatpush1.msra.mxu0 0.0
    %5268 = vmatprep.subr.mxu0 0.0
    %5269 = vmatpush1.msra.mxu0 0.0
    %5270 = vmatprep.subr.mxu0 0.0
    %5271 = vmatpush1.msra.mxu0 0.0
    %5272 = vmatprep.subr.mxu0 0.0
    %5273 = vmatpush1.msra.mxu0 0.0
    %5274 = vmatprep.mubr.f32.mxu0 0.0
    %5275 = vmatmul.mubr.f32.gmra.mrb[0].mxu0 %v5205
    %v5276 = vpop.f32.mrb[0].mxu0
    %v5277 = vadd.f32 0.0, %v5276
    %v5278 = vpop.f32.mrb[0].mxu0
    %5279 = vmatprep.mubr.f32.mxu0 0.0
    %5280 = vmatmul.mubr.f32.gmra.mrb[0].mxu0 %v5208
    %v5281 = vpop.f32.mrb[0].mxu0
    %v5282 = vadd.f32 0.0, %v5281
    %v5283 = vpop.f32.mrb[0].mxu0
    %5284 = vdwg.mxu0
    %vm5285 = vcmp.eq.f32.partialorder %v4813, 0.0
    %5288 = vset.pattern.permute.xlu0 0
    %5289 = vperm.xlu0 %5288, %v5277
    %v5290 = vpop.permute.xlu0 %5289
    %5291 = vset.pattern.permute.xlu0 0
    %5292 = vperm.xlu0 %5291, %v5282
    %v5293 = vpop.permute.xlu0 %5292
    %v5294 = vlaneseq
    %v5295 = vshrl.u32 %v5294, 7
    %v5296 = vsub.s32 %v228, %v5295
    %v5297 = vrot.slane %v5290, %v5296
    %v5298 = vlaneseq
    %v5299 = vshrl.u32 %v5298, 7
    %v5300 = vsub.s32 %v228, %v5299
    %v5301 = vrot.slane %v5293, %v5300
    %v5302 = vsel %vm549, %v5301, %v5297
    %v5304 = vsel %vm5285, -1e+30, %v5302
    %v5305 = vsel %vm552, %v5304, -inf
    %5306 = vmax.xlane.f32.xlu0 %v5305
    %v5307 = vpop.xlane.xlu0 %5306
    %v5308 = vsub.f32 %v5304, %v5307
    %v5309 = vmul.f32 %v5308, 1.442695
    %v5310 = vpow.pop %v5309
    %v5311 = vsel %vm552, %v5310, 0.0
    %5312 = vadd.xlane.f32.xlu0 %v5311
    %v5313 = vpop.xlane.xlu0 %5312
    %v5314 = vrcp.pop %v5313
    %v5315 = vmul.f32 %v5310, %v5314
    %v5318 = vunpack.c.l.s4 1966171168
    %v5319 = vunpack.c.0.s8 %v5318
    %v5320 = vlaneseq
    %v5321 = vshrl.u32 %v5320, 7
    %v5322 = vsub.s32 %v5319, %v5321
    %v5323 = vrot.slane %v5315, %v5322
    %v5324 = vcombine.high %v5323, %v5323
    %v5326 = vunpack.c.l.s4 1966171168
    %v5327 = vunpack.c.0.s8 %v5326
    %v5328 = vlaneseq
    %v5329 = vshrl.u32 %v5328, 7
    %v5330 = vsub.s32 %v5327, %v5329
    %v5331 = vrot.slane %v5323, %v5330
    %v5333 = vunpack.c.l.s4 1966171168
    %v5334 = vunpack.c.0.s8 %v5333
    %v5335 = vlaneseq
    %v5336 = vshrl.u32 %v5335, 7
    %v5337 = vsub.s32 %v5334, %v5336
    %v5338 = vrot.slane %v5324, %v5337
    %v5341 = vsel %vm617, %v5331, 0
    %5343 = vmatprep.subr.mxu0 0.0
    %5344 = vmatpush1.msra.mxu0 %v225
    %5345 = vmatprep.subr.mxu0 0.0
    %5346 = vmatpush1.msra.mxu0 0.0
    %5347 = vmatprep.subr.mxu0 0.0
    %5348 = vmatpush1.msra.mxu0 0.0
    %5349 = vmatprep.subr.mxu0 0.0
    %5350 = vmatpush1.msra.mxu0 0.0
    %5351 = vmatprep.subr.mxu0 0.0
    %5352 = vmatpush1.msra.mxu0 0.0
    %5353 = vmatprep.subr.mxu0 0.0
    %5354 = vmatpush1.msra.mxu0 0.0
    %5355 = vmatprep.subr.mxu0 0.0
    %5356 = vmatpush1.msra.mxu0 0.0
    %5357 = vmatprep.subr.mxu0 0.0
    %5358 = vmatpush1.msra.mxu0 0.0
    %5359 = vmatprep.subr.mxu0 0.0
    %5360 = vmatpush1.msra.mxu0 0.0
    %5361 = vmatprep.subr.mxu0 0.0
    %5362 = vmatpush1.msra.mxu0 0.0
    %5363 = vmatprep.subr.mxu0 0.0
    %5364 = vmatpush1.msra.mxu0 0.0
    %5365 = vmatprep.subr.mxu0 0.0
    %5366 = vmatpush1.msra.mxu0 0.0
    %5367 = vmatprep.subr.mxu0 0.0
    %5368 = vmatpush1.msra.mxu0 0.0
    %5369 = vmatprep.subr.mxu0 0.0
    %5370 = vmatpush1.msra.mxu0 0.0
    %5371 = vmatprep.subr.mxu0 0.0
    %5372 = vmatpush1.msra.mxu0 0.0
    %5373 = vmatprep.subr.mxu0 0.0
    %5374 = vmatpush1.msra.mxu0 0.0
    %5375 = vmatprep.subr.mxu0 0.0
    %5376 = vmatpush1.msra.mxu0 0.0
    %5377 = vmatprep.subr.mxu0 0.0
    %5378 = vmatpush1.msra.mxu0 0.0
    %5379 = vmatprep.subr.mxu0 0.0
    %5380 = vmatpush1.msra.mxu0 0.0
    %5381 = vmatprep.subr.mxu0 0.0
    %5382 = vmatpush1.msra.mxu0 0.0
    %5383 = vmatprep.subr.mxu0 0.0
    %5384 = vmatpush1.msra.mxu0 0.0
    %5385 = vmatprep.subr.mxu0 0.0
    %5386 = vmatpush1.msra.mxu0 0.0
    %5387 = vmatprep.subr.mxu0 0.0
    %5388 = vmatpush1.msra.mxu0 0.0
    %5389 = vmatprep.subr.mxu0 0.0
    %5390 = vmatpush1.msra.mxu0 0.0
    %5391 = vmatprep.subr.mxu0 0.0
    %5392 = vmatpush1.msra.mxu0 0.0
    %5393 = vmatprep.subr.mxu0 0.0
    %5394 = vmatpush1.msra.mxu0 0.0
    %5395 = vmatprep.subr.mxu0 0.0
    %5396 = vmatpush1.msra.mxu0 0.0
    %5397 = vmatprep.subr.mxu0 0.0
    %5398 = vmatpush1.msra.mxu0 0.0
    %5399 = vmatprep.subr.mxu0 0.0
    %5400 = vmatpush1.msra.mxu0 0.0
    %5401 = vmatprep.subr.mxu0 0.0
    %5402 = vmatpush1.msra.mxu0 0.0
    %5403 = vmatprep.subr.mxu0 0.0
    %5404 = vmatpush1.msra.mxu0 0.0
    %5405 = vmatprep.subr.mxu0 0.0
    %5406 = vmatpush1.msra.mxu0 0.0
    %5407 = vmatprep.mubr.f32.mxu0 0.0
    %5408 = vmatmul.mubr.f32.gmra.mrb[0].mxu0 %v5341
    %v5409 = vpop.f32.mrb[0].mxu0
    %v5410 = vadd.f32 0.0, %v5409
    %v5411 = vpop.f32.mrb[0].mxu0
    %5412 = vdwg.mxu0
    %v5413 = vsel %vm617, %v5338, 0
    %5415 = vmatprep.subr.mxu0 0.0
    %5416 = vmatpush1.msra.mxu0 %v226
    %5417 = vmatprep.subr.mxu0 0.0
    %5418 = vmatpush1.msra.mxu0 0.0
    %5419 = vmatprep.subr.mxu0 0.0
    %5420 = vmatpush1.msra.mxu0 0.0
    %5421 = vmatprep.subr.mxu0 0.0
    %5422 = vmatpush1.msra.mxu0 0.0
    %5423 = vmatprep.subr.mxu0 0.0
    %5424 = vmatpush1.msra.mxu0 0.0
    %5425 = vmatprep.subr.mxu0 0.0
    %5426 = vmatpush1.msra.mxu0 0.0
    %5427 = vmatprep.subr.mxu0 0.0
    %5428 = vmatpush1.msra.mxu0 0.0
    %5429 = vmatprep.subr.mxu0 0.0
    %5430 = vmatpush1.msra.mxu0 0.0
    %5431 = vmatprep.subr.mxu0 0.0
    %5432 = vmatpush1.msra.mxu0 0.0
    %5433 = vmatprep.subr.mxu0 0.0
    %5434 = vmatpush1.msra.mxu0 0.0
    %5435 = vmatprep.subr.mxu0 0.0
    %5436 = vmatpush1.msra.mxu0 0.0
    %5437 = vmatprep.subr.mxu0 0.0
    %5438 = vmatpush1.msra.mxu0 0.0
    %5439 = vmatprep.subr.mxu0 0.0
    %5440 = vmatpush1.msra.mxu0 0.0
    %5441 = vmatprep.subr.mxu0 0.0
    %5442 = vmatpush1.msra.mxu0 0.0
    %5443 = vmatprep.subr.mxu0 0.0
    %5444 = vmatpush1.msra.mxu0 0.0
    %5445 = vmatprep.subr.mxu0 0.0
    %5446 = vmatpush1.msra.mxu0 0.0
    %5447 = vmatprep.subr.mxu0 0.0
    %5448 = vmatpush1.msra.mxu0 0.0
    %5449 = vmatprep.subr.mxu0 0.0
    %5450 = vmatpush1.msra.mxu0 0.0
    %5451 = vmatprep.subr.mxu0 0.0
    %5452 = vmatpush1.msra.mxu0 0.0
    %5453 = vmatprep.subr.mxu0 0.0
    %5454 = vmatpush1.msra.mxu0 0.0
    %5455 = vmatprep.subr.mxu0 0.0
    %5456 = vmatpush1.msra.mxu0 0.0
    %5457 = vmatprep.subr.mxu0 0.0
    %5458 = vmatpush1.msra.mxu0 0.0
    %5459 = vmatprep.subr.mxu0 0.0
    %5460 = vmatpush1.msra.mxu0 0.0
    %5461 = vmatprep.subr.mxu0 0.0
    %5462 = vmatpush1.msra.mxu0 0.0
    %5463 = vmatprep.subr.mxu0 0.0
    %5464 = vmatpush1.msra.mxu0 0.0
    %5465 = vmatprep.subr.mxu0 0.0
    %5466 = vmatpush1.msra.mxu0 0.0
    %5467 = vmatprep.subr.mxu0 0.0
    %5468 = vmatpush1.msra.mxu0 0.0
    %5469 = vmatprep.subr.mxu0 0.0
    %5470 = vmatpush1.msra.mxu0 0.0
    %5471 = vmatprep.subr.mxu0 0.0
    %5472 = vmatpush1.msra.mxu0 0.0
    %5473 = vmatprep.subr.mxu0 0.0
    %5474 = vmatpush1.msra.mxu0 0.0
    %5475 = vmatprep.subr.mxu0 0.0
    %5476 = vmatpush1.msra.mxu0 0.0
    %5477 = vmatprep.subr.mxu0 0.0
    %5478 = vmatpush1.msra.mxu0 0.0
    %5479 = vmatprep.mubr.f32.mxu0 0.0
    %5480 = vmatmul.mubr.f32.gmra.mrb[0].mxu0 %v5413
    %v5481 = vpop.f32.mrb[0].mxu0
    %v5482 = vadd.f32 0.0, %v5481
    %v5483 = vpop.f32.mrb[0].mxu0
    %5484 = vdwg.mxu0
    %v5487 = vrot.slane %v5482, 7
    %v5488 = vsel %vm549, %v5487, %v5410
    %5490 = vrot.lane.b32.xlu0 %v5091, 64
    %v5491 = vpop.permute.xlu0 %5490
    %v5493 = vsel %vm136, %v5488, %v5491
    %v5495 = vsel %vm779, %v5493, 0
    %5497 = vmatprep.subr.mxu0 0.0
    %5498 = vmatpush1.msra.mxu0 %v93
    %5499 = vmatprep.subr.mxu0 0.0
    %5500 = vmatpush1.msra.mxu0 %v94
    %5501 = vmatprep.subr.mxu0 0.0
    %5502 = vmatpush1.msra.mxu0 %v95
    %5503 = vmatprep.subr.mxu0 0.0
    %5504 = vmatpush1.msra.mxu0 %v96
    %5505 = vmatprep.subr.mxu0 0.0
    %5506 = vmatpush1.msra.mxu0 %v97
    %5507 = vmatprep.subr.mxu0 0.0
    %5508 = vmatpush1.msra.mxu0 %v98
    %5509 = vmatprep.subr.mxu0 0.0
    %5510 = vmatpush1.msra.mxu0 %v99
    %5511 = vmatprep.subr.mxu0 0.0
    %5512 = vmatpush1.msra.mxu0 %v100
    %5513 = vmatprep.subr.mxu0 0.0
    %5514 = vmatpush1.msra.mxu0 0.0
    %5515 = vmatprep.subr.mxu0 0.0
    %5516 = vmatpush1.msra.mxu0 0.0
    %5517 = vmatprep.subr.mxu0 0.0
    %5518 = vmatpush1.msra.mxu0 0.0
    %5519 = vmatprep.subr.mxu0 0.0
    %5520 = vmatpush1.msra.mxu0 0.0
    %5521 = vmatprep.subr.mxu0 0.0
    %5522 = vmatpush1.msra.mxu0 0.0
    %5523 = vmatprep.subr.mxu0 0.0
    %5524 = vmatpush1.msra.mxu0 0.0
    %5525 = vmatprep.subr.mxu0 0.0
    %5526 = vmatpush1.msra.mxu0 0.0
    %5527 = vmatprep.subr.mxu0 0.0
    %5528 = vmatpush1.msra.mxu0 0.0
    %5529 = vmatprep.subr.mxu0 0.0
    %5530 = vmatpush1.msra.mxu0 0.0
    %5531 = vmatprep.subr.mxu0 0.0
    %5532 = vmatpush1.msra.mxu0 0.0
    %5533 = vmatprep.subr.mxu0 0.0
    %5534 = vmatpush1.msra.mxu0 0.0
    %5535 = vmatprep.subr.mxu0 0.0
    %5536 = vmatpush1.msra.mxu0 0.0
    %5537 = vmatprep.subr.mxu0 0.0
    %5538 = vmatpush1.msra.mxu0 0.0
    %5539 = vmatprep.subr.mxu0 0.0
    %5540 = vmatpush1.msra.mxu0 0.0
    %5541 = vmatprep.subr.mxu0 0.0
    %5542 = vmatpush1.msra.mxu0 0.0
    %5543 = vmatprep.subr.mxu0 0.0
    %5544 = vmatpush1.msra.mxu0 0.0
    %5545 = vmatprep.subr.mxu0 0.0
    %5546 = vmatpush1.msra.mxu0 0.0
    %5547 = vmatprep.subr.mxu0 0.0
    %5548 = vmatpush1.msra.mxu0 0.0
    %5549 = vmatprep.subr.mxu0 0.0
    %5550 = vmatpush1.msra.mxu0 0.0
    %5551 = vmatprep.subr.mxu0 0.0
    %5552 = vmatpush1.msra.mxu0 0.0
    %5553 = vmatprep.subr.mxu0 0.0
    %5554 = vmatpush1.msra.mxu0 0.0
    %5555 = vmatprep.subr.mxu0 0.0
    %5556 = vmatpush1.msra.mxu0 0.0
    %5557 = vmatprep.subr.mxu0 0.0
    %5558 = vmatpush1.msra.mxu0 0.0
    %5559 = vmatprep.subr.mxu0 0.0
    %5560 = vmatpush1.msra.mxu0 0.0
    %5561 = vmatprep.mubr.f32.mxu0 0.0
    %5562 = vmatmul.mubr.f32.gmra.mrb[0].mxu0 %v5495
    %v5563 = vpop.f32.mrb[0].mxu0
    %v5564 = vadd.f32 %v128, %v5563
    %v5565 = vpop.f32.mrb[0].mxu0
    %5566 = vdwg.mxu0
    %v5567 = vtanh.pop %v5564
    %v5568 = vmul.f32 %v5315, %v4813
    %v5569 = vsel %vm552, %v5568, -inf
    %5570 = vmax.xlane.f32.xlu0 %v5569
    %v5571 = vpop.xlane.xlu0 %5570
    %vm5572 = vcmp.eq.f32.partialorder %v5568, %v5571
    %v5573 = vsel %vm5572, %v228, 8
    %v5574 = vsel %vm552, %v5573, 2147483647
    %v5575 = vand.u32 %v5574, 65535
    %v5576 = vshra.s32 %v5574, 16
    %v5577 = vcvt.s32.f32 %v5575
    %v5578 = vcvt.s32.f32 %v5576
    %5579 = vmin.xlane.f32.xlu0 %v5578
    %v5580 = vpop.xlane.xlu0 %5579
    %vm5581 = vcmp.eq.f32.partialorder %v5578, %v5580
    %v5582 = vsel %vm5581, %v5577, inf
    %5583 = vmin.xlane.f32.xlu0 %v5582
    %v5584 = vpop.xlane.xlu0 %5583
    %v5585 = vcvt.f32.s32 %v5584
    %v5586 = vcvt.f32.s32 %v5580
    %v5587 = vshll.u32 %v5586, 16
    %v5588 = vadd.s32 %v5587, %v5585
    %vm5589 = vcmp.eq.s32.totalorder %v228, %v5588
    %v5590 = vsel %vm5589, 1, 0
    %v5591 = vcvt.s32.f32 %v5590
    %v5592 = vsub.f32 1.0, %v5591
    %v5593 = vmul.f32 %v4813, %v5592
    %v5596 = vunpack.c.l.s4 1966171168
    %v5597 = vunpack.c.0.s8 %v5596
    %v5598 = vlaneseq
    %v5599 = vshrl.u32 %v5598, 7
    %v5600 = vsub.s32 %v5597, %v5599
    %v5601 = vrot.slane %v5591, %v5600
    %v5602 = vcombine.high %v5601, %v5601
    %v5604 = vunpack.c.l.s4 1966171168
    %v5605 = vunpack.c.0.s8 %v5604
    %v5606 = vlaneseq
    %v5607 = vshrl.u32 %v5606, 7
    %v5608 = vsub.s32 %v5605, %v5607
    %v5609 = vrot.slane %v5601, %v5608
    %v5611 = vunpack.c.l.s4 1966171168
    %v5612 = vunpack.c.0.s8 %v5611
    %v5613 = vlaneseq
    %v5614 = vshrl.u32 %v5613, 7
    %v5615 = vsub.s32 %v5612, %v5614
    %v5616 = vrot.slane %v5602, %v5615
    %v5617 = vsel %vm617, %v5609, 0
    %5619 = vmatprep.subr.mxu0 0.0
    %5620 = vmatpush1.msra.mxu0 %v82
    %5621 = vmatprep.subr.mxu0 0.0
    %5622 = vmatpush1.msra.mxu0 0.0
    %5623 = vmatprep.subr.mxu0 0.0
    %5624 = vmatpush1.msra.mxu0 0.0
    %5625 = vmatprep.subr.mxu0 0.0
    %5626 = vmatpush1.msra.mxu0 0.0
    %5627 = vmatprep.subr.mxu0 0.0
    %5628 = vmatpush1.msra.mxu0 0.0
    %5629 = vmatprep.subr.mxu0 0.0
    %5630 = vmatpush1.msra.mxu0 0.0
    %5631 = vmatprep.subr.mxu0 0.0
    %5632 = vmatpush1.msra.mxu0 0.0
    %5633 = vmatprep.subr.mxu0 0.0
    %5634 = vmatpush1.msra.mxu0 0.0
    %5635 = vmatprep.subr.mxu0 0.0
    %5636 = vmatpush1.msra.mxu0 0.0
    %5637 = vmatprep.subr.mxu0 0.0
    %5638 = vmatpush1.msra.mxu0 0.0
    %5639 = vmatprep.subr.mxu0 0.0
    %5640 = vmatpush1.msra.mxu0 0.0
    %5641 = vmatprep.subr.mxu0 0.0
    %5642 = vmatpush1.msra.mxu0 0.0
    %5643 = vmatprep.subr.mxu0 0.0
    %5644 = vmatpush1.msra.mxu0 0.0
    %5645 = vmatprep.subr.mxu0 0.0
    %5646 = vmatpush1.msra.mxu0 0.0
    %5647 = vmatprep.subr.mxu0 0.0
    %5648 = vmatpush1.msra.mxu0 0.0
    %5649 = vmatprep.subr.mxu0 0.0
    %5650 = vmatpush1.msra.mxu0 0.0
    %5651 = vmatprep.subr.mxu0 0.0
    %5652 = vmatpush1.msra.mxu0 0.0
    %5653 = vmatprep.subr.mxu0 0.0
    %5654 = vmatpush1.msra.mxu0 0.0
    %5655 = vmatprep.subr.mxu0 0.0
    %5656 = vmatpush1.msra.mxu0 0.0
    %5657 = vmatprep.subr.mxu0 0.0
    %5658 = vmatpush1.msra.mxu0 0.0
    %5659 = vmatprep.subr.mxu0 0.0
    %5660 = vmatpush1.msra.mxu0 0.0
    %5661 = vmatprep.subr.mxu0 0.0
    %5662 = vmatpush1.msra.mxu0 0.0
    %5663 = vmatprep.subr.mxu0 0.0
    %5664 = vmatpush1.msra.mxu0 0.0
    %5665 = vmatprep.subr.mxu0 0.0
    %5666 = vmatpush1.msra.mxu0 0.0
    %5667 = vmatprep.subr.mxu0 0.0
    %5668 = vmatpush1.msra.mxu0 0.0
    %5669 = vmatprep.subr.mxu0 0.0
    %5670 = vmatpush1.msra.mxu0 0.0
    %5671 = vmatprep.subr.mxu0 0.0
    %5672 = vmatpush1.msra.mxu0 0.0
    %5673 = vmatprep.subr.mxu0 0.0
    %5674 = vmatpush1.msra.mxu0 0.0
    %5675 = vmatprep.subr.mxu0 0.0
    %5676 = vmatpush1.msra.mxu0 0.0
    %5677 = vmatprep.subr.mxu0 0.0
    %5678 = vmatpush1.msra.mxu0 0.0
    %5679 = vmatprep.subr.mxu0 0.0
    %5680 = vmatpush1.msra.mxu0 0.0
    %5681 = vmatprep.subr.mxu0 0.0
    %5682 = vmatpush1.msra.mxu0 0.0
    %5683 = vmatprep.mubr.f32.mxu0 0.0
    %5684 = vmatmul.mubr.f32.gmra.mrb[0].mxu0 %v5617
    %v5685 = vpop.f32.mrb[0].mxu0
    %v5686 = vadd.f32 0.0, %v5685
    %v5687 = vpop.f32.mrb[0].mxu0
    %5688 = vdwg.mxu0
    %v5689 = vsel %vm617, %v5616, 0
    %5691 = vmatprep.subr.mxu0 0.0
    %5692 = vmatpush1.msra.mxu0 %v83
    %5693 = vmatprep.subr.mxu0 0.0
    %5694 = vmatpush1.msra.mxu0 0.0
    %5695 = vmatprep.subr.mxu0 0.0
    %5696 = vmatpush1.msra.mxu0 0.0
    %5697 = vmatprep.subr.mxu0 0.0
    %5698 = vmatpush1.msra.mxu0 0.0
    %5699 = vmatprep.subr.mxu0 0.0
    %5700 = vmatpush1.msra.mxu0 0.0
    %5701 = vmatprep.subr.mxu0 0.0
    %5702 = vmatpush1.msra.mxu0 0.0
    %5703 = vmatprep.subr.mxu0 0.0
    %5704 = vmatpush1.msra.mxu0 0.0
    %5705 = vmatprep.subr.mxu0 0.0
    %5706 = vmatpush1.msra.mxu0 0.0
    %5707 = vmatprep.subr.mxu0 0.0
    %5708 = vmatpush1.msra.mxu0 0.0
    %5709 = vmatprep.subr.mxu0 0.0
    %5710 = vmatpush1.msra.mxu0 0.0
    %5711 = vmatprep.subr.mxu0 0.0
    %5712 = vmatpush1.msra.mxu0 0.0
    %5713 = vmatprep.subr.mxu0 0.0
    %5714 = vmatpush1.msra.mxu0 0.0
    %5715 = vmatprep.subr.mxu0 0.0
    %5716 = vmatpush1.msra.mxu0 0.0
    %5717 = vmatprep.subr.mxu0 0.0
    %5718 = vmatpush1.msra.mxu0 0.0
    %5719 = vmatprep.subr.mxu0 0.0
    %5720 = vmatpush1.msra.mxu0 0.0
    %5721 = vmatprep.subr.mxu0 0.0
    %5722 = vmatpush1.msra.mxu0 0.0
    %5723 = vmatprep.subr.mxu0 0.0
    %5724 = vmatpush1.msra.mxu0 0.0
    %5725 = vmatprep.subr.mxu0 0.0
    %5726 = vmatpush1.msra.mxu0 0.0
    %5727 = vmatprep.subr.mxu0 0.0
    %5728 = vmatpush1.msra.mxu0 0.0
    %5729 = vmatprep.subr.mxu0 0.0
    %5730 = vmatpush1.msra.mxu0 0.0
    %5731 = vmatprep.subr.mxu0 0.0
    %5732 = vmatpush1.msra.mxu0 0.0
    %5733 = vmatprep.subr.mxu0 0.0
    %5734 = vmatpush1.msra.mxu0 0.0
    %5735 = vmatprep.subr.mxu0 0.0
    %5736 = vmatpush1.msra.mxu0 0.0
    %5737 = vmatprep.subr.mxu0 0.0
    %5738 = vmatpush1.msra.mxu0 0.0
    %5739 = vmatprep.subr.mxu0 0.0
    %5740 = vmatpush1.msra.mxu0 0.0
    %5741 = vmatprep.subr.mxu0 0.0
    %5742 = vmatpush1.msra.mxu0 0.0
    %5743 = vmatprep.subr.mxu0 0.0
    %5744 = vmatpush1.msra.mxu0 0.0
    %5745 = vmatprep.subr.mxu0 0.0
    %5746 = vmatpush1.msra.mxu0 0.0
    %5747 = vmatprep.subr.mxu0 0.0
    %5748 = vmatpush1.msra.mxu0 0.0
    %5749 = vmatprep.subr.mxu0 0.0
    %5750 = vmatpush1.msra.mxu0 0.0
    %5751 = vmatprep.subr.mxu0 0.0
    %5752 = vmatpush1.msra.mxu0 0.0
    %5753 = vmatprep.subr.mxu0 0.0
    %5754 = vmatpush1.msra.mxu0 0.0
    %5755 = vmatprep.mubr.f32.mxu0 0.0
    %5756 = vmatmul.mubr.f32.gmra.mrb[0].mxu0 %v5689
    %v5757 = vpop.f32.mrb[0].mxu0
    %v5758 = vadd.f32 0.0, %v5757
    %v5759 = vpop.f32.mrb[0].mxu0
    %5760 = vdwg.mxu0
    %5761 = vst.msk [vmem:[#allocation7 + $0x6] sm:$0x1] %vm1080, %v5331
    %5762 = vst.msk [vmem:[#allocation7 + $0xe] sm:$0x1] %vm1080, %v5338
    %vm5763 = vcmask 50224
    %5764 = vst.msk [vmem:[#allocation8] sm:$0x3] %vm5763, %v5588
    %v5767 = vrot.slane %v5758, 7
    %v5768 = vsel %vm549, %v5767, %v5686
    %5771 = vrot.lane.b32.xlu0 %v5567, 16
    %v5772 = vpop.permute.xlu0 %5771
    %v5774 = vsel %vm233, %v5768, %v5772
    %v5776 = vsel %vm235, %v5774, 0
    %5778 = vmatprep.subr.mxu0 0.0
    %5779 = vmatpush1.msra.mxu0 %v87
    %5780 = vmatprep.subr.mxu0 0.0
    %5781 = vmatpush1.msra.mxu0 %v88
    %5782 = vmatprep.subr.mxu0 0.0
    %5783 = vmatpush1.msra.mxu0 %v89
    %5784 = vmatprep.subr.mxu0 0.0
    %5785 = vmatpush1.msra.mxu0 %v90
    %5786 = vmatprep.subr.mxu0 0.0
    %5787 = vmatpush1.msra.mxu0 %v91
    %5788 = vmatprep.subr.mxu0 0.0
    %5789 = vmatpush1.msra.mxu0 %v92
    %5790 = vmatprep.subr.mxu0 0.0
    %5791 = vmatpush1.msra.mxu0 0.0
    %5792 = vmatprep.subr.mxu0 0.0
    %5793 = vmatpush1.msra.mxu0 0.0
    %5794 = vmatprep.subr.mxu0 0.0
    %5795 = vmatpush1.msra.mxu0 0.0
    %5796 = vmatprep.subr.mxu0 0.0
    %5797 = vmatpush1.msra.mxu0 0.0
    %5798 = vmatprep.subr.mxu0 0.0
    %5799 = vmatpush1.msra.mxu0 0.0
    %5800 = vmatprep.subr.mxu0 0.0
    %5801 = vmatpush1.msra.mxu0 0.0
    %5802 = vmatprep.subr.mxu0 0.0
    %5803 = vmatpush1.msra.mxu0 0.0
    %5804 = vmatprep.subr.mxu0 0.0
    %5805 = vmatpush1.msra.mxu0 0.0
    %5806 = vmatprep.subr.mxu0 0.0
    %5807 = vmatpush1.msra.mxu0 0.0
    %5808 = vmatprep.subr.mxu0 0.0
    %5809 = vmatpush1.msra.mxu0 0.0
    %5810 = vmatprep.subr.mxu0 0.0
    %5811 = vmatpush1.msra.mxu0 0.0
    %5812 = vmatprep.subr.mxu0 0.0
    %5813 = vmatpush1.msra.mxu0 0.0
    %5814 = vmatprep.subr.mxu0 0.0
    %5815 = vmatpush1.msra.mxu0 0.0
    %5816 = vmatprep.subr.mxu0 0.0
    %5817 = vmatpush1.msra.mxu0 0.0
    %5818 = vmatprep.subr.mxu0 0.0
    %5819 = vmatpush1.msra.mxu0 0.0
    %5820 = vmatprep.subr.mxu0 0.0
    %5821 = vmatpush1.msra.mxu0 0.0
    %5822 = vmatprep.subr.mxu0 0.0
    %5823 = vmatpush1.msra.mxu0 0.0
    %5824 = vmatprep.subr.mxu0 0.0
    %5825 = vmatpush1.msra.mxu0 0.0
    %5826 = vmatprep.subr.mxu0 0.0
    %5827 = vmatpush1.msra.mxu0 0.0
    %5828 = vmatprep.subr.mxu0 0.0
    %5829 = vmatpush1.msra.mxu0 0.0
    %5830 = vmatprep.subr.mxu0 0.0
    %5831 = vmatpush1.msra.mxu0 0.0
    %5832 = vmatprep.subr.mxu0 0.0
    %5833 = vmatpush1.msra.mxu0 0.0
    %5834 = vmatprep.subr.mxu0 0.0
    %5835 = vmatpush1.msra.mxu0 0.0
    %5836 = vmatprep.subr.mxu0 0.0
    %5837 = vmatpush1.msra.mxu0 0.0
    %5838 = vmatprep.subr.mxu0 0.0
    %5839 = vmatpush1.msra.mxu0 0.0
    %5840 = vmatprep.subr.mxu0 0.0
    %5841 = vmatpush1.msra.mxu0 0.0
    %5842 = vmatprep.mubr.f32.mxu0 0.0
    %5843 = vmatmul.mubr.f32.gmra.mrb[0].mxu0 %v5776
    %v5844 = vpop.f32.mrb[0].mxu0
    %v5845 = vadd.f32 %v114, %v5844
    %v5846 = vpop.f32.mrb[0].mxu0
    %5847 = vdwg.mxu0
    %v5848 = vxor.u32 %v5845, 2147483648
    %v5849 = vmul.f32 %v5848, 1.442695
    %v5850 = vpow.pop %v5849
    %v5851 = vadd.f32 %v5850, 1.0
    %v5852 = vrcp.pop %v5851
    %v5853 = vmul.f32 1.0, %v5852
    %v5854 = vtanh.pop %v5845
    %v5855 = vmul.f32 %v5853, %v5085
    %5857 = vrot.lane.b32.xlu0 %v5854, 64
    %v5858 = vpop.permute.xlu0 %5857
    %v5860 = vmul.f32 %v5853, %v5858
    %5862 = vrot.lane.b32.xlu0 %v5860, 32
    %v5863 = vpop.permute.xlu0 %5862
    %v5865 = vadd.f32 %v5855, %v5863
    %v5866 = vtanh.pop %v5865
    %5868 = vrot.lane.b32.xlu0 %v5866, 64
    %v5869 = vpop.permute.xlu0 %5868
    %v5871 = vmul.f32 %v5853, %v5869
    %5873 = vrot.lane.b32.xlu0 %v5871, 32
    %v5874 = vpop.permute.xlu0 %5873
    %v5875 = vsel %vm136, %v5874, 0
    %5877 = vmatprep.subr.mxu0 0.0
    %5878 = vmatpush1.msra.mxu0 %v101
    %5879 = vmatprep.subr.mxu0 0.0
    %5880 = vmatpush1.msra.mxu0 %v102
    %5881 = vmatprep.subr.mxu0 0.0
    %5882 = vmatpush1.msra.mxu0 %v103
    %5883 = vmatprep.subr.mxu0 0.0
    %5884 = vmatpush1.msra.mxu0 %v104
    %5885 = vmatprep.subr.mxu0 0.0
    %5886 = vmatpush1.msra.mxu0 0.0
    %5887 = vmatprep.subr.mxu0 0.0
    %5888 = vmatpush1.msra.mxu0 0.0
    %5889 = vmatprep.subr.mxu0 0.0
    %5890 = vmatpush1.msra.mxu0 0.0
    %5891 = vmatprep.subr.mxu0 0.0
    %5892 = vmatpush1.msra.mxu0 0.0
    %5893 = vmatprep.subr.mxu0 0.0
    %5894 = vmatpush1.msra.mxu0 0.0
    %5895 = vmatprep.subr.mxu0 0.0
    %5896 = vmatpush1.msra.mxu0 0.0
    %5897 = vmatprep.subr.mxu0 0.0
    %5898 = vmatpush1.msra.mxu0 0.0
    %5899 = vmatprep.subr.mxu0 0.0
    %5900 = vmatpush1.msra.mxu0 0.0
    %5901 = vmatprep.subr.mxu0 0.0
    %5902 = vmatpush1.msra.mxu0 0.0
    %5903 = vmatprep.subr.mxu0 0.0
    %5904 = vmatpush1.msra.mxu0 0.0
    %5905 = vmatprep.subr.mxu0 0.0
    %5906 = vmatpush1.msra.mxu0 0.0
    %5907 = vmatprep.subr.mxu0 0.0
    %5908 = vmatpush1.msra.mxu0 0.0
    %5909 = vmatprep.subr.mxu0 0.0
    %5910 = vmatpush1.msra.mxu0 0.0
    %5911 = vmatprep.subr.mxu0 0.0
    %5912 = vmatpush1.msra.mxu0 0.0
    %5913 = vmatprep.subr.mxu0 0.0
    %5914 = vmatpush1.msra.mxu0 0.0
    %5915 = vmatprep.subr.mxu0 0.0
    %5916 = vmatpush1.msra.mxu0 0.0
    %5917 = vmatprep.subr.mxu0 0.0
    %5918 = vmatpush1.msra.mxu0 0.0
    %5919 = vmatprep.subr.mxu0 0.0
    %5920 = vmatpush1.msra.mxu0 0.0
    %5921 = vmatprep.subr.mxu0 0.0
    %5922 = vmatpush1.msra.mxu0 0.0
    %5923 = vmatprep.subr.mxu0 0.0
    %5924 = vmatpush1.msra.mxu0 0.0
    %5925 = vmatprep.subr.mxu0 0.0
    %5926 = vmatpush1.msra.mxu0 0.0
    %5927 = vmatprep.subr.mxu0 0.0
    %5928 = vmatpush1.msra.mxu0 0.0
    %5929 = vmatprep.subr.mxu0 0.0
    %5930 = vmatpush1.msra.mxu0 0.0
    %5931 = vmatprep.subr.mxu0 0.0
    %5932 = vmatpush1.msra.mxu0 0.0
    %5933 = vmatprep.subr.mxu0 0.0
    %5934 = vmatpush1.msra.mxu0 0.0
    %5935 = vmatprep.subr.mxu0 0.0
    %5936 = vmatpush1.msra.mxu0 0.0
    %5937 = vmatprep.subr.mxu0 0.0
    %5938 = vmatpush1.msra.mxu0 0.0
    %5939 = vmatprep.subr.mxu0 0.0
    %5940 = vmatpush1.msra.mxu0 0.0
    %5941 = vmatprep.mubr.f32.mxu0 0.0
    %5942 = vmatmul.mubr.f32.gmra.mrb[0].mxu0 %v5875
    %v5943 = vpop.f32.mrb[0].mxu0
    %v5944 = vadd.f32 %v121, %v5943
    %v5945 = vpop.f32.mrb[0].mxu0
    %5946 = vdwg.mxu0
    %v5949 = vunpack.c.l.s4 1966171168
    %v5950 = vunpack.c.0.s8 %v5949
    %v5951 = vlaneseq
    %v5952 = vshrl.u32 %v5951, 7
    %v5953 = vsub.s32 %v5950, %v5952
    %v5954 = vrot.slane %v5944, %v5953
    %v5955 = vcombine.high %v5954, %v5954
    %v5957 = vunpack.c.l.s4 1966171168
    %v5958 = vunpack.c.0.s8 %v5957
    %v5959 = vlaneseq
    %v5960 = vshrl.u32 %v5959, 7
    %v5961 = vsub.s32 %v5958, %v5960
    %v5962 = vrot.slane %v5954, %v5961
    %v5964 = vunpack.c.l.s4 1966171168
    %v5965 = vunpack.c.0.s8 %v5964
    %v5966 = vlaneseq
    %v5967 = vshrl.u32 %v5966, 7
    %v5968 = vsub.s32 %v5965, %v5967
    %v5969 = vrot.slane %v5955, %v5968
    %v5970 = vlaneseq
    %v5971 = vshrl.u32 %v5970, 7
    %v5972 = vsub.s32 0, %v5971
    %v5973 = vrot.slane %v5962, %v5972
    %v5974 = vlaneseq
    %v5975 = vshrl.u32 %v5974, 7
    %v5976 = vsub.s32 0, %v5975
    %v5977 = vrot.slane %v5969, %v5976
    %v5980 = vadd.f32 %v5973, %v225
    %v5981 = vadd.f32 %v5977, %v226
    %v5982 = vtanh.pop %v5980
    %v5983 = vtanh.pop %v5981
    %v5985 = vsel %vm136, %v5982, 0
    %v5988 = vsel %vm136, %v5983, 0
    %5990 = vmatprep.subr.mxu0 0.0
    %5991 = vmatpush1.msra.mxu0 %v105
    %5992 = vmatprep.subr.mxu0 0.0
    %5993 = vmatpush1.msra.mxu0 %v106
    %5994 = vmatprep.subr.mxu0 0.0
    %5995 = vmatpush1.msra.mxu0 %v107
    %5996 = vmatprep.subr.mxu0 0.0
    %5997 = vmatpush1.msra.mxu0 %v108
    %5998 = vmatprep.subr.mxu0 0.0
    %5999 = vmatpush1.msra.mxu0 0.0
    %6000 = vmatprep.subr.mxu0 0.0
    %6001 = vmatpush1.msra.mxu0 0.0
    %6002 = vmatprep.subr.mxu0 0.0
    %6003 = vmatpush1.msra.mxu0 0.0
    %6004 = vmatprep.subr.mxu0 0.0
    %6005 = vmatpush1.msra.mxu0 0.0
    %6006 = vmatprep.subr.mxu0 0.0
    %6007 = vmatpush1.msra.mxu0 0.0
    %6008 = vmatprep.subr.mxu0 0.0
    %6009 = vmatpush1.msra.mxu0 0.0
    %6010 = vmatprep.subr.mxu0 0.0
    %6011 = vmatpush1.msra.mxu0 0.0
    %6012 = vmatprep.subr.mxu0 0.0
    %6013 = vmatpush1.msra.mxu0 0.0
    %6014 = vmatprep.subr.mxu0 0.0
    %6015 = vmatpush1.msra.mxu0 0.0
    %6016 = vmatprep.subr.mxu0 0.0
    %6017 = vmatpush1.msra.mxu0 0.0
    %6018 = vmatprep.subr.mxu0 0.0
    %6019 = vmatpush1.msra.mxu0 0.0
    %6020 = vmatprep.subr.mxu0 0.0
    %6021 = vmatpush1.msra.mxu0 0.0
    %6022 = vmatprep.subr.mxu0 0.0
    %6023 = vmatpush1.msra.mxu0 0.0
    %6024 = vmatprep.subr.mxu0 0.0
    %6025 = vmatpush1.msra.mxu0 0.0
    %6026 = vmatprep.subr.mxu0 0.0
    %6027 = vmatpush1.msra.mxu0 0.0
    %6028 = vmatprep.subr.mxu0 0.0
    %6029 = vmatpush1.msra.mxu0 0.0
    %6030 = vmatprep.subr.mxu0 0.0
    %6031 = vmatpush1.msra.mxu0 0.0
    %6032 = vmatprep.subr.mxu0 0.0
    %6033 = vmatpush1.msra.mxu0 0.0
    %6034 = vmatprep.subr.mxu0 0.0
    %6035 = vmatpush1.msra.mxu0 0.0
    %6036 = vmatprep.subr.mxu0 0.0
    %6037 = vmatpush1.msra.mxu0 0.0
    %6038 = vmatprep.subr.mxu0 0.0
    %6039 = vmatpush1.msra.mxu0 0.0
    %6040 = vmatprep.subr.mxu0 0.0
    %6041 = vmatpush1.msra.mxu0 0.0
    %6042 = vmatprep.subr.mxu0 0.0
    %6043 = vmatpush1.msra.mxu0 0.0
    %6044 = vmatprep.subr.mxu0 0.0
    %6045 = vmatpush1.msra.mxu0 0.0
    %6046 = vmatprep.subr.mxu0 0.0
    %6047 = vmatpush1.msra.mxu0 0.0
    %6048 = vmatprep.subr.mxu0 0.0
    %6049 = vmatpush1.msra.mxu0 0.0
    %6050 = vmatprep.subr.mxu0 0.0
    %6051 = vmatpush1.msra.mxu0 0.0
    %6052 = vmatprep.subr.mxu0 0.0
    %6053 = vmatpush1.msra.mxu0 0.0
    %6054 = vmatprep.mubr.f32.mxu0 0.0
    %6055 = vmatmul.mubr.f32.gmra.mrb[0].mxu0 %v5985
    %v6056 = vpop.f32.mrb[0].mxu0
    %v6057 = vadd.f32 0.0, %v6056
    %v6058 = vpop.f32.mrb[0].mxu0
    %6059 = vmatprep.mubr.f32.mxu0 0.0
    %6060 = vmatmul.mubr.f32.gmra.mrb[0].mxu0 %v5988
    %v6061 = vpop.f32.mrb[0].mxu0
    %v6062 = vadd.f32 0.0, %v6061
    %v6063 = vpop.f32.mrb[0].mxu0
    %6064 = vdwg.mxu0
    %vm6065 = vcmp.eq.f32.partialorder %v5593, 0.0
    %6068 = vset.pattern.permute.xlu0 0
    %6069 = vperm.xlu0 %6068, %v6057
    %v6070 = vpop.permute.xlu0 %6069
    %6071 = vset.pattern.permute.xlu0 0
    %6072 = vperm.xlu0 %6071, %v6062
    %v6073 = vpop.permute.xlu0 %6072
    %v6074 = vlaneseq
    %v6075 = vshrl.u32 %v6074, 7
    %v6076 = vsub.s32 %v228, %v6075
    %v6077 = vrot.slane %v6070, %v6076
    %v6078 = vlaneseq
    %v6079 = vshrl.u32 %v6078, 7
    %v6080 = vsub.s32 %v228, %v6079
    %v6081 = vrot.slane %v6073, %v6080
    %v6082 = vsel %vm549, %v6081, %v6077
    %v6084 = vsel %vm6065, -1e+30, %v6082
    %v6085 = vsel %vm552, %v6084, -inf
    %6086 = vmax.xlane.f32.xlu0 %v6085
    %v6087 = vpop.xlane.xlu0 %6086
    %v6088 = vsub.f32 %v6084, %v6087
    %v6089 = vmul.f32 %v6088, 1.442695
    %v6090 = vpow.pop %v6089
    %v6091 = vsel %vm552, %v6090, 0.0
    %6092 = vadd.xlane.f32.xlu0 %v6091
    %v6093 = vpop.xlane.xlu0 %6092
    %v6094 = vrcp.pop %v6093
    %v6095 = vmul.f32 %v6090, %v6094
    %v6098 = vunpack.c.l.s4 1966171168
    %v6099 = vunpack.c.0.s8 %v6098
    %v6100 = vlaneseq
    %v6101 = vshrl.u32 %v6100, 7
    %v6102 = vsub.s32 %v6099, %v6101
    %v6103 = vrot.slane %v6095, %v6102
    %v6104 = vcombine.high %v6103, %v6103
    %v6106 = vunpack.c.l.s4 1966171168
    %v6107 = vunpack.c.0.s8 %v6106
    %v6108 = vlaneseq
    %v6109 = vshrl.u32 %v6108, 7
    %v6110 = vsub.s32 %v6107, %v6109
    %v6111 = vrot.slane %v6103, %v6110
    %v6113 = vunpack.c.l.s4 1966171168
    %v6114 = vunpack.c.0.s8 %v6113
    %v6115 = vlaneseq
    %v6116 = vshrl.u32 %v6115, 7
    %v6117 = vsub.s32 %v6114, %v6116
    %v6118 = vrot.slane %v6104, %v6117
    %v6121 = vsel %vm617, %v6111, 0
    %6123 = vmatprep.subr.mxu0 0.0
    %6124 = vmatpush1.msra.mxu0 %v225
    %6125 = vmatprep.subr.mxu0 0.0
    %6126 = vmatpush1.msra.mxu0 0.0
    %6127 = vmatprep.subr.mxu0 0.0
    %6128 = vmatpush1.msra.mxu0 0.0
    %6129 = vmatprep.subr.mxu0 0.0
    %6130 = vmatpush1.msra.mxu0 0.0
    %6131 = vmatprep.subr.mxu0 0.0
    %6132 = vmatpush1.msra.mxu0 0.0
    %6133 = vmatprep.subr.mxu0 0.0
    %6134 = vmatpush1.msra.mxu0 0.0
    %6135 = vmatprep.subr.mxu0 0.0
    %6136 = vmatpush1.msra.mxu0 0.0
    %6137 = vmatprep.subr.mxu0 0.0
    %6138 = vmatpush1.msra.mxu0 0.0
    %6139 = vmatprep.subr.mxu0 0.0
    %6140 = vmatpush1.msra.mxu0 0.0
    %6141 = vmatprep.subr.mxu0 0.0
    %6142 = vmatpush1.msra.mxu0 0.0
    %6143 = vmatprep.subr.mxu0 0.0
    %6144 = vmatpush1.msra.mxu0 0.0
    %6145 = vmatprep.subr.mxu0 0.0
    %6146 = vmatpush1.msra.mxu0 0.0
    %6147 = vmatprep.subr.mxu0 0.0
    %6148 = vmatpush1.msra.mxu0 0.0
    %6149 = vmatprep.subr.mxu0 0.0
    %6150 = vmatpush1.msra.mxu0 0.0
    %6151 = vmatprep.subr.mxu0 0.0
    %6152 = vmatpush1.msra.mxu0 0.0
    %6153 = vmatprep.subr.mxu0 0.0
    %6154 = vmatpush1.msra.mxu0 0.0
    %6155 = vmatprep.subr.mxu0 0.0
    %6156 = vmatpush1.msra.mxu0 0.0
    %6157 = vmatprep.subr.mxu0 0.0
    %6158 = vmatpush1.msra.mxu0 0.0
    %6159 = vmatprep.subr.mxu0 0.0
    %6160 = vmatpush1.msra.mxu0 0.0
    %6161 = vmatprep.subr.mxu0 0.0
    %6162 = vmatpush1.msra.mxu0 0.0
    %6163 = vmatprep.subr.mxu0 0.0
    %6164 = vmatpush1.msra.mxu0 0.0
    %6165 = vmatprep.subr.mxu0 0.0
    %6166 = vmatpush1.msra.mxu0 0.0
    %6167 = vmatprep.subr.mxu0 0.0
    %6168 = vmatpush1.msra.mxu0 0.0
    %6169 = vmatprep.subr.mxu0 0.0
    %6170 = vmatpush1.msra.mxu0 0.0
    %6171 = vmatprep.subr.mxu0 0.0
    %6172 = vmatpush1.msra.mxu0 0.0
    %6173 = vmatprep.subr.mxu0 0.0
    %6174 = vmatpush1.msra.mxu0 0.0
    %6175 = vmatprep.subr.mxu0 0.0
    %6176 = vmatpush1.msra.mxu0 0.0
    %6177 = vmatprep.subr.mxu0 0.0
    %6178 = vmatpush1.msra.mxu0 0.0
    %6179 = vmatprep.subr.mxu0 0.0
    %6180 = vmatpush1.msra.mxu0 0.0
    %6181 = vmatprep.subr.mxu0 0.0
    %6182 = vmatpush1.msra.mxu0 0.0
    %6183 = vmatprep.subr.mxu0 0.0
    %6184 = vmatpush1.msra.mxu0 0.0
    %6185 = vmatprep.subr.mxu0 0.0
    %6186 = vmatpush1.msra.mxu0 0.0
    %6187 = vmatprep.mubr.f32.mxu0 0.0
    %6188 = vmatmul.mubr.f32.gmra.mrb[0].mxu0 %v6121
    %v6189 = vpop.f32.mrb[0].mxu0
    %v6190 = vadd.f32 0.0, %v6189
    %v6191 = vpop.f32.mrb[0].mxu0
    %6192 = vdwg.mxu0
    %v6193 = vsel %vm617, %v6118, 0
    %6195 = vmatprep.subr.mxu0 0.0
    %6196 = vmatpush1.msra.mxu0 %v226
    %6197 = vmatprep.subr.mxu0 0.0
    %6198 = vmatpush1.msra.mxu0 0.0
    %6199 = vmatprep.subr.mxu0 0.0
    %6200 = vmatpush1.msra.mxu0 0.0
    %6201 = vmatprep.subr.mxu0 0.0
    %6202 = vmatpush1.msra.mxu0 0.0
    %6203 = vmatprep.subr.mxu0 0.0
    %6204 = vmatpush1.msra.mxu0 0.0
    %6205 = vmatprep.subr.mxu0 0.0
    %6206 = vmatpush1.msra.mxu0 0.0
    %6207 = vmatprep.subr.mxu0 0.0
    %6208 = vmatpush1.msra.mxu0 0.0
    %6209 = vmatprep.subr.mxu0 0.0
    %6210 = vmatpush1.msra.mxu0 0.0
    %6211 = vmatprep.subr.mxu0 0.0
    %6212 = vmatpush1.msra.mxu0 0.0
    %6213 = vmatprep.subr.mxu0 0.0
    %6214 = vmatpush1.msra.mxu0 0.0
    %6215 = vmatprep.subr.mxu0 0.0
    %6216 = vmatpush1.msra.mxu0 0.0
    %6217 = vmatprep.subr.mxu0 0.0
    %6218 = vmatpush1.msra.mxu0 0.0
    %6219 = vmatprep.subr.mxu0 0.0
    %6220 = vmatpush1.msra.mxu0 0.0
    %6221 = vmatprep.subr.mxu0 0.0
    %6222 = vmatpush1.msra.mxu0 0.0
    %6223 = vmatprep.subr.mxu0 0.0
    %6224 = vmatpush1.msra.mxu0 0.0
    %6225 = vmatprep.subr.mxu0 0.0
    %6226 = vmatpush1.msra.mxu0 0.0
    %6227 = vmatprep.subr.mxu0 0.0
    %6228 = vmatpush1.msra.mxu0 0.0
    %6229 = vmatprep.subr.mxu0 0.0
    %6230 = vmatpush1.msra.mxu0 0.0
    %6231 = vmatprep.subr.mxu0 0.0
    %6232 = vmatpush1.msra.mxu0 0.0
    %6233 = vmatprep.subr.mxu0 0.0
    %6234 = vmatpush1.msra.mxu0 0.0
    %6235 = vmatprep.subr.mxu0 0.0
    %6236 = vmatpush1.msra.mxu0 0.0
    %6237 = vmatprep.subr.mxu0 0.0
    %6238 = vmatpush1.msra.mxu0 0.0
    %6239 = vmatprep.subr.mxu0 0.0
    %6240 = vmatpush1.msra.mxu0 0.0
    %6241 = vmatprep.subr.mxu0 0.0
    %6242 = vmatpush1.msra.mxu0 0.0
    %6243 = vmatprep.subr.mxu0 0.0
    %6244 = vmatpush1.msra.mxu0 0.0
    %6245 = vmatprep.subr.mxu0 0.0
    %6246 = vmatpush1.msra.mxu0 0.0
    %6247 = vmatprep.subr.mxu0 0.0
    %6248 = vmatpush1.msra.mxu0 0.0
    %6249 = vmatprep.subr.mxu0 0.0
    %6250 = vmatpush1.msra.mxu0 0.0
    %6251 = vmatprep.subr.mxu0 0.0
    %6252 = vmatpush1.msra.mxu0 0.0
    %6253 = vmatprep.subr.mxu0 0.0
    %6254 = vmatpush1.msra.mxu0 0.0
    %6255 = vmatprep.subr.mxu0 0.0
    %6256 = vmatpush1.msra.mxu0 0.0
    %6257 = vmatprep.subr.mxu0 0.0
    %6258 = vmatpush1.msra.mxu0 0.0
    %6259 = vmatprep.mubr.f32.mxu0 0.0
    %6260 = vmatmul.mubr.f32.gmra.mrb[0].mxu0 %v6193
    %v6261 = vpop.f32.mrb[0].mxu0
    %v6262 = vadd.f32 0.0, %v6261
    %v6263 = vpop.f32.mrb[0].mxu0
    %6264 = vdwg.mxu0
    %v6267 = vrot.slane %v6262, 7
    %v6268 = vsel %vm549, %v6267, %v6190
    %6270 = vrot.lane.b32.xlu0 %v5871, 64
    %v6271 = vpop.permute.xlu0 %6270
    %v6273 = vsel %vm136, %v6268, %v6271
    %v6275 = vsel %vm779, %v6273, 0
    %6277 = vmatprep.subr.mxu0 0.0
    %6278 = vmatpush1.msra.mxu0 %v93
    %6279 = vmatprep.subr.mxu0 0.0
    %6280 = vmatpush1.msra.mxu0 %v94
    %6281 = vmatprep.subr.mxu0 0.0
    %6282 = vmatpush1.msra.mxu0 %v95
    %6283 = vmatprep.subr.mxu0 0.0
    %6284 = vmatpush1.msra.mxu0 %v96
    %6285 = vmatprep.subr.mxu0 0.0
    %6286 = vmatpush1.msra.mxu0 %v97
    %6287 = vmatprep.subr.mxu0 0.0
    %6288 = vmatpush1.msra.mxu0 %v98
    %6289 = vmatprep.subr.mxu0 0.0
    %6290 = vmatpush1.msra.mxu0 %v99
    %6291 = vmatprep.subr.mxu0 0.0
    %6292 = vmatpush1.msra.mxu0 %v100
    %6293 = vmatprep.subr.mxu0 0.0
    %6294 = vmatpush1.msra.mxu0 0.0
    %6295 = vmatprep.subr.mxu0 0.0
    %6296 = vmatpush1.msra.mxu0 0.0
    %6297 = vmatprep.subr.mxu0 0.0
    %6298 = vmatpush1.msra.mxu0 0.0
    %6299 = vmatprep.subr.mxu0 0.0
    %6300 = vmatpush1.msra.mxu0 0.0
    %6301 = vmatprep.subr.mxu0 0.0
    %6302 = vmatpush1.msra.mxu0 0.0
    %6303 = vmatprep.subr.mxu0 0.0
    %6304 = vmatpush1.msra.mxu0 0.0
    %6305 = vmatprep.subr.mxu0 0.0
    %6306 = vmatpush1.msra.mxu0 0.0
    %6307 = vmatprep.subr.mxu0 0.0
    %6308 = vmatpush1.msra.mxu0 0.0
    %6309 = vmatprep.subr.mxu0 0.0
    %6310 = vmatpush1.msra.mxu0 0.0
    %6311 = vmatprep.subr.mxu0 0.0
    %6312 = vmatpush1.msra.mxu0 0.0
    %6313 = vmatprep.subr.mxu0 0.0
    %6314 = vmatpush1.msra.mxu0 0.0
    %6315 = vmatprep.subr.mxu0 0.0
    %6316 = vmatpush1.msra.mxu0 0.0
    %6317 = vmatprep.subr.mxu0 0.0
    %6318 = vmatpush1.msra.mxu0 0.0
    %6319 = vmatprep.subr.mxu0 0.0
    %6320 = vmatpush1.msra.mxu0 0.0
    %6321 = vmatprep.subr.mxu0 0.0
    %6322 = vmatpush1.msra.mxu0 0.0
    %6323 = vmatprep.subr.mxu0 0.0
    %6324 = vmatpush1.msra.mxu0 0.0
    %6325 = vmatprep.subr.mxu0 0.0
    %6326 = vmatpush1.msra.mxu0 0.0
    %6327 = vmatprep.subr.mxu0 0.0
    %6328 = vmatpush1.msra.mxu0 0.0
    %6329 = vmatprep.subr.mxu0 0.0
    %6330 = vmatpush1.msra.mxu0 0.0
    %6331 = vmatprep.subr.mxu0 0.0
    %6332 = vmatpush1.msra.mxu0 0.0
    %6333 = vmatprep.subr.mxu0 0.0
    %6334 = vmatpush1.msra.mxu0 0.0
    %6335 = vmatprep.subr.mxu0 0.0
    %6336 = vmatpush1.msra.mxu0 0.0
    %6337 = vmatprep.subr.mxu0 0.0
    %6338 = vmatpush1.msra.mxu0 0.0
    %6339 = vmatprep.subr.mxu0 0.0
    %6340 = vmatpush1.msra.mxu0 0.0
    %6341 = vmatprep.mubr.f32.mxu0 0.0
    %6342 = vmatmul.mubr.f32.gmra.mrb[0].mxu0 %v6275
    %v6343 = vpop.f32.mrb[0].mxu0
    %v6344 = vadd.f32 %v128, %v6343
    %v6345 = vpop.f32.mrb[0].mxu0
    %6346 = vdwg.mxu0
    %v6347 = vtanh.pop %v6344
    %v6348 = vmul.f32 %v6095, %v5593
    %v6349 = vsel %vm552, %v6348, -inf
    %6350 = vmax.xlane.f32.xlu0 %v6349
    %v6351 = vpop.xlane.xlu0 %6350
    %vm6352 = vcmp.eq.f32.partialorder %v6348, %v6351
    %v6353 = vsel %vm6352, %v228, 8
    %v6354 = vsel %vm552, %v6353, 2147483647
    %v6355 = vand.u32 %v6354, 65535
    %v6356 = vshra.s32 %v6354, 16
    %v6357 = vcvt.s32.f32 %v6355
    %v6358 = vcvt.s32.f32 %v6356
    %6359 = vmin.xlane.f32.xlu0 %v6358
    %v6360 = vpop.xlane.xlu0 %6359
    %vm6361 = vcmp.eq.f32.partialorder %v6358, %v6360
    %v6362 = vsel %vm6361, %v6357, inf
    %6363 = vmin.xlane.f32.xlu0 %v6362
    %v6364 = vpop.xlane.xlu0 %6363
    %v6365 = vcvt.f32.s32 %v6364
    %v6366 = vcvt.f32.s32 %v6360
    %v6367 = vshll.u32 %v6366, 16
    %v6368 = vadd.s32 %v6367, %v6365
    %6369 = vst.msk [vmem:[#allocation7 + $0x7] sm:$0x1] %vm1080, %v6111
    %6370 = vst.msk [vmem:[#allocation7 + $0xf] sm:$0x1] %vm1080, %v6118
    %vm6371 = vcmask 58424
    %6372 = vst.msk [vmem:[#allocation8] sm:$0x3] %vm6371, %v6368
    %vm6373 = vcmask 254976
    %6374 = vst.msk [vmem:[#allocation10] sm:$0x3] %vm6373, %v6347
    %6376 = vrot.lane.b32.xlu0 %v5865, 96
    %v6377 = vpop.permute.xlu0 %6376
    %6379 = vst.msk [vmem:[#allocation11] sm:$0x3] %vm6373, %v6377
    // Predicated region
    $region66: #{tpu_custom_call.1} parent=1 // pred_check
      _
    $region67: #{tpu_custom_call.1} parent=1 // pred_check_branch
      %6381 = sbr.rel (0) target = $region69
    $region68: #{tpu_custom_call.1} parent=1 // pred_region
      %s6383 = ssub.s32 256, 256
      %6384 = vsyncadd [#allocation4], %s6383
      %s6385 = sshll.u32 [#allocation7], 4
      %s6386 = int_to_ptr.vmem [resolvable:$true] %s6385
      %6391 = dma.vmem_to_hbm [thread:$0]  %s6386, 256, %s14, [#allocation4], 128, 128, 8
    $region69: #{tpu_custom_call.1} parent=1 // pred_fallthru
      _
    // Predicated region
    $region70: #{tpu_custom_call.1} parent=1 // pred_check
      _
    $region71: #{tpu_custom_call.1} parent=1 // pred_check_branch
      %6393 = sbr.rel (0) target = $region73
    $region72: #{tpu_custom_call.1} parent=1 // pred_region
      %s6395 = ssub.s32 32, 32
      %6396 = vsyncadd [#allocation9], %s6395
      %s6398 = sshll.u32 [#allocation8], 4
      %s6399 = int_to_ptr.vmem [resolvable:$true] %s6398
      %6401 = dma.vmem_to_hbm [thread:$0]  %s6399, 32, %s15, [#allocation9]
    $region73: #{tpu_custom_call.1} parent=1 // pred_fallthru
      _
    // Predicated region
    $region74: #{tpu_custom_call.1} parent=1 // pred_check
      _
    $region75: #{tpu_custom_call.1} parent=1 // pred_check_branch
      %6403 = sbr.rel (0) target = $region77
    $region76: #{tpu_custom_call.1} parent=1 // pred_region
      %s6405 = ssub.s32 32, 32
      %6406 = vsyncadd [#allocation9], %s6405
      %s6408 = sshll.u32 [#allocation10], 4
      %s6409 = int_to_ptr.vmem [resolvable:$true] %s6408
      %6411 = dma.vmem_to_hbm [thread:$0]  %s6409, 32, %s16, [#allocation9]
    $region77: #{tpu_custom_call.1} parent=1 // pred_fallthru
      _
    // Predicated region
    $region78: #{tpu_custom_call.1} parent=1 // pred_check
      _
    $region79: #{tpu_custom_call.1} parent=1 // pred_check_branch
      %6413 = sbr.rel (0) target = $region81
    $region80: #{tpu_custom_call.1} parent=1 // pred_region
      %s6415 = ssub.s32 32, 32
      %6416 = vsyncadd [#allocation12], %s6415
      %s6418 = sshll.u32 [#allocation11], 4
      %s6419 = int_to_ptr.vmem [resolvable:$true] %s6418
      %6421 = dma.vmem_to_hbm [thread:$0]  %s6419, 32, %s17, [#allocation12]
    $region81: #{tpu_custom_call.1} parent=1 // pred_fallthru
      _
    // Predicated region
    $region82: #{tpu_custom_call.1} parent=1 // pred_check
      _
    $region83: #{tpu_custom_call.1} parent=1 // pred_check_branch
      %6423 = sbr.rel (0) target = $region85
    $region84: #{tpu_custom_call.1} parent=1 // pred_region
      %6424 = dma.done [#allocation4], 256
    $region85: #{tpu_custom_call.1} parent=1 // pred_fallthru
      _
    // Predicated region
    $region86: #{tpu_custom_call.1} parent=1 // pred_check
      _
    $region87: #{tpu_custom_call.1} parent=1 // pred_check_branch
      %6426 = sbr.rel (0) target = $region89
    $region88: #{tpu_custom_call.1} parent=1 // pred_region
      %6427 = dma.done [#allocation9], 32
    $region89: #{tpu_custom_call.1} parent=1 // pred_fallthru
      _
    // Predicated region
    $region90: #{tpu_custom_call.1} parent=1 // pred_check
      _
    $region91: #{tpu_custom_call.1} parent=1 // pred_check_branch
      %6429 = sbr.rel (0) target = $region93
    $region92: #{tpu_custom_call.1} parent=1 // pred_region
      %6430 = dma.done [#allocation9], 32
    $region93: #{tpu_custom_call.1} parent=1 // pred_fallthru
      _
    // Predicated region
    $region94: #{tpu_custom_call.1} parent=1 // pred_check
      _
    $region95: #{tpu_custom_call.1} parent=1 // pred_check_branch
      %6432 = sbr.rel (0) target = $region97
    $region96: #{tpu_custom_call.1} parent=1 // pred_region
      %6433 = dma.done [#allocation12], 32
    $region97: #{tpu_custom_call.1} parent=1 // pred_fallthru
      _
    %6434 = vsyncpa [#allocation3], 1
    %6435 = vsyncpa [#allocation6], 1
    %6436 = vsyncpa [#allocation4], 1
    %6437 = vsyncpa [#allocation9], 1
    %6438 = vsyncpa [#allocation12], 1

</llo_original>
